<compile_context>
chip_gen: v7x
topology: tpu7x:2x2x1
jax: 0.10.0
libtpu: 0.0.40
codegen_flags: <defaults>
</compile_context>

<pallas_src>
import functools

import numpy as np
import jax
import jax.numpy as jnp
from jax.experimental import pallas as pl
from jax.experimental.pallas import tpu as pltpu

LRELU_SLOPE = 0.1
VMEM_LIMIT = 32 * 1024 * 1024  # live scratch stays ~2-5 MiB; safe on v5e/v6e/v7x


# ----------------------------------------------------------------------------
# Banded-weight preparation (tiny XLA einsums, fused into the same jit).
#
# For a lane-dense activation row x_row[h] (length Win*Cin, (w, ci) flattened)
# and one vertical tap kh of a 3x3 conv, the horizontal taps + 'same' padding
# in W can be written as a single matmul with a block-banded matrix:
#   (x_row[h + kh - 1] @ band(W[kh]))[wo*Cout + co]
#       = sum_{kw, ci} W[kh, kw, ci, co] * x[h + kh - 1, s*wo + kw - 1, ci]
# ----------------------------------------------------------------------------
def _band(w_tap, win, wout, stride):
    """w_tap: (3, Cin, Cout) = (kw, ci, co). Returns (win*Cin, wout*Cout)."""
    cin, cout = w_tap.shape[1], w_tap.shape[2]
    sel = np.zeros((3, win, wout), np.float32)
    for kw in range(3):
        for wo in range(wout):
            wi = stride * wo + kw - 1
            if 0 <= wi < win:           # out-of-range taps == zero padding
                sel[kw, wi, wo] = 1.0
    bw = jnp.einsum("kio,kxy->xiyo", w_tap.astype(jnp.float32), jnp.asarray(sel))
    return bw.reshape(win * cin, wout * cout)


def _tiled_bias(b, wout):
    """(Cout,) bias -> (1, wout*Cout) lane-dense bias row (f32)."""
    return jnp.tile(b.astype(jnp.float32).reshape(1, -1), (1, wout))


def _stem_weights(w0_hwio, b0, w1_hwio, b1, w0):
    """Banded weights for the two fused stride-2 convs.

    conv0 consumes the quad-row input layout X4[r] = input rows (4r..4r+3) and
    emits the pair-row layout H1P[r] = h1 rows (2r, 2r+1):
        H1P[r] = shift_down(X4)[r] @ w_prev0 + X4[r] @ w_cur0 + bias0
    conv1 consumes H1P and emits single output rows:
        out[r] = shift_down(H1P)[r] @ w_prev1 + H1P[r] @ w_cur1 + bias1
    """
    cin, c = w0_hwio.shape[2], w0_hwio.shape[3]
    w1sp, w2sp = w0 // 2, w0 // 4
    l_in, l_mid, l_out = w0 * cin, w1sp * c, w2sp * c

    band0 = [_band(w0_hwio[kh], w0, w1sp, 2) for kh in range(3)]
    band1 = [_band(w1_hwio[kh], w1sp, w2sp, 2) for kh in range(3)]

    z_in = jnp.zeros((l_in, l_mid), jnp.float32)
    zero_pair = jnp.concatenate([z_in, z_in], axis=1)
    # previous quad-row: only original row 4r-1 (position 3) feeds the even
    # output row (kh = 0).
    w_prev0 = jnp.concatenate(
        [zero_pair, zero_pair, zero_pair,
         jnp.concatenate([band0[0], z_in], axis=1)], axis=0)
    # current quad-row positions 0..3 = original rows 4r .. 4r+3.
    w_cur0 = jnp.concatenate(
        [jnp.concatenate([band0[1], z_in], axis=1),       # 4r   -> kh=1 (even)
         jnp.concatenate([band0[2], band0[0]], axis=1),   # 4r+1 -> kh=2 even, kh=0 odd
         jnp.concatenate([z_in, band0[1]], axis=1),       # 4r+2 -> kh=1 (odd)
         jnp.concatenate([z_in, band0[2]], axis=1)], axis=0)  # 4r+3 -> kh=2 (odd)
    bias0 = _tiled_bias(b0, 2 * w1sp)

    z_mid = jnp.zeros((l_mid, l_out), jnp.float32)
    w_prev1 = jnp.concatenate([z_mid, band1[0]], axis=0)          # odd of H1P[r-1]
    w_cur1 = jnp.concatenate([band1[1], band1[2]], axis=0)        # even/odd of H1P[r]
    bias1 = _tiled_bias(b1, w2sp)

    bf = lambda a: a.astype(jnp.bfloat16)
    return bf(w_prev0), bf(w_cur0), bias0, bf(w_prev1), bf(w_cur1), bias1


# ----------------------------------------------------------------------------
# In-kernel helpers
# ----------------------------------------------------------------------------
def _shift_down(x):
    """out[i] = x[i - 1], out[0] = 0  (vertical 'same' padding from above)."""
    return jnp.concatenate([jnp.zeros_like(x[:1]), x[:-1]], axis=0)


def _shift_up(x):
    """out[i] = x[i + 1], out[-1] = 0 (vertical 'same' padding from below)."""
    return jnp.concatenate([x[1:], jnp.zeros_like(x[:1])], axis=0)


def _conv3x3_same_rows(x, bw_ref, b_row, img_h):
    """Stride-1 'same' 3x3 conv on lane-dense rows.

    x     : (rows, W*C) bf16, images stacked along rows (img_h rows each)
    bw_ref: (3, W*C, W*C) banded weights, one per vertical tap
    b_row : (1, W*C) f32
    """
    m = x.shape[0]
    x_up = _shift_down(x)        # x[h-1]
    x_dn = _shift_up(x)          # x[h+1]
    if m > img_h:
        # Several images stacked along rows: zero the rows that crossed an
        # image boundary (they are the vertical padding rows).
        row = jax.lax.broadcasted_iota(jnp.int32, (m, 1), 0) % img_h
        zero = jnp.zeros_like(x)
        x_up = jnp.where(row == 0, zero, x_up)
        x_dn = jnp.where(row == img_h - 1, zero, x_dn)
    acc = jnp.dot(x_up, bw_ref[0], preferred_element_type=jnp.float32)
    acc = acc + jnp.dot(x, bw_ref[1], preferred_element_type=jnp.float32)
    acc = acc + jnp.dot(x_dn, bw_ref[2], preferred_element_type=jnp.float32)
    return acc + b_row


# ----------------------------------------------------------------------------
# Kernel bodies
# ----------------------------------------------------------------------------
def stem_kernel(x_ref, w_prev0_ref, w_cur0_ref, b0_ref,
                w_prev1_ref, w_cur1_ref, b1_ref, o_ref):
    """Both stride-2 convs + LeakyReLU for one image, entirely in VMEM.

    x_ref: (H0//4, 4*W0*Cin) quad-row layout.  Vertical padding is a one-row
    shift with zero fill; horizontal padding lives in the banded weights.
    """
    x = x_ref[...]
    h = (jnp.dot(_shift_down(x), w_prev0_ref[...],
                 preferred_element_type=jnp.float32)
         + jnp.dot(x, w_cur0_ref[...], preferred_element_type=jnp.float32)
         + b0_ref[...])
    h = jnp.where(h >= 0.0, h, LRELU_SLOPE * h)          # LeakyReLU(0.1)
    h = h.astype(x.dtype)                                # (H2, 2*W1*C) pair rows
    y = (jnp.dot(_shift_down(h), w_prev1_ref[...],
                 preferred_element_type=jnp.float32)
         + jnp.dot(h, w_cur1_ref[...], preferred_element_type=jnp.float32)
         + b1_ref[...])
    y = jnp.where(y >= 0.0, y, LRELU_SLOPE * y)
    o_ref[...] = y.astype(o_ref.dtype)                   # (H2, W2*C)


def res_chain_kernel(x_ref, bw1_ref, b1_ref, bw2_ref, b2_ref, o_ref, *, img_h):
    """One residual block (Conv-ReLU-Conv + identity) of the fused chain.

    Grid = (row_groups, num_block).  The output block is the running
    activation, resident in VMEM across the inner 'arbitrary' block axis, so
    the whole chain makes a single HBM round trip.
    """
    j = pl.program_id(1)

    @pl.when(j == 0)
    def _():
        o_ref[...] = x_ref[...]          # chain input only consumed at block 0

    cur = o_ref[...]                                              # (rows, W*C)
    h = _conv3x3_same_rows(cur, bw1_ref, b1_ref[...], img_h)      # conv1
    h = jnp.maximum(h, 0.0)                                       # ReLU
    y = _conv3x3_same_rows(h.astype(cur.dtype), bw2_ref, b2_ref[...], img_h)
    o_ref[...] = (cur.astype(jnp.float32) + y).astype(o_ref.dtype)  # +identity


# ----------------------------------------------------------------------------
# Pallas wrappers
# ----------------------------------------------------------------------------
def stem_forward(x_quad, w_prev0, w_cur0, bias0, w_prev1, w_cur1, bias1):
    """Fused Conv(s2)+LReLU+Conv(s2)+LReLU.  x_quad: (N, H0//4, 4*W0*Cin)."""
    n, hq, lq = x_quad.shape
    l_out = w_prev1.shape[1]
    return pl.pallas_call(
        stem_kernel,
        out_shape=jax.ShapeDtypeStruct((n, hq, l_out), jnp.bfloat16),
        grid=(n,),
        in_specs=[
            pl.BlockSpec((None, hq, lq), lambda i: (i, 0, 0)),
            pl.BlockSpec(w_prev0.shape, lambda i: (0, 0)),
            pl.BlockSpec(w_cur0.shape, lambda i: (0, 0)),
            pl.BlockSpec(bias0.shape, lambda i: (0, 0)),
            pl.BlockSpec(w_prev1.shape, lambda i: (0, 0)),
            pl.BlockSpec(w_cur1.shape, lambda i: (0, 0)),
            pl.BlockSpec(bias1.shape, lambda i: (0, 0)),
        ],
        out_specs=pl.BlockSpec((None, hq, l_out), lambda i: (i, 0, 0)),
        compiler_params=pltpu.CompilerParams(
            dimension_semantics=("parallel",),
            vmem_limit_bytes=VMEM_LIMIT),
    )(x_quad, w_prev0, w_cur0, bias0, w_prev1, w_cur1, bias1)


def res_blocks_chain(x_rows, bw1s, b1s, bw2s, b2s, *, img_h, num_groups=1):
    """All residual blocks in one pallas_call.

    x_rows: (N*H, W*C) bf16, images stacked along rows (lane-dense layout).
    bw*s  : (nb, 3, W*C, W*C) bf16 banded weights; b*s: (nb, 1, W*C) f32.
    num_groups > 1 splits the rows (whole images) across a 'parallel' axis for
    v7x megacore; default 1 keeps weight DMA minimal (once per block).
    """
    m, l = x_rows.shape
    nb = bw1s.shape[0]
    assert m % num_groups == 0 and (m // num_groups) % img_h == 0
    mg = m // num_groups

    kernel = functools.partial(res_chain_kernel, img_h=img_h)
    return pl.pallas_call(
        kernel,
        out_shape=jax.ShapeDtypeStruct((m, l), x_rows.dtype),
        grid=(num_groups, nb),
        in_specs=[
            pl.BlockSpec((mg, l), lambda g, j: (g, 0)),
            pl.BlockSpec((None, 3, l, l), lambda g, j: (j, 0, 0, 0)),
            pl.BlockSpec((None, 1, l), lambda g, j: (j, 0, 0)),
            pl.BlockSpec((None, 3, l, l), lambda g, j: (j, 0, 0, 0)),
            pl.BlockSpec((None, 1, l), lambda g, j: (j, 0, 0)),
        ],
        out_specs=pl.BlockSpec((mg, l), lambda g, j: (g, 0)),
        compiler_params=pltpu.CompilerParams(
            dimension_semantics=("parallel", "arbitrary"),
            vmem_limit_bytes=VMEM_LIMIT),
    )(x_rows, bw1s, b1s, bw2s, b2s)


# ----------------------------------------------------------------------------
# Parameters (deterministic synthetic init; weights stored HWIO).
# NOTE: real PyTorch weights are OIHW - transpose to HWIO before loading.
# ----------------------------------------------------------------------------
def init_params(key, num_in_ch, num_out_ch, num_block):
    def conv_init(k, cin, cout):
        kw_, kb_ = jax.random.split(k)
        w = jax.random.normal(kw_, (3, 3, cin, cout), jnp.float32) / np.sqrt(9 * cin)
        b = jax.random.normal(kb_, (cout,), jnp.float32) * 0.01
        return w, b

    keys = jax.random.split(key, 2 + 2 * num_block)
    w0, b0 = conv_init(keys[0], num_in_ch, num_out_ch)
    w1, b1 = conv_init(keys[1], num_out_ch, num_out_ch)
    blocks = [(conv_init(keys[2 + 2 * i], num_out_ch, num_out_ch),
               conv_init(keys[3 + 2 * i], num_out_ch, num_out_ch))
              for i in range(num_block)]
    return {
        "w0": w0, "b0": b0, "w1": w1, "b1": b1,
        "res_w1": jnp.stack([a[0] for a, _ in blocks]),
        "res_b1": jnp.stack([a[1] for a, _ in blocks]),
        "res_w2": jnp.stack([c[0] for _, c in blocks]),
        "res_b2": jnp.stack([c[1] for _, c in blocks]),
    }


# ----------------------------------------------------------------------------
# Full forward pass (NCHW in / NCHW out, like the PyTorch module)
# ----------------------------------------------------------------------------
def conv_residual_blocks_forward(fea_nchw, params):
    n, cin, h0, w0 = fea_nchw.shape
    assert h0 % 4 == 0 and w0 % 4 == 0, "spatial dims must be divisible by 4"
    c = params["b0"].shape[0]
    w2sp, h2 = w0 // 4, h0 // 4
    l2 = w2sp * c

    # NCHW -> NHWC -> lane-dense quad-row layout (the reshape is a free view).
    x = jnp.transpose(fea_nchw, (0, 2, 3, 1)).astype(jnp.bfloat16)
    x_quad = x.reshape(n, h0 // 4, 4 * w0 * cin)

    # Banded-weight prep (tiny; runs inside the same jit).
    stem_w = _stem_weights(params["w0"], params["b0"], params["w1"], params["b1"], w0)
    nb = params["res_w1"].shape[0]
    rbw1 = jnp.stack([jnp.stack([_band(params["res_w1"][i, kh], w2sp, w2sp, 1)
                                 for kh in range(3)])
                      for i in range(nb)]).astype(jnp.bfloat16)
    rbw2 = jnp.stack([jnp.stack([_band(params["res_w2"][i, kh], w2sp, w2sp, 1)
                                 for kh in range(3)])
                      for i in range(nb)]).astype(jnp.bfloat16)
    rb1 = jnp.stack([_tiled_bias(params["res_b1"][i], w2sp) for i in range(nb)])
    rb2 = jnp.stack([_tiled_bias(params["res_b2"][i], w2sp) for i in range(nb)])

    # Stem: both stride-2 convs + LeakyReLU in one pallas_call.
    y = stem_forward(x_quad, *stem_w)                       # (N, H2, W2*C) bf16

    # Residual chain: batch folded into matmul rows, all blocks in one call.
    y = res_blocks_chain(y.reshape(n * h2, l2), rbw1, rb1, rbw2, rb2, img_h=h2)

    y = y.reshape(n, h2, w2sp, c)
    return jnp.transpose(y, (0, 3, 1, 2)).astype(jnp.float32)  # NHWC -> NCHW


# ----------------------------------------------------------------------------
# Pure-XLA reference (f32) for a correctness check.
# ----------------------------------------------------------------------------
def _ref_conv(x, w, b, stride):
    dn = jax.lax.conv_dimension_numbers(x.shape, w.shape, ("NHWC", "HWIO", "NHWC"))
    y = jax.lax.conv_general_dilated(x, w, (stride, stride), [(1, 1), (1, 1)],
                                     dimension_numbers=dn)
    return y + b.reshape(1, 1, 1, -1)


def reference_forward(fea_nchw, params):
    x = jnp.transpose(fea_nchw, (0, 2, 3, 1))
    y = _ref_conv(x, params["w0"], params["b0"], 2)
    y = jnp.where(y >= 0, y, LRELU_SLOPE * y)
    y = _ref_conv(y, params["w1"], params["b1"], 2)
    y = jnp.where(y >= 0, y, LRELU_SLOPE * y)
    for i in range(params["res_w1"].shape[0]):
        t = jnp.maximum(_ref_conv(y, params["res_w1"][i], params["res_b1"][i], 1), 0.0)
        y = y + _ref_conv(t, params["res_w2"][i], params["res_b2"][i], 1)
    return jnp.transpose(y, (0, 3, 1, 2))


# ----------------------------------------------------------------------------
if __name__ == "__main__":
    key = jax.random.PRNGKey(0)
    k_in, k_par = jax.random.split(key)

    # Small shapes consistent with the module: num_in_ch=3, num_out_ch=32,
    # num_block=3, input spatial 32x32 -> output spatial 8x8.
    N, Cin, H, W = 2, 3, 32, 32
    Cout, num_block = 32, 3

    fea = jax.random.normal(k_in, (N, Cin, H, W), jnp.float32)
    params = init_params(k_par, Cin, Cout, num_block)

    fwd = jax.jit(conv_residual_blocks_forward)
    out = jax.block_until_ready(fwd(fea, params))

    assert out.shape == (N, Cout, H // 4, W // 4), out.shape
    assert out.dtype == jnp.float32
    assert bool(jnp.all(jnp.isfinite(out)))

    # Loose tolerance: kernel runs bf16 activations/weights with f32 accum.
    ref = jax.block_until_ready(jax.jit(reference_forward)(fea, params))
    rel = float(jnp.linalg.norm(out - ref) / jnp.linalg.norm(ref))
    assert rel < 5e-2, f"relative L2 error too large: {rel}"

    print("KERNEL_OK")
</pallas_src>

<mosaic_0001>
module attributes {stable_mosaic.version = 11 : i64} {
  func.func @stem_kernel(%arg0: i32, %arg1: memref<1x8x384xbf16, #tpu.memory_space<vmem>>, %arg2: memref<384x1024xbf16, #tpu.memory_space<vmem>>, %arg3: memref<384x1024xbf16, #tpu.memory_space<vmem>>, %arg4: memref<1x1024xf32, #tpu.memory_space<vmem>>, %arg5: memref<1024x256xbf16, #tpu.memory_space<vmem>>, %arg6: memref<1024x256xbf16, #tpu.memory_space<vmem>>, %arg7: memref<1x256xf32, #tpu.memory_space<vmem>>, %arg8: memref<1x8x256xbf16, #tpu.memory_space<vmem>>) attributes {dimension_semantics = [#tpu.dimension_semantics<parallel>], iteration_bounds = array<i64: 2>, scalar_prefetch = 0 : i64, scratch_operands = 0 : i64, tpu.core_type = #tpu.core_type<tc>, window_params = [{transform_indices = @transform_0, window_bounds = array<i64: 1, 8, 384>}, {pipeline_mode = #tpu.pipeline_mode<synchronous>, transform_indices = @transform_1, window_bounds = array<i64: 384, 1024>}, {pipeline_mode = #tpu.pipeline_mode<synchronous>, transform_indices = @transform_2, window_bounds = array<i64: 384, 1024>}, {pipeline_mode = #tpu.pipeline_mode<synchronous>, transform_indices = @transform_3, window_bounds = array<i64: 1, 1024>}, {pipeline_mode = #tpu.pipeline_mode<synchronous>, transform_indices = @transform_4, window_bounds = array<i64: 1024, 256>}, {pipeline_mode = #tpu.pipeline_mode<synchronous>, transform_indices = @transform_5, window_bounds = array<i64: 1024, 256>}, {pipeline_mode = #tpu.pipeline_mode<synchronous>, transform_indices = @transform_6, window_bounds = array<i64: 1, 256>}, {transform_indices = @transform_7, window_bounds = array<i64: 1, 8, 256>}]} {
    %c0 = arith.constant 0 : index
    %c0_0 = arith.constant 0 : index
    %c0_1 = arith.constant 0 : index
    %0 = vector.load %arg1[%c0, %c0_0, %c0_1] : memref<1x8x384xbf16, #tpu.memory_space<vmem>>, vector<1x8x384xbf16>
    %1 = vector.shape_cast %0 : vector<1x8x384xbf16> to vector<8x384xbf16>
    %cst = arith.constant 0.000000e+00 : bf16
    %2 = vector.broadcast %cst : bf16 to vector<1x384xbf16>
    %3 = vector.extract_strided_slice %1 {offsets = [0, 0], sizes = [7, 384], strides = [1, 1]} : vector<8x384xbf16> to vector<7x384xbf16>
    %4 = tpu.concatenate %2, %3 in 0 : vector<1x384xbf16>, vector<7x384xbf16> -> vector<8x384xbf16>
    %c0_2 = arith.constant 0 : index
    %c0_3 = arith.constant 0 : index
    %5 = vector.load %arg2[%c0_2, %c0_3] : memref<384x1024xbf16, #tpu.memory_space<vmem>>, vector<384x1024xbf16>
    %cst_4 = arith.constant dense<0.000000e+00> : vector<8x1024xf32>
    %6 = tpu.matmul %4, %5, %cst_4 {dimension_numbers = #tpu.dot_dimension_numbers<[1], [0], [0], [1], [0, 0, 1, 1], [], []>} : vector<8x384xbf16>, vector<384x1024xbf16>, vector<8x1024xf32> -> vector<8x1024xf32>
    %c0_5 = arith.constant 0 : index
    %c0_6 = arith.constant 0 : index
    %7 = vector.load %arg3[%c0_5, %c0_6] : memref<384x1024xbf16, #tpu.memory_space<vmem>>, vector<384x1024xbf16>
    %cst_7 = arith.constant dense<0.000000e+00> : vector<8x1024xf32>
    %8 = tpu.matmul %1, %7, %cst_7 {dimension_numbers = #tpu.dot_dimension_numbers<[1], [0], [0], [1], [0, 0, 1, 1], [], []>} : vector<8x384xbf16>, vector<384x1024xbf16>, vector<8x1024xf32> -> vector<8x1024xf32>
    %9 = arith.addf %6, %8 : vector<8x1024xf32>
    %c0_8 = arith.constant 0 : index
    %c0_9 = arith.constant 0 : index
    %10 = vector.load %arg4[%c0_8, %c0_9] : memref<1x1024xf32, #tpu.memory_space<vmem>>, vector<1x1024xf32>
    %11 = vector.broadcast %10 : vector<1x1024xf32> to vector<8x1024xf32>
    %12 = arith.addf %9, %11 : vector<8x1024xf32>
    %cst_10 = arith.constant 0.000000e+00 : f32
    %13 = vector.broadcast %cst_10 : f32 to vector<8x1024xf32>
    %14 = arith.cmpf oge, %12, %13 : vector<8x1024xf32>
    %cst_11 = arith.constant 1.000000e-01 : f32
    %15 = vector.broadcast %cst_11 : f32 to vector<8x1024xf32>
    %16 = arith.mulf %15, %12 : vector<8x1024xf32>
    %17 = arith.select %14, %12, %16 : vector<8x1024xi1>, vector<8x1024xf32>
    %18 = arith.truncf %17 : vector<8x1024xf32> to vector<8x1024xbf16>
    %cst_12 = arith.constant 0.000000e+00 : bf16
    %19 = vector.broadcast %cst_12 : bf16 to vector<1x1024xbf16>
    %20 = vector.extract_strided_slice %18 {offsets = [0, 0], sizes = [7, 1024], strides = [1, 1]} : vector<8x1024xbf16> to vector<7x1024xbf16>
    %21 = tpu.concatenate %19, %20 in 0 : vector<1x1024xbf16>, vector<7x1024xbf16> -> vector<8x1024xbf16>
    %c0_13 = arith.constant 0 : index
    %c0_14 = arith.constant 0 : index
    %22 = vector.load %arg5[%c0_13, %c0_14] : memref<1024x256xbf16, #tpu.memory_space<vmem>>, vector<1024x256xbf16>
    %cst_15 = arith.constant dense<0.000000e+00> : vector<8x256xf32>
    %23 = tpu.matmul %21, %22, %cst_15 {dimension_numbers = #tpu.dot_dimension_numbers<[1], [0], [0], [1], [0, 0, 1, 1], [], []>} : vector<8x1024xbf16>, vector<1024x256xbf16>, vector<8x256xf32> -> vector<8x256xf32>
    %c0_16 = arith.constant 0 : index
    %c0_17 = arith.constant 0 : index
    %24 = vector.load %arg6[%c0_16, %c0_17] : memref<1024x256xbf16, #tpu.memory_space<vmem>>, vector<1024x256xbf16>
    %cst_18 = arith.constant dense<0.000000e+00> : vector<8x256xf32>
    %25 = tpu.matmul %18, %24, %cst_18 {dimension_numbers = #tpu.dot_dimension_numbers<[1], [0], [0], [1], [0, 0, 1, 1], [], []>} : vector<8x1024xbf16>, vector<1024x256xbf16>, vector<8x256xf32> -> vector<8x256xf32>
    %26 = arith.addf %23, %25 : vector<8x256xf32>
    %c0_19 = arith.constant 0 : index
    %c0_20 = arith.constant 0 : index
    %27 = vector.load %arg7[%c0_19, %c0_20] : memref<1x256xf32, #tpu.memory_space<vmem>>, vector<1x256xf32>
    %28 = vector.broadcast %27 : vector<1x256xf32> to vector<8x256xf32>
    %29 = arith.addf %26, %28 : vector<8x256xf32>
    %cst_21 = arith.constant 0.000000e+00 : f32
    %30 = vector.broadcast %cst_21 : f32 to vector<8x256xf32>
    %31 = arith.cmpf oge, %29, %30 : vector<8x256xf32>
    %cst_22 = arith.constant 1.000000e-01 : f32
    %32 = vector.broadcast %cst_22 : f32 to vector<8x256xf32>
    %33 = arith.mulf %32, %29 : vector<8x256xf32>
    %34 = arith.select %31, %29, %33 : vector<8x256xi1>, vector<8x256xf32>
    %35 = arith.truncf %34 : vector<8x256xf32> to vector<8x256xbf16>
    %c0_23 = arith.constant 0 : index
    %c0_24 = arith.constant 0 : index
    %c0_25 = arith.constant 0 : index
    %36 = vector.load %arg8[%c0_23, %c0_24, %c0_25] : memref<1x8x256xbf16, #tpu.memory_space<vmem>>, vector<1x8x256xbf16>
    %37 = vector.shape_cast %36 : vector<1x8x256xbf16> to vector<8x256xbf16>
    %38 = vector.shape_cast %35 : vector<8x256xbf16> to vector<1x8x256xbf16>
    tpu.vector_store %arg8[%c0_23, %c0_24, %c0_25], %38 {strides = array<i32>} : memref<1x8x256xbf16, #tpu.memory_space<vmem>>, vector<1x8x256xbf16>,
    return
  }
  func.func @transform_0(%arg0: i32) -> (i32, i32, i32) {
    %c0_i32 = arith.constant 0 : i32
    %c0_i32_0 = arith.constant 0 : i32
    %c0_i32_1 = arith.constant 0 : i32
    return %arg0, %c0_i32, %c0_i32_0 : i32, i32, i32
  }
  func.func @transform_1(%arg0: i32) -> (i32, i32) {
    %c0_i32 = arith.constant 0 : i32
    %c0_i32_0 = arith.constant 0 : i32
    %c0_i32_1 = arith.constant 0 : i32
    return %c0_i32, %c0_i32_0 : i32, i32
  }
  func.func @transform_2(%arg0: i32) -> (i32, i32) {
    %c0_i32 = arith.constant 0 : i32
    %c0_i32_0 = arith.constant 0 : i32
    %c0_i32_1 = arith.constant 0 : i32
    return %c0_i32, %c0_i32_0 : i32, i32
  }
  func.func @transform_3(%arg0: i32) -> (i32, i32) {
    %c0_i32 = arith.constant 0 : i32
    %c0_i32_0 = arith.constant 0 : i32
    %c0_i32_1 = arith.constant 0 : i32
    return %c0_i32, %c0_i32_0 : i32, i32
  }
  func.func @transform_4(%arg0: i32) -> (i32, i32) {
    %c0_i32 = arith.constant 0 : i32
    %c0_i32_0 = arith.constant 0 : i32
    %c0_i32_1 = arith.constant 0 : i32
    return %c0_i32, %c0_i32_0 : i32, i32
  }
  func.func @transform_5(%arg0: i32) -> (i32, i32) {
    %c0_i32 = arith.constant 0 : i32
    %c0_i32_0 = arith.constant 0 : i32
    %c0_i32_1 = arith.constant 0 : i32
    return %c0_i32, %c0_i32_0 : i32, i32
  }
  func.func @transform_6(%arg0: i32) -> (i32, i32) {
    %c0_i32 = arith.constant 0 : i32
    %c0_i32_0 = arith.constant 0 : i32
    %c0_i32_1 = arith.constant 0 : i32
    return %c0_i32, %c0_i32_0 : i32, i32
  }
  func.func @transform_7(%arg0: i32) -> (i32, i32, i32) {
    %c0_i32 = arith.constant 0 : i32
    %c0_i32_0 = arith.constant 0 : i32
    %c0_i32_1 = arith.constant 0 : i32
    return %arg0, %c0_i32, %c0_i32_0 : i32, i32, i32
  }
}

module attributes {stable_mosaic.version = 11 : i64} {
  func.func @res_chain_kernel(%arg0: i32, %arg1: i32, %arg2: memref<16x256xbf16, #tpu.memory_space<vmem>>, %arg3: memref<1x3x256x256xbf16, #tpu.memory_space<vmem>>, %arg4: memref<1x1x256xf32, #tpu.memory_space<vmem>>, %arg5: memref<1x3x256x256xbf16, #tpu.memory_space<vmem>>, %arg6: memref<1x1x256xf32, #tpu.memory_space<vmem>>, %arg7: memref<16x256xbf16, #tpu.memory_space<vmem>>) attributes {dimension_semantics = [#tpu.dimension_semantics<parallel>, #tpu.dimension_semantics<arbitrary>], iteration_bounds = array<i64: 1, 3>, scalar_prefetch = 0 : i64, scratch_operands = 0 : i64, tpu.core_type = #tpu.core_type<tc>, window_params = [{transform_indices = @transform_0, window_bounds = array<i64: 16, 256>}, {transform_indices = @transform_1, window_bounds = array<i64: 1, 3, 256, 256>}, {transform_indices = @transform_2, window_bounds = array<i64: 1, 1, 256>}, {transform_indices = @transform_3, window_bounds = array<i64: 1, 3, 256, 256>}, {transform_indices = @transform_4, window_bounds = array<i64: 1, 1, 256>}, {transform_indices = @transform_5, window_bounds = array<i64: 16, 256>}]} {
    %c0_i32 = arith.constant 0 : i32
    %0 = arith.cmpi eq, %arg1, %c0_i32 : i32
    %1 = arith.extui %0 : i1 to i32
    %c0_i32_0 = arith.constant 0 : i32
    %2 = arith.cmpi ne, %1, %c0_i32_0 : i32
    scf.if %2 {
      %c0_57 = arith.constant 0 : index
      %c0_58 = arith.constant 0 : index
      %109 = vector.load %arg2[%c0_57, %c0_58] : memref<16x256xbf16, #tpu.memory_space<vmem>>, vector<16x256xbf16>
      %c0_59 = arith.constant 0 : index
      %c0_60 = arith.constant 0 : index
      %110 = vector.load %arg7[%c0_59, %c0_60] : memref<16x256xbf16, #tpu.memory_space<vmem>>, vector<16x256xbf16>
      tpu.vector_store %arg7[%c0_59, %c0_60], %109 {strides = array<i32>} : memref<16x256xbf16, #tpu.memory_space<vmem>>, vector<16x256xbf16>,
    } else {
    }
    %c0 = arith.constant 0 : index
    %c0_1 = arith.constant 0 : index
    %3 = vector.load %arg7[%c0, %c0_1] : memref<16x256xbf16, #tpu.memory_space<vmem>>, vector<16x256xbf16>
    %c0_2 = arith.constant 0 : index
    %c0_3 = arith.constant 0 : index
    %c0_4 = arith.constant 0 : index
    %4 = vector.load %arg4[%c0_2, %c0_3, %c0_4] : memref<1x1x256xf32, #tpu.memory_space<vmem>>, vector<1x1x256xf32>
    %5 = vector.shape_cast %4 : vector<1x1x256xf32> to vector<1x256xf32>
    %cst = arith.constant 0.000000e+00 : bf16
    %6 = vector.broadcast %cst : bf16 to vector<1x256xbf16>
    %7 = vector.extract_strided_slice %3 {offsets = [0, 0], sizes = [15, 256], strides = [1, 1]} : vector<16x256xbf16> to vector<15x256xbf16>
    %8 = tpu.concatenate %6, %7 in 0 : vector<1x256xbf16>, vector<15x256xbf16> -> vector<16x256xbf16>
    %9 = vector.extract_strided_slice %3 {offsets = [1, 0], sizes = [15, 256], strides = [1, 1]} : vector<16x256xbf16> to vector<15x256xbf16>
    %cst_5 = arith.constant 0.000000e+00 : bf16
    %10 = vector.broadcast %cst_5 : bf16 to vector<1x256xbf16>
    %11 = tpu.concatenate %9, %10 in 0 : vector<15x256xbf16>, vector<1x256xbf16> -> vector<16x256xbf16>
    %12 = tpu.iota {dimensions = array<i32: 0>} : vector<16x1xi32>
    %c8_i32 = arith.constant 8 : i32
    %c0_i32_6 = arith.constant 0 : i32
    %13 = arith.cmpi eq, %c8_i32, %c0_i32_6 : i32
    %c1_i32 = arith.constant 1 : i32
    %14 = arith.select %13, %c1_i32, %c8_i32 : i32
    %15 = vector.broadcast %14 : i32 to vector<16x1xi32>
    %16 = arith.remsi %12, %15 : vector<16x1xi32>
    %c0_i32_7 = arith.constant 0 : i32
    %17 = vector.broadcast %c0_i32_7 : i32 to vector<16x1xi32>
    %18 = arith.cmpi ne, %16, %17 : vector<16x1xi32>
    %c0_i32_8 = arith.constant 0 : i32
    %19 = vector.broadcast %c0_i32_8 : i32 to vector<16x1xi32>
    %20 = arith.cmpi slt, %16, %19 : vector<16x1xi32>
    %c0_i32_9 = arith.constant 0 : i32
    %21 = arith.cmpi slt, %14, %c0_i32_9 : i32
    %22 = vector.broadcast %21 : i1 to vector<16x1xi1>
    %23 = vector.broadcast %22 : vector<16x1xi1> to vector<16x1xi1>
    %24 = arith.xori %20, %23 : vector<16x1xi1>
    %25 = arith.andi %24, %18 : vector<16x1xi1>
    %26 = vector.broadcast %14 : i32 to vector<16x1xi32>
    %27 = arith.addi %16, %26 : vector<16x1xi32>
    %28 = arith.select %25, %27, %16 : vector<16x1xi1>, vector<16x1xi32>
    %cst_10 = arith.constant 0.000000e+00 : bf16
    %29 = vector.broadcast %cst_10 : bf16 to vector<16x256xbf16>
    %c0_i32_11 = arith.constant 0 : i32
    %30 = vector.broadcast %c0_i32_11 : i32 to vector<16x1xi32>
    %31 = arith.cmpi eq, %28, %30 : vector<16x1xi32>
    %32 = vector.shape_cast %31 : vector<16x1xi1> to vector<16x1xi1>
    %33 = vector.broadcast %32 : vector<16x1xi1> to vector<16x256xi1>
    %34 = arith.select %33, %29, %8 : vector<16x256xi1>, vector<16x256xbf16>
    %c7_i32 = arith.constant 7 : i32
    %35 = vector.broadcast %c7_i32 : i32 to vector<16x1xi32>
    %36 = arith.cmpi eq, %28, %35 : vector<16x1xi32>
    %37 = vector.shape_cast %36 : vector<16x1xi1> to vector<16x1xi1>
    %38 = vector.broadcast %37 : vector<16x1xi1> to vector<16x256xi1>
    %39 = arith.select %38, %29, %11 : vector<16x256xi1>, vector<16x256xbf16>
    %c0_12 = arith.constant 0 : index
    %c0_13 = arith.constant 0 : index
    %c0_14 = arith.constant 0 : index
    %c0_15 = arith.constant 0 : index
    %40 = vector.load %arg3[%c0_12, %c0_13, %c0_14, %c0_15] : memref<1x3x256x256xbf16, #tpu.memory_space<vmem>>, vector<1x1x256x256xbf16>
    %41 = vector.shape_cast %40 : vector<1x1x256x256xbf16> to vector<256x256xbf16>
    %cst_16 = arith.constant dense<0.000000e+00> : vector<16x256xf32>
    %42 = tpu.matmul %34, %41, %cst_16 {dimension_numbers = #tpu.dot_dimension_numbers<[1], [0], [0], [1], [0, 0, 1, 1], [], []>} : vector<16x256xbf16>, vector<256x256xbf16>, vector<16x256xf32> -> vector<16x256xf32>
    %c0_17 = arith.constant 0 : index
    %c1 = arith.constant 1 : index
    %c0_18 = arith.constant 0 : index
    %c0_19 = arith.constant 0 : index
    %43 = vector.load %arg3[%c0_17, %c1, %c0_18, %c0_19] : memref<1x3x256x256xbf16, #tpu.memory_space<vmem>>, vector<1x1x256x256xbf16>
    %44 = vector.shape_cast %43 : vector<1x1x256x256xbf16> to vector<256x256xbf16>
    %cst_20 = arith.constant dense<0.000000e+00> : vector<16x256xf32>
    %45 = tpu.matmul %3, %44, %cst_20 {dimension_numbers = #tpu.dot_dimension_numbers<[1], [0], [0], [1], [0, 0, 1, 1], [], []>} : vector<16x256xbf16>, vector<256x256xbf16>, vector<16x256xf32> -> vector<16x256xf32>
    %46 = arith.addf %42, %45 : vector<16x256xf32>
    %c0_21 = arith.constant 0 : index
    %c2 = arith.constant 2 : index
    %c0_22 = arith.constant 0 : index
    %c0_23 = arith.constant 0 : index
    %47 = vector.load %arg3[%c0_21, %c2, %c0_22, %c0_23] : memref<1x3x256x256xbf16, #tpu.memory_space<vmem>>, vector<1x1x256x256xbf16>
    %48 = vector.shape_cast %47 : vector<1x1x256x256xbf16> to vector<256x256xbf16>
    %cst_24 = arith.constant dense<0.000000e+00> : vector<16x256xf32>
    %49 = tpu.matmul %39, %48, %cst_24 {dimension_numbers = #tpu.dot_dimension_numbers<[1], [0], [0], [1], [0, 0, 1, 1], [], []>} : vector<16x256xbf16>, vector<256x256xbf16>, vector<16x256xf32> -> vector<16x256xf32>
    %50 = arith.addf %46, %49 : vector<16x256xf32>
    %51 = vector.broadcast %5 : vector<1x256xf32> to vector<16x256xf32>
    %52 = arith.addf %50, %51 : vector<16x256xf32>
    %cst_25 = arith.constant 0.000000e+00 : f32
    %53 = vector.broadcast %cst_25 : f32 to vector<16x256xf32>
    %54 = arith.maximumf %52, %53 : vector<16x256xf32>
    %55 = arith.truncf %54 : vector<16x256xf32> to vector<16x256xbf16>
    %c0_26 = arith.constant 0 : index
    %c0_27 = arith.constant 0 : index
    %c0_28 = arith.constant 0 : index
    %56 = vector.load %arg6[%c0_26, %c0_27, %c0_28] : memref<1x1x256xf32, #tpu.memory_space<vmem>>, vector<1x1x256xf32>
    %57 = vector.shape_cast %56 : vector<1x1x256xf32> to vector<1x256xf32>
    %cst_29 = arith.constant 0.000000e+00 : bf16
    %58 = vector.broadcast %cst_29 : bf16 to vector<1x256xbf16>
    %59 = vector.extract_strided_slice %55 {offsets = [0, 0], sizes = [15, 256], strides = [1, 1]} : vector<16x256xbf16> to vector<15x256xbf16>
    %60 = tpu.concatenate %58, %59 in 0 : vector<1x256xbf16>, vector<15x256xbf16> -> vector<16x256xbf16>
    %61 = vector.extract_strided_slice %55 {offsets = [1, 0], sizes = [15, 256], strides = [1, 1]} : vector<16x256xbf16> to vector<15x256xbf16>
    %cst_30 = arith.constant 0.000000e+00 : bf16
    %62 = vector.broadcast %cst_30 : bf16 to vector<1x256xbf16>
    %63 = tpu.concatenate %61, %62 in 0 : vector<15x256xbf16>, vector<1x256xbf16> -> vector<16x256xbf16>
    %64 = tpu.iota {dimensions = array<i32: 0>} : vector<16x1xi32>
    %c8_i32_31 = arith.constant 8 : i32
    %c0_i32_32 = arith.constant 0 : i32
    %65 = arith.cmpi eq, %c8_i32_31, %c0_i32_32 : i32
    %c1_i32_33 = arith.constant 1 : i32
    %66 = arith.select %65, %c1_i32_33, %c8_i32_31 : i32
    %67 = vector.broadcast %66 : i32 to vector<16x1xi32>
    %68 = arith.remsi %64, %67 : vector<16x1xi32>
    %c0_i32_34 = arith.constant 0 : i32
    %69 = vector.broadcast %c0_i32_34 : i32 to vector<16x1xi32>
    %70 = arith.cmpi ne, %68, %69 : vector<16x1xi32>
    %c0_i32_35 = arith.constant 0 : i32
    %71 = vector.broadcast %c0_i32_35 : i32 to vector<16x1xi32>
    %72 = arith.cmpi slt, %68, %71 : vector<16x1xi32>
    %c0_i32_36 = arith.constant 0 : i32
    %73 = arith.cmpi slt, %66, %c0_i32_36 : i32
    %74 = vector.broadcast %73 : i1 to vector<16x1xi1>
    %75 = vector.broadcast %74 : vector<16x1xi1> to vector<16x1xi1>
    %76 = arith.xori %72, %75 : vector<16x1xi1>
    %77 = arith.andi %76, %70 : vector<16x1xi1>
    %78 = vector.broadcast %66 : i32 to vector<16x1xi32>
    %79 = arith.addi %68, %78 : vector<16x1xi32>
    %80 = arith.select %77, %79, %68 : vector<16x1xi1>, vector<16x1xi32>
    %cst_37 = arith.constant 0.000000e+00 : bf16
    %81 = vector.broadcast %cst_37 : bf16 to vector<16x256xbf16>
    %c0_i32_38 = arith.constant 0 : i32
    %82 = vector.broadcast %c0_i32_38 : i32 to vector<16x1xi32>
    %83 = arith.cmpi eq, %80, %82 : vector<16x1xi32>
    %84 = vector.shape_cast %83 : vector<16x1xi1> to vector<16x1xi1>
    %85 = vector.broadcast %84 : vector<16x1xi1> to vector<16x256xi1>
    %86 = arith.select %85, %81, %60 : vector<16x256xi1>, vector<16x256xbf16>
    %c7_i32_39 = arith.constant 7 : i32
    %87 = vector.broadcast %c7_i32_39 : i32 to vector<16x1xi32>
    %88 = arith.cmpi eq, %80, %87 : vector<16x1xi32>
    %89 = vector.shape_cast %88 : vector<16x1xi1> to vector<16x1xi1>
    %90 = vector.broadcast %89 : vector<16x1xi1> to vector<16x256xi1>
    %91 = arith.select %90, %81, %63 : vector<16x256xi1>, vector<16x256xbf16>
    %c0_40 = arith.constant 0 : index
    %c0_41 = arith.constant 0 : index
    %c0_42 = arith.constant 0 : index
    %c0_43 = arith.constant 0 : index
    %92 = vector.load %arg5[%c0_40, %c0_41, %c0_42, %c0_43] : memref<1x3x256x256xbf16, #tpu.memory_space<vmem>>, vector<1x1x256x256xbf16>
    %93 = vector.shape_cast %92 : vector<1x1x256x256xbf16> to vector<256x256xbf16>
    %cst_44 = arith.constant dense<0.000000e+00> : vector<16x256xf32>
    %94 = tpu.matmul %86, %93, %cst_44 {dimension_numbers = #tpu.dot_dimension_numbers<[1], [0], [0], [1], [0, 0, 1, 1], [], []>} : vector<16x256xbf16>, vector<256x256xbf16>, vector<16x256xf32> -> vector<16x256xf32>
    %c0_45 = arith.constant 0 : index
    %c1_46 = arith.constant 1 : index
    %c0_47 = arith.constant 0 : index
    %c0_48 = arith.constant 0 : index
    %95 = vector.load %arg5[%c0_45, %c1_46, %c0_47, %c0_48] : memref<1x3x256x256xbf16, #tpu.memory_space<vmem>>, vector<1x1x256x256xbf16>
    %96 = vector.shape_cast %95 : vector<1x1x256x256xbf16> to vector<256x256xbf16>
    %cst_49 = arith.constant dense<0.000000e+00> : vector<16x256xf32>
    %97 = tpu.matmul %55, %96, %cst_49 {dimension_numbers = #tpu.dot_dimension_numbers<[1], [0], [0], [1], [0, 0, 1, 1], [], []>} : vector<16x256xbf16>, vector<256x256xbf16>, vector<16x256xf32> -> vector<16x256xf32>
    %98 = arith.addf %94, %97 : vector<16x256xf32>
    %c0_50 = arith.constant 0 : index
    %c2_51 = arith.constant 2 : index
    %c0_52 = arith.constant 0 : index
    %c0_53 = arith.constant 0 : index
    %99 = vector.load %arg5[%c0_50, %c2_51, %c0_52, %c0_53] : memref<1x3x256x256xbf16, #tpu.memory_space<vmem>>, vector<1x1x256x256xbf16>
    %100 = vector.shape_cast %99 : vector<1x1x256x256xbf16> to vector<256x256xbf16>
    %cst_54 = arith.constant dense<0.000000e+00> : vector<16x256xf32>
    %101 = tpu.matmul %91, %100, %cst_54 {dimension_numbers = #tpu.dot_dimension_numbers<[1], [0], [0], [1], [0, 0, 1, 1], [], []>} : vector<16x256xbf16>, vector<256x256xbf16>, vector<16x256xf32> -> vector<16x256xf32>
    %102 = arith.addf %98, %101 : vector<16x256xf32>
    %103 = vector.broadcast %57 : vector<1x256xf32> to vector<16x256xf32>
    %104 = arith.addf %102, %103 : vector<16x256xf32>
    %105 = arith.extf %3 : vector<16x256xbf16> to vector<16x256xf32>
    %106 = arith.addf %105, %104 : vector<16x256xf32>
    %107 = arith.truncf %106 : vector<16x256xf32> to vector<16x256xbf16>
    %c0_55 = arith.constant 0 : index
    %c0_56 = arith.constant 0 : index
    %108 = vector.load %arg7[%c0_55, %c0_56] : memref<16x256xbf16, #tpu.memory_space<vmem>>, vector<16x256xbf16>
    tpu.vector_store %arg7[%c0_55, %c0_56], %107 {strides = array<i32>} : memref<16x256xbf16, #tpu.memory_space<vmem>>, vector<16x256xbf16>,
    return
  }
  func.func @transform_0(%arg0: i32, %arg1: i32) -> (i32, i32) {
    %c0_i32 = arith.constant 0 : i32
    %c0_i32_0 = arith.constant 0 : i32
    return %arg0, %c0_i32 : i32, i32
  }
  func.func @transform_1(%arg0: i32, %arg1: i32) -> (i32, i32, i32, i32) {
    %c0_i32 = arith.constant 0 : i32
    %c0_i32_0 = arith.constant 0 : i32
    %c0_i32_1 = arith.constant 0 : i32
    %c0_i32_2 = arith.constant 0 : i32
    return %arg1, %c0_i32, %c0_i32_0, %c0_i32_1 : i32, i32, i32, i32
  }
  func.func @transform_2(%arg0: i32, %arg1: i32) -> (i32, i32, i32) {
    %c0_i32 = arith.constant 0 : i32
    %c0_i32_0 = arith.constant 0 : i32
    %c0_i32_1 = arith.constant 0 : i32
    return %arg1, %c0_i32, %c0_i32_0 : i32, i32, i32
  }
  func.func @transform_3(%arg0: i32, %arg1: i32) -> (i32, i32, i32, i32) {
    %c0_i32 = arith.constant 0 : i32
    %c0_i32_0 = arith.constant 0 : i32
    %c0_i32_1 = arith.constant 0 : i32
    %c0_i32_2 = arith.constant 0 : i32
    return %arg1, %c0_i32, %c0_i32_0, %c0_i32_1 : i32, i32, i32, i32
  }
  func.func @transform_4(%arg0: i32, %arg1: i32) -> (i32, i32, i32) {
    %c0_i32 = arith.constant 0 : i32
    %c0_i32_0 = arith.constant 0 : i32
    %c0_i32_1 = arith.constant 0 : i32
    return %arg1, %c0_i32, %c0_i32_0 : i32, i32, i32
  }
  func.func @transform_5(%arg0: i32, %arg1: i32) -> (i32, i32) {
    %c0_i32 = arith.constant 0 : i32
    %c0_i32_0 = arith.constant 0 : i32
    return %arg0, %c0_i32 : i32, i32
  }
}

</mosaic_0001>

<llo_original>
// kernel: conv_residual_blocks_forward.2
$region0: #{conv_residual_blocks_forward.2}
  #allocation0 [shape = 'u32[]', space=smem, size = 0x4, offset = 0x4, fixed_abs, tag = 'smem constant byte address 0x4 - core index']
  #allocation1 [shape = 'u32[144,128]{1,0:T(1,128)}', space=vmem, size = 0x12000, scoped, tag = 'internal scratch']
  %s0 = inlined_call_operand.vmem [shape: bf16[2,8,384], index: 0, kind: input, shape index: {}]
  %s1 = inlined_call_operand.vmem [shape: bf16[384,1024], index: 1, kind: input, shape index: {}]
  %s2 = inlined_call_operand.vmem [shape: bf16[384,1024], index: 2, kind: input, shape index: {}]
  %s3 = inlined_call_operand.vmem [shape: f32[1,1024], index: 3, kind: input, shape index: {}]
  %s4 = inlined_call_operand.vmem [shape: bf16[1024,256], index: 4, kind: input, shape index: {}]
  %s5 = inlined_call_operand.vmem [shape: bf16[1024,256], index: 5, kind: input, shape index: {}]
  %s6 = inlined_call_operand.vmem [shape: f32[1,256], index: 6, kind: input, shape index: {}]
  %s7 = inlined_call_operand.vmem [shape: bf16[2,8,256], index: 7, kind: output, shape index: {}]
  %s8 = sld [smem:[#allocation0]]
  $region61: #{conv_residual_blocks_forward.2} parent=0
    _
  %s10 = ssub.s32 1, %s8
  %s11 = scalar_select 0, %s10, %s8
  loop: start=0, step=1, limit=4
  $region2: #{conv_residual_blocks_forward.2} parent=0 // loop_pre_header
    _
  $region3: #{conv_residual_blocks_forward.2} parent=0 // loop_header
    %s13 = sphi 0, %s17
    %p14 = scmp.ge.s32.totalorder %s13, 4
    %s23 = sphi 0, %s25
    %s26 = sphi 0, %s23
    %s27 = sphi 0, %s26
    %s43 = sphi 0, %s27
    %s47 = sphi 0, %s47
    %s49 = sphi 0, %s47
    %s50 = sphi 0, %s49
    %s64 = sphi 0, %s50
    %s68 = sphi 0, %s68
    %s70 = sphi 0, %s68
    %s71 = sphi 0, %s70
    %s85 = sphi 0, %s71
    %s89 = sphi 0, %s89
    %s91 = sphi 0, %s89
    %s92 = sphi 0, %s91
    %s106 = sphi 0, %s92
    %s110 = sphi 0, %s110
    %s112 = sphi 0, %s110
    %s113 = sphi 0, %s112
    %s127 = sphi 0, %s113
    %s131 = sphi 0, %s131
    %s133 = sphi 0, %s131
    %s134 = sphi 0, %s133
    %s148 = sphi 0, %s134
    %s152 = sphi 0, %s152
    %s154 = sphi 0, %s152
    %s155 = sphi 0, %s154
    %s169 = sphi 0, %s155
    %s175 = sphi 0, %s177
    %s178 = sphi 0, %s175
    %s179 = sphi 0, %s178
    %s195 = sphi 0, %s179
  $region4: #{conv_residual_blocks_forward.2} parent=0 // loop_header_branch
    %16 = sbr.rel (%p14) target = $region8
  $region5: #{conv_residual_blocks_forward.2} parent=0 // loop_body
    %s18 = ssub.s32 %s13, 1
    %s19 = ssub.s32 %s13, 2
    %s20 = sadd.s32 %s13, 1
    %s21 = ssub.s32 %s13, %s20
    %p22 = scmp.eq.s32.totalorder %s21, 0
    %s24 = sadd.s32 %s23, 1
    %s25 = scalar_select %p22, %s23, %s24
    %p28 = pneg %p22
    %p29 = scmp.eq.s32.totalorder %s13, 1
    %p30 = por %p28, %p29
    %p31 = scmp.ne.s32.totalorder %s23, %s26
    %p32 = scmp.eq.s32.totalorder %s13, 0
    %p33 = por %p31, %p32
    %p34 = scmp.ne.s32.totalorder %s23, %s26
    %p35 = scmp.eq.s32.totalorder %s18, 1
    %p36 = por %p34, %p35
    %p37 = scmp.ne.s32.totalorder %s26, %s27
    %p38 = scmp.eq.s32.totalorder %s18, 0
    %p39 = por %p37, %p38
    %p40 = scmp.ne.s32.totalorder %s26, %s27
    %p41 = scmp.eq.s32.totalorder %s19, 1
    %p42 = por %p40, %p41
    %p44 = scmp.ne.s32.totalorder %s27, %s43
    %p45 = scmp.eq.s32.totalorder %s19, 0
    %p46 = por %p44, %p45
    %s48 = sadd.s32 %s47, 1
    %p51 = scmp.eq.s32.totalorder %s13, 1
    %p52 = scmp.ne.s32.totalorder %s47, %s49
    %p53 = scmp.eq.s32.totalorder %s13, 0
    %p54 = por %p52, %p53
    %p55 = scmp.ne.s32.totalorder %s47, %s49
    %p56 = scmp.eq.s32.totalorder %s18, 1
    %p57 = por %p55, %p56
    %p58 = scmp.ne.s32.totalorder %s49, %s50
    %p59 = scmp.eq.s32.totalorder %s18, 0
    %p60 = por %p58, %p59
    %p61 = scmp.ne.s32.totalorder %s49, %s50
    %p62 = scmp.eq.s32.totalorder %s19, 1
    %p63 = por %p61, %p62
    %p65 = scmp.ne.s32.totalorder %s50, %s64
    %p66 = scmp.eq.s32.totalorder %s19, 0
    %p67 = por %p65, %p66
    %s69 = sadd.s32 %s68, 1
    %p72 = scmp.eq.s32.totalorder %s13, 1
    %p73 = scmp.ne.s32.totalorder %s68, %s70
    %p74 = scmp.eq.s32.totalorder %s13, 0
    %p75 = por %p73, %p74
    %p76 = scmp.ne.s32.totalorder %s68, %s70
    %p77 = scmp.eq.s32.totalorder %s18, 1
    %p78 = por %p76, %p77
    %p79 = scmp.ne.s32.totalorder %s70, %s71
    %p80 = scmp.eq.s32.totalorder %s18, 0
    %p81 = por %p79, %p80
    %p82 = scmp.ne.s32.totalorder %s70, %s71
    %p83 = scmp.eq.s32.totalorder %s19, 1
    %p84 = por %p82, %p83
    %p86 = scmp.ne.s32.totalorder %s71, %s85
    %p87 = scmp.eq.s32.totalorder %s19, 0
    %p88 = por %p86, %p87
    %s90 = sadd.s32 %s89, 1
    %p93 = scmp.eq.s32.totalorder %s13, 1
    %p94 = scmp.ne.s32.totalorder %s89, %s91
    %p95 = scmp.eq.s32.totalorder %s13, 0
    %p96 = por %p94, %p95
    %p97 = scmp.ne.s32.totalorder %s89, %s91
    %p98 = scmp.eq.s32.totalorder %s18, 1
    %p99 = por %p97, %p98
    %p100 = scmp.ne.s32.totalorder %s91, %s92
    %p101 = scmp.eq.s32.totalorder %s18, 0
    %p102 = por %p100, %p101
    %p103 = scmp.ne.s32.totalorder %s91, %s92
    %p104 = scmp.eq.s32.totalorder %s19, 1
    %p105 = por %p103, %p104
    %p107 = scmp.ne.s32.totalorder %s92, %s106
    %p108 = scmp.eq.s32.totalorder %s19, 0
    %p109 = por %p107, %p108
    %s111 = sadd.s32 %s110, 1
    %p114 = scmp.eq.s32.totalorder %s13, 1
    %p115 = scmp.ne.s32.totalorder %s110, %s112
    %p116 = scmp.eq.s32.totalorder %s13, 0
    %p117 = por %p115, %p116
    %p118 = scmp.ne.s32.totalorder %s110, %s112
    %p119 = scmp.eq.s32.totalorder %s18, 1
    %p120 = por %p118, %p119
    %p121 = scmp.ne.s32.totalorder %s112, %s113
    %p122 = scmp.eq.s32.totalorder %s18, 0
    %p123 = por %p121, %p122
    %p124 = scmp.ne.s32.totalorder %s112, %s113
    %p125 = scmp.eq.s32.totalorder %s19, 1
    %p126 = por %p124, %p125
    %p128 = scmp.ne.s32.totalorder %s113, %s127
    %p129 = scmp.eq.s32.totalorder %s19, 0
    %p130 = por %p128, %p129
    %s132 = sadd.s32 %s131, 1
    %p135 = scmp.eq.s32.totalorder %s13, 1
    %p136 = scmp.ne.s32.totalorder %s131, %s133
    %p137 = scmp.eq.s32.totalorder %s13, 0
    %p138 = por %p136, %p137
    %p139 = scmp.ne.s32.totalorder %s131, %s133
    %p140 = scmp.eq.s32.totalorder %s18, 1
    %p141 = por %p139, %p140
    %p142 = scmp.ne.s32.totalorder %s133, %s134
    %p143 = scmp.eq.s32.totalorder %s18, 0
    %p144 = por %p142, %p143
    %p145 = scmp.ne.s32.totalorder %s133, %s134
    %p146 = scmp.eq.s32.totalorder %s19, 1
    %p147 = por %p145, %p146
    %p149 = scmp.ne.s32.totalorder %s134, %s148
    %p150 = scmp.eq.s32.totalorder %s19, 0
    %p151 = por %p149, %p150
    %s153 = sadd.s32 %s152, 1
    %p156 = scmp.eq.s32.totalorder %s13, 1
    %p157 = scmp.ne.s32.totalorder %s152, %s154
    %p158 = scmp.eq.s32.totalorder %s13, 0
    %p159 = por %p157, %p158
    %p160 = scmp.ne.s32.totalorder %s152, %s154
    %p161 = scmp.eq.s32.totalorder %s18, 1
    %p162 = por %p160, %p161
    %p163 = scmp.ne.s32.totalorder %s154, %s155
    %p164 = scmp.eq.s32.totalorder %s18, 0
    %p165 = por %p163, %p164
    %p166 = scmp.ne.s32.totalorder %s154, %s155
    %p167 = scmp.eq.s32.totalorder %s19, 1
    %p168 = por %p166, %p167
    %p170 = scmp.ne.s32.totalorder %s155, %s169
    %p171 = scmp.eq.s32.totalorder %s19, 0
    %p172 = por %p170, %p171
    %s173 = ssub.s32 %s13, %s20
    %p174 = scmp.eq.s32.totalorder %s173, 0
    %s176 = sadd.s32 %s175, 1
    %s177 = scalar_select %p174, %s175, %s176
    %p180 = pneg %p174
    %p181 = scmp.eq.s32.totalorder %s13, 1
    %p182 = por %p180, %p181
    %p183 = scmp.ne.s32.totalorder %s175, %s178
    %p184 = scmp.eq.s32.totalorder %s13, 0
    %p185 = por %p183, %p184
    %p186 = scmp.ne.s32.totalorder %s175, %s178
    %p187 = scmp.eq.s32.totalorder %s18, 1
    %p188 = por %p186, %p187
    %p189 = scmp.ne.s32.totalorder %s178, %s179
    %p190 = scmp.eq.s32.totalorder %s18, 0
    %p191 = por %p189, %p190
    %p192 = scmp.ne.s32.totalorder %s178, %s179
    %p193 = scmp.eq.s32.totalorder %s19, 1
    %p194 = por %p192, %p193
    %p196 = scmp.ne.s32.totalorder %s179, %s195
    %p197 = scmp.eq.s32.totalorder %s19, 0
    %p198 = por %p196, %p197
    %p199 = scmp.le.s32.totalorder 1, %s13
    %p200 = scmp.lt.s32.totalorder %s13, 3
    %p201 = pnand %p199, %p200
    %p202 = pneg %p201
    // Predicated region
    $region9: #{conv_residual_blocks_forward.2} parent=5 // pred_check
      _
    $region10: #{conv_residual_blocks_forward.2} parent=5 // pred_check_branch
      %204 = sbr.rel (%p201) target = $region12
    $region11: #{conv_residual_blocks_forward.2} parent=5 // pred_region
      %s205 = ssub.s32 %s13, 1
      // Predicated region
      $region13: #{conv_residual_blocks_forward.2} parent=11 // pred_check
        %p206 = pneg %p60
      $region14: #{conv_residual_blocks_forward.2} parent=11 // pred_check_branch
        %208 = sbr.rel (%p206) target = $region16
      $region15: #{conv_residual_blocks_forward.2} parent=11 // pred_region
        _
      $region16: #{conv_residual_blocks_forward.2} parent=11 // pred_fallthru
        _
      // Predicated region
      $region17: #{conv_residual_blocks_forward.2} parent=11 // pred_check
        %p209 = pneg %p81
      $region18: #{conv_residual_blocks_forward.2} parent=11 // pred_check_branch
        %211 = sbr.rel (%p209) target = $region20
      $region19: #{conv_residual_blocks_forward.2} parent=11 // pred_region
        _
      $region20: #{conv_residual_blocks_forward.2} parent=11 // pred_fallthru
        _
      // Predicated region
      $region21: #{conv_residual_blocks_forward.2} parent=11 // pred_check
        %p212 = pneg %p102
      $region22: #{conv_residual_blocks_forward.2} parent=11 // pred_check_branch
        %214 = sbr.rel (%p212) target = $region24
      $region23: #{conv_residual_blocks_forward.2} parent=11 // pred_region
        _
      $region24: #{conv_residual_blocks_forward.2} parent=11 // pred_fallthru
        _
      // Predicated region
      $region25: #{conv_residual_blocks_forward.2} parent=11 // pred_check
        %p215 = pneg %p123
      $region26: #{conv_residual_blocks_forward.2} parent=11 // pred_check_branch
        %217 = sbr.rel (%p215) target = $region28
      $region27: #{conv_residual_blocks_forward.2} parent=11 // pred_region
        _
      $region28: #{conv_residual_blocks_forward.2} parent=11 // pred_fallthru
        _
      // Predicated region
      $region29: #{conv_residual_blocks_forward.2} parent=11 // pred_check
        %p218 = pneg %p144
      $region30: #{conv_residual_blocks_forward.2} parent=11 // pred_check_branch
        %220 = sbr.rel (%p218) target = $region32
      $region31: #{conv_residual_blocks_forward.2} parent=11 // pred_region
        _
      $region32: #{conv_residual_blocks_forward.2} parent=11 // pred_fallthru
        _
      // Predicated region
      $region33: #{conv_residual_blocks_forward.2} parent=11 // pred_check
        %p221 = pneg %p165
      $region34: #{conv_residual_blocks_forward.2} parent=11 // pred_check_branch
        %223 = sbr.rel (%p221) target = $region36
      $region35: #{conv_residual_blocks_forward.2} parent=11 // pred_region
        _
      $region36: #{conv_residual_blocks_forward.2} parent=11 // pred_fallthru
        _
    $region12: #{conv_residual_blocks_forward.2} parent=5 // pred_fallthru
      _
    %p224 = scmp.lt.s32.totalorder %s13, 2
    // Predicated region
    $region37: #{conv_residual_blocks_forward.2} parent=5 // pred_check
      %p225 = pneg %p224
    $region38: #{conv_residual_blocks_forward.2} parent=5 // pred_check_branch
      %227 = sbr.rel (%p225) target = $region40
    $region39: #{conv_residual_blocks_forward.2} parent=5 // pred_region
      // Predicated region
      $region41: #{conv_residual_blocks_forward.2} parent=39 // pred_check
        %p228 = pneg %p33
      $region42: #{conv_residual_blocks_forward.2} parent=39 // pred_check_branch
        %230 = sbr.rel (%p228) target = $region44
      $region43: #{conv_residual_blocks_forward.2} parent=39 // pred_region
        %p231 = scmp.lt.s32.totalorder %s13, 1
        %s232 = scalar_select %p231, %s13, 1
        %s233 = smul.addr %s232, 3
        %s234 = smul.addr %s233, 4
        %s235 = scalar_lea.vmem %s0, %s234
      $region44: #{conv_residual_blocks_forward.2} parent=39 // pred_fallthru
        _
    $region40: #{conv_residual_blocks_forward.2} parent=5 // pred_fallthru
      _
    %p236 = scmp.le.s32.totalorder 1, %s13
    %p237 = scmp.lt.s32.totalorder %s13, 3
    %p238 = pnand %p236, %p237
    %p239 = pneg %p238
    // Predicated region
    $region45: #{conv_residual_blocks_forward.2} parent=5 // pred_check
      _
    $region46: #{conv_residual_blocks_forward.2} parent=5 // pred_check_branch
      %241 = sbr.rel (%p238) target = $region48
    $region47: #{conv_residual_blocks_forward.2} parent=5 // pred_region
      %s242 = ssub.s32 %s13, 1
      %p243 = scmp.lt.s32.totalorder %s18, 1
      %s244 = scalar_select %p243, %s18, 1
      %s245 = smul.addr %s244, 3
      %s246 = smul.addr %s245, 4
      %s247 = scalar_lea.vmem %s0, %s246
      %p248 = pneg %p39
      %p249 = pneg %p36
      %p250 = pneg %p60
      %p251 = pneg %p57
      %p252 = pneg %p81
      %p253 = pneg %p78
      %p254 = pneg %p102
      %p255 = pneg %p99
      %p256 = pneg %p123
      %p257 = pneg %p120
      %p258 = pneg %p144
      %p259 = pneg %p141
      %p260 = pneg %p165
      %p261 = pneg %p162
      %p262 = pneg %p191
      %p263 = pneg %p188
      %p264 = scmp.lt.s32.totalorder %s18, 1
      %s265 = scalar_select %p264, %s18, 1
      %s266 = smul.addr %s265, 2
      %s267 = smul.addr %s266, 4
      %s268 = scalar_lea.vmem %s7, %s267
      %p269 = scmp.lt.s32.totalorder %s18, 1
      %s270 = scalar_select %p269, %s18, 1
      %s271 = smul.addr %s270, 3
      %s272 = smul.addr %s271, 4
      %s273 = scalar_lea.vmem %s0, %s272
      %p274 = scmp.lt.s32.totalorder %s18, 1
      %s275 = scalar_select %p274, %s18, 1
      %s276 = smul.addr %s275, 2
      %s277 = smul.addr %s276, 4
      %s278 = scalar_lea.vmem %s7, %s277
      %v280 = vld [vmem:[%s273] sm:$0xff]
      %v281 = vld [vmem:[%s273 + $0x8] sm:$0xf]
      %v284 = vunpack.c.l.b16 %v280
      %v285 = vunpack.c.h.b16 %v280
      %v286 = vunpack.c.l.b16 %v281
      %v287 = vpack.c.b16 %v284, %v284
      %v288 = vpack.c.b16 %v285, %v285
      %v289 = vpack.c.b16 %v286, %v286
      %v291 = vshrl.u32 %v287, 16
      %v293 = vrot.slane %v291, 7
      %v294 = vshll.u32 %v287, 16
      %v296 = vor.u32 %v293, %v294
      %v298 = vshrl.u32 %v288, 16
      %v300 = vrot.slane %v298, 7
      %v301 = vshll.u32 %v288, 16
      %v303 = vor.u32 %v300, %v301
      %v305 = vshrl.u32 %v289, 16
      %v307 = vrot.slane %v305, 7
      %v308 = vshll.u32 %v289, 16
      %v310 = vor.u32 %v307, %v308
      %vm314 = vcmask 1040384
      %vm315 = vsmask.f32 256
      %vm316 = vmand %vm314, %vm315
      %v317 = vsel %vm316, 0, %v296
      %v318 = vsel %vm316, 0, %v303
      %v319 = vsel %vm316, 0, %v310
      %v320 = vld [vmem:[%s1] sm:$0xff]
      %v321 = vld [vmem:[%s1 + $0x8] sm:$0xff]
      %v322 = vld [vmem:[%s1 + $0x10] sm:$0xff]
      %v323 = vld [vmem:[%s1 + $0x18] sm:$0xff]
      %v324 = vld [vmem:[%s1 + $0x20] sm:$0xff]
      %v325 = vld [vmem:[%s1 + $0x28] sm:$0xff]
      %v326 = vld [vmem:[%s1 + $0x30] sm:$0xff]
      %v327 = vld [vmem:[%s1 + $0x38] sm:$0xff]
      %v328 = vld [vmem:[%s1 + $0x40] sm:$0xff]
      %v329 = vld [vmem:[%s1 + $0x48] sm:$0xff]
      %v330 = vld [vmem:[%s1 + $0x50] sm:$0xff]
      %v331 = vld [vmem:[%s1 + $0x58] sm:$0xff]
      %v332 = vld [vmem:[%s1 + $0x60] sm:$0xff]
      %v333 = vld [vmem:[%s1 + $0x68] sm:$0xff]
      %v334 = vld [vmem:[%s1 + $0x70] sm:$0xff]
      %v335 = vld [vmem:[%s1 + $0x78] sm:$0xff]
      %v336 = vld [vmem:[%s1 + $0x80] sm:$0xff]
      %v337 = vld [vmem:[%s1 + $0x88] sm:$0xff]
      %v338 = vld [vmem:[%s1 + $0x90] sm:$0xff]
      %v339 = vld [vmem:[%s1 + $0x98] sm:$0xff]
      %v340 = vld [vmem:[%s1 + $0xa0] sm:$0xff]
      %v341 = vld [vmem:[%s1 + $0xa8] sm:$0xff]
      %v342 = vld [vmem:[%s1 + $0xb0] sm:$0xff]
      %v343 = vld [vmem:[%s1 + $0xb8] sm:$0xff]
      %v344 = vld [vmem:[%s1 + $0xc0] sm:$0xff]
      %v345 = vld [vmem:[%s1 + $0xc8] sm:$0xff]
      %v346 = vld [vmem:[%s1 + $0xd0] sm:$0xff]
      %v347 = vld [vmem:[%s1 + $0xd8] sm:$0xff]
      %v348 = vld [vmem:[%s1 + $0xe0] sm:$0xff]
      %v349 = vld [vmem:[%s1 + $0xe8] sm:$0xff]
      %v350 = vld [vmem:[%s1 + $0xf0] sm:$0xff]
      %v351 = vld [vmem:[%s1 + $0xf8] sm:$0xff]
      %v352 = vld [vmem:[%s1 + $0x100] sm:$0xff]
      %v353 = vld [vmem:[%s1 + $0x108] sm:$0xff]
      %v354 = vld [vmem:[%s1 + $0x110] sm:$0xff]
      %v355 = vld [vmem:[%s1 + $0x118] sm:$0xff]
      %v356 = vld [vmem:[%s1 + $0x120] sm:$0xff]
      %v357 = vld [vmem:[%s1 + $0x128] sm:$0xff]
      %v358 = vld [vmem:[%s1 + $0x130] sm:$0xff]
      %v359 = vld [vmem:[%s1 + $0x138] sm:$0xff]
      %v360 = vld [vmem:[%s1 + $0x140] sm:$0xff]
      %v361 = vld [vmem:[%s1 + $0x148] sm:$0xff]
      %v362 = vld [vmem:[%s1 + $0x150] sm:$0xff]
      %v363 = vld [vmem:[%s1 + $0x158] sm:$0xff]
      %v364 = vld [vmem:[%s1 + $0x160] sm:$0xff]
      %v365 = vld [vmem:[%s1 + $0x168] sm:$0xff]
      %v366 = vld [vmem:[%s1 + $0x170] sm:$0xff]
      %v367 = vld [vmem:[%s1 + $0x178] sm:$0xff]
      %v368 = vld [vmem:[%s1 + $0x180] sm:$0xff]
      %v369 = vld [vmem:[%s1 + $0x188] sm:$0xff]
      %v370 = vld [vmem:[%s1 + $0x190] sm:$0xff]
      %v371 = vld [vmem:[%s1 + $0x198] sm:$0xff]
      %v372 = vld [vmem:[%s1 + $0x1a0] sm:$0xff]
      %v373 = vld [vmem:[%s1 + $0x1a8] sm:$0xff]
      %v374 = vld [vmem:[%s1 + $0x1b0] sm:$0xff]
      %v375 = vld [vmem:[%s1 + $0x1b8] sm:$0xff]
      %v376 = vld [vmem:[%s1 + $0x1c0] sm:$0xff]
      %v377 = vld [vmem:[%s1 + $0x1c8] sm:$0xff]
      %v378 = vld [vmem:[%s1 + $0x1d0] sm:$0xff]
      %v379 = vld [vmem:[%s1 + $0x1d8] sm:$0xff]
      %v380 = vld [vmem:[%s1 + $0x1e0] sm:$0xff]
      %v381 = vld [vmem:[%s1 + $0x1e8] sm:$0xff]
      %v382 = vld [vmem:[%s1 + $0x1f0] sm:$0xff]
      %v383 = vld [vmem:[%s1 + $0x1f8] sm:$0xff]
      %v384 = vld [vmem:[%s1 + $0x200] sm:$0xff]
      %v385 = vld [vmem:[%s1 + $0x208] sm:$0xff]
      %v386 = vld [vmem:[%s1 + $0x210] sm:$0xff]
      %v387 = vld [vmem:[%s1 + $0x218] sm:$0xff]
      %v388 = vld [vmem:[%s1 + $0x220] sm:$0xff]
      %v389 = vld [vmem:[%s1 + $0x228] sm:$0xff]
      %v390 = vld [vmem:[%s1 + $0x230] sm:$0xff]
      %v391 = vld [vmem:[%s1 + $0x238] sm:$0xff]
      %v392 = vld [vmem:[%s1 + $0x240] sm:$0xff]
      %v393 = vld [vmem:[%s1 + $0x248] sm:$0xff]
      %v394 = vld [vmem:[%s1 + $0x250] sm:$0xff]
      %v395 = vld [vmem:[%s1 + $0x258] sm:$0xff]
      %v396 = vld [vmem:[%s1 + $0x260] sm:$0xff]
      %v397 = vld [vmem:[%s1 + $0x268] sm:$0xff]
      %v398 = vld [vmem:[%s1 + $0x270] sm:$0xff]
      %v399 = vld [vmem:[%s1 + $0x278] sm:$0xff]
      %v400 = vld [vmem:[%s1 + $0x280] sm:$0xff]
      %v401 = vld [vmem:[%s1 + $0x288] sm:$0xff]
      %v402 = vld [vmem:[%s1 + $0x290] sm:$0xff]
      %v403 = vld [vmem:[%s1 + $0x298] sm:$0xff]
      %v404 = vld [vmem:[%s1 + $0x2a0] sm:$0xff]
      %v405 = vld [vmem:[%s1 + $0x2a8] sm:$0xff]
      %v406 = vld [vmem:[%s1 + $0x2b0] sm:$0xff]
      %v407 = vld [vmem:[%s1 + $0x2b8] sm:$0xff]
      %v408 = vld [vmem:[%s1 + $0x2c0] sm:$0xff]
      %v409 = vld [vmem:[%s1 + $0x2c8] sm:$0xff]
      %v410 = vld [vmem:[%s1 + $0x2d0] sm:$0xff]
      %v411 = vld [vmem:[%s1 + $0x2d8] sm:$0xff]
      %v412 = vld [vmem:[%s1 + $0x2e0] sm:$0xff]
      %v413 = vld [vmem:[%s1 + $0x2e8] sm:$0xff]
      %v414 = vld [vmem:[%s1 + $0x2f0] sm:$0xff]
      %v415 = vld [vmem:[%s1 + $0x2f8] sm:$0xff]
      %v416 = vld [vmem:[%s1 + $0x300] sm:$0xff]
      %v417 = vld [vmem:[%s1 + $0x308] sm:$0xff]
      %v418 = vld [vmem:[%s1 + $0x310] sm:$0xff]
      %v419 = vld [vmem:[%s1 + $0x318] sm:$0xff]
      %v420 = vld [vmem:[%s1 + $0x320] sm:$0xff]
      %v421 = vld [vmem:[%s1 + $0x328] sm:$0xff]
      %v422 = vld [vmem:[%s1 + $0x330] sm:$0xff]
      %v423 = vld [vmem:[%s1 + $0x338] sm:$0xff]
      %v424 = vld [vmem:[%s1 + $0x340] sm:$0xff]
      %v425 = vld [vmem:[%s1 + $0x348] sm:$0xff]
      %v426 = vld [vmem:[%s1 + $0x350] sm:$0xff]
      %v427 = vld [vmem:[%s1 + $0x358] sm:$0xff]
      %v428 = vld [vmem:[%s1 + $0x360] sm:$0xff]
      %v429 = vld [vmem:[%s1 + $0x368] sm:$0xff]
      %v430 = vld [vmem:[%s1 + $0x370] sm:$0xff]
      %v431 = vld [vmem:[%s1 + $0x378] sm:$0xff]
      %v432 = vld [vmem:[%s1 + $0x380] sm:$0xff]
      %v433 = vld [vmem:[%s1 + $0x388] sm:$0xff]
      %v434 = vld [vmem:[%s1 + $0x390] sm:$0xff]
      %v435 = vld [vmem:[%s1 + $0x398] sm:$0xff]
      %v436 = vld [vmem:[%s1 + $0x3a0] sm:$0xff]
      %v437 = vld [vmem:[%s1 + $0x3a8] sm:$0xff]
      %v438 = vld [vmem:[%s1 + $0x3b0] sm:$0xff]
      %v439 = vld [vmem:[%s1 + $0x3b8] sm:$0xff]
      %v440 = vld [vmem:[%s1 + $0x3c0] sm:$0xff]
      %v441 = vld [vmem:[%s1 + $0x3c8] sm:$0xff]
      %v442 = vld [vmem:[%s1 + $0x3d0] sm:$0xff]
      %v443 = vld [vmem:[%s1 + $0x3d8] sm:$0xff]
      %v444 = vld [vmem:[%s1 + $0x3e0] sm:$0xff]
      %v445 = vld [vmem:[%s1 + $0x3e8] sm:$0xff]
      %v446 = vld [vmem:[%s1 + $0x3f0] sm:$0xff]
      %v447 = vld [vmem:[%s1 + $0x3f8] sm:$0xff]
      %v448 = vld [vmem:[%s1 + $0x400] sm:$0xff]
      %v449 = vld [vmem:[%s1 + $0x408] sm:$0xff]
      %v450 = vld [vmem:[%s1 + $0x410] sm:$0xff]
      %v451 = vld [vmem:[%s1 + $0x418] sm:$0xff]
      %v452 = vld [vmem:[%s1 + $0x420] sm:$0xff]
      %v453 = vld [vmem:[%s1 + $0x428] sm:$0xff]
      %v454 = vld [vmem:[%s1 + $0x430] sm:$0xff]
      %v455 = vld [vmem:[%s1 + $0x438] sm:$0xff]
      %v456 = vld [vmem:[%s1 + $0x440] sm:$0xff]
      %v457 = vld [vmem:[%s1 + $0x448] sm:$0xff]
      %v458 = vld [vmem:[%s1 + $0x450] sm:$0xff]
      %v459 = vld [vmem:[%s1 + $0x458] sm:$0xff]
      %v460 = vld [vmem:[%s1 + $0x460] sm:$0xff]
      %v461 = vld [vmem:[%s1 + $0x468] sm:$0xff]
      %v462 = vld [vmem:[%s1 + $0x470] sm:$0xff]
      %v463 = vld [vmem:[%s1 + $0x478] sm:$0xff]
      %v464 = vld [vmem:[%s1 + $0x480] sm:$0xff]
      %v465 = vld [vmem:[%s1 + $0x488] sm:$0xff]
      %v466 = vld [vmem:[%s1 + $0x490] sm:$0xff]
      %v467 = vld [vmem:[%s1 + $0x498] sm:$0xff]
      %v468 = vld [vmem:[%s1 + $0x4a0] sm:$0xff]
      %v469 = vld [vmem:[%s1 + $0x4a8] sm:$0xff]
      %v470 = vld [vmem:[%s1 + $0x4b0] sm:$0xff]
      %v471 = vld [vmem:[%s1 + $0x4b8] sm:$0xff]
      %v472 = vld [vmem:[%s1 + $0x4c0] sm:$0xff]
      %v473 = vld [vmem:[%s1 + $0x4c8] sm:$0xff]
      %v474 = vld [vmem:[%s1 + $0x4d0] sm:$0xff]
      %v475 = vld [vmem:[%s1 + $0x4d8] sm:$0xff]
      %v476 = vld [vmem:[%s1 + $0x4e0] sm:$0xff]
      %v477 = vld [vmem:[%s1 + $0x4e8] sm:$0xff]
      %v478 = vld [vmem:[%s1 + $0x4f0] sm:$0xff]
      %v479 = vld [vmem:[%s1 + $0x4f8] sm:$0xff]
      %v480 = vld [vmem:[%s1 + $0x500] sm:$0xff]
      %v481 = vld [vmem:[%s1 + $0x508] sm:$0xff]
      %v482 = vld [vmem:[%s1 + $0x510] sm:$0xff]
      %v483 = vld [vmem:[%s1 + $0x518] sm:$0xff]
      %v484 = vld [vmem:[%s1 + $0x520] sm:$0xff]
      %v485 = vld [vmem:[%s1 + $0x528] sm:$0xff]
      %v486 = vld [vmem:[%s1 + $0x530] sm:$0xff]
      %v487 = vld [vmem:[%s1 + $0x538] sm:$0xff]
      %v488 = vld [vmem:[%s1 + $0x540] sm:$0xff]
      %v489 = vld [vmem:[%s1 + $0x548] sm:$0xff]
      %v490 = vld [vmem:[%s1 + $0x550] sm:$0xff]
      %v491 = vld [vmem:[%s1 + $0x558] sm:$0xff]
      %v492 = vld [vmem:[%s1 + $0x560] sm:$0xff]
      %v493 = vld [vmem:[%s1 + $0x568] sm:$0xff]
      %v494 = vld [vmem:[%s1 + $0x570] sm:$0xff]
      %v495 = vld [vmem:[%s1 + $0x578] sm:$0xff]
      %v496 = vld [vmem:[%s1 + $0x580] sm:$0xff]
      %v497 = vld [vmem:[%s1 + $0x588] sm:$0xff]
      %v498 = vld [vmem:[%s1 + $0x590] sm:$0xff]
      %v499 = vld [vmem:[%s1 + $0x598] sm:$0xff]
      %v500 = vld [vmem:[%s1 + $0x5a0] sm:$0xff]
      %v501 = vld [vmem:[%s1 + $0x5a8] sm:$0xff]
      %v502 = vld [vmem:[%s1 + $0x5b0] sm:$0xff]
      %v503 = vld [vmem:[%s1 + $0x5b8] sm:$0xff]
      %v504 = vld [vmem:[%s1 + $0x5c0] sm:$0xff]
      %v505 = vld [vmem:[%s1 + $0x5c8] sm:$0xff]
      %v506 = vld [vmem:[%s1 + $0x5d0] sm:$0xff]
      %v507 = vld [vmem:[%s1 + $0x5d8] sm:$0xff]
      %v508 = vld [vmem:[%s1 + $0x5e0] sm:$0xff]
      %v509 = vld [vmem:[%s1 + $0x5e8] sm:$0xff]
      %v510 = vld [vmem:[%s1 + $0x5f0] sm:$0xff]
      %v511 = vld [vmem:[%s1 + $0x5f8] sm:$0xff]
      %v512 = vld [vmem:[%s2] sm:$0xff]
      %v513 = vld [vmem:[%s2 + $0x8] sm:$0xff]
      %v514 = vld [vmem:[%s2 + $0x10] sm:$0xff]
      %v515 = vld [vmem:[%s2 + $0x18] sm:$0xff]
      %v516 = vld [vmem:[%s2 + $0x20] sm:$0xff]
      %v517 = vld [vmem:[%s2 + $0x28] sm:$0xff]
      %v518 = vld [vmem:[%s2 + $0x30] sm:$0xff]
      %v519 = vld [vmem:[%s2 + $0x38] sm:$0xff]
      %v520 = vld [vmem:[%s2 + $0x40] sm:$0xff]
      %v521 = vld [vmem:[%s2 + $0x48] sm:$0xff]
      %v522 = vld [vmem:[%s2 + $0x50] sm:$0xff]
      %v523 = vld [vmem:[%s2 + $0x58] sm:$0xff]
      %v524 = vld [vmem:[%s2 + $0x60] sm:$0xff]
      %v525 = vld [vmem:[%s2 + $0x68] sm:$0xff]
      %v526 = vld [vmem:[%s2 + $0x70] sm:$0xff]
      %v527 = vld [vmem:[%s2 + $0x78] sm:$0xff]
      %v528 = vld [vmem:[%s2 + $0x80] sm:$0xff]
      %v529 = vld [vmem:[%s2 + $0x88] sm:$0xff]
      %v530 = vld [vmem:[%s2 + $0x90] sm:$0xff]
      %v531 = vld [vmem:[%s2 + $0x98] sm:$0xff]
      %v532 = vld [vmem:[%s2 + $0xa0] sm:$0xff]
      %v533 = vld [vmem:[%s2 + $0xa8] sm:$0xff]
      %v534 = vld [vmem:[%s2 + $0xb0] sm:$0xff]
      %v535 = vld [vmem:[%s2 + $0xb8] sm:$0xff]
      %v536 = vld [vmem:[%s2 + $0xc0] sm:$0xff]
      %v537 = vld [vmem:[%s2 + $0xc8] sm:$0xff]
      %v538 = vld [vmem:[%s2 + $0xd0] sm:$0xff]
      %v539 = vld [vmem:[%s2 + $0xd8] sm:$0xff]
      %v540 = vld [vmem:[%s2 + $0xe0] sm:$0xff]
      %v541 = vld [vmem:[%s2 + $0xe8] sm:$0xff]
      %v542 = vld [vmem:[%s2 + $0xf0] sm:$0xff]
      %v543 = vld [vmem:[%s2 + $0xf8] sm:$0xff]
      %v544 = vld [vmem:[%s2 + $0x100] sm:$0xff]
      %v545 = vld [vmem:[%s2 + $0x108] sm:$0xff]
      %v546 = vld [vmem:[%s2 + $0x110] sm:$0xff]
      %v547 = vld [vmem:[%s2 + $0x118] sm:$0xff]
      %v548 = vld [vmem:[%s2 + $0x120] sm:$0xff]
      %v549 = vld [vmem:[%s2 + $0x128] sm:$0xff]
      %v550 = vld [vmem:[%s2 + $0x130] sm:$0xff]
      %v551 = vld [vmem:[%s2 + $0x138] sm:$0xff]
      %v552 = vld [vmem:[%s2 + $0x140] sm:$0xff]
      %v553 = vld [vmem:[%s2 + $0x148] sm:$0xff]
      %v554 = vld [vmem:[%s2 + $0x150] sm:$0xff]
      %v555 = vld [vmem:[%s2 + $0x158] sm:$0xff]
      %v556 = vld [vmem:[%s2 + $0x160] sm:$0xff]
      %v557 = vld [vmem:[%s2 + $0x168] sm:$0xff]
      %v558 = vld [vmem:[%s2 + $0x170] sm:$0xff]
      %v559 = vld [vmem:[%s2 + $0x178] sm:$0xff]
      %v560 = vld [vmem:[%s2 + $0x180] sm:$0xff]
      %v561 = vld [vmem:[%s2 + $0x188] sm:$0xff]
      %v562 = vld [vmem:[%s2 + $0x190] sm:$0xff]
      %v563 = vld [vmem:[%s2 + $0x198] sm:$0xff]
      %v564 = vld [vmem:[%s2 + $0x1a0] sm:$0xff]
      %v565 = vld [vmem:[%s2 + $0x1a8] sm:$0xff]
      %v566 = vld [vmem:[%s2 + $0x1b0] sm:$0xff]
      %v567 = vld [vmem:[%s2 + $0x1b8] sm:$0xff]
      %v568 = vld [vmem:[%s2 + $0x1c0] sm:$0xff]
      %v569 = vld [vmem:[%s2 + $0x1c8] sm:$0xff]
      %v570 = vld [vmem:[%s2 + $0x1d0] sm:$0xff]
      %v571 = vld [vmem:[%s2 + $0x1d8] sm:$0xff]
      %v572 = vld [vmem:[%s2 + $0x1e0] sm:$0xff]
      %v573 = vld [vmem:[%s2 + $0x1e8] sm:$0xff]
      %v574 = vld [vmem:[%s2 + $0x1f0] sm:$0xff]
      %v575 = vld [vmem:[%s2 + $0x1f8] sm:$0xff]
      %v576 = vld [vmem:[%s2 + $0x200] sm:$0xff]
      %v577 = vld [vmem:[%s2 + $0x208] sm:$0xff]
      %v578 = vld [vmem:[%s2 + $0x210] sm:$0xff]
      %v579 = vld [vmem:[%s2 + $0x218] sm:$0xff]
      %v580 = vld [vmem:[%s2 + $0x220] sm:$0xff]
      %v581 = vld [vmem:[%s2 + $0x228] sm:$0xff]
      %v582 = vld [vmem:[%s2 + $0x230] sm:$0xff]
      %v583 = vld [vmem:[%s2 + $0x238] sm:$0xff]
      %v584 = vld [vmem:[%s2 + $0x240] sm:$0xff]
      %v585 = vld [vmem:[%s2 + $0x248] sm:$0xff]
      %v586 = vld [vmem:[%s2 + $0x250] sm:$0xff]
      %v587 = vld [vmem:[%s2 + $0x258] sm:$0xff]
      %v588 = vld [vmem:[%s2 + $0x260] sm:$0xff]
      %v589 = vld [vmem:[%s2 + $0x268] sm:$0xff]
      %v590 = vld [vmem:[%s2 + $0x270] sm:$0xff]
      %v591 = vld [vmem:[%s2 + $0x278] sm:$0xff]
      %v592 = vld [vmem:[%s2 + $0x280] sm:$0xff]
      %v593 = vld [vmem:[%s2 + $0x288] sm:$0xff]
      %v594 = vld [vmem:[%s2 + $0x290] sm:$0xff]
      %v595 = vld [vmem:[%s2 + $0x298] sm:$0xff]
      %v596 = vld [vmem:[%s2 + $0x2a0] sm:$0xff]
      %v597 = vld [vmem:[%s2 + $0x2a8] sm:$0xff]
      %v598 = vld [vmem:[%s2 + $0x2b0] sm:$0xff]
      %v599 = vld [vmem:[%s2 + $0x2b8] sm:$0xff]
      %v600 = vld [vmem:[%s2 + $0x2c0] sm:$0xff]
      %v601 = vld [vmem:[%s2 + $0x2c8] sm:$0xff]
      %v602 = vld [vmem:[%s2 + $0x2d0] sm:$0xff]
      %v603 = vld [vmem:[%s2 + $0x2d8] sm:$0xff]
      %v604 = vld [vmem:[%s2 + $0x2e0] sm:$0xff]
      %v605 = vld [vmem:[%s2 + $0x2e8] sm:$0xff]
      %v606 = vld [vmem:[%s2 + $0x2f0] sm:$0xff]
      %v607 = vld [vmem:[%s2 + $0x2f8] sm:$0xff]
      %v608 = vld [vmem:[%s2 + $0x300] sm:$0xff]
      %v609 = vld [vmem:[%s2 + $0x308] sm:$0xff]
      %v610 = vld [vmem:[%s2 + $0x310] sm:$0xff]
      %v611 = vld [vmem:[%s2 + $0x318] sm:$0xff]
      %v612 = vld [vmem:[%s2 + $0x320] sm:$0xff]
      %v613 = vld [vmem:[%s2 + $0x328] sm:$0xff]
      %v614 = vld [vmem:[%s2 + $0x330] sm:$0xff]
      %v615 = vld [vmem:[%s2 + $0x338] sm:$0xff]
      %v616 = vld [vmem:[%s2 + $0x340] sm:$0xff]
      %v617 = vld [vmem:[%s2 + $0x348] sm:$0xff]
      %v618 = vld [vmem:[%s2 + $0x350] sm:$0xff]
      %v619 = vld [vmem:[%s2 + $0x358] sm:$0xff]
      %v620 = vld [vmem:[%s2 + $0x360] sm:$0xff]
      %v621 = vld [vmem:[%s2 + $0x368] sm:$0xff]
      %v622 = vld [vmem:[%s2 + $0x370] sm:$0xff]
      %v623 = vld [vmem:[%s2 + $0x378] sm:$0xff]
      %v624 = vld [vmem:[%s2 + $0x380] sm:$0xff]
      %v625 = vld [vmem:[%s2 + $0x388] sm:$0xff]
      %v626 = vld [vmem:[%s2 + $0x390] sm:$0xff]
      %v627 = vld [vmem:[%s2 + $0x398] sm:$0xff]
      %v628 = vld [vmem:[%s2 + $0x3a0] sm:$0xff]
      %v629 = vld [vmem:[%s2 + $0x3a8] sm:$0xff]
      %v630 = vld [vmem:[%s2 + $0x3b0] sm:$0xff]
      %v631 = vld [vmem:[%s2 + $0x3b8] sm:$0xff]
      %v632 = vld [vmem:[%s2 + $0x3c0] sm:$0xff]
      %v633 = vld [vmem:[%s2 + $0x3c8] sm:$0xff]
      %v634 = vld [vmem:[%s2 + $0x3d0] sm:$0xff]
      %v635 = vld [vmem:[%s2 + $0x3d8] sm:$0xff]
      %v636 = vld [vmem:[%s2 + $0x3e0] sm:$0xff]
      %v637 = vld [vmem:[%s2 + $0x3e8] sm:$0xff]
      %v638 = vld [vmem:[%s2 + $0x3f0] sm:$0xff]
      %v639 = vld [vmem:[%s2 + $0x3f8] sm:$0xff]
      %v640 = vld [vmem:[%s2 + $0x400] sm:$0xff]
      %v641 = vld [vmem:[%s2 + $0x408] sm:$0xff]
      %v642 = vld [vmem:[%s2 + $0x410] sm:$0xff]
      %v643 = vld [vmem:[%s2 + $0x418] sm:$0xff]
      %v644 = vld [vmem:[%s2 + $0x420] sm:$0xff]
      %v645 = vld [vmem:[%s2 + $0x428] sm:$0xff]
      %v646 = vld [vmem:[%s2 + $0x430] sm:$0xff]
      %v647 = vld [vmem:[%s2 + $0x438] sm:$0xff]
      %v648 = vld [vmem:[%s2 + $0x440] sm:$0xff]
      %v649 = vld [vmem:[%s2 + $0x448] sm:$0xff]
      %v650 = vld [vmem:[%s2 + $0x450] sm:$0xff]
      %v651 = vld [vmem:[%s2 + $0x458] sm:$0xff]
      %v652 = vld [vmem:[%s2 + $0x460] sm:$0xff]
      %v653 = vld [vmem:[%s2 + $0x468] sm:$0xff]
      %v654 = vld [vmem:[%s2 + $0x470] sm:$0xff]
      %v655 = vld [vmem:[%s2 + $0x478] sm:$0xff]
      %v656 = vld [vmem:[%s2 + $0x480] sm:$0xff]
      %v657 = vld [vmem:[%s2 + $0x488] sm:$0xff]
      %v658 = vld [vmem:[%s2 + $0x490] sm:$0xff]
      %v659 = vld [vmem:[%s2 + $0x498] sm:$0xff]
      %v660 = vld [vmem:[%s2 + $0x4a0] sm:$0xff]
      %v661 = vld [vmem:[%s2 + $0x4a8] sm:$0xff]
      %v662 = vld [vmem:[%s2 + $0x4b0] sm:$0xff]
      %v663 = vld [vmem:[%s2 + $0x4b8] sm:$0xff]
      %v664 = vld [vmem:[%s2 + $0x4c0] sm:$0xff]
      %v665 = vld [vmem:[%s2 + $0x4c8] sm:$0xff]
      %v666 = vld [vmem:[%s2 + $0x4d0] sm:$0xff]
      %v667 = vld [vmem:[%s2 + $0x4d8] sm:$0xff]
      %v668 = vld [vmem:[%s2 + $0x4e0] sm:$0xff]
      %v669 = vld [vmem:[%s2 + $0x4e8] sm:$0xff]
      %v670 = vld [vmem:[%s2 + $0x4f0] sm:$0xff]
      %v671 = vld [vmem:[%s2 + $0x4f8] sm:$0xff]
      %v672 = vld [vmem:[%s2 + $0x500] sm:$0xff]
      %v673 = vld [vmem:[%s2 + $0x508] sm:$0xff]
      %v674 = vld [vmem:[%s2 + $0x510] sm:$0xff]
      %v675 = vld [vmem:[%s2 + $0x518] sm:$0xff]
      %v676 = vld [vmem:[%s2 + $0x520] sm:$0xff]
      %v677 = vld [vmem:[%s2 + $0x528] sm:$0xff]
      %v678 = vld [vmem:[%s2 + $0x530] sm:$0xff]
      %v679 = vld [vmem:[%s2 + $0x538] sm:$0xff]
      %v680 = vld [vmem:[%s2 + $0x540] sm:$0xff]
      %v681 = vld [vmem:[%s2 + $0x548] sm:$0xff]
      %v682 = vld [vmem:[%s2 + $0x550] sm:$0xff]
      %v683 = vld [vmem:[%s2 + $0x558] sm:$0xff]
      %v684 = vld [vmem:[%s2 + $0x560] sm:$0xff]
      %v685 = vld [vmem:[%s2 + $0x568] sm:$0xff]
      %v686 = vld [vmem:[%s2 + $0x570] sm:$0xff]
      %v687 = vld [vmem:[%s2 + $0x578] sm:$0xff]
      %v688 = vld [vmem:[%s2 + $0x580] sm:$0xff]
      %v689 = vld [vmem:[%s2 + $0x588] sm:$0xff]
      %v690 = vld [vmem:[%s2 + $0x590] sm:$0xff]
      %v691 = vld [vmem:[%s2 + $0x598] sm:$0xff]
      %v692 = vld [vmem:[%s2 + $0x5a0] sm:$0xff]
      %v693 = vld [vmem:[%s2 + $0x5a8] sm:$0xff]
      %v694 = vld [vmem:[%s2 + $0x5b0] sm:$0xff]
      %v695 = vld [vmem:[%s2 + $0x5b8] sm:$0xff]
      %v696 = vld [vmem:[%s2 + $0x5c0] sm:$0xff]
      %v697 = vld [vmem:[%s2 + $0x5c8] sm:$0xff]
      %v698 = vld [vmem:[%s2 + $0x5d0] sm:$0xff]
      %v699 = vld [vmem:[%s2 + $0x5d8] sm:$0xff]
      %v700 = vld [vmem:[%s2 + $0x5e0] sm:$0xff]
      %v701 = vld [vmem:[%s2 + $0x5e8] sm:$0xff]
      %v702 = vld [vmem:[%s2 + $0x5f0] sm:$0xff]
      %v703 = vld [vmem:[%s2 + $0x5f8] sm:$0xff]
      %v899 = vunpack.c.l.b16 %v512
      %v900 = vunpack.c.h.b16 %v512
      %v901 = vunpack.c.l.b16 %v513
      %v902 = vunpack.c.h.b16 %v513
      %v903 = vunpack.c.l.b16 %v514
      %v904 = vunpack.c.h.b16 %v514
      %v905 = vunpack.c.l.b16 %v515
      %v906 = vunpack.c.h.b16 %v515
      %v907 = vunpack.c.l.b16 %v516
      %v908 = vunpack.c.h.b16 %v516
      %v909 = vunpack.c.l.b16 %v517
      %v910 = vunpack.c.h.b16 %v517
      %v911 = vunpack.c.l.b16 %v518
      %v912 = vunpack.c.h.b16 %v518
      %v913 = vunpack.c.l.b16 %v519
      %v914 = vunpack.c.h.b16 %v519
      %v915 = vunpack.c.l.b16 %v520
      %v916 = vunpack.c.h.b16 %v520
      %v917 = vunpack.c.l.b16 %v521
      %v918 = vunpack.c.h.b16 %v521
      %v919 = vunpack.c.l.b16 %v522
      %v920 = vunpack.c.h.b16 %v522
      %v921 = vunpack.c.l.b16 %v523
      %v922 = vunpack.c.h.b16 %v523
      %v923 = vunpack.c.l.b16 %v524
      %v924 = vunpack.c.h.b16 %v524
      %v925 = vunpack.c.l.b16 %v525
      %v926 = vunpack.c.h.b16 %v525
      %v927 = vunpack.c.l.b16 %v526
      %v928 = vunpack.c.h.b16 %v526
      %v929 = vunpack.c.l.b16 %v527
      %v930 = vunpack.c.h.b16 %v527
      %v931 = vunpack.c.l.b16 %v528
      %v932 = vunpack.c.h.b16 %v528
      %v933 = vunpack.c.l.b16 %v529
      %v934 = vunpack.c.h.b16 %v529
      %v935 = vunpack.c.l.b16 %v530
      %v936 = vunpack.c.h.b16 %v530
      %v937 = vunpack.c.l.b16 %v531
      %v938 = vunpack.c.h.b16 %v531
      %v939 = vunpack.c.l.b16 %v532
      %v940 = vunpack.c.h.b16 %v532
      %v941 = vunpack.c.l.b16 %v533
      %v942 = vunpack.c.h.b16 %v533
      %v943 = vunpack.c.l.b16 %v534
      %v944 = vunpack.c.h.b16 %v534
      %v945 = vunpack.c.l.b16 %v535
      %v946 = vunpack.c.h.b16 %v535
      %v947 = vunpack.c.l.b16 %v536
      %v948 = vunpack.c.h.b16 %v536
      %v949 = vunpack.c.l.b16 %v537
      %v950 = vunpack.c.h.b16 %v537
      %v951 = vunpack.c.l.b16 %v538
      %v952 = vunpack.c.h.b16 %v538
      %v953 = vunpack.c.l.b16 %v539
      %v954 = vunpack.c.h.b16 %v539
      %v955 = vunpack.c.l.b16 %v540
      %v956 = vunpack.c.h.b16 %v540
      %v957 = vunpack.c.l.b16 %v541
      %v958 = vunpack.c.h.b16 %v541
      %v959 = vunpack.c.l.b16 %v542
      %v960 = vunpack.c.h.b16 %v542
      %v961 = vunpack.c.l.b16 %v543
      %v962 = vunpack.c.h.b16 %v543
      %v963 = vunpack.c.l.b16 %v544
      %v964 = vunpack.c.h.b16 %v544
      %v965 = vunpack.c.l.b16 %v545
      %v966 = vunpack.c.h.b16 %v545
      %v967 = vunpack.c.l.b16 %v546
      %v968 = vunpack.c.h.b16 %v546
      %v969 = vunpack.c.l.b16 %v547
      %v970 = vunpack.c.h.b16 %v547
      %v971 = vunpack.c.l.b16 %v548
      %v972 = vunpack.c.h.b16 %v548
      %v973 = vunpack.c.l.b16 %v549
      %v974 = vunpack.c.h.b16 %v549
      %v975 = vunpack.c.l.b16 %v550
      %v976 = vunpack.c.h.b16 %v550
      %v977 = vunpack.c.l.b16 %v551
      %v978 = vunpack.c.h.b16 %v551
      %v979 = vunpack.c.l.b16 %v552
      %v980 = vunpack.c.h.b16 %v552
      %v981 = vunpack.c.l.b16 %v553
      %v982 = vunpack.c.h.b16 %v553
      %v983 = vunpack.c.l.b16 %v554
      %v984 = vunpack.c.h.b16 %v554
      %v985 = vunpack.c.l.b16 %v555
      %v986 = vunpack.c.h.b16 %v555
      %v987 = vunpack.c.l.b16 %v556
      %v988 = vunpack.c.h.b16 %v556
      %v989 = vunpack.c.l.b16 %v557
      %v990 = vunpack.c.h.b16 %v557
      %v991 = vunpack.c.l.b16 %v558
      %v992 = vunpack.c.h.b16 %v558
      %v993 = vunpack.c.l.b16 %v559
      %v994 = vunpack.c.h.b16 %v559
      %v995 = vunpack.c.l.b16 %v560
      %v996 = vunpack.c.h.b16 %v560
      %v997 = vunpack.c.l.b16 %v561
      %v998 = vunpack.c.h.b16 %v561
      %v999 = vunpack.c.l.b16 %v562
      %v1000 = vunpack.c.h.b16 %v562
      %v1001 = vunpack.c.l.b16 %v563
      %v1002 = vunpack.c.h.b16 %v563
      %v1003 = vunpack.c.l.b16 %v564
      %v1004 = vunpack.c.h.b16 %v564
      %v1005 = vunpack.c.l.b16 %v565
      %v1006 = vunpack.c.h.b16 %v565
      %v1007 = vunpack.c.l.b16 %v566
      %v1008 = vunpack.c.h.b16 %v566
      %v1009 = vunpack.c.l.b16 %v567
      %v1010 = vunpack.c.h.b16 %v567
      %v1011 = vunpack.c.l.b16 %v568
      %v1012 = vunpack.c.h.b16 %v568
      %v1013 = vunpack.c.l.b16 %v569
      %v1014 = vunpack.c.h.b16 %v569
      %v1015 = vunpack.c.l.b16 %v570
      %v1016 = vunpack.c.h.b16 %v570
      %v1017 = vunpack.c.l.b16 %v571
      %v1018 = vunpack.c.h.b16 %v571
      %v1019 = vunpack.c.l.b16 %v572
      %v1020 = vunpack.c.h.b16 %v572
      %v1021 = vunpack.c.l.b16 %v573
      %v1022 = vunpack.c.h.b16 %v573
      %v1023 = vunpack.c.l.b16 %v574
      %v1024 = vunpack.c.h.b16 %v574
      %v1025 = vunpack.c.l.b16 %v575
      %v1026 = vunpack.c.h.b16 %v575
      %v1027 = vunpack.c.l.b16 %v576
      %v1028 = vunpack.c.h.b16 %v576
      %v1029 = vunpack.c.l.b16 %v577
      %v1030 = vunpack.c.h.b16 %v577
      %v1031 = vunpack.c.l.b16 %v578
      %v1032 = vunpack.c.h.b16 %v578
      %v1033 = vunpack.c.l.b16 %v579
      %v1034 = vunpack.c.h.b16 %v579
      %v1035 = vunpack.c.l.b16 %v580
      %v1036 = vunpack.c.h.b16 %v580
      %v1037 = vunpack.c.l.b16 %v581
      %v1038 = vunpack.c.h.b16 %v581
      %v1039 = vunpack.c.l.b16 %v582
      %v1040 = vunpack.c.h.b16 %v582
      %v1041 = vunpack.c.l.b16 %v583
      %v1042 = vunpack.c.h.b16 %v583
      %v1043 = vunpack.c.l.b16 %v584
      %v1044 = vunpack.c.h.b16 %v584
      %v1045 = vunpack.c.l.b16 %v585
      %v1046 = vunpack.c.h.b16 %v585
      %v1047 = vunpack.c.l.b16 %v586
      %v1048 = vunpack.c.h.b16 %v586
      %v1049 = vunpack.c.l.b16 %v587
      %v1050 = vunpack.c.h.b16 %v587
      %v1051 = vunpack.c.l.b16 %v588
      %v1052 = vunpack.c.h.b16 %v588
      %v1053 = vunpack.c.l.b16 %v589
      %v1054 = vunpack.c.h.b16 %v589
      %v1055 = vunpack.c.l.b16 %v590
      %v1056 = vunpack.c.h.b16 %v590
      %v1057 = vunpack.c.l.b16 %v591
      %v1058 = vunpack.c.h.b16 %v591
      %v1059 = vunpack.c.l.b16 %v592
      %v1060 = vunpack.c.h.b16 %v592
      %v1061 = vunpack.c.l.b16 %v593
      %v1062 = vunpack.c.h.b16 %v593
      %v1063 = vunpack.c.l.b16 %v594
      %v1064 = vunpack.c.h.b16 %v594
      %v1065 = vunpack.c.l.b16 %v595
      %v1066 = vunpack.c.h.b16 %v595
      %v1067 = vunpack.c.l.b16 %v596
      %v1068 = vunpack.c.h.b16 %v596
      %v1069 = vunpack.c.l.b16 %v597
      %v1070 = vunpack.c.h.b16 %v597
      %v1071 = vunpack.c.l.b16 %v598
      %v1072 = vunpack.c.h.b16 %v598
      %v1073 = vunpack.c.l.b16 %v599
      %v1074 = vunpack.c.h.b16 %v599
      %v1075 = vunpack.c.l.b16 %v600
      %v1076 = vunpack.c.h.b16 %v600
      %v1077 = vunpack.c.l.b16 %v601
      %v1078 = vunpack.c.h.b16 %v601
      %v1079 = vunpack.c.l.b16 %v602
      %v1080 = vunpack.c.h.b16 %v602
      %v1081 = vunpack.c.l.b16 %v603
      %v1082 = vunpack.c.h.b16 %v603
      %v1083 = vunpack.c.l.b16 %v604
      %v1084 = vunpack.c.h.b16 %v604
      %v1085 = vunpack.c.l.b16 %v605
      %v1086 = vunpack.c.h.b16 %v605
      %v1087 = vunpack.c.l.b16 %v606
      %v1088 = vunpack.c.h.b16 %v606
      %v1089 = vunpack.c.l.b16 %v607
      %v1090 = vunpack.c.h.b16 %v607
      %v1091 = vunpack.c.l.b16 %v608
      %v1092 = vunpack.c.h.b16 %v608
      %v1093 = vunpack.c.l.b16 %v609
      %v1094 = vunpack.c.h.b16 %v609
      %v1095 = vunpack.c.l.b16 %v610
      %v1096 = vunpack.c.h.b16 %v610
      %v1097 = vunpack.c.l.b16 %v611
      %v1098 = vunpack.c.h.b16 %v611
      %v1099 = vunpack.c.l.b16 %v612
      %v1100 = vunpack.c.h.b16 %v612
      %v1101 = vunpack.c.l.b16 %v613
      %v1102 = vunpack.c.h.b16 %v613
      %v1103 = vunpack.c.l.b16 %v614
      %v1104 = vunpack.c.h.b16 %v614
      %v1105 = vunpack.c.l.b16 %v615
      %v1106 = vunpack.c.h.b16 %v615
      %v1107 = vunpack.c.l.b16 %v616
      %v1108 = vunpack.c.h.b16 %v616
      %v1109 = vunpack.c.l.b16 %v617
      %v1110 = vunpack.c.h.b16 %v617
      %v1111 = vunpack.c.l.b16 %v618
      %v1112 = vunpack.c.h.b16 %v618
      %v1113 = vunpack.c.l.b16 %v619
      %v1114 = vunpack.c.h.b16 %v619
      %v1115 = vunpack.c.l.b16 %v620
      %v1116 = vunpack.c.h.b16 %v620
      %v1117 = vunpack.c.l.b16 %v621
      %v1118 = vunpack.c.h.b16 %v621
      %v1119 = vunpack.c.l.b16 %v622
      %v1120 = vunpack.c.h.b16 %v622
      %v1121 = vunpack.c.l.b16 %v623
      %v1122 = vunpack.c.h.b16 %v623
      %v1123 = vunpack.c.l.b16 %v624
      %v1124 = vunpack.c.h.b16 %v624
      %v1125 = vunpack.c.l.b16 %v625
      %v1126 = vunpack.c.h.b16 %v625
      %v1127 = vunpack.c.l.b16 %v626
      %v1128 = vunpack.c.h.b16 %v626
      %v1129 = vunpack.c.l.b16 %v627
      %v1130 = vunpack.c.h.b16 %v627
      %v1131 = vunpack.c.l.b16 %v628
      %v1132 = vunpack.c.h.b16 %v628
      %v1133 = vunpack.c.l.b16 %v629
      %v1134 = vunpack.c.h.b16 %v629
      %v1135 = vunpack.c.l.b16 %v630
      %v1136 = vunpack.c.h.b16 %v630
      %v1137 = vunpack.c.l.b16 %v631
      %v1138 = vunpack.c.h.b16 %v631
      %v1139 = vunpack.c.l.b16 %v632
      %v1140 = vunpack.c.h.b16 %v632
      %v1141 = vunpack.c.l.b16 %v633
      %v1142 = vunpack.c.h.b16 %v633
      %v1143 = vunpack.c.l.b16 %v634
      %v1144 = vunpack.c.h.b16 %v634
      %v1145 = vunpack.c.l.b16 %v635
      %v1146 = vunpack.c.h.b16 %v635
      %v1147 = vunpack.c.l.b16 %v636
      %v1148 = vunpack.c.h.b16 %v636
      %v1149 = vunpack.c.l.b16 %v637
      %v1150 = vunpack.c.h.b16 %v637
      %v1151 = vunpack.c.l.b16 %v638
      %v1152 = vunpack.c.h.b16 %v638
      %v1153 = vunpack.c.l.b16 %v639
      %v1154 = vunpack.c.h.b16 %v639
      %v1155 = vunpack.c.l.b16 %v640
      %v1156 = vunpack.c.h.b16 %v640
      %v1157 = vunpack.c.l.b16 %v641
      %v1158 = vunpack.c.h.b16 %v641
      %v1159 = vunpack.c.l.b16 %v642
      %v1160 = vunpack.c.h.b16 %v642
      %v1161 = vunpack.c.l.b16 %v643
      %v1162 = vunpack.c.h.b16 %v643
      %v1163 = vunpack.c.l.b16 %v644
      %v1164 = vunpack.c.h.b16 %v644
      %v1165 = vunpack.c.l.b16 %v645
      %v1166 = vunpack.c.h.b16 %v645
      %v1167 = vunpack.c.l.b16 %v646
      %v1168 = vunpack.c.h.b16 %v646
      %v1169 = vunpack.c.l.b16 %v647
      %v1170 = vunpack.c.h.b16 %v647
      %v1171 = vunpack.c.l.b16 %v648
      %v1172 = vunpack.c.h.b16 %v648
      %v1173 = vunpack.c.l.b16 %v649
      %v1174 = vunpack.c.h.b16 %v649
      %v1175 = vunpack.c.l.b16 %v650
      %v1176 = vunpack.c.h.b16 %v650
      %v1177 = vunpack.c.l.b16 %v651
      %v1178 = vunpack.c.h.b16 %v651
      %v1179 = vunpack.c.l.b16 %v652
      %v1180 = vunpack.c.h.b16 %v652
      %v1181 = vunpack.c.l.b16 %v653
      %v1182 = vunpack.c.h.b16 %v653
      %v1183 = vunpack.c.l.b16 %v654
      %v1184 = vunpack.c.h.b16 %v654
      %v1185 = vunpack.c.l.b16 %v655
      %v1186 = vunpack.c.h.b16 %v655
      %v1187 = vunpack.c.l.b16 %v656
      %v1188 = vunpack.c.h.b16 %v656
      %v1189 = vunpack.c.l.b16 %v657
      %v1190 = vunpack.c.h.b16 %v657
      %v1191 = vunpack.c.l.b16 %v658
      %v1192 = vunpack.c.h.b16 %v658
      %v1193 = vunpack.c.l.b16 %v659
      %v1194 = vunpack.c.h.b16 %v659
      %v1195 = vunpack.c.l.b16 %v660
      %v1196 = vunpack.c.h.b16 %v660
      %v1197 = vunpack.c.l.b16 %v661
      %v1198 = vunpack.c.h.b16 %v661
      %v1199 = vunpack.c.l.b16 %v662
      %v1200 = vunpack.c.h.b16 %v662
      %v1201 = vunpack.c.l.b16 %v663
      %v1202 = vunpack.c.h.b16 %v663
      %v1203 = vunpack.c.l.b16 %v664
      %v1204 = vunpack.c.h.b16 %v664
      %v1205 = vunpack.c.l.b16 %v665
      %v1206 = vunpack.c.h.b16 %v665
      %v1207 = vunpack.c.l.b16 %v666
      %v1208 = vunpack.c.h.b16 %v666
      %v1209 = vunpack.c.l.b16 %v667
      %v1210 = vunpack.c.h.b16 %v667
      %v1211 = vunpack.c.l.b16 %v668
      %v1212 = vunpack.c.h.b16 %v668
      %v1213 = vunpack.c.l.b16 %v669
      %v1214 = vunpack.c.h.b16 %v669
      %v1215 = vunpack.c.l.b16 %v670
      %v1216 = vunpack.c.h.b16 %v670
      %v1217 = vunpack.c.l.b16 %v671
      %v1218 = vunpack.c.h.b16 %v671
      %v1219 = vunpack.c.l.b16 %v672
      %v1220 = vunpack.c.h.b16 %v672
      %v1221 = vunpack.c.l.b16 %v673
      %v1222 = vunpack.c.h.b16 %v673
      %v1223 = vunpack.c.l.b16 %v674
      %v1224 = vunpack.c.h.b16 %v674
      %v1225 = vunpack.c.l.b16 %v675
      %v1226 = vunpack.c.h.b16 %v675
      %v1227 = vunpack.c.l.b16 %v676
      %v1228 = vunpack.c.h.b16 %v676
      %v1229 = vunpack.c.l.b16 %v677
      %v1230 = vunpack.c.h.b16 %v677
      %v1231 = vunpack.c.l.b16 %v678
      %v1232 = vunpack.c.h.b16 %v678
      %v1233 = vunpack.c.l.b16 %v679
      %v1234 = vunpack.c.h.b16 %v679
      %v1235 = vunpack.c.l.b16 %v680
      %v1236 = vunpack.c.h.b16 %v680
      %v1237 = vunpack.c.l.b16 %v681
      %v1238 = vunpack.c.h.b16 %v681
      %v1239 = vunpack.c.l.b16 %v682
      %v1240 = vunpack.c.h.b16 %v682
      %v1241 = vunpack.c.l.b16 %v683
      %v1242 = vunpack.c.h.b16 %v683
      %v1243 = vunpack.c.l.b16 %v684
      %v1244 = vunpack.c.h.b16 %v684
      %v1245 = vunpack.c.l.b16 %v685
      %v1246 = vunpack.c.h.b16 %v685
      %v1247 = vunpack.c.l.b16 %v686
      %v1248 = vunpack.c.h.b16 %v686
      %v1249 = vunpack.c.l.b16 %v687
      %v1250 = vunpack.c.h.b16 %v687
      %v1251 = vunpack.c.l.b16 %v688
      %v1252 = vunpack.c.h.b16 %v688
      %v1253 = vunpack.c.l.b16 %v689
      %v1254 = vunpack.c.h.b16 %v689
      %v1255 = vunpack.c.l.b16 %v690
      %v1256 = vunpack.c.h.b16 %v690
      %v1257 = vunpack.c.l.b16 %v691
      %v1258 = vunpack.c.h.b16 %v691
      %v1259 = vunpack.c.l.b16 %v692
      %v1260 = vunpack.c.h.b16 %v692
      %v1261 = vunpack.c.l.b16 %v693
      %v1262 = vunpack.c.h.b16 %v693
      %v1263 = vunpack.c.l.b16 %v694
      %v1264 = vunpack.c.h.b16 %v694
      %v1265 = vunpack.c.l.b16 %v695
      %v1266 = vunpack.c.h.b16 %v695
      %v1267 = vunpack.c.l.b16 %v696
      %v1268 = vunpack.c.h.b16 %v696
      %v1269 = vunpack.c.l.b16 %v697
      %v1270 = vunpack.c.h.b16 %v697
      %v1271 = vunpack.c.l.b16 %v698
      %v1272 = vunpack.c.h.b16 %v698
      %v1273 = vunpack.c.l.b16 %v699
      %v1274 = vunpack.c.h.b16 %v699
      %v1275 = vunpack.c.l.b16 %v700
      %v1276 = vunpack.c.h.b16 %v700
      %v1277 = vunpack.c.l.b16 %v701
      %v1278 = vunpack.c.h.b16 %v701
      %v1279 = vunpack.c.l.b16 %v702
      %v1280 = vunpack.c.h.b16 %v702
      %v1281 = vunpack.c.l.b16 %v703
      %v1282 = vunpack.c.h.b16 %v703
      %v1283 = vpack.c.b16 %v907, %v899
      %v1284 = vpack.c.b16 %v908, %v900
      %v1285 = vpack.c.b16 %v909, %v901
      %v1286 = vpack.c.b16 %v910, %v902
      %v1287 = vpack.c.b16 %v911, %v903
      %v1288 = vpack.c.b16 %v912, %v904
      %v1289 = vpack.c.b16 %v913, %v905
      %v1290 = vpack.c.b16 %v914, %v906
      %v1291 = vpack.c.b16 %v923, %v915
      %v1292 = vpack.c.b16 %v924, %v916
      %v1293 = vpack.c.b16 %v925, %v917
      %v1294 = vpack.c.b16 %v926, %v918
      %v1295 = vpack.c.b16 %v927, %v919
      %v1296 = vpack.c.b16 %v928, %v920
      %v1297 = vpack.c.b16 %v929, %v921
      %v1298 = vpack.c.b16 %v930, %v922
      %v1299 = vpack.c.b16 %v939, %v931
      %v1300 = vpack.c.b16 %v940, %v932
      %v1301 = vpack.c.b16 %v941, %v933
      %v1302 = vpack.c.b16 %v942, %v934
      %v1303 = vpack.c.b16 %v943, %v935
      %v1304 = vpack.c.b16 %v944, %v936
      %v1305 = vpack.c.b16 %v945, %v937
      %v1306 = vpack.c.b16 %v946, %v938
      %v1307 = vpack.c.b16 %v955, %v947
      %v1308 = vpack.c.b16 %v956, %v948
      %v1309 = vpack.c.b16 %v957, %v949
      %v1310 = vpack.c.b16 %v958, %v950
      %v1311 = vpack.c.b16 %v959, %v951
      %v1312 = vpack.c.b16 %v960, %v952
      %v1313 = vpack.c.b16 %v961, %v953
      %v1314 = vpack.c.b16 %v962, %v954
      %v1315 = vpack.c.b16 %v971, %v963
      %v1316 = vpack.c.b16 %v972, %v964
      %v1317 = vpack.c.b16 %v973, %v965
      %v1318 = vpack.c.b16 %v974, %v966
      %v1319 = vpack.c.b16 %v975, %v967
      %v1320 = vpack.c.b16 %v976, %v968
      %v1321 = vpack.c.b16 %v977, %v969
      %v1322 = vpack.c.b16 %v978, %v970
      %v1323 = vpack.c.b16 %v987, %v979
      %v1324 = vpack.c.b16 %v988, %v980
      %v1325 = vpack.c.b16 %v989, %v981
      %v1326 = vpack.c.b16 %v990, %v982
      %v1327 = vpack.c.b16 %v991, %v983
      %v1328 = vpack.c.b16 %v992, %v984
      %v1329 = vpack.c.b16 %v993, %v985
      %v1330 = vpack.c.b16 %v994, %v986
      %v1331 = vpack.c.b16 %v1003, %v995
      %v1332 = vpack.c.b16 %v1004, %v996
      %v1333 = vpack.c.b16 %v1005, %v997
      %v1334 = vpack.c.b16 %v1006, %v998
      %v1335 = vpack.c.b16 %v1007, %v999
      %v1336 = vpack.c.b16 %v1008, %v1000
      %v1337 = vpack.c.b16 %v1009, %v1001
      %v1338 = vpack.c.b16 %v1010, %v1002
      %v1339 = vpack.c.b16 %v1019, %v1011
      %v1340 = vpack.c.b16 %v1020, %v1012
      %v1341 = vpack.c.b16 %v1021, %v1013
      %v1342 = vpack.c.b16 %v1022, %v1014
      %v1343 = vpack.c.b16 %v1023, %v1015
      %v1344 = vpack.c.b16 %v1024, %v1016
      %v1345 = vpack.c.b16 %v1025, %v1017
      %v1346 = vpack.c.b16 %v1026, %v1018
      %v1347 = vpack.c.b16 %v1035, %v1027
      %v1348 = vpack.c.b16 %v1036, %v1028
      %v1349 = vpack.c.b16 %v1037, %v1029
      %v1350 = vpack.c.b16 %v1038, %v1030
      %v1351 = vpack.c.b16 %v1039, %v1031
      %v1352 = vpack.c.b16 %v1040, %v1032
      %v1353 = vpack.c.b16 %v1041, %v1033
      %v1354 = vpack.c.b16 %v1042, %v1034
      %v1355 = vpack.c.b16 %v1051, %v1043
      %v1356 = vpack.c.b16 %v1052, %v1044
      %v1357 = vpack.c.b16 %v1053, %v1045
      %v1358 = vpack.c.b16 %v1054, %v1046
      %v1359 = vpack.c.b16 %v1055, %v1047
      %v1360 = vpack.c.b16 %v1056, %v1048
      %v1361 = vpack.c.b16 %v1057, %v1049
      %v1362 = vpack.c.b16 %v1058, %v1050
      %v1363 = vpack.c.b16 %v1067, %v1059
      %v1364 = vpack.c.b16 %v1068, %v1060
      %v1365 = vpack.c.b16 %v1069, %v1061
      %v1366 = vpack.c.b16 %v1070, %v1062
      %v1367 = vpack.c.b16 %v1071, %v1063
      %v1368 = vpack.c.b16 %v1072, %v1064
      %v1369 = vpack.c.b16 %v1073, %v1065
      %v1370 = vpack.c.b16 %v1074, %v1066
      %v1371 = vpack.c.b16 %v1083, %v1075
      %v1372 = vpack.c.b16 %v1084, %v1076
      %v1373 = vpack.c.b16 %v1085, %v1077
      %v1374 = vpack.c.b16 %v1086, %v1078
      %v1375 = vpack.c.b16 %v1087, %v1079
      %v1376 = vpack.c.b16 %v1088, %v1080
      %v1377 = vpack.c.b16 %v1089, %v1081
      %v1378 = vpack.c.b16 %v1090, %v1082
      %v1379 = vpack.c.b16 %v1099, %v1091
      %v1380 = vpack.c.b16 %v1100, %v1092
      %v1381 = vpack.c.b16 %v1101, %v1093
      %v1382 = vpack.c.b16 %v1102, %v1094
      %v1383 = vpack.c.b16 %v1103, %v1095
      %v1384 = vpack.c.b16 %v1104, %v1096
      %v1385 = vpack.c.b16 %v1105, %v1097
      %v1386 = vpack.c.b16 %v1106, %v1098
      %v1387 = vpack.c.b16 %v1115, %v1107
      %v1388 = vpack.c.b16 %v1116, %v1108
      %v1389 = vpack.c.b16 %v1117, %v1109
      %v1390 = vpack.c.b16 %v1118, %v1110
      %v1391 = vpack.c.b16 %v1119, %v1111
      %v1392 = vpack.c.b16 %v1120, %v1112
      %v1393 = vpack.c.b16 %v1121, %v1113
      %v1394 = vpack.c.b16 %v1122, %v1114
      %v1395 = vpack.c.b16 %v1131, %v1123
      %v1396 = vpack.c.b16 %v1132, %v1124
      %v1397 = vpack.c.b16 %v1133, %v1125
      %v1398 = vpack.c.b16 %v1134, %v1126
      %v1399 = vpack.c.b16 %v1135, %v1127
      %v1400 = vpack.c.b16 %v1136, %v1128
      %v1401 = vpack.c.b16 %v1137, %v1129
      %v1402 = vpack.c.b16 %v1138, %v1130
      %v1403 = vpack.c.b16 %v1147, %v1139
      %v1404 = vpack.c.b16 %v1148, %v1140
      %v1405 = vpack.c.b16 %v1149, %v1141
      %v1406 = vpack.c.b16 %v1150, %v1142
      %v1407 = vpack.c.b16 %v1151, %v1143
      %v1408 = vpack.c.b16 %v1152, %v1144
      %v1409 = vpack.c.b16 %v1153, %v1145
      %v1410 = vpack.c.b16 %v1154, %v1146
      %v1411 = vpack.c.b16 %v1163, %v1155
      %v1412 = vpack.c.b16 %v1164, %v1156
      %v1413 = vpack.c.b16 %v1165, %v1157
      %v1414 = vpack.c.b16 %v1166, %v1158
      %v1415 = vpack.c.b16 %v1167, %v1159
      %v1416 = vpack.c.b16 %v1168, %v1160
      %v1417 = vpack.c.b16 %v1169, %v1161
      %v1418 = vpack.c.b16 %v1170, %v1162
      %v1419 = vpack.c.b16 %v1179, %v1171
      %v1420 = vpack.c.b16 %v1180, %v1172
      %v1421 = vpack.c.b16 %v1181, %v1173
      %v1422 = vpack.c.b16 %v1182, %v1174
      %v1423 = vpack.c.b16 %v1183, %v1175
      %v1424 = vpack.c.b16 %v1184, %v1176
      %v1425 = vpack.c.b16 %v1185, %v1177
      %v1426 = vpack.c.b16 %v1186, %v1178
      %v1427 = vpack.c.b16 %v1195, %v1187
      %v1428 = vpack.c.b16 %v1196, %v1188
      %v1429 = vpack.c.b16 %v1197, %v1189
      %v1430 = vpack.c.b16 %v1198, %v1190
      %v1431 = vpack.c.b16 %v1199, %v1191
      %v1432 = vpack.c.b16 %v1200, %v1192
      %v1433 = vpack.c.b16 %v1201, %v1193
      %v1434 = vpack.c.b16 %v1202, %v1194
      %v1435 = vpack.c.b16 %v1211, %v1203
      %v1436 = vpack.c.b16 %v1212, %v1204
      %v1437 = vpack.c.b16 %v1213, %v1205
      %v1438 = vpack.c.b16 %v1214, %v1206
      %v1439 = vpack.c.b16 %v1215, %v1207
      %v1440 = vpack.c.b16 %v1216, %v1208
      %v1441 = vpack.c.b16 %v1217, %v1209
      %v1442 = vpack.c.b16 %v1218, %v1210
      %v1443 = vpack.c.b16 %v1227, %v1219
      %v1444 = vpack.c.b16 %v1228, %v1220
      %v1445 = vpack.c.b16 %v1229, %v1221
      %v1446 = vpack.c.b16 %v1230, %v1222
      %v1447 = vpack.c.b16 %v1231, %v1223
      %v1448 = vpack.c.b16 %v1232, %v1224
      %v1449 = vpack.c.b16 %v1233, %v1225
      %v1450 = vpack.c.b16 %v1234, %v1226
      %v1451 = vpack.c.b16 %v1243, %v1235
      %v1452 = vpack.c.b16 %v1244, %v1236
      %v1453 = vpack.c.b16 %v1245, %v1237
      %v1454 = vpack.c.b16 %v1246, %v1238
      %v1455 = vpack.c.b16 %v1247, %v1239
      %v1456 = vpack.c.b16 %v1248, %v1240
      %v1457 = vpack.c.b16 %v1249, %v1241
      %v1458 = vpack.c.b16 %v1250, %v1242
      %v1459 = vpack.c.b16 %v1259, %v1251
      %v1460 = vpack.c.b16 %v1260, %v1252
      %v1461 = vpack.c.b16 %v1261, %v1253
      %v1462 = vpack.c.b16 %v1262, %v1254
      %v1463 = vpack.c.b16 %v1263, %v1255
      %v1464 = vpack.c.b16 %v1264, %v1256
      %v1465 = vpack.c.b16 %v1265, %v1257
      %v1466 = vpack.c.b16 %v1266, %v1258
      %v1467 = vpack.c.b16 %v1275, %v1267
      %v1468 = vpack.c.b16 %v1276, %v1268
      %v1469 = vpack.c.b16 %v1277, %v1269
      %v1470 = vpack.c.b16 %v1278, %v1270
      %v1471 = vpack.c.b16 %v1279, %v1271
      %v1472 = vpack.c.b16 %v1280, %v1272
      %v1473 = vpack.c.b16 %v1281, %v1273
      %v1474 = vpack.c.b16 %v1282, %v1274
      %1667 = vmatprep.subr.bf16.mxu0 %v1284
      %1668 = vmatpush1.bf16.msra.mxu0 %v1283
      %1669 = vmatprep.subr.bf16.mxu0 %v1292
      %1670 = vmatpush1.bf16.msra.mxu0 %v1291
      %1671 = vmatprep.subr.bf16.mxu0 %v1300
      %1672 = vmatpush1.bf16.msra.mxu0 %v1299
      %1673 = vmatprep.subr.bf16.mxu0 %v1308
      %1674 = vmatpush1.bf16.msra.mxu0 %v1307
      %1675 = vmatprep.subr.bf16.mxu0 %v1316
      %1676 = vmatpush1.bf16.msra.mxu0 %v1315
      %1677 = vmatprep.subr.bf16.mxu0 %v1324
      %1678 = vmatpush1.bf16.msra.mxu0 %v1323
      %1679 = vmatprep.subr.bf16.mxu0 %v1332
      %1680 = vmatpush1.bf16.msra.mxu0 %v1331
      %1681 = vmatprep.subr.bf16.mxu0 %v1340
      %1682 = vmatpush1.bf16.msra.mxu0 %v1339
      %1683 = vmatprep.subr.bf16.mxu0 %v1348
      %1684 = vmatpush1.bf16.msra.mxu0 %v1347
      %1685 = vmatprep.subr.bf16.mxu0 %v1356
      %1686 = vmatpush1.bf16.msra.mxu0 %v1355
      %1687 = vmatprep.subr.bf16.mxu0 %v1364
      %1688 = vmatpush1.bf16.msra.mxu0 %v1363
      %1689 = vmatprep.subr.bf16.mxu0 %v1372
      %1690 = vmatpush1.bf16.msra.mxu0 %v1371
      %1691 = vmatprep.subr.bf16.mxu0 %v1380
      %1692 = vmatpush1.bf16.msra.mxu0 %v1379
      %1693 = vmatprep.subr.bf16.mxu0 %v1388
      %1694 = vmatpush1.bf16.msra.mxu0 %v1387
      %1695 = vmatprep.subr.bf16.mxu0 %v1396
      %1696 = vmatpush1.bf16.msra.mxu0 %v1395
      %1697 = vmatprep.subr.bf16.mxu0 %v1404
      %1698 = vmatpush1.bf16.msra.mxu0 %v1403
      %1699 = vmatprep.mubr.bf16.mxu0 %v288
      %1700 = vmatmul.mubr.bf16.gmra.mrb[0].mxu0 %v287
      %v1701 = vpop.f32.mrb[0].mxu0
      %v1702 = vadd.f32 0.0, %v1701
      %v1703 = vpop.f32.mrb[0].mxu0
      %v1704 = vadd.f32 0.0, %v1703
      %v1705 = vpop.f32.mrb[0].mxu0
      %v1706 = vpop.f32.mrb[0].mxu0
      %1707 = vdwg.mxu0
      %1708 = vmatprep.subr.bf16.mxu0 %v1412
      %1709 = vmatpush1.bf16.msra.mxu0 %v1411
      %1710 = vmatprep.subr.bf16.mxu0 %v1420
      %1711 = vmatpush1.bf16.msra.mxu0 %v1419
      %1712 = vmatprep.subr.bf16.mxu0 %v1428
      %1713 = vmatpush1.bf16.msra.mxu0 %v1427
      %1714 = vmatprep.subr.bf16.mxu0 %v1436
      %1715 = vmatpush1.bf16.msra.mxu0 %v1435
      %1716 = vmatprep.subr.bf16.mxu0 %v1444
      %1717 = vmatpush1.bf16.msra.mxu0 %v1443
      %1718 = vmatprep.subr.bf16.mxu0 %v1452
      %1719 = vmatpush1.bf16.msra.mxu0 %v1451
      %1720 = vmatprep.subr.bf16.mxu0 %v1460
      %1721 = vmatpush1.bf16.msra.mxu0 %v1459
      %1722 = vmatprep.subr.bf16.mxu0 %v1468
      %1723 = vmatpush1.bf16.msra.mxu0 %v1467
      %1724 = vmatprep.subr.bf16.mxu0 0
      %1725 = vmatpush1.bf16.msra.mxu0 0
      %1726 = vmatprep.subr.bf16.mxu0 0
      %1727 = vmatpush1.bf16.msra.mxu0 0
      %1728 = vmatprep.subr.bf16.mxu0 0
      %1729 = vmatpush1.bf16.msra.mxu0 0
      %1730 = vmatprep.subr.bf16.mxu0 0
      %1731 = vmatpush1.bf16.msra.mxu0 0
      %1732 = vmatprep.subr.bf16.mxu0 0
      %1733 = vmatpush1.bf16.msra.mxu0 0
      %1734 = vmatprep.subr.bf16.mxu0 0
      %1735 = vmatpush1.bf16.msra.mxu0 0
      %1736 = vmatprep.subr.bf16.mxu0 0
      %1737 = vmatpush1.bf16.msra.mxu0 0
      %1738 = vmatprep.subr.bf16.mxu0 0
      %1739 = vmatpush1.bf16.msra.mxu0 0
      %1740 = vmatprep.mubr.bf16.mxu0 0
      %1741 = vmatmul.mubr.bf16.gmra.mrb[0].mxu0 %v289
      %v1742 = vpop.f32.mrb[0].mxu0
      %v1743 = vadd.f32 %v1702, %v1742
      %v1744 = vpop.f32.mrb[0].mxu0
      %v1745 = vadd.f32 %v1704, %v1744
      %v1746 = vpop.f32.mrb[0].mxu0
      %v1747 = vpop.f32.mrb[0].mxu0
      %1748 = vdwg.mxu0
      %1749 = vmatprep.subr.bf16.mxu0 %v1286
      %1750 = vmatpush1.bf16.msra.mxu0 %v1285
      %1751 = vmatprep.subr.bf16.mxu0 %v1294
      %1752 = vmatpush1.bf16.msra.mxu0 %v1293
      %1753 = vmatprep.subr.bf16.mxu0 %v1302
      %1754 = vmatpush1.bf16.msra.mxu0 %v1301
      %1755 = vmatprep.subr.bf16.mxu0 %v1310
      %1756 = vmatpush1.bf16.msra.mxu0 %v1309
      %1757 = vmatprep.subr.bf16.mxu0 %v1318
      %1758 = vmatpush1.bf16.msra.mxu0 %v1317
      %1759 = vmatprep.subr.bf16.mxu0 %v1326
      %1760 = vmatpush1.bf16.msra.mxu0 %v1325
      %1761 = vmatprep.subr.bf16.mxu0 %v1334
      %1762 = vmatpush1.bf16.msra.mxu0 %v1333
      %1763 = vmatprep.subr.bf16.mxu0 %v1342
      %1764 = vmatpush1.bf16.msra.mxu0 %v1341
      %1765 = vmatprep.subr.bf16.mxu0 %v1350
      %1766 = vmatpush1.bf16.msra.mxu0 %v1349
      %1767 = vmatprep.subr.bf16.mxu0 %v1358
      %1768 = vmatpush1.bf16.msra.mxu0 %v1357
      %1769 = vmatprep.subr.bf16.mxu0 %v1366
      %1770 = vmatpush1.bf16.msra.mxu0 %v1365
      %1771 = vmatprep.subr.bf16.mxu0 %v1374
      %1772 = vmatpush1.bf16.msra.mxu0 %v1373
      %1773 = vmatprep.subr.bf16.mxu0 %v1382
      %1774 = vmatpush1.bf16.msra.mxu0 %v1381
      %1775 = vmatprep.subr.bf16.mxu0 %v1390
      %1776 = vmatpush1.bf16.msra.mxu0 %v1389
      %1777 = vmatprep.subr.bf16.mxu0 %v1398
      %1778 = vmatpush1.bf16.msra.mxu0 %v1397
      %1779 = vmatprep.subr.bf16.mxu0 %v1406
      %1780 = vmatpush1.bf16.msra.mxu0 %v1405
      %1781 = vmatprep.mubr.bf16.mxu0 %v288
      %1782 = vmatmul.mubr.bf16.gmra.mrb[0].mxu0 %v287
      %v1783 = vpop.f32.mrb[0].mxu0
      %v1784 = vadd.f32 0.0, %v1783
      %v1785 = vpop.f32.mrb[0].mxu0
      %v1786 = vadd.f32 0.0, %v1785
      %v1787 = vpop.f32.mrb[0].mxu0
      %v1788 = vpop.f32.mrb[0].mxu0
      %1789 = vdwg.mxu0
      %1790 = vmatprep.subr.bf16.mxu0 %v1414
      %1791 = vmatpush1.bf16.msra.mxu0 %v1413
      %1792 = vmatprep.subr.bf16.mxu0 %v1422
      %1793 = vmatpush1.bf16.msra.mxu0 %v1421
      %1794 = vmatprep.subr.bf16.mxu0 %v1430
      %1795 = vmatpush1.bf16.msra.mxu0 %v1429
      %1796 = vmatprep.subr.bf16.mxu0 %v1438
      %1797 = vmatpush1.bf16.msra.mxu0 %v1437
      %1798 = vmatprep.subr.bf16.mxu0 %v1446
      %1799 = vmatpush1.bf16.msra.mxu0 %v1445
      %1800 = vmatprep.subr.bf16.mxu0 %v1454
      %1801 = vmatpush1.bf16.msra.mxu0 %v1453
      %1802 = vmatprep.subr.bf16.mxu0 %v1462
      %1803 = vmatpush1.bf16.msra.mxu0 %v1461
      %1804 = vmatprep.subr.bf16.mxu0 %v1470
      %1805 = vmatpush1.bf16.msra.mxu0 %v1469
      %1806 = vmatprep.subr.bf16.mxu0 0
      %1807 = vmatpush1.bf16.msra.mxu0 0
      %1808 = vmatprep.subr.bf16.mxu0 0
      %1809 = vmatpush1.bf16.msra.mxu0 0
      %1810 = vmatprep.subr.bf16.mxu0 0
      %1811 = vmatpush1.bf16.msra.mxu0 0
      %1812 = vmatprep.subr.bf16.mxu0 0
      %1813 = vmatpush1.bf16.msra.mxu0 0
      %1814 = vmatprep.subr.bf16.mxu0 0
      %1815 = vmatpush1.bf16.msra.mxu0 0
      %1816 = vmatprep.subr.bf16.mxu0 0
      %1817 = vmatpush1.bf16.msra.mxu0 0
      %1818 = vmatprep.subr.bf16.mxu0 0
      %1819 = vmatpush1.bf16.msra.mxu0 0
      %1820 = vmatprep.subr.bf16.mxu0 0
      %1821 = vmatpush1.bf16.msra.mxu0 0
      %1822 = vmatprep.mubr.bf16.mxu0 0
      %1823 = vmatmul.mubr.bf16.gmra.mrb[0].mxu0 %v289
      %v1824 = vpop.f32.mrb[0].mxu0
      %v1825 = vadd.f32 %v1784, %v1824
      %v1826 = vpop.f32.mrb[0].mxu0
      %v1827 = vadd.f32 %v1786, %v1826
      %v1828 = vpop.f32.mrb[0].mxu0
      %v1829 = vpop.f32.mrb[0].mxu0
      %1830 = vdwg.mxu0
      %1831 = vmatprep.subr.bf16.mxu0 %v1288
      %1832 = vmatpush1.bf16.msra.mxu0 %v1287
      %1833 = vmatprep.subr.bf16.mxu0 %v1296
      %1834 = vmatpush1.bf16.msra.mxu0 %v1295
      %1835 = vmatprep.subr.bf16.mxu0 %v1304
      %1836 = vmatpush1.bf16.msra.mxu0 %v1303
      %1837 = vmatprep.subr.bf16.mxu0 %v1312
      %1838 = vmatpush1.bf16.msra.mxu0 %v1311
      %1839 = vmatprep.subr.bf16.mxu0 %v1320
      %1840 = vmatpush1.bf16.msra.mxu0 %v1319
      %1841 = vmatprep.subr.bf16.mxu0 %v1328
      %1842 = vmatpush1.bf16.msra.mxu0 %v1327
      %1843 = vmatprep.subr.bf16.mxu0 %v1336
      %1844 = vmatpush1.bf16.msra.mxu0 %v1335
      %1845 = vmatprep.subr.bf16.mxu0 %v1344
      %1846 = vmatpush1.bf16.msra.mxu0 %v1343
      %1847 = vmatprep.subr.bf16.mxu0 %v1352
      %1848 = vmatpush1.bf16.msra.mxu0 %v1351
      %1849 = vmatprep.subr.bf16.mxu0 %v1360
      %1850 = vmatpush1.bf16.msra.mxu0 %v1359
      %1851 = vmatprep.subr.bf16.mxu0 %v1368
      %1852 = vmatpush1.bf16.msra.mxu0 %v1367
      %1853 = vmatprep.subr.bf16.mxu0 %v1376
      %1854 = vmatpush1.bf16.msra.mxu0 %v1375
      %1855 = vmatprep.subr.bf16.mxu0 %v1384
      %1856 = vmatpush1.bf16.msra.mxu0 %v1383
      %1857 = vmatprep.subr.bf16.mxu0 %v1392
      %1858 = vmatpush1.bf16.msra.mxu0 %v1391
      %1859 = vmatprep.subr.bf16.mxu0 %v1400
      %1860 = vmatpush1.bf16.msra.mxu0 %v1399
      %1861 = vmatprep.subr.bf16.mxu0 %v1408
      %1862 = vmatpush1.bf16.msra.mxu0 %v1407
      %1863 = vmatprep.mubr.bf16.mxu0 %v288
      %1864 = vmatmul.mubr.bf16.gmra.mrb[0].mxu0 %v287
      %v1865 = vpop.f32.mrb[0].mxu0
      %v1866 = vadd.f32 0.0, %v1865
      %v1867 = vpop.f32.mrb[0].mxu0
      %v1868 = vadd.f32 0.0, %v1867
      %v1869 = vpop.f32.mrb[0].mxu0
      %v1870 = vpop.f32.mrb[0].mxu0
      %1871 = vdwg.mxu0
      %1872 = vmatprep.subr.bf16.mxu0 %v1416
      %1873 = vmatpush1.bf16.msra.mxu0 %v1415
      %1874 = vmatprep.subr.bf16.mxu0 %v1424
      %1875 = vmatpush1.bf16.msra.mxu0 %v1423
      %1876 = vmatprep.subr.bf16.mxu0 %v1432
      %1877 = vmatpush1.bf16.msra.mxu0 %v1431
      %1878 = vmatprep.subr.bf16.mxu0 %v1440
      %1879 = vmatpush1.bf16.msra.mxu0 %v1439
      %1880 = vmatprep.subr.bf16.mxu0 %v1448
      %1881 = vmatpush1.bf16.msra.mxu0 %v1447
      %1882 = vmatprep.subr.bf16.mxu0 %v1456
      %1883 = vmatpush1.bf16.msra.mxu0 %v1455
      %1884 = vmatprep.subr.bf16.mxu0 %v1464
      %1885 = vmatpush1.bf16.msra.mxu0 %v1463
      %1886 = vmatprep.subr.bf16.mxu0 %v1472
      %1887 = vmatpush1.bf16.msra.mxu0 %v1471
      %1888 = vmatprep.subr.bf16.mxu0 0
      %1889 = vmatpush1.bf16.msra.mxu0 0
      %1890 = vmatprep.subr.bf16.mxu0 0
      %1891 = vmatpush1.bf16.msra.mxu0 0
      %1892 = vmatprep.subr.bf16.mxu0 0
      %1893 = vmatpush1.bf16.msra.mxu0 0
      %1894 = vmatprep.subr.bf16.mxu0 0
      %1895 = vmatpush1.bf16.msra.mxu0 0
      %1896 = vmatprep.subr.bf16.mxu0 0
      %1897 = vmatpush1.bf16.msra.mxu0 0
      %1898 = vmatprep.subr.bf16.mxu0 0
      %1899 = vmatpush1.bf16.msra.mxu0 0
      %1900 = vmatprep.subr.bf16.mxu0 0
      %1901 = vmatpush1.bf16.msra.mxu0 0
      %1902 = vmatprep.subr.bf16.mxu0 0
      %1903 = vmatpush1.bf16.msra.mxu0 0
      %1904 = vmatprep.mubr.bf16.mxu0 0
      %1905 = vmatmul.mubr.bf16.gmra.mrb[0].mxu0 %v289
      %v1906 = vpop.f32.mrb[0].mxu0
      %v1907 = vadd.f32 %v1866, %v1906
      %v1908 = vpop.f32.mrb[0].mxu0
      %v1909 = vadd.f32 %v1868, %v1908
      %v1910 = vpop.f32.mrb[0].mxu0
      %v1911 = vpop.f32.mrb[0].mxu0
      %1912 = vdwg.mxu0
      %1913 = vmatprep.subr.bf16.mxu0 %v1290
      %1914 = vmatpush1.bf16.msra.mxu0 %v1289
      %1915 = vmatprep.subr.bf16.mxu0 %v1298
      %1916 = vmatpush1.bf16.msra.mxu0 %v1297
      %1917 = vmatprep.subr.bf16.mxu0 %v1306
      %1918 = vmatpush1.bf16.msra.mxu0 %v1305
      %1919 = vmatprep.subr.bf16.mxu0 %v1314
      %1920 = vmatpush1.bf16.msra.mxu0 %v1313
      %1921 = vmatprep.subr.bf16.mxu0 %v1322
      %1922 = vmatpush1.bf16.msra.mxu0 %v1321
      %1923 = vmatprep.subr.bf16.mxu0 %v1330
      %1924 = vmatpush1.bf16.msra.mxu0 %v1329
      %1925 = vmatprep.subr.bf16.mxu0 %v1338
      %1926 = vmatpush1.bf16.msra.mxu0 %v1337
      %1927 = vmatprep.subr.bf16.mxu0 %v1346
      %1928 = vmatpush1.bf16.msra.mxu0 %v1345
      %1929 = vmatprep.subr.bf16.mxu0 %v1354
      %1930 = vmatpush1.bf16.msra.mxu0 %v1353
      %1931 = vmatprep.subr.bf16.mxu0 %v1362
      %1932 = vmatpush1.bf16.msra.mxu0 %v1361
      %1933 = vmatprep.subr.bf16.mxu0 %v1370
      %1934 = vmatpush1.bf16.msra.mxu0 %v1369
      %1935 = vmatprep.subr.bf16.mxu0 %v1378
      %1936 = vmatpush1.bf16.msra.mxu0 %v1377
      %1937 = vmatprep.subr.bf16.mxu0 %v1386
      %1938 = vmatpush1.bf16.msra.mxu0 %v1385
      %1939 = vmatprep.subr.bf16.mxu0 %v1394
      %1940 = vmatpush1.bf16.msra.mxu0 %v1393
      %1941 = vmatprep.subr.bf16.mxu0 %v1402
      %1942 = vmatpush1.bf16.msra.mxu0 %v1401
      %1943 = vmatprep.subr.bf16.mxu0 %v1410
      %1944 = vmatpush1.bf16.msra.mxu0 %v1409
      %1945 = vmatprep.mubr.bf16.mxu0 %v288
      %1946 = vmatmul.mubr.bf16.gmra.mrb[0].mxu0 %v287
      %v1947 = vpop.f32.mrb[0].mxu0
      %v1948 = vadd.f32 0.0, %v1947
      %v1949 = vpop.f32.mrb[0].mxu0
      %v1950 = vadd.f32 0.0, %v1949
      %v1951 = vpop.f32.mrb[0].mxu0
      %v1952 = vpop.f32.mrb[0].mxu0
      %1953 = vdwg.mxu0
      %1954 = vmatprep.subr.bf16.mxu0 %v1418
      %1955 = vmatpush1.bf16.msra.mxu0 %v1417
      %1956 = vmatprep.subr.bf16.mxu0 %v1426
      %1957 = vmatpush1.bf16.msra.mxu0 %v1425
      %1958 = vmatprep.subr.bf16.mxu0 %v1434
      %1959 = vmatpush1.bf16.msra.mxu0 %v1433
      %1960 = vmatprep.subr.bf16.mxu0 %v1442
      %1961 = vmatpush1.bf16.msra.mxu0 %v1441
      %1962 = vmatprep.subr.bf16.mxu0 %v1450
      %1963 = vmatpush1.bf16.msra.mxu0 %v1449
      %1964 = vmatprep.subr.bf16.mxu0 %v1458
      %1965 = vmatpush1.bf16.msra.mxu0 %v1457
      %1966 = vmatprep.subr.bf16.mxu0 %v1466
      %1967 = vmatpush1.bf16.msra.mxu0 %v1465
      %1968 = vmatprep.subr.bf16.mxu0 %v1474
      %1969 = vmatpush1.bf16.msra.mxu0 %v1473
      %1970 = vmatprep.subr.bf16.mxu0 0
      %1971 = vmatpush1.bf16.msra.mxu0 0
      %1972 = vmatprep.subr.bf16.mxu0 0
      %1973 = vmatpush1.bf16.msra.mxu0 0
      %1974 = vmatprep.subr.bf16.mxu0 0
      %1975 = vmatpush1.bf16.msra.mxu0 0
      %1976 = vmatprep.subr.bf16.mxu0 0
      %1977 = vmatpush1.bf16.msra.mxu0 0
      %1978 = vmatprep.subr.bf16.mxu0 0
      %1979 = vmatpush1.bf16.msra.mxu0 0
      %1980 = vmatprep.subr.bf16.mxu0 0
      %1981 = vmatpush1.bf16.msra.mxu0 0
      %1982 = vmatprep.subr.bf16.mxu0 0
      %1983 = vmatpush1.bf16.msra.mxu0 0
      %1984 = vmatprep.subr.bf16.mxu0 0
      %1985 = vmatpush1.bf16.msra.mxu0 0
      %1986 = vmatprep.mubr.bf16.mxu0 0
      %1987 = vmatmul.mubr.bf16.gmra.mrb[0].mxu0 %v289
      %v1988 = vpop.f32.mrb[0].mxu0
      %v1989 = vadd.f32 %v1948, %v1988
      %v1990 = vpop.f32.mrb[0].mxu0
      %v1991 = vadd.f32 %v1950, %v1990
      %v1992 = vpop.f32.mrb[0].mxu0
      %v1993 = vpop.f32.mrb[0].mxu0
      %1994 = vdwg.mxu0
      %v2187 = vunpack.c.l.b16 %v320
      %v2188 = vunpack.c.h.b16 %v320
      %v2189 = vunpack.c.l.b16 %v321
      %v2190 = vunpack.c.h.b16 %v321
      %v2191 = vunpack.c.l.b16 %v322
      %v2192 = vunpack.c.h.b16 %v322
      %v2193 = vunpack.c.l.b16 %v323
      %v2194 = vunpack.c.h.b16 %v323
      %v2195 = vunpack.c.l.b16 %v324
      %v2196 = vunpack.c.h.b16 %v324
      %v2197 = vunpack.c.l.b16 %v325
      %v2198 = vunpack.c.h.b16 %v325
      %v2199 = vunpack.c.l.b16 %v326
      %v2200 = vunpack.c.h.b16 %v326
      %v2201 = vunpack.c.l.b16 %v327
      %v2202 = vunpack.c.h.b16 %v327
      %v2203 = vunpack.c.l.b16 %v328
      %v2204 = vunpack.c.h.b16 %v328
      %v2205 = vunpack.c.l.b16 %v329
      %v2206 = vunpack.c.h.b16 %v329
      %v2207 = vunpack.c.l.b16 %v330
      %v2208 = vunpack.c.h.b16 %v330
      %v2209 = vunpack.c.l.b16 %v331
      %v2210 = vunpack.c.h.b16 %v331
      %v2211 = vunpack.c.l.b16 %v332
      %v2212 = vunpack.c.h.b16 %v332
      %v2213 = vunpack.c.l.b16 %v333
      %v2214 = vunpack.c.h.b16 %v333
      %v2215 = vunpack.c.l.b16 %v334
      %v2216 = vunpack.c.h.b16 %v334
      %v2217 = vunpack.c.l.b16 %v335
      %v2218 = vunpack.c.h.b16 %v335
      %v2219 = vunpack.c.l.b16 %v336
      %v2220 = vunpack.c.h.b16 %v336
      %v2221 = vunpack.c.l.b16 %v337
      %v2222 = vunpack.c.h.b16 %v337
      %v2223 = vunpack.c.l.b16 %v338
      %v2224 = vunpack.c.h.b16 %v338
      %v2225 = vunpack.c.l.b16 %v339
      %v2226 = vunpack.c.h.b16 %v339
      %v2227 = vunpack.c.l.b16 %v340
      %v2228 = vunpack.c.h.b16 %v340
      %v2229 = vunpack.c.l.b16 %v341
      %v2230 = vunpack.c.h.b16 %v341
      %v2231 = vunpack.c.l.b16 %v342
      %v2232 = vunpack.c.h.b16 %v342
      %v2233 = vunpack.c.l.b16 %v343
      %v2234 = vunpack.c.h.b16 %v343
      %v2235 = vunpack.c.l.b16 %v344
      %v2236 = vunpack.c.h.b16 %v344
      %v2237 = vunpack.c.l.b16 %v345
      %v2238 = vunpack.c.h.b16 %v345
      %v2239 = vunpack.c.l.b16 %v346
      %v2240 = vunpack.c.h.b16 %v346
      %v2241 = vunpack.c.l.b16 %v347
      %v2242 = vunpack.c.h.b16 %v347
      %v2243 = vunpack.c.l.b16 %v348
      %v2244 = vunpack.c.h.b16 %v348
      %v2245 = vunpack.c.l.b16 %v349
      %v2246 = vunpack.c.h.b16 %v349
      %v2247 = vunpack.c.l.b16 %v350
      %v2248 = vunpack.c.h.b16 %v350
      %v2249 = vunpack.c.l.b16 %v351
      %v2250 = vunpack.c.h.b16 %v351
      %v2251 = vunpack.c.l.b16 %v352
      %v2252 = vunpack.c.h.b16 %v352
      %v2253 = vunpack.c.l.b16 %v353
      %v2254 = vunpack.c.h.b16 %v353
      %v2255 = vunpack.c.l.b16 %v354
      %v2256 = vunpack.c.h.b16 %v354
      %v2257 = vunpack.c.l.b16 %v355
      %v2258 = vunpack.c.h.b16 %v355
      %v2259 = vunpack.c.l.b16 %v356
      %v2260 = vunpack.c.h.b16 %v356
      %v2261 = vunpack.c.l.b16 %v357
      %v2262 = vunpack.c.h.b16 %v357
      %v2263 = vunpack.c.l.b16 %v358
      %v2264 = vunpack.c.h.b16 %v358
      %v2265 = vunpack.c.l.b16 %v359
      %v2266 = vunpack.c.h.b16 %v359
      %v2267 = vunpack.c.l.b16 %v360
      %v2268 = vunpack.c.h.b16 %v360
      %v2269 = vunpack.c.l.b16 %v361
      %v2270 = vunpack.c.h.b16 %v361
      %v2271 = vunpack.c.l.b16 %v362
      %v2272 = vunpack.c.h.b16 %v362
      %v2273 = vunpack.c.l.b16 %v363
      %v2274 = vunpack.c.h.b16 %v363
      %v2275 = vunpack.c.l.b16 %v364
      %v2276 = vunpack.c.h.b16 %v364
      %v2277 = vunpack.c.l.b16 %v365
      %v2278 = vunpack.c.h.b16 %v365
      %v2279 = vunpack.c.l.b16 %v366
      %v2280 = vunpack.c.h.b16 %v366
      %v2281 = vunpack.c.l.b16 %v367
      %v2282 = vunpack.c.h.b16 %v367
      %v2283 = vunpack.c.l.b16 %v368
      %v2284 = vunpack.c.h.b16 %v368
      %v2285 = vunpack.c.l.b16 %v369
      %v2286 = vunpack.c.h.b16 %v369
      %v2287 = vunpack.c.l.b16 %v370
      %v2288 = vunpack.c.h.b16 %v370
      %v2289 = vunpack.c.l.b16 %v371
      %v2290 = vunpack.c.h.b16 %v371
      %v2291 = vunpack.c.l.b16 %v372
      %v2292 = vunpack.c.h.b16 %v372
      %v2293 = vunpack.c.l.b16 %v373
      %v2294 = vunpack.c.h.b16 %v373
      %v2295 = vunpack.c.l.b16 %v374
      %v2296 = vunpack.c.h.b16 %v374
      %v2297 = vunpack.c.l.b16 %v375
      %v2298 = vunpack.c.h.b16 %v375
      %v2299 = vunpack.c.l.b16 %v376
      %v2300 = vunpack.c.h.b16 %v376
      %v2301 = vunpack.c.l.b16 %v377
      %v2302 = vunpack.c.h.b16 %v377
      %v2303 = vunpack.c.l.b16 %v378
      %v2304 = vunpack.c.h.b16 %v378
      %v2305 = vunpack.c.l.b16 %v379
      %v2306 = vunpack.c.h.b16 %v379
      %v2307 = vunpack.c.l.b16 %v380
      %v2308 = vunpack.c.h.b16 %v380
      %v2309 = vunpack.c.l.b16 %v381
      %v2310 = vunpack.c.h.b16 %v381
      %v2311 = vunpack.c.l.b16 %v382
      %v2312 = vunpack.c.h.b16 %v382
      %v2313 = vunpack.c.l.b16 %v383
      %v2314 = vunpack.c.h.b16 %v383
      %v2315 = vunpack.c.l.b16 %v384
      %v2316 = vunpack.c.h.b16 %v384
      %v2317 = vunpack.c.l.b16 %v385
      %v2318 = vunpack.c.h.b16 %v385
      %v2319 = vunpack.c.l.b16 %v386
      %v2320 = vunpack.c.h.b16 %v386
      %v2321 = vunpack.c.l.b16 %v387
      %v2322 = vunpack.c.h.b16 %v387
      %v2323 = vunpack.c.l.b16 %v388
      %v2324 = vunpack.c.h.b16 %v388
      %v2325 = vunpack.c.l.b16 %v389
      %v2326 = vunpack.c.h.b16 %v389
      %v2327 = vunpack.c.l.b16 %v390
      %v2328 = vunpack.c.h.b16 %v390
      %v2329 = vunpack.c.l.b16 %v391
      %v2330 = vunpack.c.h.b16 %v391
      %v2331 = vunpack.c.l.b16 %v392
      %v2332 = vunpack.c.h.b16 %v392
      %v2333 = vunpack.c.l.b16 %v393
      %v2334 = vunpack.c.h.b16 %v393
      %v2335 = vunpack.c.l.b16 %v394
      %v2336 = vunpack.c.h.b16 %v394
      %v2337 = vunpack.c.l.b16 %v395
      %v2338 = vunpack.c.h.b16 %v395
      %v2339 = vunpack.c.l.b16 %v396
      %v2340 = vunpack.c.h.b16 %v396
      %v2341 = vunpack.c.l.b16 %v397
      %v2342 = vunpack.c.h.b16 %v397
      %v2343 = vunpack.c.l.b16 %v398
      %v2344 = vunpack.c.h.b16 %v398
      %v2345 = vunpack.c.l.b16 %v399
      %v2346 = vunpack.c.h.b16 %v399
      %v2347 = vunpack.c.l.b16 %v400
      %v2348 = vunpack.c.h.b16 %v400
      %v2349 = vunpack.c.l.b16 %v401
      %v2350 = vunpack.c.h.b16 %v401
      %v2351 = vunpack.c.l.b16 %v402
      %v2352 = vunpack.c.h.b16 %v402
      %v2353 = vunpack.c.l.b16 %v403
      %v2354 = vunpack.c.h.b16 %v403
      %v2355 = vunpack.c.l.b16 %v404
      %v2356 = vunpack.c.h.b16 %v404
      %v2357 = vunpack.c.l.b16 %v405
      %v2358 = vunpack.c.h.b16 %v405
      %v2359 = vunpack.c.l.b16 %v406
      %v2360 = vunpack.c.h.b16 %v406
      %v2361 = vunpack.c.l.b16 %v407
      %v2362 = vunpack.c.h.b16 %v407
      %v2363 = vunpack.c.l.b16 %v408
      %v2364 = vunpack.c.h.b16 %v408
      %v2365 = vunpack.c.l.b16 %v409
      %v2366 = vunpack.c.h.b16 %v409
      %v2367 = vunpack.c.l.b16 %v410
      %v2368 = vunpack.c.h.b16 %v410
      %v2369 = vunpack.c.l.b16 %v411
      %v2370 = vunpack.c.h.b16 %v411
      %v2371 = vunpack.c.l.b16 %v412
      %v2372 = vunpack.c.h.b16 %v412
      %v2373 = vunpack.c.l.b16 %v413
      %v2374 = vunpack.c.h.b16 %v413
      %v2375 = vunpack.c.l.b16 %v414
      %v2376 = vunpack.c.h.b16 %v414
      %v2377 = vunpack.c.l.b16 %v415
      %v2378 = vunpack.c.h.b16 %v415
      %v2379 = vunpack.c.l.b16 %v416
      %v2380 = vunpack.c.h.b16 %v416
      %v2381 = vunpack.c.l.b16 %v417
      %v2382 = vunpack.c.h.b16 %v417
      %v2383 = vunpack.c.l.b16 %v418
      %v2384 = vunpack.c.h.b16 %v418
      %v2385 = vunpack.c.l.b16 %v419
      %v2386 = vunpack.c.h.b16 %v419
      %v2387 = vunpack.c.l.b16 %v420
      %v2388 = vunpack.c.h.b16 %v420
      %v2389 = vunpack.c.l.b16 %v421
      %v2390 = vunpack.c.h.b16 %v421
      %v2391 = vunpack.c.l.b16 %v422
      %v2392 = vunpack.c.h.b16 %v422
      %v2393 = vunpack.c.l.b16 %v423
      %v2394 = vunpack.c.h.b16 %v423
      %v2395 = vunpack.c.l.b16 %v424
      %v2396 = vunpack.c.h.b16 %v424
      %v2397 = vunpack.c.l.b16 %v425
      %v2398 = vunpack.c.h.b16 %v425
      %v2399 = vunpack.c.l.b16 %v426
      %v2400 = vunpack.c.h.b16 %v426
      %v2401 = vunpack.c.l.b16 %v427
      %v2402 = vunpack.c.h.b16 %v427
      %v2403 = vunpack.c.l.b16 %v428
      %v2404 = vunpack.c.h.b16 %v428
      %v2405 = vunpack.c.l.b16 %v429
      %v2406 = vunpack.c.h.b16 %v429
      %v2407 = vunpack.c.l.b16 %v430
      %v2408 = vunpack.c.h.b16 %v430
      %v2409 = vunpack.c.l.b16 %v431
      %v2410 = vunpack.c.h.b16 %v431
      %v2411 = vunpack.c.l.b16 %v432
      %v2412 = vunpack.c.h.b16 %v432
      %v2413 = vunpack.c.l.b16 %v433
      %v2414 = vunpack.c.h.b16 %v433
      %v2415 = vunpack.c.l.b16 %v434
      %v2416 = vunpack.c.h.b16 %v434
      %v2417 = vunpack.c.l.b16 %v435
      %v2418 = vunpack.c.h.b16 %v435
      %v2419 = vunpack.c.l.b16 %v436
      %v2420 = vunpack.c.h.b16 %v436
      %v2421 = vunpack.c.l.b16 %v437
      %v2422 = vunpack.c.h.b16 %v437
      %v2423 = vunpack.c.l.b16 %v438
      %v2424 = vunpack.c.h.b16 %v438
      %v2425 = vunpack.c.l.b16 %v439
      %v2426 = vunpack.c.h.b16 %v439
      %v2427 = vunpack.c.l.b16 %v440
      %v2428 = vunpack.c.h.b16 %v440
      %v2429 = vunpack.c.l.b16 %v441
      %v2430 = vunpack.c.h.b16 %v441
      %v2431 = vunpack.c.l.b16 %v442
      %v2432 = vunpack.c.h.b16 %v442
      %v2433 = vunpack.c.l.b16 %v443
      %v2434 = vunpack.c.h.b16 %v443
      %v2435 = vunpack.c.l.b16 %v444
      %v2436 = vunpack.c.h.b16 %v444
      %v2437 = vunpack.c.l.b16 %v445
      %v2438 = vunpack.c.h.b16 %v445
      %v2439 = vunpack.c.l.b16 %v446
      %v2440 = vunpack.c.h.b16 %v446
      %v2441 = vunpack.c.l.b16 %v447
      %v2442 = vunpack.c.h.b16 %v447
      %v2443 = vunpack.c.l.b16 %v448
      %v2444 = vunpack.c.h.b16 %v448
      %v2445 = vunpack.c.l.b16 %v449
      %v2446 = vunpack.c.h.b16 %v449
      %v2447 = vunpack.c.l.b16 %v450
      %v2448 = vunpack.c.h.b16 %v450
      %v2449 = vunpack.c.l.b16 %v451
      %v2450 = vunpack.c.h.b16 %v451
      %v2451 = vunpack.c.l.b16 %v452
      %v2452 = vunpack.c.h.b16 %v452
      %v2453 = vunpack.c.l.b16 %v453
      %v2454 = vunpack.c.h.b16 %v453
      %v2455 = vunpack.c.l.b16 %v454
      %v2456 = vunpack.c.h.b16 %v454
      %v2457 = vunpack.c.l.b16 %v455
      %v2458 = vunpack.c.h.b16 %v455
      %v2459 = vunpack.c.l.b16 %v456
      %v2460 = vunpack.c.h.b16 %v456
      %v2461 = vunpack.c.l.b16 %v457
      %v2462 = vunpack.c.h.b16 %v457
      %v2463 = vunpack.c.l.b16 %v458
      %v2464 = vunpack.c.h.b16 %v458
      %v2465 = vunpack.c.l.b16 %v459
      %v2466 = vunpack.c.h.b16 %v459
      %v2467 = vunpack.c.l.b16 %v460
      %v2468 = vunpack.c.h.b16 %v460
      %v2469 = vunpack.c.l.b16 %v461
      %v2470 = vunpack.c.h.b16 %v461
      %v2471 = vunpack.c.l.b16 %v462
      %v2472 = vunpack.c.h.b16 %v462
      %v2473 = vunpack.c.l.b16 %v463
      %v2474 = vunpack.c.h.b16 %v463
      %v2475 = vunpack.c.l.b16 %v464
      %v2476 = vunpack.c.h.b16 %v464
      %v2477 = vunpack.c.l.b16 %v465
      %v2478 = vunpack.c.h.b16 %v465
      %v2479 = vunpack.c.l.b16 %v466
      %v2480 = vunpack.c.h.b16 %v466
      %v2481 = vunpack.c.l.b16 %v467
      %v2482 = vunpack.c.h.b16 %v467
      %v2483 = vunpack.c.l.b16 %v468
      %v2484 = vunpack.c.h.b16 %v468
      %v2485 = vunpack.c.l.b16 %v469
      %v2486 = vunpack.c.h.b16 %v469
      %v2487 = vunpack.c.l.b16 %v470
      %v2488 = vunpack.c.h.b16 %v470
      %v2489 = vunpack.c.l.b16 %v471
      %v2490 = vunpack.c.h.b16 %v471
      %v2491 = vunpack.c.l.b16 %v472
      %v2492 = vunpack.c.h.b16 %v472
      %v2493 = vunpack.c.l.b16 %v473
      %v2494 = vunpack.c.h.b16 %v473
      %v2495 = vunpack.c.l.b16 %v474
      %v2496 = vunpack.c.h.b16 %v474
      %v2497 = vunpack.c.l.b16 %v475
      %v2498 = vunpack.c.h.b16 %v475
      %v2499 = vunpack.c.l.b16 %v476
      %v2500 = vunpack.c.h.b16 %v476
      %v2501 = vunpack.c.l.b16 %v477
      %v2502 = vunpack.c.h.b16 %v477
      %v2503 = vunpack.c.l.b16 %v478
      %v2504 = vunpack.c.h.b16 %v478
      %v2505 = vunpack.c.l.b16 %v479
      %v2506 = vunpack.c.h.b16 %v479
      %v2507 = vunpack.c.l.b16 %v480
      %v2508 = vunpack.c.h.b16 %v480
      %v2509 = vunpack.c.l.b16 %v481
      %v2510 = vunpack.c.h.b16 %v481
      %v2511 = vunpack.c.l.b16 %v482
      %v2512 = vunpack.c.h.b16 %v482
      %v2513 = vunpack.c.l.b16 %v483
      %v2514 = vunpack.c.h.b16 %v483
      %v2515 = vunpack.c.l.b16 %v484
      %v2516 = vunpack.c.h.b16 %v484
      %v2517 = vunpack.c.l.b16 %v485
      %v2518 = vunpack.c.h.b16 %v485
      %v2519 = vunpack.c.l.b16 %v486
      %v2520 = vunpack.c.h.b16 %v486
      %v2521 = vunpack.c.l.b16 %v487
      %v2522 = vunpack.c.h.b16 %v487
      %v2523 = vunpack.c.l.b16 %v488
      %v2524 = vunpack.c.h.b16 %v488
      %v2525 = vunpack.c.l.b16 %v489
      %v2526 = vunpack.c.h.b16 %v489
      %v2527 = vunpack.c.l.b16 %v490
      %v2528 = vunpack.c.h.b16 %v490
      %v2529 = vunpack.c.l.b16 %v491
      %v2530 = vunpack.c.h.b16 %v491
      %v2531 = vunpack.c.l.b16 %v492
      %v2532 = vunpack.c.h.b16 %v492
      %v2533 = vunpack.c.l.b16 %v493
      %v2534 = vunpack.c.h.b16 %v493
      %v2535 = vunpack.c.l.b16 %v494
      %v2536 = vunpack.c.h.b16 %v494
      %v2537 = vunpack.c.l.b16 %v495
      %v2538 = vunpack.c.h.b16 %v495
      %v2539 = vunpack.c.l.b16 %v496
      %v2540 = vunpack.c.h.b16 %v496
      %v2541 = vunpack.c.l.b16 %v497
      %v2542 = vunpack.c.h.b16 %v497
      %v2543 = vunpack.c.l.b16 %v498
      %v2544 = vunpack.c.h.b16 %v498
      %v2545 = vunpack.c.l.b16 %v499
      %v2546 = vunpack.c.h.b16 %v499
      %v2547 = vunpack.c.l.b16 %v500
      %v2548 = vunpack.c.h.b16 %v500
      %v2549 = vunpack.c.l.b16 %v501
      %v2550 = vunpack.c.h.b16 %v501
      %v2551 = vunpack.c.l.b16 %v502
      %v2552 = vunpack.c.h.b16 %v502
      %v2553 = vunpack.c.l.b16 %v503
      %v2554 = vunpack.c.h.b16 %v503
      %v2555 = vunpack.c.l.b16 %v504
      %v2556 = vunpack.c.h.b16 %v504
      %v2557 = vunpack.c.l.b16 %v505
      %v2558 = vunpack.c.h.b16 %v505
      %v2559 = vunpack.c.l.b16 %v506
      %v2560 = vunpack.c.h.b16 %v506
      %v2561 = vunpack.c.l.b16 %v507
      %v2562 = vunpack.c.h.b16 %v507
      %v2563 = vunpack.c.l.b16 %v508
      %v2564 = vunpack.c.h.b16 %v508
      %v2565 = vunpack.c.l.b16 %v509
      %v2566 = vunpack.c.h.b16 %v509
      %v2567 = vunpack.c.l.b16 %v510
      %v2568 = vunpack.c.h.b16 %v510
      %v2569 = vunpack.c.l.b16 %v511
      %v2570 = vunpack.c.h.b16 %v511
      %v2571 = vpack.c.b16 %v2195, %v2187
      %v2572 = vpack.c.b16 %v2196, %v2188
      %v2573 = vpack.c.b16 %v2197, %v2189
      %v2574 = vpack.c.b16 %v2198, %v2190
      %v2575 = vpack.c.b16 %v2199, %v2191
      %v2576 = vpack.c.b16 %v2200, %v2192
      %v2577 = vpack.c.b16 %v2201, %v2193
      %v2578 = vpack.c.b16 %v2202, %v2194
      %v2579 = vpack.c.b16 %v2211, %v2203
      %v2580 = vpack.c.b16 %v2212, %v2204
      %v2581 = vpack.c.b16 %v2213, %v2205
      %v2582 = vpack.c.b16 %v2214, %v2206
      %v2583 = vpack.c.b16 %v2215, %v2207
      %v2584 = vpack.c.b16 %v2216, %v2208
      %v2585 = vpack.c.b16 %v2217, %v2209
      %v2586 = vpack.c.b16 %v2218, %v2210
      %v2587 = vpack.c.b16 %v2227, %v2219
      %v2588 = vpack.c.b16 %v2228, %v2220
      %v2589 = vpack.c.b16 %v2229, %v2221
      %v2590 = vpack.c.b16 %v2230, %v2222
      %v2591 = vpack.c.b16 %v2231, %v2223
      %v2592 = vpack.c.b16 %v2232, %v2224
      %v2593 = vpack.c.b16 %v2233, %v2225
      %v2594 = vpack.c.b16 %v2234, %v2226
      %v2595 = vpack.c.b16 %v2243, %v2235
      %v2596 = vpack.c.b16 %v2244, %v2236
      %v2597 = vpack.c.b16 %v2245, %v2237
      %v2598 = vpack.c.b16 %v2246, %v2238
      %v2599 = vpack.c.b16 %v2247, %v2239
      %v2600 = vpack.c.b16 %v2248, %v2240
      %v2601 = vpack.c.b16 %v2249, %v2241
      %v2602 = vpack.c.b16 %v2250, %v2242
      %v2603 = vpack.c.b16 %v2259, %v2251
      %v2604 = vpack.c.b16 %v2260, %v2252
      %v2605 = vpack.c.b16 %v2261, %v2253
      %v2606 = vpack.c.b16 %v2262, %v2254
      %v2607 = vpack.c.b16 %v2263, %v2255
      %v2608 = vpack.c.b16 %v2264, %v2256
      %v2609 = vpack.c.b16 %v2265, %v2257
      %v2610 = vpack.c.b16 %v2266, %v2258
      %v2611 = vpack.c.b16 %v2275, %v2267
      %v2612 = vpack.c.b16 %v2276, %v2268
      %v2613 = vpack.c.b16 %v2277, %v2269
      %v2614 = vpack.c.b16 %v2278, %v2270
      %v2615 = vpack.c.b16 %v2279, %v2271
      %v2616 = vpack.c.b16 %v2280, %v2272
      %v2617 = vpack.c.b16 %v2281, %v2273
      %v2618 = vpack.c.b16 %v2282, %v2274
      %v2619 = vpack.c.b16 %v2291, %v2283
      %v2620 = vpack.c.b16 %v2292, %v2284
      %v2621 = vpack.c.b16 %v2293, %v2285
      %v2622 = vpack.c.b16 %v2294, %v2286
      %v2623 = vpack.c.b16 %v2295, %v2287
      %v2624 = vpack.c.b16 %v2296, %v2288
      %v2625 = vpack.c.b16 %v2297, %v2289
      %v2626 = vpack.c.b16 %v2298, %v2290
      %v2627 = vpack.c.b16 %v2307, %v2299
      %v2628 = vpack.c.b16 %v2308, %v2300
      %v2629 = vpack.c.b16 %v2309, %v2301
      %v2630 = vpack.c.b16 %v2310, %v2302
      %v2631 = vpack.c.b16 %v2311, %v2303
      %v2632 = vpack.c.b16 %v2312, %v2304
      %v2633 = vpack.c.b16 %v2313, %v2305
      %v2634 = vpack.c.b16 %v2314, %v2306
      %v2635 = vpack.c.b16 %v2323, %v2315
      %v2636 = vpack.c.b16 %v2324, %v2316
      %v2637 = vpack.c.b16 %v2325, %v2317
      %v2638 = vpack.c.b16 %v2326, %v2318
      %v2639 = vpack.c.b16 %v2327, %v2319
      %v2640 = vpack.c.b16 %v2328, %v2320
      %v2641 = vpack.c.b16 %v2329, %v2321
      %v2642 = vpack.c.b16 %v2330, %v2322
      %v2643 = vpack.c.b16 %v2339, %v2331
      %v2644 = vpack.c.b16 %v2340, %v2332
      %v2645 = vpack.c.b16 %v2341, %v2333
      %v2646 = vpack.c.b16 %v2342, %v2334
      %v2647 = vpack.c.b16 %v2343, %v2335
      %v2648 = vpack.c.b16 %v2344, %v2336
      %v2649 = vpack.c.b16 %v2345, %v2337
      %v2650 = vpack.c.b16 %v2346, %v2338
      %v2651 = vpack.c.b16 %v2355, %v2347
      %v2652 = vpack.c.b16 %v2356, %v2348
      %v2653 = vpack.c.b16 %v2357, %v2349
      %v2654 = vpack.c.b16 %v2358, %v2350
      %v2655 = vpack.c.b16 %v2359, %v2351
      %v2656 = vpack.c.b16 %v2360, %v2352
      %v2657 = vpack.c.b16 %v2361, %v2353
      %v2658 = vpack.c.b16 %v2362, %v2354
      %v2659 = vpack.c.b16 %v2371, %v2363
      %v2660 = vpack.c.b16 %v2372, %v2364
      %v2661 = vpack.c.b16 %v2373, %v2365
      %v2662 = vpack.c.b16 %v2374, %v2366
      %v2663 = vpack.c.b16 %v2375, %v2367
      %v2664 = vpack.c.b16 %v2376, %v2368
      %v2665 = vpack.c.b16 %v2377, %v2369
      %v2666 = vpack.c.b16 %v2378, %v2370
      %v2667 = vpack.c.b16 %v2387, %v2379
      %v2668 = vpack.c.b16 %v2388, %v2380
      %v2669 = vpack.c.b16 %v2389, %v2381
      %v2670 = vpack.c.b16 %v2390, %v2382
      %v2671 = vpack.c.b16 %v2391, %v2383
      %v2672 = vpack.c.b16 %v2392, %v2384
      %v2673 = vpack.c.b16 %v2393, %v2385
      %v2674 = vpack.c.b16 %v2394, %v2386
      %v2675 = vpack.c.b16 %v2403, %v2395
      %v2676 = vpack.c.b16 %v2404, %v2396
      %v2677 = vpack.c.b16 %v2405, %v2397
      %v2678 = vpack.c.b16 %v2406, %v2398
      %v2679 = vpack.c.b16 %v2407, %v2399
      %v2680 = vpack.c.b16 %v2408, %v2400
      %v2681 = vpack.c.b16 %v2409, %v2401
      %v2682 = vpack.c.b16 %v2410, %v2402
      %v2683 = vpack.c.b16 %v2419, %v2411
      %v2684 = vpack.c.b16 %v2420, %v2412
      %v2685 = vpack.c.b16 %v2421, %v2413
      %v2686 = vpack.c.b16 %v2422, %v2414
      %v2687 = vpack.c.b16 %v2423, %v2415
      %v2688 = vpack.c.b16 %v2424, %v2416
      %v2689 = vpack.c.b16 %v2425, %v2417
      %v2690 = vpack.c.b16 %v2426, %v2418
      %v2691 = vpack.c.b16 %v2435, %v2427
      %v2692 = vpack.c.b16 %v2436, %v2428
      %v2693 = vpack.c.b16 %v2437, %v2429
      %v2694 = vpack.c.b16 %v2438, %v2430
      %v2695 = vpack.c.b16 %v2439, %v2431
      %v2696 = vpack.c.b16 %v2440, %v2432
      %v2697 = vpack.c.b16 %v2441, %v2433
      %v2698 = vpack.c.b16 %v2442, %v2434
      %v2699 = vpack.c.b16 %v2451, %v2443
      %v2700 = vpack.c.b16 %v2452, %v2444
      %v2701 = vpack.c.b16 %v2453, %v2445
      %v2702 = vpack.c.b16 %v2454, %v2446
      %v2703 = vpack.c.b16 %v2455, %v2447
      %v2704 = vpack.c.b16 %v2456, %v2448
      %v2705 = vpack.c.b16 %v2457, %v2449
      %v2706 = vpack.c.b16 %v2458, %v2450
      %v2707 = vpack.c.b16 %v2467, %v2459
      %v2708 = vpack.c.b16 %v2468, %v2460
      %v2709 = vpack.c.b16 %v2469, %v2461
      %v2710 = vpack.c.b16 %v2470, %v2462
      %v2711 = vpack.c.b16 %v2471, %v2463
      %v2712 = vpack.c.b16 %v2472, %v2464
      %v2713 = vpack.c.b16 %v2473, %v2465
      %v2714 = vpack.c.b16 %v2474, %v2466
      %v2715 = vpack.c.b16 %v2483, %v2475
      %v2716 = vpack.c.b16 %v2484, %v2476
      %v2717 = vpack.c.b16 %v2485, %v2477
      %v2718 = vpack.c.b16 %v2486, %v2478
      %v2719 = vpack.c.b16 %v2487, %v2479
      %v2720 = vpack.c.b16 %v2488, %v2480
      %v2721 = vpack.c.b16 %v2489, %v2481
      %v2722 = vpack.c.b16 %v2490, %v2482
      %v2723 = vpack.c.b16 %v2499, %v2491
      %v2724 = vpack.c.b16 %v2500, %v2492
      %v2725 = vpack.c.b16 %v2501, %v2493
      %v2726 = vpack.c.b16 %v2502, %v2494
      %v2727 = vpack.c.b16 %v2503, %v2495
      %v2728 = vpack.c.b16 %v2504, %v2496
      %v2729 = vpack.c.b16 %v2505, %v2497
      %v2730 = vpack.c.b16 %v2506, %v2498
      %v2731 = vpack.c.b16 %v2515, %v2507
      %v2732 = vpack.c.b16 %v2516, %v2508
      %v2733 = vpack.c.b16 %v2517, %v2509
      %v2734 = vpack.c.b16 %v2518, %v2510
      %v2735 = vpack.c.b16 %v2519, %v2511
      %v2736 = vpack.c.b16 %v2520, %v2512
      %v2737 = vpack.c.b16 %v2521, %v2513
      %v2738 = vpack.c.b16 %v2522, %v2514
      %v2739 = vpack.c.b16 %v2531, %v2523
      %v2740 = vpack.c.b16 %v2532, %v2524
      %v2741 = vpack.c.b16 %v2533, %v2525
      %v2742 = vpack.c.b16 %v2534, %v2526
      %v2743 = vpack.c.b16 %v2535, %v2527
      %v2744 = vpack.c.b16 %v2536, %v2528
      %v2745 = vpack.c.b16 %v2537, %v2529
      %v2746 = vpack.c.b16 %v2538, %v2530
      %v2747 = vpack.c.b16 %v2547, %v2539
      %v2748 = vpack.c.b16 %v2548, %v2540
      %v2749 = vpack.c.b16 %v2549, %v2541
      %v2750 = vpack.c.b16 %v2550, %v2542
      %v2751 = vpack.c.b16 %v2551, %v2543
      %v2752 = vpack.c.b16 %v2552, %v2544
      %v2753 = vpack.c.b16 %v2553, %v2545
      %v2754 = vpack.c.b16 %v2554, %v2546
      %v2755 = vpack.c.b16 %v2563, %v2555
      %v2756 = vpack.c.b16 %v2564, %v2556
      %v2757 = vpack.c.b16 %v2565, %v2557
      %v2758 = vpack.c.b16 %v2566, %v2558
      %v2759 = vpack.c.b16 %v2567, %v2559
      %v2760 = vpack.c.b16 %v2568, %v2560
      %v2761 = vpack.c.b16 %v2569, %v2561
      %v2762 = vpack.c.b16 %v2570, %v2562
      %2955 = vmatprep.subr.bf16.mxu0 %v2572
      %2956 = vmatpush1.bf16.msra.mxu0 %v2571
      %2957 = vmatprep.subr.bf16.mxu0 %v2580
      %2958 = vmatpush1.bf16.msra.mxu0 %v2579
      %2959 = vmatprep.subr.bf16.mxu0 %v2588
      %2960 = vmatpush1.bf16.msra.mxu0 %v2587
      %2961 = vmatprep.subr.bf16.mxu0 %v2596
      %2962 = vmatpush1.bf16.msra.mxu0 %v2595
      %2963 = vmatprep.subr.bf16.mxu0 %v2604
      %2964 = vmatpush1.bf16.msra.mxu0 %v2603
      %2965 = vmatprep.subr.bf16.mxu0 %v2612
      %2966 = vmatpush1.bf16.msra.mxu0 %v2611
      %2967 = vmatprep.subr.bf16.mxu0 %v2620
      %2968 = vmatpush1.bf16.msra.mxu0 %v2619
      %2969 = vmatprep.subr.bf16.mxu0 %v2628
      %2970 = vmatpush1.bf16.msra.mxu0 %v2627
      %2971 = vmatprep.subr.bf16.mxu0 %v2636
      %2972 = vmatpush1.bf16.msra.mxu0 %v2635
      %2973 = vmatprep.subr.bf16.mxu0 %v2644
      %2974 = vmatpush1.bf16.msra.mxu0 %v2643
      %2975 = vmatprep.subr.bf16.mxu0 %v2652
      %2976 = vmatpush1.bf16.msra.mxu0 %v2651
      %2977 = vmatprep.subr.bf16.mxu0 %v2660
      %2978 = vmatpush1.bf16.msra.mxu0 %v2659
      %2979 = vmatprep.subr.bf16.mxu0 %v2668
      %2980 = vmatpush1.bf16.msra.mxu0 %v2667
      %2981 = vmatprep.subr.bf16.mxu0 %v2676
      %2982 = vmatpush1.bf16.msra.mxu0 %v2675
      %2983 = vmatprep.subr.bf16.mxu0 %v2684
      %2984 = vmatpush1.bf16.msra.mxu0 %v2683
      %2985 = vmatprep.subr.bf16.mxu0 %v2692
      %2986 = vmatpush1.bf16.msra.mxu0 %v2691
      %2987 = vmatprep.mubr.bf16.mxu0 %v318
      %2988 = vmatmul.mubr.bf16.gmra.mrb[0].mxu0 %v317
      %v2989 = vpop.f32.mrb[0].mxu0
      %v2990 = vadd.f32 %v1743, %v2989
      %v2991 = vpop.f32.mrb[0].mxu0
      %v2992 = vadd.f32 %v1745, %v2991
      %v2993 = vpop.f32.mrb[0].mxu0
      %v2994 = vpop.f32.mrb[0].mxu0
      %2995 = vdwg.mxu0
      %2996 = vmatprep.subr.bf16.mxu0 %v2700
      %2997 = vmatpush1.bf16.msra.mxu0 %v2699
      %2998 = vmatprep.subr.bf16.mxu0 %v2708
      %2999 = vmatpush1.bf16.msra.mxu0 %v2707
      %3000 = vmatprep.subr.bf16.mxu0 %v2716
      %3001 = vmatpush1.bf16.msra.mxu0 %v2715
      %3002 = vmatprep.subr.bf16.mxu0 %v2724
      %3003 = vmatpush1.bf16.msra.mxu0 %v2723
      %3004 = vmatprep.subr.bf16.mxu0 %v2732
      %3005 = vmatpush1.bf16.msra.mxu0 %v2731
      %3006 = vmatprep.subr.bf16.mxu0 %v2740
      %3007 = vmatpush1.bf16.msra.mxu0 %v2739
      %3008 = vmatprep.subr.bf16.mxu0 %v2748
      %3009 = vmatpush1.bf16.msra.mxu0 %v2747
      %3010 = vmatprep.subr.bf16.mxu0 %v2756
      %3011 = vmatpush1.bf16.msra.mxu0 %v2755
      %3012 = vmatprep.subr.bf16.mxu0 0
      %3013 = vmatpush1.bf16.msra.mxu0 0
      %3014 = vmatprep.subr.bf16.mxu0 0
      %3015 = vmatpush1.bf16.msra.mxu0 0
      %3016 = vmatprep.subr.bf16.mxu0 0
      %3017 = vmatpush1.bf16.msra.mxu0 0
      %3018 = vmatprep.subr.bf16.mxu0 0
      %3019 = vmatpush1.bf16.msra.mxu0 0
      %3020 = vmatprep.subr.bf16.mxu0 0
      %3021 = vmatpush1.bf16.msra.mxu0 0
      %3022 = vmatprep.subr.bf16.mxu0 0
      %3023 = vmatpush1.bf16.msra.mxu0 0
      %3024 = vmatprep.subr.bf16.mxu0 0
      %3025 = vmatpush1.bf16.msra.mxu0 0
      %3026 = vmatprep.subr.bf16.mxu0 0
      %3027 = vmatpush1.bf16.msra.mxu0 0
      %3028 = vmatprep.mubr.bf16.mxu0 0
      %3029 = vmatmul.mubr.bf16.gmra.mrb[0].mxu0 %v319
      %v3030 = vpop.f32.mrb[0].mxu0
      %v3031 = vadd.f32 %v2990, %v3030
      %v3032 = vpop.f32.mrb[0].mxu0
      %v3033 = vadd.f32 %v2992, %v3032
      %v3034 = vpop.f32.mrb[0].mxu0
      %v3035 = vpop.f32.mrb[0].mxu0
      %3036 = vdwg.mxu0
      %3037 = vmatprep.subr.bf16.mxu0 %v2574
      %3038 = vmatpush1.bf16.msra.mxu0 %v2573
      %3039 = vmatprep.subr.bf16.mxu0 %v2582
      %3040 = vmatpush1.bf16.msra.mxu0 %v2581
      %3041 = vmatprep.subr.bf16.mxu0 %v2590
      %3042 = vmatpush1.bf16.msra.mxu0 %v2589
      %3043 = vmatprep.subr.bf16.mxu0 %v2598
      %3044 = vmatpush1.bf16.msra.mxu0 %v2597
      %3045 = vmatprep.subr.bf16.mxu0 %v2606
      %3046 = vmatpush1.bf16.msra.mxu0 %v2605
      %3047 = vmatprep.subr.bf16.mxu0 %v2614
      %3048 = vmatpush1.bf16.msra.mxu0 %v2613
      %3049 = vmatprep.subr.bf16.mxu0 %v2622
      %3050 = vmatpush1.bf16.msra.mxu0 %v2621
      %3051 = vmatprep.subr.bf16.mxu0 %v2630
      %3052 = vmatpush1.bf16.msra.mxu0 %v2629
      %3053 = vmatprep.subr.bf16.mxu0 %v2638
      %3054 = vmatpush1.bf16.msra.mxu0 %v2637
      %3055 = vmatprep.subr.bf16.mxu0 %v2646
      %3056 = vmatpush1.bf16.msra.mxu0 %v2645
      %3057 = vmatprep.subr.bf16.mxu0 %v2654
      %3058 = vmatpush1.bf16.msra.mxu0 %v2653
      %3059 = vmatprep.subr.bf16.mxu0 %v2662
      %3060 = vmatpush1.bf16.msra.mxu0 %v2661
      %3061 = vmatprep.subr.bf16.mxu0 %v2670
      %3062 = vmatpush1.bf16.msra.mxu0 %v2669
      %3063 = vmatprep.subr.bf16.mxu0 %v2678
      %3064 = vmatpush1.bf16.msra.mxu0 %v2677
      %3065 = vmatprep.subr.bf16.mxu0 %v2686
      %3066 = vmatpush1.bf16.msra.mxu0 %v2685
      %3067 = vmatprep.subr.bf16.mxu0 %v2694
      %3068 = vmatpush1.bf16.msra.mxu0 %v2693
      %3069 = vmatprep.mubr.bf16.mxu0 %v318
      %3070 = vmatmul.mubr.bf16.gmra.mrb[0].mxu0 %v317
      %v3071 = vpop.f32.mrb[0].mxu0
      %v3072 = vadd.f32 %v1825, %v3071
      %v3073 = vpop.f32.mrb[0].mxu0
      %v3074 = vadd.f32 %v1827, %v3073
      %v3075 = vpop.f32.mrb[0].mxu0
      %v3076 = vpop.f32.mrb[0].mxu0
      %3077 = vdwg.mxu0
      %3078 = vmatprep.subr.bf16.mxu0 %v2702
      %3079 = vmatpush1.bf16.msra.mxu0 %v2701
      %3080 = vmatprep.subr.bf16.mxu0 %v2710
      %3081 = vmatpush1.bf16.msra.mxu0 %v2709
      %3082 = vmatprep.subr.bf16.mxu0 %v2718
      %3083 = vmatpush1.bf16.msra.mxu0 %v2717
      %3084 = vmatprep.subr.bf16.mxu0 %v2726
      %3085 = vmatpush1.bf16.msra.mxu0 %v2725
      %3086 = vmatprep.subr.bf16.mxu0 %v2734
      %3087 = vmatpush1.bf16.msra.mxu0 %v2733
      %3088 = vmatprep.subr.bf16.mxu0 %v2742
      %3089 = vmatpush1.bf16.msra.mxu0 %v2741
      %3090 = vmatprep.subr.bf16.mxu0 %v2750
      %3091 = vmatpush1.bf16.msra.mxu0 %v2749
      %3092 = vmatprep.subr.bf16.mxu0 %v2758
      %3093 = vmatpush1.bf16.msra.mxu0 %v2757
      %3094 = vmatprep.subr.bf16.mxu0 0
      %3095 = vmatpush1.bf16.msra.mxu0 0
      %3096 = vmatprep.subr.bf16.mxu0 0
      %3097 = vmatpush1.bf16.msra.mxu0 0
      %3098 = vmatprep.subr.bf16.mxu0 0
      %3099 = vmatpush1.bf16.msra.mxu0 0
      %3100 = vmatprep.subr.bf16.mxu0 0
      %3101 = vmatpush1.bf16.msra.mxu0 0
      %3102 = vmatprep.subr.bf16.mxu0 0
      %3103 = vmatpush1.bf16.msra.mxu0 0
      %3104 = vmatprep.subr.bf16.mxu0 0
      %3105 = vmatpush1.bf16.msra.mxu0 0
      %3106 = vmatprep.subr.bf16.mxu0 0
      %3107 = vmatpush1.bf16.msra.mxu0 0
      %3108 = vmatprep.subr.bf16.mxu0 0
      %3109 = vmatpush1.bf16.msra.mxu0 0
      %3110 = vmatprep.mubr.bf16.mxu0 0
      %3111 = vmatmul.mubr.bf16.gmra.mrb[0].mxu0 %v319
      %v3112 = vpop.f32.mrb[0].mxu0
      %v3113 = vadd.f32 %v3072, %v3112
      %v3114 = vpop.f32.mrb[0].mxu0
      %v3115 = vadd.f32 %v3074, %v3114
      %v3116 = vpop.f32.mrb[0].mxu0
      %v3117 = vpop.f32.mrb[0].mxu0
      %3118 = vdwg.mxu0
      %3119 = vmatprep.subr.bf16.mxu0 %v2576
      %3120 = vmatpush1.bf16.msra.mxu0 %v2575
      %3121 = vmatprep.subr.bf16.mxu0 %v2584
      %3122 = vmatpush1.bf16.msra.mxu0 %v2583
      %3123 = vmatprep.subr.bf16.mxu0 %v2592
      %3124 = vmatpush1.bf16.msra.mxu0 %v2591
      %3125 = vmatprep.subr.bf16.mxu0 %v2600
      %3126 = vmatpush1.bf16.msra.mxu0 %v2599
      %3127 = vmatprep.subr.bf16.mxu0 %v2608
      %3128 = vmatpush1.bf16.msra.mxu0 %v2607
      %3129 = vmatprep.subr.bf16.mxu0 %v2616
      %3130 = vmatpush1.bf16.msra.mxu0 %v2615
      %3131 = vmatprep.subr.bf16.mxu0 %v2624
      %3132 = vmatpush1.bf16.msra.mxu0 %v2623
      %3133 = vmatprep.subr.bf16.mxu0 %v2632
      %3134 = vmatpush1.bf16.msra.mxu0 %v2631
      %3135 = vmatprep.subr.bf16.mxu0 %v2640
      %3136 = vmatpush1.bf16.msra.mxu0 %v2639
      %3137 = vmatprep.subr.bf16.mxu0 %v2648
      %3138 = vmatpush1.bf16.msra.mxu0 %v2647
      %3139 = vmatprep.subr.bf16.mxu0 %v2656
      %3140 = vmatpush1.bf16.msra.mxu0 %v2655
      %3141 = vmatprep.subr.bf16.mxu0 %v2664
      %3142 = vmatpush1.bf16.msra.mxu0 %v2663
      %3143 = vmatprep.subr.bf16.mxu0 %v2672
      %3144 = vmatpush1.bf16.msra.mxu0 %v2671
      %3145 = vmatprep.subr.bf16.mxu0 %v2680
      %3146 = vmatpush1.bf16.msra.mxu0 %v2679
      %3147 = vmatprep.subr.bf16.mxu0 %v2688
      %3148 = vmatpush1.bf16.msra.mxu0 %v2687
      %3149 = vmatprep.subr.bf16.mxu0 %v2696
      %3150 = vmatpush1.bf16.msra.mxu0 %v2695
      %3151 = vmatprep.mubr.bf16.mxu0 %v318
      %3152 = vmatmul.mubr.bf16.gmra.mrb[0].mxu0 %v317
      %v3153 = vpop.f32.mrb[0].mxu0
      %v3154 = vadd.f32 %v1907, %v3153
      %v3155 = vpop.f32.mrb[0].mxu0
      %v3156 = vadd.f32 %v1909, %v3155
      %v3157 = vpop.f32.mrb[0].mxu0
      %v3158 = vpop.f32.mrb[0].mxu0
      %3159 = vdwg.mxu0
      %3160 = vmatprep.subr.bf16.mxu0 %v2704
      %3161 = vmatpush1.bf16.msra.mxu0 %v2703
      %3162 = vmatprep.subr.bf16.mxu0 %v2712
      %3163 = vmatpush1.bf16.msra.mxu0 %v2711
      %3164 = vmatprep.subr.bf16.mxu0 %v2720
      %3165 = vmatpush1.bf16.msra.mxu0 %v2719
      %3166 = vmatprep.subr.bf16.mxu0 %v2728
      %3167 = vmatpush1.bf16.msra.mxu0 %v2727
      %3168 = vmatprep.subr.bf16.mxu0 %v2736
      %3169 = vmatpush1.bf16.msra.mxu0 %v2735
      %3170 = vmatprep.subr.bf16.mxu0 %v2744
      %3171 = vmatpush1.bf16.msra.mxu0 %v2743
      %3172 = vmatprep.subr.bf16.mxu0 %v2752
      %3173 = vmatpush1.bf16.msra.mxu0 %v2751
      %3174 = vmatprep.subr.bf16.mxu0 %v2760
      %3175 = vmatpush1.bf16.msra.mxu0 %v2759
      %3176 = vmatprep.subr.bf16.mxu0 0
      %3177 = vmatpush1.bf16.msra.mxu0 0
      %3178 = vmatprep.subr.bf16.mxu0 0
      %3179 = vmatpush1.bf16.msra.mxu0 0
      %3180 = vmatprep.subr.bf16.mxu0 0
      %3181 = vmatpush1.bf16.msra.mxu0 0
      %3182 = vmatprep.subr.bf16.mxu0 0
      %3183 = vmatpush1.bf16.msra.mxu0 0
      %3184 = vmatprep.subr.bf16.mxu0 0
      %3185 = vmatpush1.bf16.msra.mxu0 0
      %3186 = vmatprep.subr.bf16.mxu0 0
      %3187 = vmatpush1.bf16.msra.mxu0 0
      %3188 = vmatprep.subr.bf16.mxu0 0
      %3189 = vmatpush1.bf16.msra.mxu0 0
      %3190 = vmatprep.subr.bf16.mxu0 0
      %3191 = vmatpush1.bf16.msra.mxu0 0
      %3192 = vmatprep.mubr.bf16.mxu0 0
      %3193 = vmatmul.mubr.bf16.gmra.mrb[0].mxu0 %v319
      %v3194 = vpop.f32.mrb[0].mxu0
      %v3195 = vadd.f32 %v3154, %v3194
      %v3196 = vpop.f32.mrb[0].mxu0
      %v3197 = vadd.f32 %v3156, %v3196
      %v3198 = vpop.f32.mrb[0].mxu0
      %v3199 = vpop.f32.mrb[0].mxu0
      %3200 = vdwg.mxu0
      %3201 = vmatprep.subr.bf16.mxu0 %v2578
      %3202 = vmatpush1.bf16.msra.mxu0 %v2577
      %3203 = vmatprep.subr.bf16.mxu0 %v2586
      %3204 = vmatpush1.bf16.msra.mxu0 %v2585
      %3205 = vmatprep.subr.bf16.mxu0 %v2594
      %3206 = vmatpush1.bf16.msra.mxu0 %v2593
      %3207 = vmatprep.subr.bf16.mxu0 %v2602
      %3208 = vmatpush1.bf16.msra.mxu0 %v2601
      %3209 = vmatprep.subr.bf16.mxu0 %v2610
      %3210 = vmatpush1.bf16.msra.mxu0 %v2609
      %3211 = vmatprep.subr.bf16.mxu0 %v2618
      %3212 = vmatpush1.bf16.msra.mxu0 %v2617
      %3213 = vmatprep.subr.bf16.mxu0 %v2626
      %3214 = vmatpush1.bf16.msra.mxu0 %v2625
      %3215 = vmatprep.subr.bf16.mxu0 %v2634
      %3216 = vmatpush1.bf16.msra.mxu0 %v2633
      %3217 = vmatprep.subr.bf16.mxu0 %v2642
      %3218 = vmatpush1.bf16.msra.mxu0 %v2641
      %3219 = vmatprep.subr.bf16.mxu0 %v2650
      %3220 = vmatpush1.bf16.msra.mxu0 %v2649
      %3221 = vmatprep.subr.bf16.mxu0 %v2658
      %3222 = vmatpush1.bf16.msra.mxu0 %v2657
      %3223 = vmatprep.subr.bf16.mxu0 %v2666
      %3224 = vmatpush1.bf16.msra.mxu0 %v2665
      %3225 = vmatprep.subr.bf16.mxu0 %v2674
      %3226 = vmatpush1.bf16.msra.mxu0 %v2673
      %3227 = vmatprep.subr.bf16.mxu0 %v2682
      %3228 = vmatpush1.bf16.msra.mxu0 %v2681
      %3229 = vmatprep.subr.bf16.mxu0 %v2690
      %3230 = vmatpush1.bf16.msra.mxu0 %v2689
      %3231 = vmatprep.subr.bf16.mxu0 %v2698
      %3232 = vmatpush1.bf16.msra.mxu0 %v2697
      %3233 = vmatprep.mubr.bf16.mxu0 %v318
      %3234 = vmatmul.mubr.bf16.gmra.mrb[0].mxu0 %v317
      %v3235 = vpop.f32.mrb[0].mxu0
      %v3236 = vadd.f32 %v1989, %v3235
      %v3237 = vpop.f32.mrb[0].mxu0
      %v3238 = vadd.f32 %v1991, %v3237
      %v3239 = vpop.f32.mrb[0].mxu0
      %v3240 = vpop.f32.mrb[0].mxu0
      %3241 = vdwg.mxu0
      %3242 = vmatprep.subr.bf16.mxu0 %v2706
      %3243 = vmatpush1.bf16.msra.mxu0 %v2705
      %3244 = vmatprep.subr.bf16.mxu0 %v2714
      %3245 = vmatpush1.bf16.msra.mxu0 %v2713
      %3246 = vmatprep.subr.bf16.mxu0 %v2722
      %3247 = vmatpush1.bf16.msra.mxu0 %v2721
      %3248 = vmatprep.subr.bf16.mxu0 %v2730
      %3249 = vmatpush1.bf16.msra.mxu0 %v2729
      %3250 = vmatprep.subr.bf16.mxu0 %v2738
      %3251 = vmatpush1.bf16.msra.mxu0 %v2737
      %3252 = vmatprep.subr.bf16.mxu0 %v2746
      %3253 = vmatpush1.bf16.msra.mxu0 %v2745
      %3254 = vmatprep.subr.bf16.mxu0 %v2754
      %3255 = vmatpush1.bf16.msra.mxu0 %v2753
      %3256 = vmatprep.subr.bf16.mxu0 %v2762
      %3257 = vmatpush1.bf16.msra.mxu0 %v2761
      %3258 = vmatprep.subr.bf16.mxu0 0
      %3259 = vmatpush1.bf16.msra.mxu0 0
      %3260 = vmatprep.subr.bf16.mxu0 0
      %3261 = vmatpush1.bf16.msra.mxu0 0
      %3262 = vmatprep.subr.bf16.mxu0 0
      %3263 = vmatpush1.bf16.msra.mxu0 0
      %3264 = vmatprep.subr.bf16.mxu0 0
      %3265 = vmatpush1.bf16.msra.mxu0 0
      %3266 = vmatprep.subr.bf16.mxu0 0
      %3267 = vmatpush1.bf16.msra.mxu0 0
      %3268 = vmatprep.subr.bf16.mxu0 0
      %3269 = vmatpush1.bf16.msra.mxu0 0
      %3270 = vmatprep.subr.bf16.mxu0 0
      %3271 = vmatpush1.bf16.msra.mxu0 0
      %3272 = vmatprep.subr.bf16.mxu0 0
      %3273 = vmatpush1.bf16.msra.mxu0 0
      %3274 = vmatprep.mubr.bf16.mxu0 0
      %3275 = vmatmul.mubr.bf16.gmra.mrb[0].mxu0 %v319
      %v3276 = vpop.f32.mrb[0].mxu0
      %v3277 = vadd.f32 %v3236, %v3276
      %v3278 = vpop.f32.mrb[0].mxu0
      %v3279 = vadd.f32 %v3238, %v3278
      %v3280 = vpop.f32.mrb[0].mxu0
      %v3281 = vpop.f32.mrb[0].mxu0
      %3282 = vdwg.mxu0
      %v3283 = vld [vmem:[%s3] sm:$0xff]
      %v3285 = vlaneseq
      %v3286 = vshrl.u32 %v3285, 7
      %v3287 = vsub.s32 0, %v3286
      %v3288 = vrot.slane %v3283, %v3287
      %v3289 = vlaneseq
      %v3290 = vshrl.u32 %v3289, 7
      %v3291 = vsub.s32 1, %v3290
      %v3292 = vrot.slane %v3283, %v3291
      %v3293 = vlaneseq
      %v3294 = vshrl.u32 %v3293, 7
      %v3295 = vsub.s32 2, %v3294
      %v3296 = vrot.slane %v3283, %v3295
      %v3297 = vlaneseq
      %v3298 = vshrl.u32 %v3297, 7
      %v3299 = vsub.s32 3, %v3298
      %v3300 = vrot.slane %v3283, %v3299
      %v3301 = vlaneseq
      %v3302 = vshrl.u32 %v3301, 7
      %v3303 = vsub.s32 4, %v3302
      %v3304 = vrot.slane %v3283, %v3303
      %v3305 = vlaneseq
      %v3306 = vshrl.u32 %v3305, 7
      %v3307 = vsub.s32 5, %v3306
      %v3308 = vrot.slane %v3283, %v3307
      %v3309 = vlaneseq
      %v3310 = vshrl.u32 %v3309, 7
      %v3311 = vsub.s32 6, %v3310
      %v3312 = vrot.slane %v3283, %v3311
      %v3313 = vlaneseq
      %v3314 = vshrl.u32 %v3313, 7
      %v3315 = vsub.s32 7, %v3314
      %v3316 = vrot.slane %v3283, %v3315
      %v3325 = vadd.f32 %v3031, %v3288
      %v3326 = vadd.f32 %v3033, %v3292
      %v3327 = vadd.f32 %v3113, %v3296
      %v3328 = vadd.f32 %v3115, %v3300
      %v3329 = vadd.f32 %v3195, %v3304
      %v3330 = vadd.f32 %v3197, %v3308
      %v3331 = vadd.f32 %v3277, %v3312
      %v3332 = vadd.f32 %v3279, %v3316
      %vm3333 = vcmp.ge.f32.partialorder %v3325, 0.0
      %vm3334 = vcmp.ge.f32.partialorder %v3326, 0.0
      %vm3335 = vcmp.ge.f32.partialorder %v3327, 0.0
      %vm3336 = vcmp.ge.f32.partialorder %v3328, 0.0
      %vm3337 = vcmp.ge.f32.partialorder %v3329, 0.0
      %vm3338 = vcmp.ge.f32.partialorder %v3330, 0.0
      %vm3339 = vcmp.ge.f32.partialorder %v3331, 0.0
      %vm3340 = vcmp.ge.f32.partialorder %v3332, 0.0
      %v3341 = vmul.f32 %v3325, 0.1
      %v3342 = vmul.f32 %v3326, 0.1
      %v3343 = vmul.f32 %v3327, 0.1
      %v3344 = vmul.f32 %v3328, 0.1
      %v3345 = vmul.f32 %v3329, 0.1
      %v3346 = vmul.f32 %v3330, 0.1
      %v3347 = vmul.f32 %v3331, 0.1
      %v3348 = vmul.f32 %v3332, 0.1
      %v3349 = vsel %vm3333, %v3325, %v3341
      %v3350 = vsel %vm3334, %v3326, %v3342
      %v3351 = vsel %vm3335, %v3327, %v3343
      %v3352 = vsel %vm3336, %v3328, %v3344
      %v3353 = vsel %vm3337, %v3329, %v3345
      %v3354 = vsel %vm3338, %v3330, %v3346
      %v3355 = vsel %vm3339, %v3331, %v3347
      %v3356 = vsel %vm3340, %v3332, %v3348
      %v3357 = vpack.c.bf16 %v3349, %v3349
      %v3358 = vpack.c.bf16 %v3350, %v3350
      %v3359 = vpack.c.bf16 %v3351, %v3351
      %v3360 = vpack.c.bf16 %v3352, %v3352
      %v3361 = vpack.c.bf16 %v3353, %v3353
      %v3362 = vpack.c.bf16 %v3354, %v3354
      %v3363 = vpack.c.bf16 %v3355, %v3355
      %v3364 = vpack.c.bf16 %v3356, %v3356
      %v3366 = vshrl.u32 %v3357, 16
      %v3368 = vrot.slane %v3366, 7
      %v3369 = vshll.u32 %v3357, 16
      %v3371 = vor.u32 %v3368, %v3369
      %v3373 = vshrl.u32 %v3358, 16
      %v3375 = vrot.slane %v3373, 7
      %v3376 = vshll.u32 %v3358, 16
      %v3378 = vor.u32 %v3375, %v3376
      %v3380 = vshrl.u32 %v3359, 16
      %v3382 = vrot.slane %v3380, 7
      %v3383 = vshll.u32 %v3359, 16
      %v3385 = vor.u32 %v3382, %v3383
      %v3387 = vshrl.u32 %v3360, 16
      %v3389 = vrot.slane %v3387, 7
      %v3390 = vshll.u32 %v3360, 16
      %v3392 = vor.u32 %v3389, %v3390
      %v3394 = vshrl.u32 %v3361, 16
      %v3396 = vrot.slane %v3394, 7
      %v3397 = vshll.u32 %v3361, 16
      %v3399 = vor.u32 %v3396, %v3397
      %v3401 = vshrl.u32 %v3362, 16
      %v3403 = vrot.slane %v3401, 7
      %v3404 = vshll.u32 %v3362, 16
      %v3406 = vor.u32 %v3403, %v3404
      %v3408 = vshrl.u32 %v3363, 16
      %v3410 = vrot.slane %v3408, 7
      %v3411 = vshll.u32 %v3363, 16
      %v3413 = vor.u32 %v3410, %v3411
      %v3415 = vshrl.u32 %v3364, 16
      %v3417 = vrot.slane %v3415, 7
      %v3418 = vshll.u32 %v3364, 16
      %v3420 = vor.u32 %v3417, %v3418
      %v3429 = vsel %vm316, 0, %v3371
      %v3430 = vsel %vm316, 0, %v3378
      %v3431 = vsel %vm316, 0, %v3385
      %v3432 = vsel %vm316, 0, %v3392
      %v3433 = vsel %vm316, 0, %v3399
      %v3434 = vsel %vm316, 0, %v3406
      %v3435 = vsel %vm316, 0, %v3413
      %v3436 = vsel %vm316, 0, %v3420
      %v3437 = vld [vmem:[%s4] sm:$0xff]
      %v3438 = vld [vmem:[%s4 + $0x8] sm:$0xff]
      %v3439 = vld [vmem:[%s4 + $0x10] sm:$0xff]
      %v3440 = vld [vmem:[%s4 + $0x18] sm:$0xff]
      %v3441 = vld [vmem:[%s4 + $0x20] sm:$0xff]
      %v3442 = vld [vmem:[%s4 + $0x28] sm:$0xff]
      %v3443 = vld [vmem:[%s4 + $0x30] sm:$0xff]
      %v3444 = vld [vmem:[%s4 + $0x38] sm:$0xff]
      %v3445 = vld [vmem:[%s4 + $0x40] sm:$0xff]
      %v3446 = vld [vmem:[%s4 + $0x48] sm:$0xff]
      %v3447 = vld [vmem:[%s4 + $0x50] sm:$0xff]
      %v3448 = vld [vmem:[%s4 + $0x58] sm:$0xff]
      %v3449 = vld [vmem:[%s4 + $0x60] sm:$0xff]
      %v3450 = vld [vmem:[%s4 + $0x68] sm:$0xff]
      %v3451 = vld [vmem:[%s4 + $0x70] sm:$0xff]
      %v3452 = vld [vmem:[%s4 + $0x78] sm:$0xff]
      %v3453 = vld [vmem:[%s4 + $0x80] sm:$0xff]
      %v3454 = vld [vmem:[%s4 + $0x88] sm:$0xff]
      %v3455 = vld [vmem:[%s4 + $0x90] sm:$0xff]
      %v3456 = vld [vmem:[%s4 + $0x98] sm:$0xff]
      %v3457 = vld [vmem:[%s4 + $0xa0] sm:$0xff]
      %v3458 = vld [vmem:[%s4 + $0xa8] sm:$0xff]
      %v3459 = vld [vmem:[%s4 + $0xb0] sm:$0xff]
      %v3460 = vld [vmem:[%s4 + $0xb8] sm:$0xff]
      %v3461 = vld [vmem:[%s4 + $0xc0] sm:$0xff]
      %v3462 = vld [vmem:[%s4 + $0xc8] sm:$0xff]
      %v3463 = vld [vmem:[%s4 + $0xd0] sm:$0xff]
      %v3464 = vld [vmem:[%s4 + $0xd8] sm:$0xff]
      %v3465 = vld [vmem:[%s4 + $0xe0] sm:$0xff]
      %v3466 = vld [vmem:[%s4 + $0xe8] sm:$0xff]
      %v3467 = vld [vmem:[%s4 + $0xf0] sm:$0xff]
      %v3468 = vld [vmem:[%s4 + $0xf8] sm:$0xff]
      %v3469 = vld [vmem:[%s4 + $0x100] sm:$0xff]
      %v3470 = vld [vmem:[%s4 + $0x108] sm:$0xff]
      %v3471 = vld [vmem:[%s4 + $0x110] sm:$0xff]
      %v3472 = vld [vmem:[%s4 + $0x118] sm:$0xff]
      %v3473 = vld [vmem:[%s4 + $0x120] sm:$0xff]
      %v3474 = vld [vmem:[%s4 + $0x128] sm:$0xff]
      %v3475 = vld [vmem:[%s4 + $0x130] sm:$0xff]
      %v3476 = vld [vmem:[%s4 + $0x138] sm:$0xff]
      %v3477 = vld [vmem:[%s4 + $0x140] sm:$0xff]
      %v3478 = vld [vmem:[%s4 + $0x148] sm:$0xff]
      %v3479 = vld [vmem:[%s4 + $0x150] sm:$0xff]
      %v3480 = vld [vmem:[%s4 + $0x158] sm:$0xff]
      %v3481 = vld [vmem:[%s4 + $0x160] sm:$0xff]
      %v3482 = vld [vmem:[%s4 + $0x168] sm:$0xff]
      %v3483 = vld [vmem:[%s4 + $0x170] sm:$0xff]
      %v3484 = vld [vmem:[%s4 + $0x178] sm:$0xff]
      %v3485 = vld [vmem:[%s4 + $0x180] sm:$0xff]
      %v3486 = vld [vmem:[%s4 + $0x188] sm:$0xff]
      %v3487 = vld [vmem:[%s4 + $0x190] sm:$0xff]
      %v3488 = vld [vmem:[%s4 + $0x198] sm:$0xff]
      %v3489 = vld [vmem:[%s4 + $0x1a0] sm:$0xff]
      %v3490 = vld [vmem:[%s4 + $0x1a8] sm:$0xff]
      %v3491 = vld [vmem:[%s4 + $0x1b0] sm:$0xff]
      %v3492 = vld [vmem:[%s4 + $0x1b8] sm:$0xff]
      %v3493 = vld [vmem:[%s4 + $0x1c0] sm:$0xff]
      %v3494 = vld [vmem:[%s4 + $0x1c8] sm:$0xff]
      %v3495 = vld [vmem:[%s4 + $0x1d0] sm:$0xff]
      %v3496 = vld [vmem:[%s4 + $0x1d8] sm:$0xff]
      %v3497 = vld [vmem:[%s4 + $0x1e0] sm:$0xff]
      %v3498 = vld [vmem:[%s4 + $0x1e8] sm:$0xff]
      %v3499 = vld [vmem:[%s4 + $0x1f0] sm:$0xff]
      %v3500 = vld [vmem:[%s4 + $0x1f8] sm:$0xff]
      %v3501 = vld [vmem:[%s4 + $0x200] sm:$0xff]
      %v3502 = vld [vmem:[%s4 + $0x208] sm:$0xff]
      %v3503 = vld [vmem:[%s4 + $0x210] sm:$0xff]
      %v3504 = vld [vmem:[%s4 + $0x218] sm:$0xff]
      %v3505 = vld [vmem:[%s4 + $0x220] sm:$0xff]
      %v3506 = vld [vmem:[%s4 + $0x228] sm:$0xff]
      %v3507 = vld [vmem:[%s4 + $0x230] sm:$0xff]
      %v3508 = vld [vmem:[%s4 + $0x238] sm:$0xff]
      %v3509 = vld [vmem:[%s4 + $0x240] sm:$0xff]
      %v3510 = vld [vmem:[%s4 + $0x248] sm:$0xff]
      %v3511 = vld [vmem:[%s4 + $0x250] sm:$0xff]
      %v3512 = vld [vmem:[%s4 + $0x258] sm:$0xff]
      %v3513 = vld [vmem:[%s4 + $0x260] sm:$0xff]
      %v3514 = vld [vmem:[%s4 + $0x268] sm:$0xff]
      %v3515 = vld [vmem:[%s4 + $0x270] sm:$0xff]
      %v3516 = vld [vmem:[%s4 + $0x278] sm:$0xff]
      %v3517 = vld [vmem:[%s4 + $0x280] sm:$0xff]
      %v3518 = vld [vmem:[%s4 + $0x288] sm:$0xff]
      %v3519 = vld [vmem:[%s4 + $0x290] sm:$0xff]
      %v3520 = vld [vmem:[%s4 + $0x298] sm:$0xff]
      %v3521 = vld [vmem:[%s4 + $0x2a0] sm:$0xff]
      %v3522 = vld [vmem:[%s4 + $0x2a8] sm:$0xff]
      %v3523 = vld [vmem:[%s4 + $0x2b0] sm:$0xff]
      %v3524 = vld [vmem:[%s4 + $0x2b8] sm:$0xff]
      %v3525 = vld [vmem:[%s4 + $0x2c0] sm:$0xff]
      %v3526 = vld [vmem:[%s4 + $0x2c8] sm:$0xff]
      %v3527 = vld [vmem:[%s4 + $0x2d0] sm:$0xff]
      %v3528 = vld [vmem:[%s4 + $0x2d8] sm:$0xff]
      %v3529 = vld [vmem:[%s4 + $0x2e0] sm:$0xff]
      %v3530 = vld [vmem:[%s4 + $0x2e8] sm:$0xff]
      %v3531 = vld [vmem:[%s4 + $0x2f0] sm:$0xff]
      %v3532 = vld [vmem:[%s4 + $0x2f8] sm:$0xff]
      %v3533 = vld [vmem:[%s4 + $0x300] sm:$0xff]
      %v3534 = vld [vmem:[%s4 + $0x308] sm:$0xff]
      %v3535 = vld [vmem:[%s4 + $0x310] sm:$0xff]
      %v3536 = vld [vmem:[%s4 + $0x318] sm:$0xff]
      %v3537 = vld [vmem:[%s4 + $0x320] sm:$0xff]
      %v3538 = vld [vmem:[%s4 + $0x328] sm:$0xff]
      %v3539 = vld [vmem:[%s4 + $0x330] sm:$0xff]
      %v3540 = vld [vmem:[%s4 + $0x338] sm:$0xff]
      %v3541 = vld [vmem:[%s4 + $0x340] sm:$0xff]
      %v3542 = vld [vmem:[%s4 + $0x348] sm:$0xff]
      %v3543 = vld [vmem:[%s4 + $0x350] sm:$0xff]
      %v3544 = vld [vmem:[%s4 + $0x358] sm:$0xff]
      %v3545 = vld [vmem:[%s4 + $0x360] sm:$0xff]
      %v3546 = vld [vmem:[%s4 + $0x368] sm:$0xff]
      %v3547 = vld [vmem:[%s4 + $0x370] sm:$0xff]
      %v3548 = vld [vmem:[%s4 + $0x378] sm:$0xff]
      %v3549 = vld [vmem:[%s4 + $0x380] sm:$0xff]
      %v3550 = vld [vmem:[%s4 + $0x388] sm:$0xff]
      %v3551 = vld [vmem:[%s4 + $0x390] sm:$0xff]
      %v3552 = vld [vmem:[%s4 + $0x398] sm:$0xff]
      %v3553 = vld [vmem:[%s4 + $0x3a0] sm:$0xff]
      %v3554 = vld [vmem:[%s4 + $0x3a8] sm:$0xff]
      %v3555 = vld [vmem:[%s4 + $0x3b0] sm:$0xff]
      %v3556 = vld [vmem:[%s4 + $0x3b8] sm:$0xff]
      %v3557 = vld [vmem:[%s4 + $0x3c0] sm:$0xff]
      %v3558 = vld [vmem:[%s4 + $0x3c8] sm:$0xff]
      %v3559 = vld [vmem:[%s4 + $0x3d0] sm:$0xff]
      %v3560 = vld [vmem:[%s4 + $0x3d8] sm:$0xff]
      %v3561 = vld [vmem:[%s4 + $0x3e0] sm:$0xff]
      %v3562 = vld [vmem:[%s4 + $0x3e8] sm:$0xff]
      %v3563 = vld [vmem:[%s4 + $0x3f0] sm:$0xff]
      %v3564 = vld [vmem:[%s4 + $0x3f8] sm:$0xff]
      %v3565 = vld [vmem:[%s5] sm:$0xff]
      %v3566 = vld [vmem:[%s5 + $0x8] sm:$0xff]
      %v3567 = vld [vmem:[%s5 + $0x10] sm:$0xff]
      %v3568 = vld [vmem:[%s5 + $0x18] sm:$0xff]
      %v3569 = vld [vmem:[%s5 + $0x20] sm:$0xff]
      %v3570 = vld [vmem:[%s5 + $0x28] sm:$0xff]
      %v3571 = vld [vmem:[%s5 + $0x30] sm:$0xff]
      %v3572 = vld [vmem:[%s5 + $0x38] sm:$0xff]
      %v3573 = vld [vmem:[%s5 + $0x40] sm:$0xff]
      %v3574 = vld [vmem:[%s5 + $0x48] sm:$0xff]
      %v3575 = vld [vmem:[%s5 + $0x50] sm:$0xff]
      %v3576 = vld [vmem:[%s5 + $0x58] sm:$0xff]
      %v3577 = vld [vmem:[%s5 + $0x60] sm:$0xff]
      %v3578 = vld [vmem:[%s5 + $0x68] sm:$0xff]
      %v3579 = vld [vmem:[%s5 + $0x70] sm:$0xff]
      %v3580 = vld [vmem:[%s5 + $0x78] sm:$0xff]
      %v3581 = vld [vmem:[%s5 + $0x80] sm:$0xff]
      %v3582 = vld [vmem:[%s5 + $0x88] sm:$0xff]
      %v3583 = vld [vmem:[%s5 + $0x90] sm:$0xff]
      %v3584 = vld [vmem:[%s5 + $0x98] sm:$0xff]
      %v3585 = vld [vmem:[%s5 + $0xa0] sm:$0xff]
      %v3586 = vld [vmem:[%s5 + $0xa8] sm:$0xff]
      %v3587 = vld [vmem:[%s5 + $0xb0] sm:$0xff]
      %v3588 = vld [vmem:[%s5 + $0xb8] sm:$0xff]
      %v3589 = vld [vmem:[%s5 + $0xc0] sm:$0xff]
      %v3590 = vld [vmem:[%s5 + $0xc8] sm:$0xff]
      %v3591 = vld [vmem:[%s5 + $0xd0] sm:$0xff]
      %v3592 = vld [vmem:[%s5 + $0xd8] sm:$0xff]
      %v3593 = vld [vmem:[%s5 + $0xe0] sm:$0xff]
      %v3594 = vld [vmem:[%s5 + $0xe8] sm:$0xff]
      %v3595 = vld [vmem:[%s5 + $0xf0] sm:$0xff]
      %v3596 = vld [vmem:[%s5 + $0xf8] sm:$0xff]
      %v3597 = vld [vmem:[%s5 + $0x100] sm:$0xff]
      %v3598 = vld [vmem:[%s5 + $0x108] sm:$0xff]
      %v3599 = vld [vmem:[%s5 + $0x110] sm:$0xff]
      %v3600 = vld [vmem:[%s5 + $0x118] sm:$0xff]
      %v3601 = vld [vmem:[%s5 + $0x120] sm:$0xff]
      %v3602 = vld [vmem:[%s5 + $0x128] sm:$0xff]
      %v3603 = vld [vmem:[%s5 + $0x130] sm:$0xff]
      %v3604 = vld [vmem:[%s5 + $0x138] sm:$0xff]
      %v3605 = vld [vmem:[%s5 + $0x140] sm:$0xff]
      %v3606 = vld [vmem:[%s5 + $0x148] sm:$0xff]
      %v3607 = vld [vmem:[%s5 + $0x150] sm:$0xff]
      %v3608 = vld [vmem:[%s5 + $0x158] sm:$0xff]
      %v3609 = vld [vmem:[%s5 + $0x160] sm:$0xff]
      %v3610 = vld [vmem:[%s5 + $0x168] sm:$0xff]
      %v3611 = vld [vmem:[%s5 + $0x170] sm:$0xff]
      %v3612 = vld [vmem:[%s5 + $0x178] sm:$0xff]
      %v3613 = vld [vmem:[%s5 + $0x180] sm:$0xff]
      %v3614 = vld [vmem:[%s5 + $0x188] sm:$0xff]
      %v3615 = vld [vmem:[%s5 + $0x190] sm:$0xff]
      %v3616 = vld [vmem:[%s5 + $0x198] sm:$0xff]
      %v3617 = vld [vmem:[%s5 + $0x1a0] sm:$0xff]
      %v3618 = vld [vmem:[%s5 + $0x1a8] sm:$0xff]
      %v3619 = vld [vmem:[%s5 + $0x1b0] sm:$0xff]
      %v3620 = vld [vmem:[%s5 + $0x1b8] sm:$0xff]
      %v3621 = vld [vmem:[%s5 + $0x1c0] sm:$0xff]
      %v3622 = vld [vmem:[%s5 + $0x1c8] sm:$0xff]
      %v3623 = vld [vmem:[%s5 + $0x1d0] sm:$0xff]
      %v3624 = vld [vmem:[%s5 + $0x1d8] sm:$0xff]
      %v3625 = vld [vmem:[%s5 + $0x1e0] sm:$0xff]
      %v3626 = vld [vmem:[%s5 + $0x1e8] sm:$0xff]
      %v3627 = vld [vmem:[%s5 + $0x1f0] sm:$0xff]
      %v3628 = vld [vmem:[%s5 + $0x1f8] sm:$0xff]
      %v3629 = vld [vmem:[%s5 + $0x200] sm:$0xff]
      %v3630 = vld [vmem:[%s5 + $0x208] sm:$0xff]
      %v3631 = vld [vmem:[%s5 + $0x210] sm:$0xff]
      %v3632 = vld [vmem:[%s5 + $0x218] sm:$0xff]
      %v3633 = vld [vmem:[%s5 + $0x220] sm:$0xff]
      %v3634 = vld [vmem:[%s5 + $0x228] sm:$0xff]
      %v3635 = vld [vmem:[%s5 + $0x230] sm:$0xff]
      %v3636 = vld [vmem:[%s5 + $0x238] sm:$0xff]
      %v3637 = vld [vmem:[%s5 + $0x240] sm:$0xff]
      %v3638 = vld [vmem:[%s5 + $0x248] sm:$0xff]
      %v3639 = vld [vmem:[%s5 + $0x250] sm:$0xff]
      %v3640 = vld [vmem:[%s5 + $0x258] sm:$0xff]
      %v3641 = vld [vmem:[%s5 + $0x260] sm:$0xff]
      %v3642 = vld [vmem:[%s5 + $0x268] sm:$0xff]
      %v3643 = vld [vmem:[%s5 + $0x270] sm:$0xff]
      %v3644 = vld [vmem:[%s5 + $0x278] sm:$0xff]
      %v3645 = vld [vmem:[%s5 + $0x280] sm:$0xff]
      %v3646 = vld [vmem:[%s5 + $0x288] sm:$0xff]
      %v3647 = vld [vmem:[%s5 + $0x290] sm:$0xff]
      %v3648 = vld [vmem:[%s5 + $0x298] sm:$0xff]
      %v3649 = vld [vmem:[%s5 + $0x2a0] sm:$0xff]
      %v3650 = vld [vmem:[%s5 + $0x2a8] sm:$0xff]
      %v3651 = vld [vmem:[%s5 + $0x2b0] sm:$0xff]
      %v3652 = vld [vmem:[%s5 + $0x2b8] sm:$0xff]
      %v3653 = vld [vmem:[%s5 + $0x2c0] sm:$0xff]
      %v3654 = vld [vmem:[%s5 + $0x2c8] sm:$0xff]
      %v3655 = vld [vmem:[%s5 + $0x2d0] sm:$0xff]
      %v3656 = vld [vmem:[%s5 + $0x2d8] sm:$0xff]
      %v3657 = vld [vmem:[%s5 + $0x2e0] sm:$0xff]
      %v3658 = vld [vmem:[%s5 + $0x2e8] sm:$0xff]
      %v3659 = vld [vmem:[%s5 + $0x2f0] sm:$0xff]
      %v3660 = vld [vmem:[%s5 + $0x2f8] sm:$0xff]
      %v3661 = vld [vmem:[%s5 + $0x300] sm:$0xff]
      %v3662 = vld [vmem:[%s5 + $0x308] sm:$0xff]
      %v3663 = vld [vmem:[%s5 + $0x310] sm:$0xff]
      %v3664 = vld [vmem:[%s5 + $0x318] sm:$0xff]
      %v3665 = vld [vmem:[%s5 + $0x320] sm:$0xff]
      %v3666 = vld [vmem:[%s5 + $0x328] sm:$0xff]
      %v3667 = vld [vmem:[%s5 + $0x330] sm:$0xff]
      %v3668 = vld [vmem:[%s5 + $0x338] sm:$0xff]
      %v3669 = vld [vmem:[%s5 + $0x340] sm:$0xff]
      %v3670 = vld [vmem:[%s5 + $0x348] sm:$0xff]
      %v3671 = vld [vmem:[%s5 + $0x350] sm:$0xff]
      %v3672 = vld [vmem:[%s5 + $0x358] sm:$0xff]
      %v3673 = vld [vmem:[%s5 + $0x360] sm:$0xff]
      %v3674 = vld [vmem:[%s5 + $0x368] sm:$0xff]
      %v3675 = vld [vmem:[%s5 + $0x370] sm:$0xff]
      %v3676 = vld [vmem:[%s5 + $0x378] sm:$0xff]
      %v3677 = vld [vmem:[%s5 + $0x380] sm:$0xff]
      %v3678 = vld [vmem:[%s5 + $0x388] sm:$0xff]
      %v3679 = vld [vmem:[%s5 + $0x390] sm:$0xff]
      %v3680 = vld [vmem:[%s5 + $0x398] sm:$0xff]
      %v3681 = vld [vmem:[%s5 + $0x3a0] sm:$0xff]
      %v3682 = vld [vmem:[%s5 + $0x3a8] sm:$0xff]
      %v3683 = vld [vmem:[%s5 + $0x3b0] sm:$0xff]
      %v3684 = vld [vmem:[%s5 + $0x3b8] sm:$0xff]
      %v3685 = vld [vmem:[%s5 + $0x3c0] sm:$0xff]
      %v3686 = vld [vmem:[%s5 + $0x3c8] sm:$0xff]
      %v3687 = vld [vmem:[%s5 + $0x3d0] sm:$0xff]
      %v3688 = vld [vmem:[%s5 + $0x3d8] sm:$0xff]
      %v3689 = vld [vmem:[%s5 + $0x3e0] sm:$0xff]
      %v3690 = vld [vmem:[%s5 + $0x3e8] sm:$0xff]
      %v3691 = vld [vmem:[%s5 + $0x3f0] sm:$0xff]
      %v3692 = vld [vmem:[%s5 + $0x3f8] sm:$0xff]
      %v3821 = vunpack.c.l.b16 %v3565
      %v3822 = vunpack.c.h.b16 %v3565
      %v3823 = vunpack.c.l.b16 %v3566
      %v3824 = vunpack.c.h.b16 %v3566
      %v3825 = vunpack.c.l.b16 %v3567
      %v3826 = vunpack.c.h.b16 %v3567
      %v3827 = vunpack.c.l.b16 %v3568
      %v3828 = vunpack.c.h.b16 %v3568
      %v3829 = vunpack.c.l.b16 %v3569
      %v3830 = vunpack.c.h.b16 %v3569
      %v3831 = vunpack.c.l.b16 %v3570
      %v3832 = vunpack.c.h.b16 %v3570
      %v3833 = vunpack.c.l.b16 %v3571
      %v3834 = vunpack.c.h.b16 %v3571
      %v3835 = vunpack.c.l.b16 %v3572
      %v3836 = vunpack.c.h.b16 %v3572
      %v3837 = vunpack.c.l.b16 %v3573
      %v3838 = vunpack.c.h.b16 %v3573
      %v3839 = vunpack.c.l.b16 %v3574
      %v3840 = vunpack.c.h.b16 %v3574
      %v3841 = vunpack.c.l.b16 %v3575
      %v3842 = vunpack.c.h.b16 %v3575
      %v3843 = vunpack.c.l.b16 %v3576
      %v3844 = vunpack.c.h.b16 %v3576
      %v3845 = vunpack.c.l.b16 %v3577
      %v3846 = vunpack.c.h.b16 %v3577
      %v3847 = vunpack.c.l.b16 %v3578
      %v3848 = vunpack.c.h.b16 %v3578
      %v3849 = vunpack.c.l.b16 %v3579
      %v3850 = vunpack.c.h.b16 %v3579
      %v3851 = vunpack.c.l.b16 %v3580
      %v3852 = vunpack.c.h.b16 %v3580
      %v3853 = vunpack.c.l.b16 %v3581
      %v3854 = vunpack.c.h.b16 %v3581
      %v3855 = vunpack.c.l.b16 %v3582
      %v3856 = vunpack.c.h.b16 %v3582
      %v3857 = vunpack.c.l.b16 %v3583
      %v3858 = vunpack.c.h.b16 %v3583
      %v3859 = vunpack.c.l.b16 %v3584
      %v3860 = vunpack.c.h.b16 %v3584
      %v3861 = vunpack.c.l.b16 %v3585
      %v3862 = vunpack.c.h.b16 %v3585
      %v3863 = vunpack.c.l.b16 %v3586
      %v3864 = vunpack.c.h.b16 %v3586
      %v3865 = vunpack.c.l.b16 %v3587
      %v3866 = vunpack.c.h.b16 %v3587
      %v3867 = vunpack.c.l.b16 %v3588
      %v3868 = vunpack.c.h.b16 %v3588
      %v3869 = vunpack.c.l.b16 %v3589
      %v3870 = vunpack.c.h.b16 %v3589
      %v3871 = vunpack.c.l.b16 %v3590
      %v3872 = vunpack.c.h.b16 %v3590
      %v3873 = vunpack.c.l.b16 %v3591
      %v3874 = vunpack.c.h.b16 %v3591
      %v3875 = vunpack.c.l.b16 %v3592
      %v3876 = vunpack.c.h.b16 %v3592
      %v3877 = vunpack.c.l.b16 %v3593
      %v3878 = vunpack.c.h.b16 %v3593
      %v3879 = vunpack.c.l.b16 %v3594
      %v3880 = vunpack.c.h.b16 %v3594
      %v3881 = vunpack.c.l.b16 %v3595
      %v3882 = vunpack.c.h.b16 %v3595
      %v3883 = vunpack.c.l.b16 %v3596
      %v3884 = vunpack.c.h.b16 %v3596
      %v3885 = vunpack.c.l.b16 %v3597
      %v3886 = vunpack.c.h.b16 %v3597
      %v3887 = vunpack.c.l.b16 %v3598
      %v3888 = vunpack.c.h.b16 %v3598
      %v3889 = vunpack.c.l.b16 %v3599
      %v3890 = vunpack.c.h.b16 %v3599
      %v3891 = vunpack.c.l.b16 %v3600
      %v3892 = vunpack.c.h.b16 %v3600
      %v3893 = vunpack.c.l.b16 %v3601
      %v3894 = vunpack.c.h.b16 %v3601
      %v3895 = vunpack.c.l.b16 %v3602
      %v3896 = vunpack.c.h.b16 %v3602
      %v3897 = vunpack.c.l.b16 %v3603
      %v3898 = vunpack.c.h.b16 %v3603
      %v3899 = vunpack.c.l.b16 %v3604
      %v3900 = vunpack.c.h.b16 %v3604
      %v3901 = vunpack.c.l.b16 %v3605
      %v3902 = vunpack.c.h.b16 %v3605
      %v3903 = vunpack.c.l.b16 %v3606
      %v3904 = vunpack.c.h.b16 %v3606
      %v3905 = vunpack.c.l.b16 %v3607
      %v3906 = vunpack.c.h.b16 %v3607
      %v3907 = vunpack.c.l.b16 %v3608
      %v3908 = vunpack.c.h.b16 %v3608
      %v3909 = vunpack.c.l.b16 %v3609
      %v3910 = vunpack.c.h.b16 %v3609
      %v3911 = vunpack.c.l.b16 %v3610
      %v3912 = vunpack.c.h.b16 %v3610
      %v3913 = vunpack.c.l.b16 %v3611
      %v3914 = vunpack.c.h.b16 %v3611
      %v3915 = vunpack.c.l.b16 %v3612
      %v3916 = vunpack.c.h.b16 %v3612
      %v3917 = vunpack.c.l.b16 %v3613
      %v3918 = vunpack.c.h.b16 %v3613
      %v3919 = vunpack.c.l.b16 %v3614
      %v3920 = vunpack.c.h.b16 %v3614
      %v3921 = vunpack.c.l.b16 %v3615
      %v3922 = vunpack.c.h.b16 %v3615
      %v3923 = vunpack.c.l.b16 %v3616
      %v3924 = vunpack.c.h.b16 %v3616
      %v3925 = vunpack.c.l.b16 %v3617
      %v3926 = vunpack.c.h.b16 %v3617
      %v3927 = vunpack.c.l.b16 %v3618
      %v3928 = vunpack.c.h.b16 %v3618
      %v3929 = vunpack.c.l.b16 %v3619
      %v3930 = vunpack.c.h.b16 %v3619
      %v3931 = vunpack.c.l.b16 %v3620
      %v3932 = vunpack.c.h.b16 %v3620
      %v3933 = vunpack.c.l.b16 %v3621
      %v3934 = vunpack.c.h.b16 %v3621
      %v3935 = vunpack.c.l.b16 %v3622
      %v3936 = vunpack.c.h.b16 %v3622
      %v3937 = vunpack.c.l.b16 %v3623
      %v3938 = vunpack.c.h.b16 %v3623
      %v3939 = vunpack.c.l.b16 %v3624
      %v3940 = vunpack.c.h.b16 %v3624
      %v3941 = vunpack.c.l.b16 %v3625
      %v3942 = vunpack.c.h.b16 %v3625
      %v3943 = vunpack.c.l.b16 %v3626
      %v3944 = vunpack.c.h.b16 %v3626
      %v3945 = vunpack.c.l.b16 %v3627
      %v3946 = vunpack.c.h.b16 %v3627
      %v3947 = vunpack.c.l.b16 %v3628
      %v3948 = vunpack.c.h.b16 %v3628
      %v3949 = vunpack.c.l.b16 %v3629
      %v3950 = vunpack.c.h.b16 %v3629
      %v3951 = vunpack.c.l.b16 %v3630
      %v3952 = vunpack.c.h.b16 %v3630
      %v3953 = vunpack.c.l.b16 %v3631
      %v3954 = vunpack.c.h.b16 %v3631
      %v3955 = vunpack.c.l.b16 %v3632
      %v3956 = vunpack.c.h.b16 %v3632
      %v3957 = vunpack.c.l.b16 %v3633
      %v3958 = vunpack.c.h.b16 %v3633
      %v3959 = vunpack.c.l.b16 %v3634
      %v3960 = vunpack.c.h.b16 %v3634
      %v3961 = vunpack.c.l.b16 %v3635
      %v3962 = vunpack.c.h.b16 %v3635
      %v3963 = vunpack.c.l.b16 %v3636
      %v3964 = vunpack.c.h.b16 %v3636
      %v3965 = vunpack.c.l.b16 %v3637
      %v3966 = vunpack.c.h.b16 %v3637
      %v3967 = vunpack.c.l.b16 %v3638
      %v3968 = vunpack.c.h.b16 %v3638
      %v3969 = vunpack.c.l.b16 %v3639
      %v3970 = vunpack.c.h.b16 %v3639
      %v3971 = vunpack.c.l.b16 %v3640
      %v3972 = vunpack.c.h.b16 %v3640
      %v3973 = vunpack.c.l.b16 %v3641
      %v3974 = vunpack.c.h.b16 %v3641
      %v3975 = vunpack.c.l.b16 %v3642
      %v3976 = vunpack.c.h.b16 %v3642
      %v3977 = vunpack.c.l.b16 %v3643
      %v3978 = vunpack.c.h.b16 %v3643
      %v3979 = vunpack.c.l.b16 %v3644
      %v3980 = vunpack.c.h.b16 %v3644
      %v3981 = vunpack.c.l.b16 %v3645
      %v3982 = vunpack.c.h.b16 %v3645
      %v3983 = vunpack.c.l.b16 %v3646
      %v3984 = vunpack.c.h.b16 %v3646
      %v3985 = vunpack.c.l.b16 %v3647
      %v3986 = vunpack.c.h.b16 %v3647
      %v3987 = vunpack.c.l.b16 %v3648
      %v3988 = vunpack.c.h.b16 %v3648
      %v3989 = vunpack.c.l.b16 %v3649
      %v3990 = vunpack.c.h.b16 %v3649
      %v3991 = vunpack.c.l.b16 %v3650
      %v3992 = vunpack.c.h.b16 %v3650
      %v3993 = vunpack.c.l.b16 %v3651
      %v3994 = vunpack.c.h.b16 %v3651
      %v3995 = vunpack.c.l.b16 %v3652
      %v3996 = vunpack.c.h.b16 %v3652
      %v3997 = vunpack.c.l.b16 %v3653
      %v3998 = vunpack.c.h.b16 %v3653
      %v3999 = vunpack.c.l.b16 %v3654
      %v4000 = vunpack.c.h.b16 %v3654
      %v4001 = vunpack.c.l.b16 %v3655
      %v4002 = vunpack.c.h.b16 %v3655
      %v4003 = vunpack.c.l.b16 %v3656
      %v4004 = vunpack.c.h.b16 %v3656
      %v4005 = vunpack.c.l.b16 %v3657
      %v4006 = vunpack.c.h.b16 %v3657
      %v4007 = vunpack.c.l.b16 %v3658
      %v4008 = vunpack.c.h.b16 %v3658
      %v4009 = vunpack.c.l.b16 %v3659
      %v4010 = vunpack.c.h.b16 %v3659
      %v4011 = vunpack.c.l.b16 %v3660
      %v4012 = vunpack.c.h.b16 %v3660
      %v4013 = vunpack.c.l.b16 %v3661
      %v4014 = vunpack.c.h.b16 %v3661
      %v4015 = vunpack.c.l.b16 %v3662
      %v4016 = vunpack.c.h.b16 %v3662
      %v4017 = vunpack.c.l.b16 %v3663
      %v4018 = vunpack.c.h.b16 %v3663
      %v4019 = vunpack.c.l.b16 %v3664
      %v4020 = vunpack.c.h.b16 %v3664
      %v4021 = vunpack.c.l.b16 %v3665
      %v4022 = vunpack.c.h.b16 %v3665
      %v4023 = vunpack.c.l.b16 %v3666
      %v4024 = vunpack.c.h.b16 %v3666
      %v4025 = vunpack.c.l.b16 %v3667
      %v4026 = vunpack.c.h.b16 %v3667
      %v4027 = vunpack.c.l.b16 %v3668
      %v4028 = vunpack.c.h.b16 %v3668
      %v4029 = vunpack.c.l.b16 %v3669
      %v4030 = vunpack.c.h.b16 %v3669
      %v4031 = vunpack.c.l.b16 %v3670
      %v4032 = vunpack.c.h.b16 %v3670
      %v4033 = vunpack.c.l.b16 %v3671
      %v4034 = vunpack.c.h.b16 %v3671
      %v4035 = vunpack.c.l.b16 %v3672
      %v4036 = vunpack.c.h.b16 %v3672
      %v4037 = vunpack.c.l.b16 %v3673
      %v4038 = vunpack.c.h.b16 %v3673
      %v4039 = vunpack.c.l.b16 %v3674
      %v4040 = vunpack.c.h.b16 %v3674
      %v4041 = vunpack.c.l.b16 %v3675
      %v4042 = vunpack.c.h.b16 %v3675
      %v4043 = vunpack.c.l.b16 %v3676
      %v4044 = vunpack.c.h.b16 %v3676
      %v4045 = vunpack.c.l.b16 %v3677
      %v4046 = vunpack.c.h.b16 %v3677
      %v4047 = vunpack.c.l.b16 %v3678
      %v4048 = vunpack.c.h.b16 %v3678
      %v4049 = vunpack.c.l.b16 %v3679
      %v4050 = vunpack.c.h.b16 %v3679
      %v4051 = vunpack.c.l.b16 %v3680
      %v4052 = vunpack.c.h.b16 %v3680
      %v4053 = vunpack.c.l.b16 %v3681
      %v4054 = vunpack.c.h.b16 %v3681
      %v4055 = vunpack.c.l.b16 %v3682
      %v4056 = vunpack.c.h.b16 %v3682
      %v4057 = vunpack.c.l.b16 %v3683
      %v4058 = vunpack.c.h.b16 %v3683
      %v4059 = vunpack.c.l.b16 %v3684
      %v4060 = vunpack.c.h.b16 %v3684
      %v4061 = vunpack.c.l.b16 %v3685
      %v4062 = vunpack.c.h.b16 %v3685
      %v4063 = vunpack.c.l.b16 %v3686
      %v4064 = vunpack.c.h.b16 %v3686
      %v4065 = vunpack.c.l.b16 %v3687
      %v4066 = vunpack.c.h.b16 %v3687
      %v4067 = vunpack.c.l.b16 %v3688
      %v4068 = vunpack.c.h.b16 %v3688
      %v4069 = vunpack.c.l.b16 %v3689
      %v4070 = vunpack.c.h.b16 %v3689
      %v4071 = vunpack.c.l.b16 %v3690
      %v4072 = vunpack.c.h.b16 %v3690
      %v4073 = vunpack.c.l.b16 %v3691
      %v4074 = vunpack.c.h.b16 %v3691
      %v4075 = vunpack.c.l.b16 %v3692
      %v4076 = vunpack.c.h.b16 %v3692
      %v4077 = vpack.c.b16 %v3823, %v3821
      %v4078 = vpack.c.b16 %v3824, %v3822
      %v4079 = vpack.c.b16 %v3827, %v3825
      %v4080 = vpack.c.b16 %v3828, %v3826
      %v4081 = vpack.c.b16 %v3831, %v3829
      %v4082 = vpack.c.b16 %v3832, %v3830
      %v4083 = vpack.c.b16 %v3835, %v3833
      %v4084 = vpack.c.b16 %v3836, %v3834
      %v4085 = vpack.c.b16 %v3839, %v3837
      %v4086 = vpack.c.b16 %v3840, %v3838
      %v4087 = vpack.c.b16 %v3843, %v3841
      %v4088 = vpack.c.b16 %v3844, %v3842
      %v4089 = vpack.c.b16 %v3847, %v3845
      %v4090 = vpack.c.b16 %v3848, %v3846
      %v4091 = vpack.c.b16 %v3851, %v3849
      %v4092 = vpack.c.b16 %v3852, %v3850
      %v4093 = vpack.c.b16 %v3855, %v3853
      %v4094 = vpack.c.b16 %v3856, %v3854
      %v4095 = vpack.c.b16 %v3859, %v3857
      %v4096 = vpack.c.b16 %v3860, %v3858
      %v4097 = vpack.c.b16 %v3863, %v3861
      %v4098 = vpack.c.b16 %v3864, %v3862
      %v4099 = vpack.c.b16 %v3867, %v3865
      %v4100 = vpack.c.b16 %v3868, %v3866
      %v4101 = vpack.c.b16 %v3871, %v3869
      %v4102 = vpack.c.b16 %v3872, %v3870
      %v4103 = vpack.c.b16 %v3875, %v3873
      %v4104 = vpack.c.b16 %v3876, %v3874
      %v4105 = vpack.c.b16 %v3879, %v3877
      %v4106 = vpack.c.b16 %v3880, %v3878
      %v4107 = vpack.c.b16 %v3883, %v3881
      %v4108 = vpack.c.b16 %v3884, %v3882
      %v4109 = vpack.c.b16 %v3887, %v3885
      %v4110 = vpack.c.b16 %v3888, %v3886
      %v4111 = vpack.c.b16 %v3891, %v3889
      %v4112 = vpack.c.b16 %v3892, %v3890
      %v4113 = vpack.c.b16 %v3895, %v3893
      %v4114 = vpack.c.b16 %v3896, %v3894
      %v4115 = vpack.c.b16 %v3899, %v3897
      %v4116 = vpack.c.b16 %v3900, %v3898
      %v4117 = vpack.c.b16 %v3903, %v3901
      %v4118 = vpack.c.b16 %v3904, %v3902
      %v4119 = vpack.c.b16 %v3907, %v3905
      %v4120 = vpack.c.b16 %v3908, %v3906
      %v4121 = vpack.c.b16 %v3911, %v3909
      %v4122 = vpack.c.b16 %v3912, %v3910
      %v4123 = vpack.c.b16 %v3915, %v3913
      %v4124 = vpack.c.b16 %v3916, %v3914
      %v4125 = vpack.c.b16 %v3919, %v3917
      %v4126 = vpack.c.b16 %v3920, %v3918
      %v4127 = vpack.c.b16 %v3923, %v3921
      %v4128 = vpack.c.b16 %v3924, %v3922
      %v4129 = vpack.c.b16 %v3927, %v3925
      %v4130 = vpack.c.b16 %v3928, %v3926
      %v4131 = vpack.c.b16 %v3931, %v3929
      %v4132 = vpack.c.b16 %v3932, %v3930
      %v4133 = vpack.c.b16 %v3935, %v3933
      %v4134 = vpack.c.b16 %v3936, %v3934
      %v4135 = vpack.c.b16 %v3939, %v3937
      %v4136 = vpack.c.b16 %v3940, %v3938
      %v4137 = vpack.c.b16 %v3943, %v3941
      %v4138 = vpack.c.b16 %v3944, %v3942
      %v4139 = vpack.c.b16 %v3947, %v3945
      %v4140 = vpack.c.b16 %v3948, %v3946
      %v4141 = vpack.c.b16 %v3951, %v3949
      %v4142 = vpack.c.b16 %v3952, %v3950
      %v4143 = vpack.c.b16 %v3955, %v3953
      %v4144 = vpack.c.b16 %v3956, %v3954
      %v4145 = vpack.c.b16 %v3959, %v3957
      %v4146 = vpack.c.b16 %v3960, %v3958
      %v4147 = vpack.c.b16 %v3963, %v3961
      %v4148 = vpack.c.b16 %v3964, %v3962
      %v4149 = vpack.c.b16 %v3967, %v3965
      %v4150 = vpack.c.b16 %v3968, %v3966
      %v4151 = vpack.c.b16 %v3971, %v3969
      %v4152 = vpack.c.b16 %v3972, %v3970
      %v4153 = vpack.c.b16 %v3975, %v3973
      %v4154 = vpack.c.b16 %v3976, %v3974
      %v4155 = vpack.c.b16 %v3979, %v3977
      %v4156 = vpack.c.b16 %v3980, %v3978
      %v4157 = vpack.c.b16 %v3983, %v3981
      %v4158 = vpack.c.b16 %v3984, %v3982
      %v4159 = vpack.c.b16 %v3987, %v3985
      %v4160 = vpack.c.b16 %v3988, %v3986
      %v4161 = vpack.c.b16 %v3991, %v3989
      %v4162 = vpack.c.b16 %v3992, %v3990
      %v4163 = vpack.c.b16 %v3995, %v3993
      %v4164 = vpack.c.b16 %v3996, %v3994
      %v4165 = vpack.c.b16 %v3999, %v3997
      %v4166 = vpack.c.b16 %v4000, %v3998
      %v4167 = vpack.c.b16 %v4003, %v4001
      %v4168 = vpack.c.b16 %v4004, %v4002
      %v4169 = vpack.c.b16 %v4007, %v4005
      %v4170 = vpack.c.b16 %v4008, %v4006
      %v4171 = vpack.c.b16 %v4011, %v4009
      %v4172 = vpack.c.b16 %v4012, %v4010
      %v4173 = vpack.c.b16 %v4015, %v4013
      %v4174 = vpack.c.b16 %v4016, %v4014
      %v4175 = vpack.c.b16 %v4019, %v4017
      %v4176 = vpack.c.b16 %v4020, %v4018
      %v4177 = vpack.c.b16 %v4023, %v4021
      %v4178 = vpack.c.b16 %v4024, %v4022
      %v4179 = vpack.c.b16 %v4027, %v4025
      %v4180 = vpack.c.b16 %v4028, %v4026
      %v4181 = vpack.c.b16 %v4031, %v4029
      %v4182 = vpack.c.b16 %v4032, %v4030
      %v4183 = vpack.c.b16 %v4035, %v4033
      %v4184 = vpack.c.b16 %v4036, %v4034
      %v4185 = vpack.c.b16 %v4039, %v4037
      %v4186 = vpack.c.b16 %v4040, %v4038
      %v4187 = vpack.c.b16 %v4043, %v4041
      %v4188 = vpack.c.b16 %v4044, %v4042
      %v4189 = vpack.c.b16 %v4047, %v4045
      %v4190 = vpack.c.b16 %v4048, %v4046
      %v4191 = vpack.c.b16 %v4051, %v4049
      %v4192 = vpack.c.b16 %v4052, %v4050
      %v4193 = vpack.c.b16 %v4055, %v4053
      %v4194 = vpack.c.b16 %v4056, %v4054
      %v4195 = vpack.c.b16 %v4059, %v4057
      %v4196 = vpack.c.b16 %v4060, %v4058
      %v4197 = vpack.c.b16 %v4063, %v4061
      %v4198 = vpack.c.b16 %v4064, %v4062
      %v4199 = vpack.c.b16 %v4067, %v4065
      %v4200 = vpack.c.b16 %v4068, %v4066
      %v4201 = vpack.c.b16 %v4071, %v4069
      %v4202 = vpack.c.b16 %v4072, %v4070
      %v4203 = vpack.c.b16 %v4075, %v4073
      %v4204 = vpack.c.b16 %v4076, %v4074
      %4333 = vmatprep.subr.bf16.mxu0 %v4078
      %4334 = vmatpush1.bf16.msra.mxu0 %v4077
      %4335 = vmatprep.subr.bf16.mxu0 %v4080
      %4336 = vmatpush1.bf16.msra.mxu0 %v4079
      %4337 = vmatprep.subr.bf16.mxu0 %v4082
      %4338 = vmatpush1.bf16.msra.mxu0 %v4081
      %4339 = vmatprep.subr.bf16.mxu0 %v4084
      %4340 = vmatpush1.bf16.msra.mxu0 %v4083
      %4341 = vmatprep.subr.bf16.mxu0 %v4086
      %4342 = vmatpush1.bf16.msra.mxu0 %v4085
      %4343 = vmatprep.subr.bf16.mxu0 %v4088
      %4344 = vmatpush1.bf16.msra.mxu0 %v4087
      %4345 = vmatprep.subr.bf16.mxu0 %v4090
      %4346 = vmatpush1.bf16.msra.mxu0 %v4089
      %4347 = vmatprep.subr.bf16.mxu0 %v4092
      %4348 = vmatpush1.bf16.msra.mxu0 %v4091
      %4349 = vmatprep.subr.bf16.mxu0 %v4094
      %4350 = vmatpush1.bf16.msra.mxu0 %v4093
      %4351 = vmatprep.subr.bf16.mxu0 %v4096
      %4352 = vmatpush1.bf16.msra.mxu0 %v4095
      %4353 = vmatprep.subr.bf16.mxu0 %v4098
      %4354 = vmatpush1.bf16.msra.mxu0 %v4097
      %4355 = vmatprep.subr.bf16.mxu0 %v4100
      %4356 = vmatpush1.bf16.msra.mxu0 %v4099
      %4357 = vmatprep.subr.bf16.mxu0 %v4102
      %4358 = vmatpush1.bf16.msra.mxu0 %v4101
      %4359 = vmatprep.subr.bf16.mxu0 %v4104
      %4360 = vmatpush1.bf16.msra.mxu0 %v4103
      %4361 = vmatprep.subr.bf16.mxu0 %v4106
      %4362 = vmatpush1.bf16.msra.mxu0 %v4105
      %4363 = vmatprep.subr.bf16.mxu0 %v4108
      %4364 = vmatpush1.bf16.msra.mxu0 %v4107
      %4365 = vmatprep.mubr.bf16.mxu0 %v3358
      %4366 = vmatmul.mubr.bf16.gmra.mrb[0].mxu0 %v3357
      %v4367 = vpop.f32.mrb[0].mxu0
      %v4368 = vadd.f32 0.0, %v4367
      %v4369 = vpop.f32.mrb[0].mxu0
      %v4370 = vadd.f32 0.0, %v4369
      %v4371 = vpop.f32.mrb[0].mxu0
      %v4372 = vpop.f32.mrb[0].mxu0
      %4373 = vdwg.mxu0
      %4374 = vmatprep.subr.bf16.mxu0 %v4110
      %4375 = vmatpush1.bf16.msra.mxu0 %v4109
      %4376 = vmatprep.subr.bf16.mxu0 %v4112
      %4377 = vmatpush1.bf16.msra.mxu0 %v4111
      %4378 = vmatprep.subr.bf16.mxu0 %v4114
      %4379 = vmatpush1.bf16.msra.mxu0 %v4113
      %4380 = vmatprep.subr.bf16.mxu0 %v4116
      %4381 = vmatpush1.bf16.msra.mxu0 %v4115
      %4382 = vmatprep.subr.bf16.mxu0 %v4118
      %4383 = vmatpush1.bf16.msra.mxu0 %v4117
      %4384 = vmatprep.subr.bf16.mxu0 %v4120
      %4385 = vmatpush1.bf16.msra.mxu0 %v4119
      %4386 = vmatprep.subr.bf16.mxu0 %v4122
      %4387 = vmatpush1.bf16.msra.mxu0 %v4121
      %4388 = vmatprep.subr.bf16.mxu0 %v4124
      %4389 = vmatpush1.bf16.msra.mxu0 %v4123
      %4390 = vmatprep.subr.bf16.mxu0 %v4126
      %4391 = vmatpush1.bf16.msra.mxu0 %v4125
      %4392 = vmatprep.subr.bf16.mxu0 %v4128
      %4393 = vmatpush1.bf16.msra.mxu0 %v4127
      %4394 = vmatprep.subr.bf16.mxu0 %v4130
      %4395 = vmatpush1.bf16.msra.mxu0 %v4129
      %4396 = vmatprep.subr.bf16.mxu0 %v4132
      %4397 = vmatpush1.bf16.msra.mxu0 %v4131
      %4398 = vmatprep.subr.bf16.mxu0 %v4134
      %4399 = vmatpush1.bf16.msra.mxu0 %v4133
      %4400 = vmatprep.subr.bf16.mxu0 %v4136
      %4401 = vmatpush1.bf16.msra.mxu0 %v4135
      %4402 = vmatprep.subr.bf16.mxu0 %v4138
      %4403 = vmatpush1.bf16.msra.mxu0 %v4137
      %4404 = vmatprep.subr.bf16.mxu0 %v4140
      %4405 = vmatpush1.bf16.msra.mxu0 %v4139
      %4406 = vmatprep.mubr.bf16.mxu0 %v3360
      %4407 = vmatmul.mubr.bf16.gmra.mrb[0].mxu0 %v3359
      %v4408 = vpop.f32.mrb[0].mxu0
      %v4409 = vadd.f32 %v4368, %v4408
      %v4410 = vpop.f32.mrb[0].mxu0
      %v4411 = vadd.f32 %v4370, %v4410
      %v4412 = vpop.f32.mrb[0].mxu0
      %v4413 = vpop.f32.mrb[0].mxu0
      %4414 = vdwg.mxu0
      %4415 = vmatprep.subr.bf16.mxu0 %v4142
      %4416 = vmatpush1.bf16.msra.mxu0 %v4141
      %4417 = vmatprep.subr.bf16.mxu0 %v4144
      %4418 = vmatpush1.bf16.msra.mxu0 %v4143
      %4419 = vmatprep.subr.bf16.mxu0 %v4146
      %4420 = vmatpush1.bf16.msra.mxu0 %v4145
      %4421 = vmatprep.subr.bf16.mxu0 %v4148
      %4422 = vmatpush1.bf16.msra.mxu0 %v4147
      %4423 = vmatprep.subr.bf16.mxu0 %v4150
      %4424 = vmatpush1.bf16.msra.mxu0 %v4149
      %4425 = vmatprep.subr.bf16.mxu0 %v4152
      %4426 = vmatpush1.bf16.msra.mxu0 %v4151
      %4427 = vmatprep.subr.bf16.mxu0 %v4154
      %4428 = vmatpush1.bf16.msra.mxu0 %v4153
      %4429 = vmatprep.subr.bf16.mxu0 %v4156
      %4430 = vmatpush1.bf16.msra.mxu0 %v4155
      %4431 = vmatprep.subr.bf16.mxu0 %v4158
      %4432 = vmatpush1.bf16.msra.mxu0 %v4157
      %4433 = vmatprep.subr.bf16.mxu0 %v4160
      %4434 = vmatpush1.bf16.msra.mxu0 %v4159
      %4435 = vmatprep.subr.bf16.mxu0 %v4162
      %4436 = vmatpush1.bf16.msra.mxu0 %v4161
      %4437 = vmatprep.subr.bf16.mxu0 %v4164
      %4438 = vmatpush1.bf16.msra.mxu0 %v4163
      %4439 = vmatprep.subr.bf16.mxu0 %v4166
      %4440 = vmatpush1.bf16.msra.mxu0 %v4165
      %4441 = vmatprep.subr.bf16.mxu0 %v4168
      %4442 = vmatpush1.bf16.msra.mxu0 %v4167
      %4443 = vmatprep.subr.bf16.mxu0 %v4170
      %4444 = vmatpush1.bf16.msra.mxu0 %v4169
      %4445 = vmatprep.subr.bf16.mxu0 %v4172
      %4446 = vmatpush1.bf16.msra.mxu0 %v4171
      %4447 = vmatprep.mubr.bf16.mxu0 %v3362
      %4448 = vmatmul.mubr.bf16.gmra.mrb[0].mxu0 %v3361
      %v4449 = vpop.f32.mrb[0].mxu0
      %v4450 = vadd.f32 %v4409, %v4449
      %v4451 = vpop.f32.mrb[0].mxu0
      %v4452 = vadd.f32 %v4411, %v4451
      %v4453 = vpop.f32.mrb[0].mxu0
      %v4454 = vpop.f32.mrb[0].mxu0
      %4455 = vdwg.mxu0
      %4456 = vmatprep.subr.bf16.mxu0 %v4174
      %4457 = vmatpush1.bf16.msra.mxu0 %v4173
      %4458 = vmatprep.subr.bf16.mxu0 %v4176
      %4459 = vmatpush1.bf16.msra.mxu0 %v4175
      %4460 = vmatprep.subr.bf16.mxu0 %v4178
      %4461 = vmatpush1.bf16.msra.mxu0 %v4177
      %4462 = vmatprep.subr.bf16.mxu0 %v4180
      %4463 = vmatpush1.bf16.msra.mxu0 %v4179
      %4464 = vmatprep.subr.bf16.mxu0 %v4182
      %4465 = vmatpush1.bf16.msra.mxu0 %v4181
      %4466 = vmatprep.subr.bf16.mxu0 %v4184
      %4467 = vmatpush1.bf16.msra.mxu0 %v4183
      %4468 = vmatprep.subr.bf16.mxu0 %v4186
      %4469 = vmatpush1.bf16.msra.mxu0 %v4185
      %4470 = vmatprep.subr.bf16.mxu0 %v4188
      %4471 = vmatpush1.bf16.msra.mxu0 %v4187
      %4472 = vmatprep.subr.bf16.mxu0 %v4190
      %4473 = vmatpush1.bf16.msra.mxu0 %v4189
      %4474 = vmatprep.subr.bf16.mxu0 %v4192
      %4475 = vmatpush1.bf16.msra.mxu0 %v4191
      %4476 = vmatprep.subr.bf16.mxu0 %v4194
      %4477 = vmatpush1.bf16.msra.mxu0 %v4193
      %4478 = vmatprep.subr.bf16.mxu0 %v4196
      %4479 = vmatpush1.bf16.msra.mxu0 %v4195
      %4480 = vmatprep.subr.bf16.mxu0 %v4198
      %4481 = vmatpush1.bf16.msra.mxu0 %v4197
      %4482 = vmatprep.subr.bf16.mxu0 %v4200
      %4483 = vmatpush1.bf16.msra.mxu0 %v4199
      %4484 = vmatprep.subr.bf16.mxu0 %v4202
      %4485 = vmatpush1.bf16.msra.mxu0 %v4201
      %4486 = vmatprep.subr.bf16.mxu0 %v4204
      %4487 = vmatpush1.bf16.msra.mxu0 %v4203
      %4488 = vmatprep.mubr.bf16.mxu0 %v3364
      %4489 = vmatmul.mubr.bf16.gmra.mrb[0].mxu0 %v3363
      %v4490 = vpop.f32.mrb[0].mxu0
      %v4491 = vadd.f32 %v4450, %v4490
      %v4492 = vpop.f32.mrb[0].mxu0
      %v4493 = vadd.f32 %v4452, %v4492
      %v4494 = vpop.f32.mrb[0].mxu0
      %v4495 = vpop.f32.mrb[0].mxu0
      %4496 = vdwg.mxu0
      %v4625 = vunpack.c.l.b16 %v3437
      %v4626 = vunpack.c.h.b16 %v3437
      %v4627 = vunpack.c.l.b16 %v3438
      %v4628 = vunpack.c.h.b16 %v3438
      %v4629 = vunpack.c.l.b16 %v3439
      %v4630 = vunpack.c.h.b16 %v3439
      %v4631 = vunpack.c.l.b16 %v3440
      %v4632 = vunpack.c.h.b16 %v3440
      %v4633 = vunpack.c.l.b16 %v3441
      %v4634 = vunpack.c.h.b16 %v3441
      %v4635 = vunpack.c.l.b16 %v3442
      %v4636 = vunpack.c.h.b16 %v3442
      %v4637 = vunpack.c.l.b16 %v3443
      %v4638 = vunpack.c.h.b16 %v3443
      %v4639 = vunpack.c.l.b16 %v3444
      %v4640 = vunpack.c.h.b16 %v3444
      %v4641 = vunpack.c.l.b16 %v3445
      %v4642 = vunpack.c.h.b16 %v3445
      %v4643 = vunpack.c.l.b16 %v3446
      %v4644 = vunpack.c.h.b16 %v3446
      %v4645 = vunpack.c.l.b16 %v3447
      %v4646 = vunpack.c.h.b16 %v3447
      %v4647 = vunpack.c.l.b16 %v3448
      %v4648 = vunpack.c.h.b16 %v3448
      %v4649 = vunpack.c.l.b16 %v3449
      %v4650 = vunpack.c.h.b16 %v3449
      %v4651 = vunpack.c.l.b16 %v3450
      %v4652 = vunpack.c.h.b16 %v3450
      %v4653 = vunpack.c.l.b16 %v3451
      %v4654 = vunpack.c.h.b16 %v3451
      %v4655 = vunpack.c.l.b16 %v3452
      %v4656 = vunpack.c.h.b16 %v3452
      %v4657 = vunpack.c.l.b16 %v3453
      %v4658 = vunpack.c.h.b16 %v3453
      %v4659 = vunpack.c.l.b16 %v3454
      %v4660 = vunpack.c.h.b16 %v3454
      %v4661 = vunpack.c.l.b16 %v3455
      %v4662 = vunpack.c.h.b16 %v3455
      %v4663 = vunpack.c.l.b16 %v3456
      %v4664 = vunpack.c.h.b16 %v3456
      %v4665 = vunpack.c.l.b16 %v3457
      %v4666 = vunpack.c.h.b16 %v3457
      %v4667 = vunpack.c.l.b16 %v3458
      %v4668 = vunpack.c.h.b16 %v3458
      %v4669 = vunpack.c.l.b16 %v3459
      %v4670 = vunpack.c.h.b16 %v3459
      %v4671 = vunpack.c.l.b16 %v3460
      %v4672 = vunpack.c.h.b16 %v3460
      %v4673 = vunpack.c.l.b16 %v3461
      %v4674 = vunpack.c.h.b16 %v3461
      %v4675 = vunpack.c.l.b16 %v3462
      %v4676 = vunpack.c.h.b16 %v3462
      %v4677 = vunpack.c.l.b16 %v3463
      %v4678 = vunpack.c.h.b16 %v3463
      %v4679 = vunpack.c.l.b16 %v3464
      %v4680 = vunpack.c.h.b16 %v3464
      %v4681 = vunpack.c.l.b16 %v3465
      %v4682 = vunpack.c.h.b16 %v3465
      %v4683 = vunpack.c.l.b16 %v3466
      %v4684 = vunpack.c.h.b16 %v3466
      %v4685 = vunpack.c.l.b16 %v3467
      %v4686 = vunpack.c.h.b16 %v3467
      %v4687 = vunpack.c.l.b16 %v3468
      %v4688 = vunpack.c.h.b16 %v3468
      %v4689 = vunpack.c.l.b16 %v3469
      %v4690 = vunpack.c.h.b16 %v3469
      %v4691 = vunpack.c.l.b16 %v3470
      %v4692 = vunpack.c.h.b16 %v3470
      %v4693 = vunpack.c.l.b16 %v3471
      %v4694 = vunpack.c.h.b16 %v3471
      %v4695 = vunpack.c.l.b16 %v3472
      %v4696 = vunpack.c.h.b16 %v3472
      %v4697 = vunpack.c.l.b16 %v3473
      %v4698 = vunpack.c.h.b16 %v3473
      %v4699 = vunpack.c.l.b16 %v3474
      %v4700 = vunpack.c.h.b16 %v3474
      %v4701 = vunpack.c.l.b16 %v3475
      %v4702 = vunpack.c.h.b16 %v3475
      %v4703 = vunpack.c.l.b16 %v3476
      %v4704 = vunpack.c.h.b16 %v3476
      %v4705 = vunpack.c.l.b16 %v3477
      %v4706 = vunpack.c.h.b16 %v3477
      %v4707 = vunpack.c.l.b16 %v3478
      %v4708 = vunpack.c.h.b16 %v3478
      %v4709 = vunpack.c.l.b16 %v3479
      %v4710 = vunpack.c.h.b16 %v3479
      %v4711 = vunpack.c.l.b16 %v3480
      %v4712 = vunpack.c.h.b16 %v3480
      %v4713 = vunpack.c.l.b16 %v3481
      %v4714 = vunpack.c.h.b16 %v3481
      %v4715 = vunpack.c.l.b16 %v3482
      %v4716 = vunpack.c.h.b16 %v3482
      %v4717 = vunpack.c.l.b16 %v3483
      %v4718 = vunpack.c.h.b16 %v3483
      %v4719 = vunpack.c.l.b16 %v3484
      %v4720 = vunpack.c.h.b16 %v3484
      %v4721 = vunpack.c.l.b16 %v3485
      %v4722 = vunpack.c.h.b16 %v3485
      %v4723 = vunpack.c.l.b16 %v3486
      %v4724 = vunpack.c.h.b16 %v3486
      %v4725 = vunpack.c.l.b16 %v3487
      %v4726 = vunpack.c.h.b16 %v3487
      %v4727 = vunpack.c.l.b16 %v3488
      %v4728 = vunpack.c.h.b16 %v3488
      %v4729 = vunpack.c.l.b16 %v3489
      %v4730 = vunpack.c.h.b16 %v3489
      %v4731 = vunpack.c.l.b16 %v3490
      %v4732 = vunpack.c.h.b16 %v3490
      %v4733 = vunpack.c.l.b16 %v3491
      %v4734 = vunpack.c.h.b16 %v3491
      %v4735 = vunpack.c.l.b16 %v3492
      %v4736 = vunpack.c.h.b16 %v3492
      %v4737 = vunpack.c.l.b16 %v3493
      %v4738 = vunpack.c.h.b16 %v3493
      %v4739 = vunpack.c.l.b16 %v3494
      %v4740 = vunpack.c.h.b16 %v3494
      %v4741 = vunpack.c.l.b16 %v3495
      %v4742 = vunpack.c.h.b16 %v3495
      %v4743 = vunpack.c.l.b16 %v3496
      %v4744 = vunpack.c.h.b16 %v3496
      %v4745 = vunpack.c.l.b16 %v3497
      %v4746 = vunpack.c.h.b16 %v3497
      %v4747 = vunpack.c.l.b16 %v3498
      %v4748 = vunpack.c.h.b16 %v3498
      %v4749 = vunpack.c.l.b16 %v3499
      %v4750 = vunpack.c.h.b16 %v3499
      %v4751 = vunpack.c.l.b16 %v3500
      %v4752 = vunpack.c.h.b16 %v3500
      %v4753 = vunpack.c.l.b16 %v3501
      %v4754 = vunpack.c.h.b16 %v3501
      %v4755 = vunpack.c.l.b16 %v3502
      %v4756 = vunpack.c.h.b16 %v3502
      %v4757 = vunpack.c.l.b16 %v3503
      %v4758 = vunpack.c.h.b16 %v3503
      %v4759 = vunpack.c.l.b16 %v3504
      %v4760 = vunpack.c.h.b16 %v3504
      %v4761 = vunpack.c.l.b16 %v3505
      %v4762 = vunpack.c.h.b16 %v3505
      %v4763 = vunpack.c.l.b16 %v3506
      %v4764 = vunpack.c.h.b16 %v3506
      %v4765 = vunpack.c.l.b16 %v3507
      %v4766 = vunpack.c.h.b16 %v3507
      %v4767 = vunpack.c.l.b16 %v3508
      %v4768 = vunpack.c.h.b16 %v3508
      %v4769 = vunpack.c.l.b16 %v3509
      %v4770 = vunpack.c.h.b16 %v3509
      %v4771 = vunpack.c.l.b16 %v3510
      %v4772 = vunpack.c.h.b16 %v3510
      %v4773 = vunpack.c.l.b16 %v3511
      %v4774 = vunpack.c.h.b16 %v3511
      %v4775 = vunpack.c.l.b16 %v3512
      %v4776 = vunpack.c.h.b16 %v3512
      %v4777 = vunpack.c.l.b16 %v3513
      %v4778 = vunpack.c.h.b16 %v3513
      %v4779 = vunpack.c.l.b16 %v3514
      %v4780 = vunpack.c.h.b16 %v3514
      %v4781 = vunpack.c.l.b16 %v3515
      %v4782 = vunpack.c.h.b16 %v3515
      %v4783 = vunpack.c.l.b16 %v3516
      %v4784 = vunpack.c.h.b16 %v3516
      %v4785 = vunpack.c.l.b16 %v3517
      %v4786 = vunpack.c.h.b16 %v3517
      %v4787 = vunpack.c.l.b16 %v3518
      %v4788 = vunpack.c.h.b16 %v3518
      %v4789 = vunpack.c.l.b16 %v3519
      %v4790 = vunpack.c.h.b16 %v3519
      %v4791 = vunpack.c.l.b16 %v3520
      %v4792 = vunpack.c.h.b16 %v3520
      %v4793 = vunpack.c.l.b16 %v3521
      %v4794 = vunpack.c.h.b16 %v3521
      %v4795 = vunpack.c.l.b16 %v3522
      %v4796 = vunpack.c.h.b16 %v3522
      %v4797 = vunpack.c.l.b16 %v3523
      %v4798 = vunpack.c.h.b16 %v3523
      %v4799 = vunpack.c.l.b16 %v3524
      %v4800 = vunpack.c.h.b16 %v3524
      %v4801 = vunpack.c.l.b16 %v3525
      %v4802 = vunpack.c.h.b16 %v3525
      %v4803 = vunpack.c.l.b16 %v3526
      %v4804 = vunpack.c.h.b16 %v3526
      %v4805 = vunpack.c.l.b16 %v3527
      %v4806 = vunpack.c.h.b16 %v3527
      %v4807 = vunpack.c.l.b16 %v3528
      %v4808 = vunpack.c.h.b16 %v3528
      %v4809 = vunpack.c.l.b16 %v3529
      %v4810 = vunpack.c.h.b16 %v3529
      %v4811 = vunpack.c.l.b16 %v3530
      %v4812 = vunpack.c.h.b16 %v3530
      %v4813 = vunpack.c.l.b16 %v3531
      %v4814 = vunpack.c.h.b16 %v3531
      %v4815 = vunpack.c.l.b16 %v3532
      %v4816 = vunpack.c.h.b16 %v3532
      %v4817 = vunpack.c.l.b16 %v3533
      %v4818 = vunpack.c.h.b16 %v3533
      %v4819 = vunpack.c.l.b16 %v3534
      %v4820 = vunpack.c.h.b16 %v3534
      %v4821 = vunpack.c.l.b16 %v3535
      %v4822 = vunpack.c.h.b16 %v3535
      %v4823 = vunpack.c.l.b16 %v3536
      %v4824 = vunpack.c.h.b16 %v3536
      %v4825 = vunpack.c.l.b16 %v3537
      %v4826 = vunpack.c.h.b16 %v3537
      %v4827 = vunpack.c.l.b16 %v3538
      %v4828 = vunpack.c.h.b16 %v3538
      %v4829 = vunpack.c.l.b16 %v3539
      %v4830 = vunpack.c.h.b16 %v3539
      %v4831 = vunpack.c.l.b16 %v3540
      %v4832 = vunpack.c.h.b16 %v3540
      %v4833 = vunpack.c.l.b16 %v3541
      %v4834 = vunpack.c.h.b16 %v3541
      %v4835 = vunpack.c.l.b16 %v3542
      %v4836 = vunpack.c.h.b16 %v3542
      %v4837 = vunpack.c.l.b16 %v3543
      %v4838 = vunpack.c.h.b16 %v3543
      %v4839 = vunpack.c.l.b16 %v3544
      %v4840 = vunpack.c.h.b16 %v3544
      %v4841 = vunpack.c.l.b16 %v3545
      %v4842 = vunpack.c.h.b16 %v3545
      %v4843 = vunpack.c.l.b16 %v3546
      %v4844 = vunpack.c.h.b16 %v3546
      %v4845 = vunpack.c.l.b16 %v3547
      %v4846 = vunpack.c.h.b16 %v3547
      %v4847 = vunpack.c.l.b16 %v3548
      %v4848 = vunpack.c.h.b16 %v3548
      %v4849 = vunpack.c.l.b16 %v3549
      %v4850 = vunpack.c.h.b16 %v3549
      %v4851 = vunpack.c.l.b16 %v3550
      %v4852 = vunpack.c.h.b16 %v3550
      %v4853 = vunpack.c.l.b16 %v3551
      %v4854 = vunpack.c.h.b16 %v3551
      %v4855 = vunpack.c.l.b16 %v3552
      %v4856 = vunpack.c.h.b16 %v3552
      %v4857 = vunpack.c.l.b16 %v3553
      %v4858 = vunpack.c.h.b16 %v3553
      %v4859 = vunpack.c.l.b16 %v3554
      %v4860 = vunpack.c.h.b16 %v3554
      %v4861 = vunpack.c.l.b16 %v3555
      %v4862 = vunpack.c.h.b16 %v3555
      %v4863 = vunpack.c.l.b16 %v3556
      %v4864 = vunpack.c.h.b16 %v3556
      %v4865 = vunpack.c.l.b16 %v3557
      %v4866 = vunpack.c.h.b16 %v3557
      %v4867 = vunpack.c.l.b16 %v3558
      %v4868 = vunpack.c.h.b16 %v3558
      %v4869 = vunpack.c.l.b16 %v3559
      %v4870 = vunpack.c.h.b16 %v3559
      %v4871 = vunpack.c.l.b16 %v3560
      %v4872 = vunpack.c.h.b16 %v3560
      %v4873 = vunpack.c.l.b16 %v3561
      %v4874 = vunpack.c.h.b16 %v3561
      %v4875 = vunpack.c.l.b16 %v3562
      %v4876 = vunpack.c.h.b16 %v3562
      %v4877 = vunpack.c.l.b16 %v3563
      %v4878 = vunpack.c.h.b16 %v3563
      %v4879 = vunpack.c.l.b16 %v3564
      %v4880 = vunpack.c.h.b16 %v3564
      %v4881 = vpack.c.b16 %v4627, %v4625
      %v4882 = vpack.c.b16 %v4628, %v4626
      %v4883 = vpack.c.b16 %v4631, %v4629
      %v4884 = vpack.c.b16 %v4632, %v4630
      %v4885 = vpack.c.b16 %v4635, %v4633
      %v4886 = vpack.c.b16 %v4636, %v4634
      %v4887 = vpack.c.b16 %v4639, %v4637
      %v4888 = vpack.c.b16 %v4640, %v4638
      %v4889 = vpack.c.b16 %v4643, %v4641
      %v4890 = vpack.c.b16 %v4644, %v4642
      %v4891 = vpack.c.b16 %v4647, %v4645
      %v4892 = vpack.c.b16 %v4648, %v4646
      %v4893 = vpack.c.b16 %v4651, %v4649
      %v4894 = vpack.c.b16 %v4652, %v4650
      %v4895 = vpack.c.b16 %v4655, %v4653
      %v4896 = vpack.c.b16 %v4656, %v4654
      %v4897 = vpack.c.b16 %v4659, %v4657
      %v4898 = vpack.c.b16 %v4660, %v4658
      %v4899 = vpack.c.b16 %v4663, %v4661
      %v4900 = vpack.c.b16 %v4664, %v4662
      %v4901 = vpack.c.b16 %v4667, %v4665
      %v4902 = vpack.c.b16 %v4668, %v4666
      %v4903 = vpack.c.b16 %v4671, %v4669
      %v4904 = vpack.c.b16 %v4672, %v4670
      %v4905 = vpack.c.b16 %v4675, %v4673
      %v4906 = vpack.c.b16 %v4676, %v4674
      %v4907 = vpack.c.b16 %v4679, %v4677
      %v4908 = vpack.c.b16 %v4680, %v4678
      %v4909 = vpack.c.b16 %v4683, %v4681
      %v4910 = vpack.c.b16 %v4684, %v4682
      %v4911 = vpack.c.b16 %v4687, %v4685
      %v4912 = vpack.c.b16 %v4688, %v4686
      %v4913 = vpack.c.b16 %v4691, %v4689
      %v4914 = vpack.c.b16 %v4692, %v4690
      %v4915 = vpack.c.b16 %v4695, %v4693
      %v4916 = vpack.c.b16 %v4696, %v4694
      %v4917 = vpack.c.b16 %v4699, %v4697
      %v4918 = vpack.c.b16 %v4700, %v4698
      %v4919 = vpack.c.b16 %v4703, %v4701
      %v4920 = vpack.c.b16 %v4704, %v4702
      %v4921 = vpack.c.b16 %v4707, %v4705
      %v4922 = vpack.c.b16 %v4708, %v4706
      %v4923 = vpack.c.b16 %v4711, %v4709
      %v4924 = vpack.c.b16 %v4712, %v4710
      %v4925 = vpack.c.b16 %v4715, %v4713
      %v4926 = vpack.c.b16 %v4716, %v4714
      %v4927 = vpack.c.b16 %v4719, %v4717
      %v4928 = vpack.c.b16 %v4720, %v4718
      %v4929 = vpack.c.b16 %v4723, %v4721
      %v4930 = vpack.c.b16 %v4724, %v4722
      %v4931 = vpack.c.b16 %v4727, %v4725
      %v4932 = vpack.c.b16 %v4728, %v4726
      %v4933 = vpack.c.b16 %v4731, %v4729
      %v4934 = vpack.c.b16 %v4732, %v4730
      %v4935 = vpack.c.b16 %v4735, %v4733
      %v4936 = vpack.c.b16 %v4736, %v4734
      %v4937 = vpack.c.b16 %v4739, %v4737
      %v4938 = vpack.c.b16 %v4740, %v4738
      %v4939 = vpack.c.b16 %v4743, %v4741
      %v4940 = vpack.c.b16 %v4744, %v4742
      %v4941 = vpack.c.b16 %v4747, %v4745
      %v4942 = vpack.c.b16 %v4748, %v4746
      %v4943 = vpack.c.b16 %v4751, %v4749
      %v4944 = vpack.c.b16 %v4752, %v4750
      %v4945 = vpack.c.b16 %v4755, %v4753
      %v4946 = vpack.c.b16 %v4756, %v4754
      %v4947 = vpack.c.b16 %v4759, %v4757
      %v4948 = vpack.c.b16 %v4760, %v4758
      %v4949 = vpack.c.b16 %v4763, %v4761
      %v4950 = vpack.c.b16 %v4764, %v4762
      %v4951 = vpack.c.b16 %v4767, %v4765
      %v4952 = vpack.c.b16 %v4768, %v4766
      %v4953 = vpack.c.b16 %v4771, %v4769
      %v4954 = vpack.c.b16 %v4772, %v4770
      %v4955 = vpack.c.b16 %v4775, %v4773
      %v4956 = vpack.c.b16 %v4776, %v4774
      %v4957 = vpack.c.b16 %v4779, %v4777
      %v4958 = vpack.c.b16 %v4780, %v4778
      %v4959 = vpack.c.b16 %v4783, %v4781
      %v4960 = vpack.c.b16 %v4784, %v4782
      %v4961 = vpack.c.b16 %v4787, %v4785
      %v4962 = vpack.c.b16 %v4788, %v4786
      %v4963 = vpack.c.b16 %v4791, %v4789
      %v4964 = vpack.c.b16 %v4792, %v4790
      %v4965 = vpack.c.b16 %v4795, %v4793
      %v4966 = vpack.c.b16 %v4796, %v4794
      %v4967 = vpack.c.b16 %v4799, %v4797
      %v4968 = vpack.c.b16 %v4800, %v4798
      %v4969 = vpack.c.b16 %v4803, %v4801
      %v4970 = vpack.c.b16 %v4804, %v4802
      %v4971 = vpack.c.b16 %v4807, %v4805
      %v4972 = vpack.c.b16 %v4808, %v4806
      %v4973 = vpack.c.b16 %v4811, %v4809
      %v4974 = vpack.c.b16 %v4812, %v4810
      %v4975 = vpack.c.b16 %v4815, %v4813
      %v4976 = vpack.c.b16 %v4816, %v4814
      %v4977 = vpack.c.b16 %v4819, %v4817
      %v4978 = vpack.c.b16 %v4820, %v4818
      %v4979 = vpack.c.b16 %v4823, %v4821
      %v4980 = vpack.c.b16 %v4824, %v4822
      %v4981 = vpack.c.b16 %v4827, %v4825
      %v4982 = vpack.c.b16 %v4828, %v4826
      %v4983 = vpack.c.b16 %v4831, %v4829
      %v4984 = vpack.c.b16 %v4832, %v4830
      %v4985 = vpack.c.b16 %v4835, %v4833
      %v4986 = vpack.c.b16 %v4836, %v4834
      %v4987 = vpack.c.b16 %v4839, %v4837
      %v4988 = vpack.c.b16 %v4840, %v4838
      %v4989 = vpack.c.b16 %v4843, %v4841
      %v4990 = vpack.c.b16 %v4844, %v4842
      %v4991 = vpack.c.b16 %v4847, %v4845
      %v4992 = vpack.c.b16 %v4848, %v4846
      %v4993 = vpack.c.b16 %v4851, %v4849
      %v4994 = vpack.c.b16 %v4852, %v4850
      %v4995 = vpack.c.b16 %v4855, %v4853
      %v4996 = vpack.c.b16 %v4856, %v4854
      %v4997 = vpack.c.b16 %v4859, %v4857
      %v4998 = vpack.c.b16 %v4860, %v4858
      %v4999 = vpack.c.b16 %v4863, %v4861
      %v5000 = vpack.c.b16 %v4864, %v4862
      %v5001 = vpack.c.b16 %v4867, %v4865
      %v5002 = vpack.c.b16 %v4868, %v4866
      %v5003 = vpack.c.b16 %v4871, %v4869
      %v5004 = vpack.c.b16 %v4872, %v4870
      %v5005 = vpack.c.b16 %v4875, %v4873
      %v5006 = vpack.c.b16 %v4876, %v4874
      %v5007 = vpack.c.b16 %v4879, %v4877
      %v5008 = vpack.c.b16 %v4880, %v4878
      %5137 = vmatprep.subr.bf16.mxu0 %v4882
      %5138 = vmatpush1.bf16.msra.mxu0 %v4881
      %5139 = vmatprep.subr.bf16.mxu0 %v4884
      %5140 = vmatpush1.bf16.msra.mxu0 %v4883
      %5141 = vmatprep.subr.bf16.mxu0 %v4886
      %5142 = vmatpush1.bf16.msra.mxu0 %v4885
      %5143 = vmatprep.subr.bf16.mxu0 %v4888
      %5144 = vmatpush1.bf16.msra.mxu0 %v4887
      %5145 = vmatprep.subr.bf16.mxu0 %v4890
      %5146 = vmatpush1.bf16.msra.mxu0 %v4889
      %5147 = vmatprep.subr.bf16.mxu0 %v4892
      %5148 = vmatpush1.bf16.msra.mxu0 %v4891
      %5149 = vmatprep.subr.bf16.mxu0 %v4894
      %5150 = vmatpush1.bf16.msra.mxu0 %v4893
      %5151 = vmatprep.subr.bf16.mxu0 %v4896
      %5152 = vmatpush1.bf16.msra.mxu0 %v4895
      %5153 = vmatprep.subr.bf16.mxu0 %v4898
      %5154 = vmatpush1.bf16.msra.mxu0 %v4897
      %5155 = vmatprep.subr.bf16.mxu0 %v4900
      %5156 = vmatpush1.bf16.msra.mxu0 %v4899
      %5157 = vmatprep.subr.bf16.mxu0 %v4902
      %5158 = vmatpush1.bf16.msra.mxu0 %v4901
      %5159 = vmatprep.subr.bf16.mxu0 %v4904
      %5160 = vmatpush1.bf16.msra.mxu0 %v4903
      %5161 = vmatprep.subr.bf16.mxu0 %v4906
      %5162 = vmatpush1.bf16.msra.mxu0 %v4905
      %5163 = vmatprep.subr.bf16.mxu0 %v4908
      %5164 = vmatpush1.bf16.msra.mxu0 %v4907
      %5165 = vmatprep.subr.bf16.mxu0 %v4910
      %5166 = vmatpush1.bf16.msra.mxu0 %v4909
      %5167 = vmatprep.subr.bf16.mxu0 %v4912
      %5168 = vmatpush1.bf16.msra.mxu0 %v4911
      %5169 = vmatprep.mubr.bf16.mxu0 %v3430
      %5170 = vmatmul.mubr.bf16.gmra.mrb[0].mxu0 %v3429
      %v5171 = vpop.f32.mrb[0].mxu0
      %v5172 = vadd.f32 %v4491, %v5171
      %v5173 = vpop.f32.mrb[0].mxu0
      %v5174 = vadd.f32 %v4493, %v5173
      %v5175 = vpop.f32.mrb[0].mxu0
      %v5176 = vpop.f32.mrb[0].mxu0
      %5177 = vdwg.mxu0
      %5178 = vmatprep.subr.bf16.mxu0 %v4914
      %5179 = vmatpush1.bf16.msra.mxu0 %v4913
      %5180 = vmatprep.subr.bf16.mxu0 %v4916
      %5181 = vmatpush1.bf16.msra.mxu0 %v4915
      %5182 = vmatprep.subr.bf16.mxu0 %v4918
      %5183 = vmatpush1.bf16.msra.mxu0 %v4917
      %5184 = vmatprep.subr.bf16.mxu0 %v4920
      %5185 = vmatpush1.bf16.msra.mxu0 %v4919
      %5186 = vmatprep.subr.bf16.mxu0 %v4922
      %5187 = vmatpush1.bf16.msra.mxu0 %v4921
      %5188 = vmatprep.subr.bf16.mxu0 %v4924
      %5189 = vmatpush1.bf16.msra.mxu0 %v4923
      %5190 = vmatprep.subr.bf16.mxu0 %v4926
      %5191 = vmatpush1.bf16.msra.mxu0 %v4925
      %5192 = vmatprep.subr.bf16.mxu0 %v4928
      %5193 = vmatpush1.bf16.msra.mxu0 %v4927
      %5194 = vmatprep.subr.bf16.mxu0 %v4930
      %5195 = vmatpush1.bf16.msra.mxu0 %v4929
      %5196 = vmatprep.subr.bf16.mxu0 %v4932
      %5197 = vmatpush1.bf16.msra.mxu0 %v4931
      %5198 = vmatprep.subr.bf16.mxu0 %v4934
      %5199 = vmatpush1.bf16.msra.mxu0 %v4933
      %5200 = vmatprep.subr.bf16.mxu0 %v4936
      %5201 = vmatpush1.bf16.msra.mxu0 %v4935
      %5202 = vmatprep.subr.bf16.mxu0 %v4938
      %5203 = vmatpush1.bf16.msra.mxu0 %v4937
      %5204 = vmatprep.subr.bf16.mxu0 %v4940
      %5205 = vmatpush1.bf16.msra.mxu0 %v4939
      %5206 = vmatprep.subr.bf16.mxu0 %v4942
      %5207 = vmatpush1.bf16.msra.mxu0 %v4941
      %5208 = vmatprep.subr.bf16.mxu0 %v4944
      %5209 = vmatpush1.bf16.msra.mxu0 %v4943
      %5210 = vmatprep.mubr.bf16.mxu0 %v3432
      %5211 = vmatmul.mubr.bf16.gmra.mrb[0].mxu0 %v3431
      %v5212 = vpop.f32.mrb[0].mxu0
      %v5213 = vadd.f32 %v5172, %v5212
      %v5214 = vpop.f32.mrb[0].mxu0
      %v5215 = vadd.f32 %v5174, %v5214
      %v5216 = vpop.f32.mrb[0].mxu0
      %v5217 = vpop.f32.mrb[0].mxu0
      %5218 = vdwg.mxu0
      %5219 = vmatprep.subr.bf16.mxu0 %v4946
      %5220 = vmatpush1.bf16.msra.mxu0 %v4945
      %5221 = vmatprep.subr.bf16.mxu0 %v4948
      %5222 = vmatpush1.bf16.msra.mxu0 %v4947
      %5223 = vmatprep.subr.bf16.mxu0 %v4950
      %5224 = vmatpush1.bf16.msra.mxu0 %v4949
      %5225 = vmatprep.subr.bf16.mxu0 %v4952
      %5226 = vmatpush1.bf16.msra.mxu0 %v4951
      %5227 = vmatprep.subr.bf16.mxu0 %v4954
      %5228 = vmatpush1.bf16.msra.mxu0 %v4953
      %5229 = vmatprep.subr.bf16.mxu0 %v4956
      %5230 = vmatpush1.bf16.msra.mxu0 %v4955
      %5231 = vmatprep.subr.bf16.mxu0 %v4958
      %5232 = vmatpush1.bf16.msra.mxu0 %v4957
      %5233 = vmatprep.subr.bf16.mxu0 %v4960
      %5234 = vmatpush1.bf16.msra.mxu0 %v4959
      %5235 = vmatprep.subr.bf16.mxu0 %v4962
      %5236 = vmatpush1.bf16.msra.mxu0 %v4961
      %5237 = vmatprep.subr.bf16.mxu0 %v4964
      %5238 = vmatpush1.bf16.msra.mxu0 %v4963
      %5239 = vmatprep.subr.bf16.mxu0 %v4966
      %5240 = vmatpush1.bf16.msra.mxu0 %v4965
      %5241 = vmatprep.subr.bf16.mxu0 %v4968
      %5242 = vmatpush1.bf16.msra.mxu0 %v4967
      %5243 = vmatprep.subr.bf16.mxu0 %v4970
      %5244 = vmatpush1.bf16.msra.mxu0 %v4969
      %5245 = vmatprep.subr.bf16.mxu0 %v4972
      %5246 = vmatpush1.bf16.msra.mxu0 %v4971
      %5247 = vmatprep.subr.bf16.mxu0 %v4974
      %5248 = vmatpush1.bf16.msra.mxu0 %v4973
      %5249 = vmatprep.subr.bf16.mxu0 %v4976
      %5250 = vmatpush1.bf16.msra.mxu0 %v4975
      %5251 = vmatprep.mubr.bf16.mxu0 %v3434
      %5252 = vmatmul.mubr.bf16.gmra.mrb[0].mxu0 %v3433
      %v5253 = vpop.f32.mrb[0].mxu0
      %v5254 = vadd.f32 %v5213, %v5253
      %v5255 = vpop.f32.mrb[0].mxu0
      %v5256 = vadd.f32 %v5215, %v5255
      %v5257 = vpop.f32.mrb[0].mxu0
      %v5258 = vpop.f32.mrb[0].mxu0
      %5259 = vdwg.mxu0
      %5260 = vmatprep.subr.bf16.mxu0 %v4978
      %5261 = vmatpush1.bf16.msra.mxu0 %v4977
      %5262 = vmatprep.subr.bf16.mxu0 %v4980
      %5263 = vmatpush1.bf16.msra.mxu0 %v4979
      %5264 = vmatprep.subr.bf16.mxu0 %v4982
      %5265 = vmatpush1.bf16.msra.mxu0 %v4981
      %5266 = vmatprep.subr.bf16.mxu0 %v4984
      %5267 = vmatpush1.bf16.msra.mxu0 %v4983
      %5268 = vmatprep.subr.bf16.mxu0 %v4986
      %5269 = vmatpush1.bf16.msra.mxu0 %v4985
      %5270 = vmatprep.subr.bf16.mxu0 %v4988
      %5271 = vmatpush1.bf16.msra.mxu0 %v4987
      %5272 = vmatprep.subr.bf16.mxu0 %v4990
      %5273 = vmatpush1.bf16.msra.mxu0 %v4989
      %5274 = vmatprep.subr.bf16.mxu0 %v4992
      %5275 = vmatpush1.bf16.msra.mxu0 %v4991
      %5276 = vmatprep.subr.bf16.mxu0 %v4994
      %5277 = vmatpush1.bf16.msra.mxu0 %v4993
      %5278 = vmatprep.subr.bf16.mxu0 %v4996
      %5279 = vmatpush1.bf16.msra.mxu0 %v4995
      %5280 = vmatprep.subr.bf16.mxu0 %v4998
      %5281 = vmatpush1.bf16.msra.mxu0 %v4997
      %5282 = vmatprep.subr.bf16.mxu0 %v5000
      %5283 = vmatpush1.bf16.msra.mxu0 %v4999
      %5284 = vmatprep.subr.bf16.mxu0 %v5002
      %5285 = vmatpush1.bf16.msra.mxu0 %v5001
      %5286 = vmatprep.subr.bf16.mxu0 %v5004
      %5287 = vmatpush1.bf16.msra.mxu0 %v5003
      %5288 = vmatprep.subr.bf16.mxu0 %v5006
      %5289 = vmatpush1.bf16.msra.mxu0 %v5005
      %5290 = vmatprep.subr.bf16.mxu0 %v5008
      %5291 = vmatpush1.bf16.msra.mxu0 %v5007
      %5292 = vmatprep.mubr.bf16.mxu0 %v3436
      %5293 = vmatmul.mubr.bf16.gmra.mrb[0].mxu0 %v3435
      %v5294 = vpop.f32.mrb[0].mxu0
      %v5295 = vadd.f32 %v5254, %v5294
      %v5296 = vpop.f32.mrb[0].mxu0
      %v5297 = vadd.f32 %v5256, %v5296
      %v5298 = vpop.f32.mrb[0].mxu0
      %v5299 = vpop.f32.mrb[0].mxu0
      %5300 = vdwg.mxu0
      %v5301 = vld [vmem:[%s6] sm:$0x3]
      %v5303 = vlaneseq
      %v5304 = vshrl.u32 %v5303, 7
      %v5305 = vsub.s32 0, %v5304
      %v5306 = vrot.slane %v5301, %v5305
      %v5307 = vlaneseq
      %v5308 = vshrl.u32 %v5307, 7
      %v5309 = vsub.s32 1, %v5308
      %v5310 = vrot.slane %v5301, %v5309
      %v5313 = vadd.f32 %v5295, %v5306
      %v5314 = vadd.f32 %v5297, %v5310
      %vm5315 = vcmp.ge.f32.partialorder %v5313, 0.0
      %vm5316 = vcmp.ge.f32.partialorder %v5314, 0.0
      %v5317 = vmul.f32 %v5313, 0.1
      %v5318 = vmul.f32 %v5314, 0.1
      %v5319 = vsel %vm5315, %v5313, %v5317
      %v5320 = vsel %vm5316, %v5314, %v5318
      %v5321 = vpack.c.bf16 %v5319, %v5319
      %v5322 = vpack.c.bf16 %v5320, %v5320
      %v5325 = vunpack.c.l.b16 %v5321
      %v5326 = vunpack.c.l.b16 %v5322
      %v5327 = vpack.c.b16 %v5326, %v5325
      %5329 = vst [vmem:[%s278] sm:$0xff] %v5327
      %p5330 = scmp.lt.s32.totalorder %s18, 1
      %s5331 = scalar_select %p5330, %s18, 1
      %s5332 = smul.addr %s5331, 2
      %s5333 = smul.addr %s5332, 4
      %s5334 = scalar_lea.vmem %s7, %s5333
      // Predicated region
      $region49: #{conv_residual_blocks_forward.2} parent=47 // pred_check
        %p5335 = pneg %p188
      $region50: #{conv_residual_blocks_forward.2} parent=47 // pred_check_branch
        %5337 = sbr.rel (%p5335) target = $region52
      $region51: #{conv_residual_blocks_forward.2} parent=47 // pred_region
        _
      $region52: #{conv_residual_blocks_forward.2} parent=47 // pred_fallthru
        _
    $region48: #{conv_residual_blocks_forward.2} parent=5 // pred_fallthru
      _
    %p5338 = scmp.le.s32.totalorder 2, %s13
    // Predicated region
    $region53: #{conv_residual_blocks_forward.2} parent=5 // pred_check
      %p5339 = pneg %p5338
    $region54: #{conv_residual_blocks_forward.2} parent=5 // pred_check_branch
      %5341 = sbr.rel (%p5339) target = $region56
    $region55: #{conv_residual_blocks_forward.2} parent=5 // pred_region
      %s5342 = ssub.s32 %s13, 2
      // Predicated region
      $region57: #{conv_residual_blocks_forward.2} parent=55 // pred_check
        %p5343 = pneg %p194
      $region58: #{conv_residual_blocks_forward.2} parent=55 // pred_check_branch
        %5345 = sbr.rel (%p5343) target = $region60
      $region59: #{conv_residual_blocks_forward.2} parent=55 // pred_region
        %p5346 = scmp.lt.s32.totalorder %s19, 1
        %s5347 = scalar_select %p5346, %s19, 1
        %s5348 = smul.addr %s5347, 2
        %s5349 = smul.addr %s5348, 4
        %s5350 = scalar_lea.vmem %s7, %s5349
      $region60: #{conv_residual_blocks_forward.2} parent=55 // pred_fallthru
        _
    $region56: #{conv_residual_blocks_forward.2} parent=5 // pred_fallthru
      _
  $region6: #{conv_residual_blocks_forward.2} parent=0 // loop_footer
    %s17 = sadd.s32 1, %s13
  $region7: #{conv_residual_blocks_forward.2} parent=0 // loop_footer_branch
    %12 = sbr.rel target = $region3
  $region8: #{conv_residual_blocks_forward.2} parent=0 // loop_exit
    _

// kernel: conv_residual_blocks_forward.3
$region0: #{conv_residual_blocks_forward.3}
  #allocation0 [shape = 'u32[]', space=smem, size = 0x4, offset = 0x4, fixed_abs, tag = 'smem constant byte address 0x4 - core index']
  #allocation1 [shape = 'u32[144,128]{1,0:T(1,128)}', space=vmem, size = 0x12000, scoped, tag = 'internal scratch']
  %s0 = inlined_call_operand.vmem [shape: bf16[16,256], index: 0, kind: input, shape index: {}]
  %s1 = inlined_call_operand.vmem [shape: bf16[3,3,256,256], index: 1, kind: input, shape index: {}]
  %s2 = inlined_call_operand.vmem [shape: f32[3,1,256], index: 2, kind: input, shape index: {}]
  %s3 = inlined_call_operand.vmem [shape: bf16[3,3,256,256], index: 3, kind: input, shape index: {}]
  %s4 = inlined_call_operand.vmem [shape: f32[3,1,256], index: 4, kind: input, shape index: {}]
  %s5 = inlined_call_operand.vmem [shape: bf16[16,256], index: 5, kind: output, shape index: {}]
  %s6 = sld [smem:[#allocation0]]
  $region57: #{conv_residual_blocks_forward.3} parent=0
    _
  %s8 = ssub.s32 1, %s6
  %s9 = scalar_select 0, %s8, %s6
  loop: start=0, step=1, limit=5
  $region2: #{conv_residual_blocks_forward.3} parent=0 // loop_pre_header
    _
  $region3: #{conv_residual_blocks_forward.3} parent=0 // loop_header
    %s11 = sphi 0, %s15
    %p12 = scmp.ge.s32.totalorder %s11, 5
    %s18 = sphi 0, %s30
    %s19 = sphi 0, %s26
    %s20 = sphi 0, %s18
    %s21 = sphi 0, %s19
    %s22 = sphi 0, %s20
    %s23 = sphi 0, %s21
    %s33 = sphi 0, %s35
    %s36 = sphi 0, %s33
    %s37 = sphi 0, %s36
    %s53 = sphi 0, %s37
    %s59 = sphi 0, %s61
    %s62 = sphi 0, %s59
    %s63 = sphi 0, %s62
    %s79 = sphi 0, %s63
    %s85 = sphi 0, %s87
    %s88 = sphi 0, %s85
    %s89 = sphi 0, %s88
    %s105 = sphi 0, %s89
    %s111 = sphi 0, %s113
    %s114 = sphi 0, %s111
    %s115 = sphi 0, %s114
    %s131 = sphi 0, %s115
    %s137 = sphi 0, %s139
    %s140 = sphi 0, %s137
    %s141 = sphi 0, %s140
    %s157 = sphi 0, %s141
    %s163 = sphi 0, %s165
    %s166 = sphi 0, %s163
    %s167 = sphi 0, %s166
    %s183 = sphi 0, %s167
  $region4: #{conv_residual_blocks_forward.3} parent=0 // loop_header_branch
    %14 = sbr.rel (%p12) target = $region8
  $region5: #{conv_residual_blocks_forward.3} parent=0 // loop_body
    %s16 = ssub.s32 %s11, 1
    %s17 = ssub.s32 %s11, 2
    %s24 = sadd.s32 1, %s19
    %p25 = scmp.ge.s32.totalorder %s24, 3
    %s26 = scalar_select %p25, 0, %s24
    %s27 = sadd.s32 1, %s18
    %s28 = scalar_select %p25, %s27, %s18
    %p29 = scmp.ge.s32.totalorder %s28, 1
    %s30 = scalar_select %p29, 0, %s28
    %s31 = ssub.s32 %s18, %s30
    %p32 = scmp.eq.s32.totalorder %s31, 0
    %s34 = sadd.s32 %s33, 1
    %s35 = scalar_select %p32, %s33, %s34
    %p38 = pneg %p32
    %p39 = scmp.eq.s32.totalorder %s11, 2
    %p40 = por %p38, %p39
    %p41 = scmp.ne.s32.totalorder %s33, %s36
    %p42 = scmp.eq.s32.totalorder %s11, 0
    %p43 = por %p41, %p42
    %p44 = scmp.ne.s32.totalorder %s33, %s36
    %p45 = scmp.eq.s32.totalorder %s16, 2
    %p46 = por %p44, %p45
    %p47 = scmp.ne.s32.totalorder %s36, %s37
    %p48 = scmp.eq.s32.totalorder %s16, 0
    %p49 = por %p47, %p48
    %p50 = scmp.ne.s32.totalorder %s36, %s37
    %p51 = scmp.eq.s32.totalorder %s17, 2
    %p52 = por %p50, %p51
    %p54 = scmp.ne.s32.totalorder %s37, %s53
    %p55 = scmp.eq.s32.totalorder %s17, 0
    %p56 = por %p54, %p55
    %s57 = ssub.s32 %s19, %s26
    %p58 = scmp.eq.s32.totalorder %s57, 0
    %s60 = sadd.s32 %s59, 1
    %s61 = scalar_select %p58, %s59, %s60
    %p64 = pneg %p58
    %p65 = scmp.eq.s32.totalorder %s11, 2
    %p66 = por %p64, %p65
    %p67 = scmp.ne.s32.totalorder %s59, %s62
    %p68 = scmp.eq.s32.totalorder %s11, 0
    %p69 = por %p67, %p68
    %p70 = scmp.ne.s32.totalorder %s59, %s62
    %p71 = scmp.eq.s32.totalorder %s16, 2
    %p72 = por %p70, %p71
    %p73 = scmp.ne.s32.totalorder %s62, %s63
    %p74 = scmp.eq.s32.totalorder %s16, 0
    %p75 = por %p73, %p74
    %p76 = scmp.ne.s32.totalorder %s62, %s63
    %p77 = scmp.eq.s32.totalorder %s17, 2
    %p78 = por %p76, %p77
    %p80 = scmp.ne.s32.totalorder %s63, %s79
    %p81 = scmp.eq.s32.totalorder %s17, 0
    %p82 = por %p80, %p81
    %s83 = ssub.s32 %s19, %s26
    %p84 = scmp.eq.s32.totalorder %s83, 0
    %s86 = sadd.s32 %s85, 1
    %s87 = scalar_select %p84, %s85, %s86
    %p90 = pneg %p84
    %p91 = scmp.eq.s32.totalorder %s11, 2
    %p92 = por %p90, %p91
    %p93 = scmp.ne.s32.totalorder %s85, %s88
    %p94 = scmp.eq.s32.totalorder %s11, 0
    %p95 = por %p93, %p94
    %p96 = scmp.ne.s32.totalorder %s85, %s88
    %p97 = scmp.eq.s32.totalorder %s16, 2
    %p98 = por %p96, %p97
    %p99 = scmp.ne.s32.totalorder %s88, %s89
    %p100 = scmp.eq.s32.totalorder %s16, 0
    %p101 = por %p99, %p100
    %p102 = scmp.ne.s32.totalorder %s88, %s89
    %p103 = scmp.eq.s32.totalorder %s17, 2
    %p104 = por %p102, %p103
    %p106 = scmp.ne.s32.totalorder %s89, %s105
    %p107 = scmp.eq.s32.totalorder %s17, 0
    %p108 = por %p106, %p107
    %s109 = ssub.s32 %s19, %s26
    %p110 = scmp.eq.s32.totalorder %s109, 0
    %s112 = sadd.s32 %s111, 1
    %s113 = scalar_select %p110, %s111, %s112
    %p116 = pneg %p110
    %p117 = scmp.eq.s32.totalorder %s11, 2
    %p118 = por %p116, %p117
    %p119 = scmp.ne.s32.totalorder %s111, %s114
    %p120 = scmp.eq.s32.totalorder %s11, 0
    %p121 = por %p119, %p120
    %p122 = scmp.ne.s32.totalorder %s111, %s114
    %p123 = scmp.eq.s32.totalorder %s16, 2
    %p124 = por %p122, %p123
    %p125 = scmp.ne.s32.totalorder %s114, %s115
    %p126 = scmp.eq.s32.totalorder %s16, 0
    %p127 = por %p125, %p126
    %p128 = scmp.ne.s32.totalorder %s114, %s115
    %p129 = scmp.eq.s32.totalorder %s17, 2
    %p130 = por %p128, %p129
    %p132 = scmp.ne.s32.totalorder %s115, %s131
    %p133 = scmp.eq.s32.totalorder %s17, 0
    %p134 = por %p132, %p133
    %s135 = ssub.s32 %s19, %s26
    %p136 = scmp.eq.s32.totalorder %s135, 0
    %s138 = sadd.s32 %s137, 1
    %s139 = scalar_select %p136, %s137, %s138
    %p142 = pneg %p136
    %p143 = scmp.eq.s32.totalorder %s11, 2
    %p144 = por %p142, %p143
    %p145 = scmp.ne.s32.totalorder %s137, %s140
    %p146 = scmp.eq.s32.totalorder %s11, 0
    %p147 = por %p145, %p146
    %p148 = scmp.ne.s32.totalorder %s137, %s140
    %p149 = scmp.eq.s32.totalorder %s16, 2
    %p150 = por %p148, %p149
    %p151 = scmp.ne.s32.totalorder %s140, %s141
    %p152 = scmp.eq.s32.totalorder %s16, 0
    %p153 = por %p151, %p152
    %p154 = scmp.ne.s32.totalorder %s140, %s141
    %p155 = scmp.eq.s32.totalorder %s17, 2
    %p156 = por %p154, %p155
    %p158 = scmp.ne.s32.totalorder %s141, %s157
    %p159 = scmp.eq.s32.totalorder %s17, 0
    %p160 = por %p158, %p159
    %s161 = ssub.s32 %s18, %s30
    %p162 = scmp.eq.s32.totalorder %s161, 0
    %s164 = sadd.s32 %s163, 1
    %s165 = scalar_select %p162, %s163, %s164
    %p168 = pneg %p162
    %p169 = scmp.eq.s32.totalorder %s11, 2
    %p170 = por %p168, %p169
    %p171 = scmp.ne.s32.totalorder %s163, %s166
    %p172 = scmp.eq.s32.totalorder %s11, 0
    %p173 = por %p171, %p172
    %p174 = scmp.ne.s32.totalorder %s163, %s166
    %p175 = scmp.eq.s32.totalorder %s16, 2
    %p176 = por %p174, %p175
    %p177 = scmp.ne.s32.totalorder %s166, %s167
    %p178 = scmp.eq.s32.totalorder %s16, 0
    %p179 = por %p177, %p178
    %p180 = scmp.ne.s32.totalorder %s166, %s167
    %p181 = scmp.eq.s32.totalorder %s17, 2
    %p182 = por %p180, %p181
    %p184 = scmp.ne.s32.totalorder %s167, %s183
    %p185 = scmp.eq.s32.totalorder %s17, 0
    %p186 = por %p184, %p185
    %p187 = scmp.le.s32.totalorder 1, %s11
    %p188 = scmp.lt.s32.totalorder %s11, 4
    %p189 = pnand %p187, %p188
    %p190 = pneg %p189
    // Predicated region
    $region9: #{conv_residual_blocks_forward.3} parent=5 // pred_check
      _
    $region10: #{conv_residual_blocks_forward.3} parent=5 // pred_check_branch
      %192 = sbr.rel (%p189) target = $region12
    $region11: #{conv_residual_blocks_forward.3} parent=5 // pred_region
      %s193 = ssub.s32 %s11, 1
      // Predicated region
      $region13: #{conv_residual_blocks_forward.3} parent=11 // pred_check
        %p194 = pneg %p49
      $region14: #{conv_residual_blocks_forward.3} parent=11 // pred_check_branch
        %196 = sbr.rel (%p194) target = $region16
      $region15: #{conv_residual_blocks_forward.3} parent=11 // pred_region
        %s197 = smul.u32 2, %s20
        %p198 = scmp.lt.s32.totalorder %s197, 1
        %s199 = scalar_select %p198, %s197, 1
        %s200 = smul.addr %s199, 2
        %s201 = smul.addr %s200, 4
        %s202 = scalar_lea.vmem %s0, %s201
        %s203 = smul.u32 2, %s20
      $region16: #{conv_residual_blocks_forward.3} parent=11 // pred_fallthru
        _
    $region12: #{conv_residual_blocks_forward.3} parent=5 // pred_fallthru
      _
    %p204 = scmp.lt.s32.totalorder %s11, 3
    // Predicated region
    $region17: #{conv_residual_blocks_forward.3} parent=5 // pred_check
      %p205 = pneg %p204
    $region18: #{conv_residual_blocks_forward.3} parent=5 // pred_check_branch
      %207 = sbr.rel (%p205) target = $region20
    $region19: #{conv_residual_blocks_forward.3} parent=5 // pred_region
      // Predicated region
      $region21: #{conv_residual_blocks_forward.3} parent=19 // pred_check
        %p208 = pneg %p69
      $region22: #{conv_residual_blocks_forward.3} parent=19 // pred_check_branch
        %210 = sbr.rel (%p208) target = $region24
      $region23: #{conv_residual_blocks_forward.3} parent=19 // pred_region
        %p211 = scmp.lt.s32.totalorder %s19, 2
        %s212 = scalar_select %p211, %s19, 2
        %s213 = smul.addr %s212, 192
        %s214 = smul.addr %s213, 4
        %s215 = scalar_lea.vmem %s1, %s214
      $region24: #{conv_residual_blocks_forward.3} parent=19 // pred_fallthru
        _
      // Predicated region
      $region25: #{conv_residual_blocks_forward.3} parent=19 // pred_check
        %p216 = pneg %p95
      $region26: #{conv_residual_blocks_forward.3} parent=19 // pred_check_branch
        %218 = sbr.rel (%p216) target = $region28
      $region27: #{conv_residual_blocks_forward.3} parent=19 // pred_region
        %p219 = scmp.lt.s32.totalorder %s19, 2
        %s220 = scalar_select %p219, %s19, 2
        %s221 = smul.addr %s220, 2
        %s222 = scalar_lea.vmem %s2, %s221
      $region28: #{conv_residual_blocks_forward.3} parent=19 // pred_fallthru
        _
      // Predicated region
      $region29: #{conv_residual_blocks_forward.3} parent=19 // pred_check
        %p223 = pneg %p121
      $region30: #{conv_residual_blocks_forward.3} parent=19 // pred_check_branch
        %225 = sbr.rel (%p223) target = $region32
      $region31: #{conv_residual_blocks_forward.3} parent=19 // pred_region
        %p226 = scmp.lt.s32.totalorder %s19, 2
        %s227 = scalar_select %p226, %s19, 2
        %s228 = smul.addr %s227, 192
        %s229 = smul.addr %s228, 4
        %s230 = scalar_lea.vmem %s3, %s229
      $region32: #{conv_residual_blocks_forward.3} parent=19 // pred_fallthru
        _
      // Predicated region
      $region33: #{conv_residual_blocks_forward.3} parent=19 // pred_check
        %p231 = pneg %p147
      $region34: #{conv_residual_blocks_forward.3} parent=19 // pred_check_branch
        %233 = sbr.rel (%p231) target = $region36
      $region35: #{conv_residual_blocks_forward.3} parent=19 // pred_region
        %p234 = scmp.lt.s32.totalorder %s19, 2
        %s235 = scalar_select %p234, %s19, 2
        %s236 = smul.addr %s235, 2
        %s237 = scalar_lea.vmem %s4, %s236
      $region36: #{conv_residual_blocks_forward.3} parent=19 // pred_fallthru
        _
    $region20: #{conv_residual_blocks_forward.3} parent=5 // pred_fallthru
      _
    %p238 = scmp.le.s32.totalorder 1, %s11
    %p239 = scmp.lt.s32.totalorder %s11, 4
    %p240 = pnand %p238, %p239
    %p241 = pneg %p240
    // Predicated region
    $region37: #{conv_residual_blocks_forward.3} parent=5 // pred_check
      _
    $region38: #{conv_residual_blocks_forward.3} parent=5 // pred_check_branch
      %243 = sbr.rel (%p240) target = $region40
    $region39: #{conv_residual_blocks_forward.3} parent=5 // pred_region
      %s244 = ssub.s32 %s11, 1
      %s245 = smul.u32 2, %s20
      %p246 = scmp.lt.s32.totalorder %s245, 1
      %s247 = scalar_select %p246, %s245, 1
      %s248 = smul.addr %s247, 2
      %s249 = smul.addr %s248, 4
      %s250 = scalar_lea.vmem %s0, %s249
      %p251 = pneg %p49
      %p252 = pneg %p46
      %p253 = scmp.lt.s32.totalorder %s21, 2
      %s254 = scalar_select %p253, %s21, 2
      %s255 = smul.addr %s254, 192
      %s256 = smul.addr %s255, 4
      %s257 = scalar_lea.vmem %s1, %s256
      %p258 = pneg %p75
      %p259 = pneg %p72
      %p260 = scmp.lt.s32.totalorder %s21, 2
      %s261 = scalar_select %p260, %s21, 2
      %s262 = smul.addr %s261, 2
      %s263 = scalar_lea.vmem %s2, %s262
      %p264 = pneg %p101
      %p265 = pneg %p98
      %p266 = scmp.lt.s32.totalorder %s21, 2
      %s267 = scalar_select %p266, %s21, 2
      %s268 = smul.addr %s267, 192
      %s269 = smul.addr %s268, 4
      %s270 = scalar_lea.vmem %s3, %s269
      %p271 = pneg %p127
      %p272 = pneg %p124
      %p273 = scmp.lt.s32.totalorder %s21, 2
      %s274 = scalar_select %p273, %s21, 2
      %s275 = smul.addr %s274, 2
      %s276 = scalar_lea.vmem %s4, %s275
      %p277 = pneg %p153
      %p278 = pneg %p150
      %p279 = pneg %p179
      %p280 = pneg %p176
      %s281 = smul.u32 2, %s20
      %p282 = scmp.lt.s32.totalorder %s281, 1
      %s283 = scalar_select %p282, %s281, 1
      %s284 = smul.addr %s283, 2
      %s285 = smul.addr %s284, 4
      %s286 = scalar_lea.vmem %s5, %s285
      %s287 = smul.u32 2, %s20
      %p288 = scmp.lt.s32.totalorder %s287, 1
      %s289 = scalar_select %p288, %s287, 1
      %s290 = smul.addr %s289, 2
      %s291 = smul.addr %s290, 4
      %s292 = scalar_lea.vmem %s0, %s291
      %s293 = smul.u32 2, %s20
      %p294 = scmp.lt.s32.totalorder %s21, 2
      %s295 = scalar_select %p294, %s21, 2
      %s296 = smul.addr %s295, 192
      %s297 = smul.addr %s296, 4
      %s298 = scalar_lea.vmem %s1, %s297
      %p299 = scmp.lt.s32.totalorder %s21, 2
      %s300 = scalar_select %p299, %s21, 2
      %s301 = smul.addr %s300, 2
      %s302 = scalar_lea.vmem %s2, %s301
      %p303 = scmp.lt.s32.totalorder %s21, 2
      %s304 = scalar_select %p303, %s21, 2
      %s305 = smul.addr %s304, 192
      %s306 = smul.addr %s305, 4
      %s307 = scalar_lea.vmem %s3, %s306
      %p308 = scmp.lt.s32.totalorder %s21, 2
      %s309 = scalar_select %p308, %s21, 2
      %s310 = smul.addr %s309, 2
      %s311 = scalar_lea.vmem %s4, %s310
      %s312 = smul.u32 2, %s20
      %p313 = scmp.lt.s32.totalorder %s312, 1
      %s314 = scalar_select %p313, %s312, 1
      %s315 = smul.addr %s314, 2
      %s316 = smul.addr %s315, 4
      %s317 = scalar_lea.vmem %s5, %s316
      %s318 = smul.u32 2, %s20
      %p322 = scmp.eq.s32.totalorder %s21, 0
      // Predicated region
      $region41: #{conv_residual_blocks_forward.3} parent=39 // pred_check
        %p323 = pneg %p322
      $region42: #{conv_residual_blocks_forward.3} parent=39 // pred_check_branch
        %325 = sbr.rel (%p323) target = $region44
      $region43: #{conv_residual_blocks_forward.3} parent=39 // pred_region
        %v326 = vld [vmem:[%s292] sm:$0xff]
        %v327 = vld [vmem:[%s292 + $0x8] sm:$0xff]
        %328 = vst [vmem:[%s317] sm:$0xff] %v326
        %329 = vst [vmem:[%s317 + $0x8] sm:$0xff] %v327
      $region44: #{conv_residual_blocks_forward.3} parent=39 // pred_fallthru
        _
      %v330 = vld [vmem:[%s317] sm:$0xff]
      %v331 = vld [vmem:[%s317 + $0x8] sm:$0xff]
      %v332 = vld [vmem:[%s302] sm:$0x3]
      %v335 = vunpack.c.l.b16 %v330
      %v336 = vunpack.c.h.b16 %v330
      %v337 = vunpack.c.l.b16 %v331
      %v338 = vunpack.c.h.b16 %v331
      %v339 = vpack.c.b16 %v337, %v335
      %v340 = vpack.c.b16 %v338, %v336
      %v342 = vshrl.u32 %v339, 16
      %v344 = vrot.slane %v342, 7
      %v345 = vshll.u32 %v339, 16
      %v347 = vor.u32 %v344, %v345
      %v349 = vshrl.u32 %v340, 16
      %v351 = vrot.slane %v349, 7
      %v352 = vshll.u32 %v340, 16
      %v354 = vor.u32 %v351, %v352
      %vm357 = vcmask 1040384
      %vm358 = vsmask.f32 256
      %vm359 = vmand %vm357, %vm358
      %v360 = vsel %vm359, 0, %v347
      %v361 = vsel %vm359, 0, %v354
      %v362 = vrot.slane %v345, 1
      %v363 = vor.u32 %v342, %v362
      %v364 = vrot.slane %v352, 1
      %v365 = vor.u32 %v349, %v364
      %vm368 = vcmask 1047552
      %vm369 = vsmask.f32 7424
      %vm370 = vmand %vm368, %vm369
      %v371 = vsel %vm370, %v363, 0
      %v372 = vsel %vm370, %v365, 0
      %v373 = vlaneseq
      %v374 = vshrl.u32 %v373, 7
      %v375 = vadd.s32 %v374, 8
      %vm376 = vcmp.lt.s32.totalorder %v374, 0
      %v377 = vsub.s32 0, %v374
      %v378 = vsel %vm376, %v377, %v374
      %v379 = vshrl.u32 %v378, 3
      %v380 = vand.u32 %v378, 7
      %v381 = vsub.s32 0, %v380
      %v382 = vsel %vm376, %v381, %v380
      %vm383 = vcmp.lt.s32.totalorder %v375, 0
      %v384 = vsub.s32 0, %v375
      %v385 = vsel %vm383, %v384, %v375
      %v386 = vshrl.u32 %v385, 3
      %v387 = vand.u32 %v385, 7
      %v388 = vsub.s32 0, %v387
      %v389 = vsel %vm383, %v388, %v387
      %vm390 = vcmp.ne.s32.totalorder %v382, 0
      %vm391 = vcmp.ne.s32.totalorder %v389, 0
      %vm392 = vcmp.lt.s32.totalorder %v382, 0
      %vm393 = vcmp.lt.s32.totalorder %v389, 0
      %vm394 = vmand %vm392, %vm390
      %vm395 = vmand %vm393, %vm391
      %v396 = vadd.s32 %v382, 8
      %v397 = vadd.s32 %v389, 8
      %v398 = vsel %vm394, %v396, %v382
      %v399 = vsel %vm395, %v397, %v389
      %vm400 = vcmp.eq.s32.totalorder %v398, 0
      %vm401 = vcmp.eq.s32.totalorder %v399, 0
      %v402 = vsel %vm400, 1, 0
      %v403 = vsel %vm401, 1, 0
      %vm404 = vcmp.eq.s32.totalorder %v402, 1
      %vm405 = vcmp.eq.s32.totalorder %v403, 1
      %vm406 = vmpackc.low %vm404, %vm404
      %vm407 = vmpackc.low %vm405, %vm405
      %v408 = vsel %vm406, 65537, 0
      %v409 = vsel %vm407, 65537, 0
      %v410 = vunpack.c.l.b16 %v408
      %v411 = vunpack.c.l.b16 %v409
      %v412 = vpack.c.b16 %v411, %v410
      %vm413 = vcmp.ne.s16.totalorder %v412, 0
      %v414 = vsel %vm413, 0, %v360
      %v415 = vsel %vm413, 0, %v361
      %vm416 = vcmp.eq.s32.totalorder %v398, 7
      %vm417 = vcmp.eq.s32.totalorder %v399, 7
      %v418 = vsel %vm416, 1, 0
      %v419 = vsel %vm417, 1, 0
      %vm420 = vcmp.eq.s32.totalorder %v418, 1
      %vm421 = vcmp.eq.s32.totalorder %v419, 1
      %vm422 = vmpackc.low %vm420, %vm420
      %vm423 = vmpackc.low %vm421, %vm421
      %v424 = vsel %vm422, 65537, 0
      %v425 = vsel %vm423, 65537, 0
      %v426 = vunpack.c.l.b16 %v424
      %v427 = vunpack.c.l.b16 %v425
      %v428 = vpack.c.b16 %v427, %v426
      %vm429 = vcmp.ne.s16.totalorder %v428, 0
      %v430 = vsel %vm429, 0, %v371
      %v431 = vsel %vm429, 0, %v372
      %v432 = vld [vmem:[%s298] sm:$0xff]
      %v433 = vld [vmem:[%s298 + $0x8] sm:$0xff]
      %v434 = vld [vmem:[%s298 + $0x10] sm:$0xff]
      %v435 = vld [vmem:[%s298 + $0x18] sm:$0xff]
      %v436 = vld [vmem:[%s298 + $0x20] sm:$0xff]
      %v437 = vld [vmem:[%s298 + $0x28] sm:$0xff]
      %v438 = vld [vmem:[%s298 + $0x30] sm:$0xff]
      %v439 = vld [vmem:[%s298 + $0x38] sm:$0xff]
      %v440 = vld [vmem:[%s298 + $0x40] sm:$0xff]
      %v441 = vld [vmem:[%s298 + $0x48] sm:$0xff]
      %v442 = vld [vmem:[%s298 + $0x50] sm:$0xff]
      %v443 = vld [vmem:[%s298 + $0x58] sm:$0xff]
      %v444 = vld [vmem:[%s298 + $0x60] sm:$0xff]
      %v445 = vld [vmem:[%s298 + $0x68] sm:$0xff]
      %v446 = vld [vmem:[%s298 + $0x70] sm:$0xff]
      %v447 = vld [vmem:[%s298 + $0x78] sm:$0xff]
      %v448 = vld [vmem:[%s298 + $0x80] sm:$0xff]
      %v449 = vld [vmem:[%s298 + $0x88] sm:$0xff]
      %v450 = vld [vmem:[%s298 + $0x90] sm:$0xff]
      %v451 = vld [vmem:[%s298 + $0x98] sm:$0xff]
      %v452 = vld [vmem:[%s298 + $0xa0] sm:$0xff]
      %v453 = vld [vmem:[%s298 + $0xa8] sm:$0xff]
      %v454 = vld [vmem:[%s298 + $0xb0] sm:$0xff]
      %v455 = vld [vmem:[%s298 + $0xb8] sm:$0xff]
      %v456 = vld [vmem:[%s298 + $0xc0] sm:$0xff]
      %v457 = vld [vmem:[%s298 + $0xc8] sm:$0xff]
      %v458 = vld [vmem:[%s298 + $0xd0] sm:$0xff]
      %v459 = vld [vmem:[%s298 + $0xd8] sm:$0xff]
      %v460 = vld [vmem:[%s298 + $0xe0] sm:$0xff]
      %v461 = vld [vmem:[%s298 + $0xe8] sm:$0xff]
      %v462 = vld [vmem:[%s298 + $0xf0] sm:$0xff]
      %v463 = vld [vmem:[%s298 + $0xf8] sm:$0xff]
      %s464 = scalar_lea.vmem %s298, 256
      %v465 = vld [vmem:[%s464] sm:$0xff]
      %v466 = vld [vmem:[%s464 + $0x8] sm:$0xff]
      %v467 = vld [vmem:[%s464 + $0x10] sm:$0xff]
      %v468 = vld [vmem:[%s464 + $0x18] sm:$0xff]
      %v469 = vld [vmem:[%s464 + $0x20] sm:$0xff]
      %v470 = vld [vmem:[%s464 + $0x28] sm:$0xff]
      %v471 = vld [vmem:[%s464 + $0x30] sm:$0xff]
      %v472 = vld [vmem:[%s464 + $0x38] sm:$0xff]
      %v473 = vld [vmem:[%s464 + $0x40] sm:$0xff]
      %v474 = vld [vmem:[%s464 + $0x48] sm:$0xff]
      %v475 = vld [vmem:[%s464 + $0x50] sm:$0xff]
      %v476 = vld [vmem:[%s464 + $0x58] sm:$0xff]
      %v477 = vld [vmem:[%s464 + $0x60] sm:$0xff]
      %v478 = vld [vmem:[%s464 + $0x68] sm:$0xff]
      %v479 = vld [vmem:[%s464 + $0x70] sm:$0xff]
      %v480 = vld [vmem:[%s464 + $0x78] sm:$0xff]
      %v481 = vld [vmem:[%s464 + $0x80] sm:$0xff]
      %v482 = vld [vmem:[%s464 + $0x88] sm:$0xff]
      %v483 = vld [vmem:[%s464 + $0x90] sm:$0xff]
      %v484 = vld [vmem:[%s464 + $0x98] sm:$0xff]
      %v485 = vld [vmem:[%s464 + $0xa0] sm:$0xff]
      %v486 = vld [vmem:[%s464 + $0xa8] sm:$0xff]
      %v487 = vld [vmem:[%s464 + $0xb0] sm:$0xff]
      %v488 = vld [vmem:[%s464 + $0xb8] sm:$0xff]
      %v489 = vld [vmem:[%s464 + $0xc0] sm:$0xff]
      %v490 = vld [vmem:[%s464 + $0xc8] sm:$0xff]
      %v491 = vld [vmem:[%s464 + $0xd0] sm:$0xff]
      %v492 = vld [vmem:[%s464 + $0xd8] sm:$0xff]
      %v493 = vld [vmem:[%s464 + $0xe0] sm:$0xff]
      %v494 = vld [vmem:[%s464 + $0xe8] sm:$0xff]
      %v495 = vld [vmem:[%s464 + $0xf0] sm:$0xff]
      %v496 = vld [vmem:[%s464 + $0xf8] sm:$0xff]
      %v531 = vunpack.c.l.b16 %v465
      %v532 = vunpack.c.h.b16 %v465
      %v533 = vunpack.c.l.b16 %v466
      %v534 = vunpack.c.h.b16 %v466
      %v535 = vunpack.c.l.b16 %v467
      %v536 = vunpack.c.h.b16 %v467
      %v537 = vunpack.c.l.b16 %v468
      %v538 = vunpack.c.h.b16 %v468
      %v539 = vunpack.c.l.b16 %v469
      %v540 = vunpack.c.h.b16 %v469
      %v541 = vunpack.c.l.b16 %v470
      %v542 = vunpack.c.h.b16 %v470
      %v543 = vunpack.c.l.b16 %v471
      %v544 = vunpack.c.h.b16 %v471
      %v545 = vunpack.c.l.b16 %v472
      %v546 = vunpack.c.h.b16 %v472
      %v547 = vunpack.c.l.b16 %v473
      %v548 = vunpack.c.h.b16 %v473
      %v549 = vunpack.c.l.b16 %v474
      %v550 = vunpack.c.h.b16 %v474
      %v551 = vunpack.c.l.b16 %v475
      %v552 = vunpack.c.h.b16 %v475
      %v553 = vunpack.c.l.b16 %v476
      %v554 = vunpack.c.h.b16 %v476
      %v555 = vunpack.c.l.b16 %v477
      %v556 = vunpack.c.h.b16 %v477
      %v557 = vunpack.c.l.b16 %v478
      %v558 = vunpack.c.h.b16 %v478
      %v559 = vunpack.c.l.b16 %v479
      %v560 = vunpack.c.h.b16 %v479
      %v561 = vunpack.c.l.b16 %v480
      %v562 = vunpack.c.h.b16 %v480
      %v563 = vunpack.c.l.b16 %v481
      %v564 = vunpack.c.h.b16 %v481
      %v565 = vunpack.c.l.b16 %v482
      %v566 = vunpack.c.h.b16 %v482
      %v567 = vunpack.c.l.b16 %v483
      %v568 = vunpack.c.h.b16 %v483
      %v569 = vunpack.c.l.b16 %v484
      %v570 = vunpack.c.h.b16 %v484
      %v571 = vunpack.c.l.b16 %v485
      %v572 = vunpack.c.h.b16 %v485
      %v573 = vunpack.c.l.b16 %v486
      %v574 = vunpack.c.h.b16 %v486
      %v575 = vunpack.c.l.b16 %v487
      %v576 = vunpack.c.h.b16 %v487
      %v577 = vunpack.c.l.b16 %v488
      %v578 = vunpack.c.h.b16 %v488
      %v579 = vunpack.c.l.b16 %v489
      %v580 = vunpack.c.h.b16 %v489
      %v581 = vunpack.c.l.b16 %v490
      %v582 = vunpack.c.h.b16 %v490
      %v583 = vunpack.c.l.b16 %v491
      %v584 = vunpack.c.h.b16 %v491
      %v585 = vunpack.c.l.b16 %v492
      %v586 = vunpack.c.h.b16 %v492
      %v587 = vunpack.c.l.b16 %v493
      %v588 = vunpack.c.h.b16 %v493
      %v589 = vunpack.c.l.b16 %v494
      %v590 = vunpack.c.h.b16 %v494
      %v591 = vunpack.c.l.b16 %v495
      %v592 = vunpack.c.h.b16 %v495
      %v593 = vunpack.c.l.b16 %v496
      %v594 = vunpack.c.h.b16 %v496
      %v595 = vpack.c.b16 %v533, %v531
      %v596 = vpack.c.b16 %v534, %v532
      %v597 = vpack.c.b16 %v537, %v535
      %v598 = vpack.c.b16 %v538, %v536
      %v599 = vpack.c.b16 %v541, %v539
      %v600 = vpack.c.b16 %v542, %v540
      %v601 = vpack.c.b16 %v545, %v543
      %v602 = vpack.c.b16 %v546, %v544
      %v603 = vpack.c.b16 %v549, %v547
      %v604 = vpack.c.b16 %v550, %v548
      %v605 = vpack.c.b16 %v553, %v551
      %v606 = vpack.c.b16 %v554, %v552
      %v607 = vpack.c.b16 %v557, %v555
      %v608 = vpack.c.b16 %v558, %v556
      %v609 = vpack.c.b16 %v561, %v559
      %v610 = vpack.c.b16 %v562, %v560
      %v611 = vpack.c.b16 %v565, %v563
      %v612 = vpack.c.b16 %v566, %v564
      %v613 = vpack.c.b16 %v569, %v567
      %v614 = vpack.c.b16 %v570, %v568
      %v615 = vpack.c.b16 %v573, %v571
      %v616 = vpack.c.b16 %v574, %v572
      %v617 = vpack.c.b16 %v577, %v575
      %v618 = vpack.c.b16 %v578, %v576
      %v619 = vpack.c.b16 %v581, %v579
      %v620 = vpack.c.b16 %v582, %v580
      %v621 = vpack.c.b16 %v585, %v583
      %v622 = vpack.c.b16 %v586, %v584
      %v623 = vpack.c.b16 %v589, %v587
      %v624 = vpack.c.b16 %v590, %v588
      %v625 = vpack.c.b16 %v593, %v591
      %v626 = vpack.c.b16 %v594, %v592
      %659 = vmatprep.subr.bf16.mxu0 %v596
      %660 = vmatpush1.bf16.msra.mxu0 %v595
      %661 = vmatprep.subr.bf16.mxu0 %v598
      %662 = vmatpush1.bf16.msra.mxu0 %v597
      %663 = vmatprep.subr.bf16.mxu0 %v600
      %664 = vmatpush1.bf16.msra.mxu0 %v599
      %665 = vmatprep.subr.bf16.mxu0 %v602
      %666 = vmatpush1.bf16.msra.mxu0 %v601
      %667 = vmatprep.subr.bf16.mxu0 %v604
      %668 = vmatpush1.bf16.msra.mxu0 %v603
      %669 = vmatprep.subr.bf16.mxu0 %v606
      %670 = vmatpush1.bf16.msra.mxu0 %v605
      %671 = vmatprep.subr.bf16.mxu0 %v608
      %672 = vmatpush1.bf16.msra.mxu0 %v607
      %673 = vmatprep.subr.bf16.mxu0 %v610
      %674 = vmatpush1.bf16.msra.mxu0 %v609
      %675 = vmatprep.subr.bf16.mxu0 %v612
      %676 = vmatpush1.bf16.msra.mxu0 %v611
      %677 = vmatprep.subr.bf16.mxu0 %v614
      %678 = vmatpush1.bf16.msra.mxu0 %v613
      %679 = vmatprep.subr.bf16.mxu0 %v616
      %680 = vmatpush1.bf16.msra.mxu0 %v615
      %681 = vmatprep.subr.bf16.mxu0 %v618
      %682 = vmatpush1.bf16.msra.mxu0 %v617
      %683 = vmatprep.subr.bf16.mxu0 %v620
      %684 = vmatpush1.bf16.msra.mxu0 %v619
      %685 = vmatprep.subr.bf16.mxu0 %v622
      %686 = vmatpush1.bf16.msra.mxu0 %v621
      %687 = vmatprep.subr.bf16.mxu0 %v624
      %688 = vmatpush1.bf16.msra.mxu0 %v623
      %689 = vmatprep.subr.bf16.mxu0 %v626
      %690 = vmatpush1.bf16.msra.mxu0 %v625
      %691 = vmatprep.mubr.bf16.mxu0 %v340
      %692 = vmatmul.mubr.bf16.gmra.mrb[0].mxu0 %v339
      %v693 = vpop.f32.mrb[0].mxu0
      %v694 = vadd.f32 0.0, %v693
      %v695 = vpop.f32.mrb[0].mxu0
      %v696 = vadd.f32 0.0, %v695
      %v697 = vpop.f32.mrb[0].mxu0
      %v698 = vadd.f32 0.0, %v697
      %v699 = vpop.f32.mrb[0].mxu0
      %v700 = vadd.f32 0.0, %v699
      %701 = vdwg.mxu0
      %v734 = vunpack.c.l.b16 %v432
      %v735 = vunpack.c.h.b16 %v432
      %v736 = vunpack.c.l.b16 %v433
      %v737 = vunpack.c.h.b16 %v433
      %v738 = vunpack.c.l.b16 %v434
      %v739 = vunpack.c.h.b16 %v434
      %v740 = vunpack.c.l.b16 %v435
      %v741 = vunpack.c.h.b16 %v435
      %v742 = vunpack.c.l.b16 %v436
      %v743 = vunpack.c.h.b16 %v436
      %v744 = vunpack.c.l.b16 %v437
      %v745 = vunpack.c.h.b16 %v437
      %v746 = vunpack.c.l.b16 %v438
      %v747 = vunpack.c.h.b16 %v438
      %v748 = vunpack.c.l.b16 %v439
      %v749 = vunpack.c.h.b16 %v439
      %v750 = vunpack.c.l.b16 %v440
      %v751 = vunpack.c.h.b16 %v440
      %v752 = vunpack.c.l.b16 %v441
      %v753 = vunpack.c.h.b16 %v441
      %v754 = vunpack.c.l.b16 %v442
      %v755 = vunpack.c.h.b16 %v442
      %v756 = vunpack.c.l.b16 %v443
      %v757 = vunpack.c.h.b16 %v443
      %v758 = vunpack.c.l.b16 %v444
      %v759 = vunpack.c.h.b16 %v444
      %v760 = vunpack.c.l.b16 %v445
      %v761 = vunpack.c.h.b16 %v445
      %v762 = vunpack.c.l.b16 %v446
      %v763 = vunpack.c.h.b16 %v446
      %v764 = vunpack.c.l.b16 %v447
      %v765 = vunpack.c.h.b16 %v447
      %v766 = vunpack.c.l.b16 %v448
      %v767 = vunpack.c.h.b16 %v448
      %v768 = vunpack.c.l.b16 %v449
      %v769 = vunpack.c.h.b16 %v449
      %v770 = vunpack.c.l.b16 %v450
      %v771 = vunpack.c.h.b16 %v450
      %v772 = vunpack.c.l.b16 %v451
      %v773 = vunpack.c.h.b16 %v451
      %v774 = vunpack.c.l.b16 %v452
      %v775 = vunpack.c.h.b16 %v452
      %v776 = vunpack.c.l.b16 %v453
      %v777 = vunpack.c.h.b16 %v453
      %v778 = vunpack.c.l.b16 %v454
      %v779 = vunpack.c.h.b16 %v454
      %v780 = vunpack.c.l.b16 %v455
      %v781 = vunpack.c.h.b16 %v455
      %v782 = vunpack.c.l.b16 %v456
      %v783 = vunpack.c.h.b16 %v456
      %v784 = vunpack.c.l.b16 %v457
      %v785 = vunpack.c.h.b16 %v457
      %v786 = vunpack.c.l.b16 %v458
      %v787 = vunpack.c.h.b16 %v458
      %v788 = vunpack.c.l.b16 %v459
      %v789 = vunpack.c.h.b16 %v459
      %v790 = vunpack.c.l.b16 %v460
      %v791 = vunpack.c.h.b16 %v460
      %v792 = vunpack.c.l.b16 %v461
      %v793 = vunpack.c.h.b16 %v461
      %v794 = vunpack.c.l.b16 %v462
      %v795 = vunpack.c.h.b16 %v462
      %v796 = vunpack.c.l.b16 %v463
      %v797 = vunpack.c.h.b16 %v463
      %v798 = vpack.c.b16 %v736, %v734
      %v799 = vpack.c.b16 %v737, %v735
      %v800 = vpack.c.b16 %v740, %v738
      %v801 = vpack.c.b16 %v741, %v739
      %v802 = vpack.c.b16 %v744, %v742
      %v803 = vpack.c.b16 %v745, %v743
      %v804 = vpack.c.b16 %v748, %v746
      %v805 = vpack.c.b16 %v749, %v747
      %v806 = vpack.c.b16 %v752, %v750
      %v807 = vpack.c.b16 %v753, %v751
      %v808 = vpack.c.b16 %v756, %v754
      %v809 = vpack.c.b16 %v757, %v755
      %v810 = vpack.c.b16 %v760, %v758
      %v811 = vpack.c.b16 %v761, %v759
      %v812 = vpack.c.b16 %v764, %v762
      %v813 = vpack.c.b16 %v765, %v763
      %v814 = vpack.c.b16 %v768, %v766
      %v815 = vpack.c.b16 %v769, %v767
      %v816 = vpack.c.b16 %v772, %v770
      %v817 = vpack.c.b16 %v773, %v771
      %v818 = vpack.c.b16 %v776, %v774
      %v819 = vpack.c.b16 %v777, %v775
      %v820 = vpack.c.b16 %v780, %v778
      %v821 = vpack.c.b16 %v781, %v779
      %v822 = vpack.c.b16 %v784, %v782
      %v823 = vpack.c.b16 %v785, %v783
      %v824 = vpack.c.b16 %v788, %v786
      %v825 = vpack.c.b16 %v789, %v787
      %v826 = vpack.c.b16 %v792, %v790
      %v827 = vpack.c.b16 %v793, %v791
      %v828 = vpack.c.b16 %v796, %v794
      %v829 = vpack.c.b16 %v797, %v795
      %862 = vmatprep.subr.bf16.mxu0 %v799
      %863 = vmatpush1.bf16.msra.mxu0 %v798
      %864 = vmatprep.subr.bf16.mxu0 %v801
      %865 = vmatpush1.bf16.msra.mxu0 %v800
      %866 = vmatprep.subr.bf16.mxu0 %v803
      %867 = vmatpush1.bf16.msra.mxu0 %v802
      %868 = vmatprep.subr.bf16.mxu0 %v805
      %869 = vmatpush1.bf16.msra.mxu0 %v804
      %870 = vmatprep.subr.bf16.mxu0 %v807
      %871 = vmatpush1.bf16.msra.mxu0 %v806
      %872 = vmatprep.subr.bf16.mxu0 %v809
      %873 = vmatpush1.bf16.msra.mxu0 %v808
      %874 = vmatprep.subr.bf16.mxu0 %v811
      %875 = vmatpush1.bf16.msra.mxu0 %v810
      %876 = vmatprep.subr.bf16.mxu0 %v813
      %877 = vmatpush1.bf16.msra.mxu0 %v812
      %878 = vmatprep.subr.bf16.mxu0 %v815
      %879 = vmatpush1.bf16.msra.mxu0 %v814
      %880 = vmatprep.subr.bf16.mxu0 %v817
      %881 = vmatpush1.bf16.msra.mxu0 %v816
      %882 = vmatprep.subr.bf16.mxu0 %v819
      %883 = vmatpush1.bf16.msra.mxu0 %v818
      %884 = vmatprep.subr.bf16.mxu0 %v821
      %885 = vmatpush1.bf16.msra.mxu0 %v820
      %886 = vmatprep.subr.bf16.mxu0 %v823
      %887 = vmatpush1.bf16.msra.mxu0 %v822
      %888 = vmatprep.subr.bf16.mxu0 %v825
      %889 = vmatpush1.bf16.msra.mxu0 %v824
      %890 = vmatprep.subr.bf16.mxu0 %v827
      %891 = vmatpush1.bf16.msra.mxu0 %v826
      %892 = vmatprep.subr.bf16.mxu0 %v829
      %893 = vmatpush1.bf16.msra.mxu0 %v828
      %894 = vmatprep.mubr.bf16.mxu0 %v415
      %895 = vmatmul.mubr.bf16.gmra.mrb[0].mxu0 %v414
      %v896 = vpop.f32.mrb[0].mxu0
      %v897 = vadd.f32 %v694, %v896
      %v898 = vpop.f32.mrb[0].mxu0
      %v899 = vadd.f32 %v696, %v898
      %v900 = vpop.f32.mrb[0].mxu0
      %v901 = vadd.f32 %v698, %v900
      %v902 = vpop.f32.mrb[0].mxu0
      %v903 = vadd.f32 %v700, %v902
      %904 = vdwg.mxu0
      %s905 = scalar_lea.vmem %s298, 512
      %v906 = vld [vmem:[%s905] sm:$0xff]
      %v907 = vld [vmem:[%s905 + $0x8] sm:$0xff]
      %v908 = vld [vmem:[%s905 + $0x10] sm:$0xff]
      %v909 = vld [vmem:[%s905 + $0x18] sm:$0xff]
      %v910 = vld [vmem:[%s905 + $0x20] sm:$0xff]
      %v911 = vld [vmem:[%s905 + $0x28] sm:$0xff]
      %v912 = vld [vmem:[%s905 + $0x30] sm:$0xff]
      %v913 = vld [vmem:[%s905 + $0x38] sm:$0xff]
      %v914 = vld [vmem:[%s905 + $0x40] sm:$0xff]
      %v915 = vld [vmem:[%s905 + $0x48] sm:$0xff]
      %v916 = vld [vmem:[%s905 + $0x50] sm:$0xff]
      %v917 = vld [vmem:[%s905 + $0x58] sm:$0xff]
      %v918 = vld [vmem:[%s905 + $0x60] sm:$0xff]
      %v919 = vld [vmem:[%s905 + $0x68] sm:$0xff]
      %v920 = vld [vmem:[%s905 + $0x70] sm:$0xff]
      %v921 = vld [vmem:[%s905 + $0x78] sm:$0xff]
      %v922 = vld [vmem:[%s905 + $0x80] sm:$0xff]
      %v923 = vld [vmem:[%s905 + $0x88] sm:$0xff]
      %v924 = vld [vmem:[%s905 + $0x90] sm:$0xff]
      %v925 = vld [vmem:[%s905 + $0x98] sm:$0xff]
      %v926 = vld [vmem:[%s905 + $0xa0] sm:$0xff]
      %v927 = vld [vmem:[%s905 + $0xa8] sm:$0xff]
      %v928 = vld [vmem:[%s905 + $0xb0] sm:$0xff]
      %v929 = vld [vmem:[%s905 + $0xb8] sm:$0xff]
      %v930 = vld [vmem:[%s905 + $0xc0] sm:$0xff]
      %v931 = vld [vmem:[%s905 + $0xc8] sm:$0xff]
      %v932 = vld [vmem:[%s905 + $0xd0] sm:$0xff]
      %v933 = vld [vmem:[%s905 + $0xd8] sm:$0xff]
      %v934 = vld [vmem:[%s905 + $0xe0] sm:$0xff]
      %v935 = vld [vmem:[%s905 + $0xe8] sm:$0xff]
      %v936 = vld [vmem:[%s905 + $0xf0] sm:$0xff]
      %v937 = vld [vmem:[%s905 + $0xf8] sm:$0xff]
      %v970 = vunpack.c.l.b16 %v906
      %v971 = vunpack.c.h.b16 %v906
      %v972 = vunpack.c.l.b16 %v907
      %v973 = vunpack.c.h.b16 %v907
      %v974 = vunpack.c.l.b16 %v908
      %v975 = vunpack.c.h.b16 %v908
      %v976 = vunpack.c.l.b16 %v909
      %v977 = vunpack.c.h.b16 %v909
      %v978 = vunpack.c.l.b16 %v910
      %v979 = vunpack.c.h.b16 %v910
      %v980 = vunpack.c.l.b16 %v911
      %v981 = vunpack.c.h.b16 %v911
      %v982 = vunpack.c.l.b16 %v912
      %v983 = vunpack.c.h.b16 %v912
      %v984 = vunpack.c.l.b16 %v913
      %v985 = vunpack.c.h.b16 %v913
      %v986 = vunpack.c.l.b16 %v914
      %v987 = vunpack.c.h.b16 %v914
      %v988 = vunpack.c.l.b16 %v915
      %v989 = vunpack.c.h.b16 %v915
      %v990 = vunpack.c.l.b16 %v916
      %v991 = vunpack.c.h.b16 %v916
      %v992 = vunpack.c.l.b16 %v917
      %v993 = vunpack.c.h.b16 %v917
      %v994 = vunpack.c.l.b16 %v918
      %v995 = vunpack.c.h.b16 %v918
      %v996 = vunpack.c.l.b16 %v919
      %v997 = vunpack.c.h.b16 %v919
      %v998 = vunpack.c.l.b16 %v920
      %v999 = vunpack.c.h.b16 %v920
      %v1000 = vunpack.c.l.b16 %v921
      %v1001 = vunpack.c.h.b16 %v921
      %v1002 = vunpack.c.l.b16 %v922
      %v1003 = vunpack.c.h.b16 %v922
      %v1004 = vunpack.c.l.b16 %v923
      %v1005 = vunpack.c.h.b16 %v923
      %v1006 = vunpack.c.l.b16 %v924
      %v1007 = vunpack.c.h.b16 %v924
      %v1008 = vunpack.c.l.b16 %v925
      %v1009 = vunpack.c.h.b16 %v925
      %v1010 = vunpack.c.l.b16 %v926
      %v1011 = vunpack.c.h.b16 %v926
      %v1012 = vunpack.c.l.b16 %v927
      %v1013 = vunpack.c.h.b16 %v927
      %v1014 = vunpack.c.l.b16 %v928
      %v1015 = vunpack.c.h.b16 %v928
      %v1016 = vunpack.c.l.b16 %v929
      %v1017 = vunpack.c.h.b16 %v929
      %v1018 = vunpack.c.l.b16 %v930
      %v1019 = vunpack.c.h.b16 %v930
      %v1020 = vunpack.c.l.b16 %v931
      %v1021 = vunpack.c.h.b16 %v931
      %v1022 = vunpack.c.l.b16 %v932
      %v1023 = vunpack.c.h.b16 %v932
      %v1024 = vunpack.c.l.b16 %v933
      %v1025 = vunpack.c.h.b16 %v933
      %v1026 = vunpack.c.l.b16 %v934
      %v1027 = vunpack.c.h.b16 %v934
      %v1028 = vunpack.c.l.b16 %v935
      %v1029 = vunpack.c.h.b16 %v935
      %v1030 = vunpack.c.l.b16 %v936
      %v1031 = vunpack.c.h.b16 %v936
      %v1032 = vunpack.c.l.b16 %v937
      %v1033 = vunpack.c.h.b16 %v937
      %v1034 = vpack.c.b16 %v972, %v970
      %v1035 = vpack.c.b16 %v973, %v971
      %v1036 = vpack.c.b16 %v976, %v974
      %v1037 = vpack.c.b16 %v977, %v975
      %v1038 = vpack.c.b16 %v980, %v978
      %v1039 = vpack.c.b16 %v981, %v979
      %v1040 = vpack.c.b16 %v984, %v982
      %v1041 = vpack.c.b16 %v985, %v983
      %v1042 = vpack.c.b16 %v988, %v986
      %v1043 = vpack.c.b16 %v989, %v987
      %v1044 = vpack.c.b16 %v992, %v990
      %v1045 = vpack.c.b16 %v993, %v991
      %v1046 = vpack.c.b16 %v996, %v994
      %v1047 = vpack.c.b16 %v997, %v995
      %v1048 = vpack.c.b16 %v1000, %v998
      %v1049 = vpack.c.b16 %v1001, %v999
      %v1050 = vpack.c.b16 %v1004, %v1002
      %v1051 = vpack.c.b16 %v1005, %v1003
      %v1052 = vpack.c.b16 %v1008, %v1006
      %v1053 = vpack.c.b16 %v1009, %v1007
      %v1054 = vpack.c.b16 %v1012, %v1010
      %v1055 = vpack.c.b16 %v1013, %v1011
      %v1056 = vpack.c.b16 %v1016, %v1014
      %v1057 = vpack.c.b16 %v1017, %v1015
      %v1058 = vpack.c.b16 %v1020, %v1018
      %v1059 = vpack.c.b16 %v1021, %v1019
      %v1060 = vpack.c.b16 %v1024, %v1022
      %v1061 = vpack.c.b16 %v1025, %v1023
      %v1062 = vpack.c.b16 %v1028, %v1026
      %v1063 = vpack.c.b16 %v1029, %v1027
      %v1064 = vpack.c.b16 %v1032, %v1030
      %v1065 = vpack.c.b16 %v1033, %v1031
      %1098 = vmatprep.subr.bf16.mxu0 %v1035
      %1099 = vmatpush1.bf16.msra.mxu0 %v1034
      %1100 = vmatprep.subr.bf16.mxu0 %v1037
      %1101 = vmatpush1.bf16.msra.mxu0 %v1036
      %1102 = vmatprep.subr.bf16.mxu0 %v1039
      %1103 = vmatpush1.bf16.msra.mxu0 %v1038
      %1104 = vmatprep.subr.bf16.mxu0 %v1041
      %1105 = vmatpush1.bf16.msra.mxu0 %v1040
      %1106 = vmatprep.subr.bf16.mxu0 %v1043
      %1107 = vmatpush1.bf16.msra.mxu0 %v1042
      %1108 = vmatprep.subr.bf16.mxu0 %v1045
      %1109 = vmatpush1.bf16.msra.mxu0 %v1044
      %1110 = vmatprep.subr.bf16.mxu0 %v1047
      %1111 = vmatpush1.bf16.msra.mxu0 %v1046
      %1112 = vmatprep.subr.bf16.mxu0 %v1049
      %1113 = vmatpush1.bf16.msra.mxu0 %v1048
      %1114 = vmatprep.subr.bf16.mxu0 %v1051
      %1115 = vmatpush1.bf16.msra.mxu0 %v1050
      %1116 = vmatprep.subr.bf16.mxu0 %v1053
      %1117 = vmatpush1.bf16.msra.mxu0 %v1052
      %1118 = vmatprep.subr.bf16.mxu0 %v1055
      %1119 = vmatpush1.bf16.msra.mxu0 %v1054
      %1120 = vmatprep.subr.bf16.mxu0 %v1057
      %1121 = vmatpush1.bf16.msra.mxu0 %v1056
      %1122 = vmatprep.subr.bf16.mxu0 %v1059
      %1123 = vmatpush1.bf16.msra.mxu0 %v1058
      %1124 = vmatprep.subr.bf16.mxu0 %v1061
      %1125 = vmatpush1.bf16.msra.mxu0 %v1060
      %1126 = vmatprep.subr.bf16.mxu0 %v1063
      %1127 = vmatpush1.bf16.msra.mxu0 %v1062
      %1128 = vmatprep.subr.bf16.mxu0 %v1065
      %1129 = vmatpush1.bf16.msra.mxu0 %v1064
      %1130 = vmatprep.mubr.bf16.mxu0 %v431
      %1131 = vmatmul.mubr.bf16.gmra.mrb[0].mxu0 %v430
      %v1132 = vpop.f32.mrb[0].mxu0
      %v1133 = vadd.f32 0.0, %v1132
      %v1134 = vpop.f32.mrb[0].mxu0
      %v1135 = vadd.f32 0.0, %v1134
      %v1136 = vpop.f32.mrb[0].mxu0
      %v1137 = vadd.f32 0.0, %v1136
      %v1138 = vpop.f32.mrb[0].mxu0
      %v1139 = vadd.f32 0.0, %v1138
      %1140 = vdwg.mxu0
      %v1141 = vadd.f32 %v897, %v1133
      %v1142 = vadd.f32 %v899, %v1135
      %v1143 = vadd.f32 %v901, %v1137
      %v1144 = vadd.f32 %v903, %v1139
      %v1146 = vlaneseq
      %v1147 = vshrl.u32 %v1146, 7
      %v1148 = vsub.s32 0, %v1147
      %v1149 = vrot.slane %v332, %v1148
      %v1150 = vlaneseq
      %v1151 = vshrl.u32 %v1150, 7
      %v1152 = vsub.s32 1, %v1151
      %v1153 = vrot.slane %v332, %v1152
      %v1156 = vadd.f32 %v1141, %v1149
      %v1157 = vadd.f32 %v1142, %v1153
      %v1158 = vadd.f32 %v1143, %v1149
      %v1159 = vadd.f32 %v1144, %v1153
      %v1160 = vmax.f32 %v1156, 0.0
      %v1161 = vmax.f32 %v1157, 0.0
      %v1162 = vmax.f32 %v1158, 0.0
      %v1163 = vmax.f32 %v1159, 0.0
      %v1164 = vpack.c.bf16 %v1162, %v1160
      %v1165 = vpack.c.bf16 %v1163, %v1161
      %v1166 = vld [vmem:[%s311] sm:$0x3]
      %v1168 = vshrl.u32 %v1164, 16
      %v1170 = vrot.slane %v1168, 7
      %v1171 = vshll.u32 %v1164, 16
      %v1173 = vor.u32 %v1170, %v1171
      %v1175 = vshrl.u32 %v1165, 16
      %v1177 = vrot.slane %v1175, 7
      %v1178 = vshll.u32 %v1165, 16
      %v1180 = vor.u32 %v1177, %v1178
      %v1183 = vsel %vm359, 0, %v1173
      %v1184 = vsel %vm359, 0, %v1180
      %v1185 = vrot.slane %v1171, 1
      %v1186 = vor.u32 %v1168, %v1185
      %v1187 = vrot.slane %v1178, 1
      %v1188 = vor.u32 %v1175, %v1187
      %v1191 = vsel %vm370, %v1186, 0
      %v1192 = vsel %vm370, %v1188, 0
      %v1193 = vsel %vm413, 0, %v1183
      %v1194 = vsel %vm413, 0, %v1184
      %v1195 = vsel %vm429, 0, %v1191
      %v1196 = vsel %vm429, 0, %v1192
      %v1197 = vld [vmem:[%s307] sm:$0xff]
      %v1198 = vld [vmem:[%s307 + $0x8] sm:$0xff]
      %v1199 = vld [vmem:[%s307 + $0x10] sm:$0xff]
      %v1200 = vld [vmem:[%s307 + $0x18] sm:$0xff]
      %v1201 = vld [vmem:[%s307 + $0x20] sm:$0xff]
      %v1202 = vld [vmem:[%s307 + $0x28] sm:$0xff]
      %v1203 = vld [vmem:[%s307 + $0x30] sm:$0xff]
      %v1204 = vld [vmem:[%s307 + $0x38] sm:$0xff]
      %v1205 = vld [vmem:[%s307 + $0x40] sm:$0xff]
      %v1206 = vld [vmem:[%s307 + $0x48] sm:$0xff]
      %v1207 = vld [vmem:[%s307 + $0x50] sm:$0xff]
      %v1208 = vld [vmem:[%s307 + $0x58] sm:$0xff]
      %v1209 = vld [vmem:[%s307 + $0x60] sm:$0xff]
      %v1210 = vld [vmem:[%s307 + $0x68] sm:$0xff]
      %v1211 = vld [vmem:[%s307 + $0x70] sm:$0xff]
      %v1212 = vld [vmem:[%s307 + $0x78] sm:$0xff]
      %v1213 = vld [vmem:[%s307 + $0x80] sm:$0xff]
      %v1214 = vld [vmem:[%s307 + $0x88] sm:$0xff]
      %v1215 = vld [vmem:[%s307 + $0x90] sm:$0xff]
      %v1216 = vld [vmem:[%s307 + $0x98] sm:$0xff]
      %v1217 = vld [vmem:[%s307 + $0xa0] sm:$0xff]
      %v1218 = vld [vmem:[%s307 + $0xa8] sm:$0xff]
      %v1219 = vld [vmem:[%s307 + $0xb0] sm:$0xff]
      %v1220 = vld [vmem:[%s307 + $0xb8] sm:$0xff]
      %v1221 = vld [vmem:[%s307 + $0xc0] sm:$0xff]
      %v1222 = vld [vmem:[%s307 + $0xc8] sm:$0xff]
      %v1223 = vld [vmem:[%s307 + $0xd0] sm:$0xff]
      %v1224 = vld [vmem:[%s307 + $0xd8] sm:$0xff]
      %v1225 = vld [vmem:[%s307 + $0xe0] sm:$0xff]
      %v1226 = vld [vmem:[%s307 + $0xe8] sm:$0xff]
      %v1227 = vld [vmem:[%s307 + $0xf0] sm:$0xff]
      %v1228 = vld [vmem:[%s307 + $0xf8] sm:$0xff]
      %s1229 = scalar_lea.vmem %s307, 256
      %v1230 = vld [vmem:[%s1229] sm:$0xff]
      %v1231 = vld [vmem:[%s1229 + $0x8] sm:$0xff]
      %v1232 = vld [vmem:[%s1229 + $0x10] sm:$0xff]
      %v1233 = vld [vmem:[%s1229 + $0x18] sm:$0xff]
      %v1234 = vld [vmem:[%s1229 + $0x20] sm:$0xff]
      %v1235 = vld [vmem:[%s1229 + $0x28] sm:$0xff]
      %v1236 = vld [vmem:[%s1229 + $0x30] sm:$0xff]
      %v1237 = vld [vmem:[%s1229 + $0x38] sm:$0xff]
      %v1238 = vld [vmem:[%s1229 + $0x40] sm:$0xff]
      %v1239 = vld [vmem:[%s1229 + $0x48] sm:$0xff]
      %v1240 = vld [vmem:[%s1229 + $0x50] sm:$0xff]
      %v1241 = vld [vmem:[%s1229 + $0x58] sm:$0xff]
      %v1242 = vld [vmem:[%s1229 + $0x60] sm:$0xff]
      %v1243 = vld [vmem:[%s1229 + $0x68] sm:$0xff]
      %v1244 = vld [vmem:[%s1229 + $0x70] sm:$0xff]
      %v1245 = vld [vmem:[%s1229 + $0x78] sm:$0xff]
      %v1246 = vld [vmem:[%s1229 + $0x80] sm:$0xff]
      %v1247 = vld [vmem:[%s1229 + $0x88] sm:$0xff]
      %v1248 = vld [vmem:[%s1229 + $0x90] sm:$0xff]
      %v1249 = vld [vmem:[%s1229 + $0x98] sm:$0xff]
      %v1250 = vld [vmem:[%s1229 + $0xa0] sm:$0xff]
      %v1251 = vld [vmem:[%s1229 + $0xa8] sm:$0xff]
      %v1252 = vld [vmem:[%s1229 + $0xb0] sm:$0xff]
      %v1253 = vld [vmem:[%s1229 + $0xb8] sm:$0xff]
      %v1254 = vld [vmem:[%s1229 + $0xc0] sm:$0xff]
      %v1255 = vld [vmem:[%s1229 + $0xc8] sm:$0xff]
      %v1256 = vld [vmem:[%s1229 + $0xd0] sm:$0xff]
      %v1257 = vld [vmem:[%s1229 + $0xd8] sm:$0xff]
      %v1258 = vld [vmem:[%s1229 + $0xe0] sm:$0xff]
      %v1259 = vld [vmem:[%s1229 + $0xe8] sm:$0xff]
      %v1260 = vld [vmem:[%s1229 + $0xf0] sm:$0xff]
      %v1261 = vld [vmem:[%s1229 + $0xf8] sm:$0xff]
      %v1294 = vunpack.c.l.b16 %v1230
      %v1295 = vunpack.c.h.b16 %v1230
      %v1296 = vunpack.c.l.b16 %v1231
      %v1297 = vunpack.c.h.b16 %v1231
      %v1298 = vunpack.c.l.b16 %v1232
      %v1299 = vunpack.c.h.b16 %v1232
      %v1300 = vunpack.c.l.b16 %v1233
      %v1301 = vunpack.c.h.b16 %v1233
      %v1302 = vunpack.c.l.b16 %v1234
      %v1303 = vunpack.c.h.b16 %v1234
      %v1304 = vunpack.c.l.b16 %v1235
      %v1305 = vunpack.c.h.b16 %v1235
      %v1306 = vunpack.c.l.b16 %v1236
      %v1307 = vunpack.c.h.b16 %v1236
      %v1308 = vunpack.c.l.b16 %v1237
      %v1309 = vunpack.c.h.b16 %v1237
      %v1310 = vunpack.c.l.b16 %v1238
      %v1311 = vunpack.c.h.b16 %v1238
      %v1312 = vunpack.c.l.b16 %v1239
      %v1313 = vunpack.c.h.b16 %v1239
      %v1314 = vunpack.c.l.b16 %v1240
      %v1315 = vunpack.c.h.b16 %v1240
      %v1316 = vunpack.c.l.b16 %v1241
      %v1317 = vunpack.c.h.b16 %v1241
      %v1318 = vunpack.c.l.b16 %v1242
      %v1319 = vunpack.c.h.b16 %v1242
      %v1320 = vunpack.c.l.b16 %v1243
      %v1321 = vunpack.c.h.b16 %v1243
      %v1322 = vunpack.c.l.b16 %v1244
      %v1323 = vunpack.c.h.b16 %v1244
      %v1324 = vunpack.c.l.b16 %v1245
      %v1325 = vunpack.c.h.b16 %v1245
      %v1326 = vunpack.c.l.b16 %v1246
      %v1327 = vunpack.c.h.b16 %v1246
      %v1328 = vunpack.c.l.b16 %v1247
      %v1329 = vunpack.c.h.b16 %v1247
      %v1330 = vunpack.c.l.b16 %v1248
      %v1331 = vunpack.c.h.b16 %v1248
      %v1332 = vunpack.c.l.b16 %v1249
      %v1333 = vunpack.c.h.b16 %v1249
      %v1334 = vunpack.c.l.b16 %v1250
      %v1335 = vunpack.c.h.b16 %v1250
      %v1336 = vunpack.c.l.b16 %v1251
      %v1337 = vunpack.c.h.b16 %v1251
      %v1338 = vunpack.c.l.b16 %v1252
      %v1339 = vunpack.c.h.b16 %v1252
      %v1340 = vunpack.c.l.b16 %v1253
      %v1341 = vunpack.c.h.b16 %v1253
      %v1342 = vunpack.c.l.b16 %v1254
      %v1343 = vunpack.c.h.b16 %v1254
      %v1344 = vunpack.c.l.b16 %v1255
      %v1345 = vunpack.c.h.b16 %v1255
      %v1346 = vunpack.c.l.b16 %v1256
      %v1347 = vunpack.c.h.b16 %v1256
      %v1348 = vunpack.c.l.b16 %v1257
      %v1349 = vunpack.c.h.b16 %v1257
      %v1350 = vunpack.c.l.b16 %v1258
      %v1351 = vunpack.c.h.b16 %v1258
      %v1352 = vunpack.c.l.b16 %v1259
      %v1353 = vunpack.c.h.b16 %v1259
      %v1354 = vunpack.c.l.b16 %v1260
      %v1355 = vunpack.c.h.b16 %v1260
      %v1356 = vunpack.c.l.b16 %v1261
      %v1357 = vunpack.c.h.b16 %v1261
      %v1358 = vpack.c.b16 %v1296, %v1294
      %v1359 = vpack.c.b16 %v1297, %v1295
      %v1360 = vpack.c.b16 %v1300, %v1298
      %v1361 = vpack.c.b16 %v1301, %v1299
      %v1362 = vpack.c.b16 %v1304, %v1302
      %v1363 = vpack.c.b16 %v1305, %v1303
      %v1364 = vpack.c.b16 %v1308, %v1306
      %v1365 = vpack.c.b16 %v1309, %v1307
      %v1366 = vpack.c.b16 %v1312, %v1310
      %v1367 = vpack.c.b16 %v1313, %v1311
      %v1368 = vpack.c.b16 %v1316, %v1314
      %v1369 = vpack.c.b16 %v1317, %v1315
      %v1370 = vpack.c.b16 %v1320, %v1318
      %v1371 = vpack.c.b16 %v1321, %v1319
      %v1372 = vpack.c.b16 %v1324, %v1322
      %v1373 = vpack.c.b16 %v1325, %v1323
      %v1374 = vpack.c.b16 %v1328, %v1326
      %v1375 = vpack.c.b16 %v1329, %v1327
      %v1376 = vpack.c.b16 %v1332, %v1330
      %v1377 = vpack.c.b16 %v1333, %v1331
      %v1378 = vpack.c.b16 %v1336, %v1334
      %v1379 = vpack.c.b16 %v1337, %v1335
      %v1380 = vpack.c.b16 %v1340, %v1338
      %v1381 = vpack.c.b16 %v1341, %v1339
      %v1382 = vpack.c.b16 %v1344, %v1342
      %v1383 = vpack.c.b16 %v1345, %v1343
      %v1384 = vpack.c.b16 %v1348, %v1346
      %v1385 = vpack.c.b16 %v1349, %v1347
      %v1386 = vpack.c.b16 %v1352, %v1350
      %v1387 = vpack.c.b16 %v1353, %v1351
      %v1388 = vpack.c.b16 %v1356, %v1354
      %v1389 = vpack.c.b16 %v1357, %v1355
      %1422 = vmatprep.subr.bf16.mxu0 %v1359
      %1423 = vmatpush1.bf16.msra.mxu0 %v1358
      %1424 = vmatprep.subr.bf16.mxu0 %v1361
      %1425 = vmatpush1.bf16.msra.mxu0 %v1360
      %1426 = vmatprep.subr.bf16.mxu0 %v1363
      %1427 = vmatpush1.bf16.msra.mxu0 %v1362
      %1428 = vmatprep.subr.bf16.mxu0 %v1365
      %1429 = vmatpush1.bf16.msra.mxu0 %v1364
      %1430 = vmatprep.subr.bf16.mxu0 %v1367
      %1431 = vmatpush1.bf16.msra.mxu0 %v1366
      %1432 = vmatprep.subr.bf16.mxu0 %v1369
      %1433 = vmatpush1.bf16.msra.mxu0 %v1368
      %1434 = vmatprep.subr.bf16.mxu0 %v1371
      %1435 = vmatpush1.bf16.msra.mxu0 %v1370
      %1436 = vmatprep.subr.bf16.mxu0 %v1373
      %1437 = vmatpush1.bf16.msra.mxu0 %v1372
      %1438 = vmatprep.subr.bf16.mxu0 %v1375
      %1439 = vmatpush1.bf16.msra.mxu0 %v1374
      %1440 = vmatprep.subr.bf16.mxu0 %v1377
      %1441 = vmatpush1.bf16.msra.mxu0 %v1376
      %1442 = vmatprep.subr.bf16.mxu0 %v1379
      %1443 = vmatpush1.bf16.msra.mxu0 %v1378
      %1444 = vmatprep.subr.bf16.mxu0 %v1381
      %1445 = vmatpush1.bf16.msra.mxu0 %v1380
      %1446 = vmatprep.subr.bf16.mxu0 %v1383
      %1447 = vmatpush1.bf16.msra.mxu0 %v1382
      %1448 = vmatprep.subr.bf16.mxu0 %v1385
      %1449 = vmatpush1.bf16.msra.mxu0 %v1384
      %1450 = vmatprep.subr.bf16.mxu0 %v1387
      %1451 = vmatpush1.bf16.msra.mxu0 %v1386
      %1452 = vmatprep.subr.bf16.mxu0 %v1389
      %1453 = vmatpush1.bf16.msra.mxu0 %v1388
      %1454 = vmatprep.mubr.bf16.mxu0 %v1165
      %1455 = vmatmul.mubr.bf16.gmra.mrb[0].mxu0 %v1164
      %v1456 = vpop.f32.mrb[0].mxu0
      %v1457 = vadd.f32 0.0, %v1456
      %v1458 = vpop.f32.mrb[0].mxu0
      %v1459 = vadd.f32 0.0, %v1458
      %v1460 = vpop.f32.mrb[0].mxu0
      %v1461 = vadd.f32 0.0, %v1460
      %v1462 = vpop.f32.mrb[0].mxu0
      %v1463 = vadd.f32 0.0, %v1462
      %1464 = vdwg.mxu0
      %v1497 = vunpack.c.l.b16 %v1197
      %v1498 = vunpack.c.h.b16 %v1197
      %v1499 = vunpack.c.l.b16 %v1198
      %v1500 = vunpack.c.h.b16 %v1198
      %v1501 = vunpack.c.l.b16 %v1199
      %v1502 = vunpack.c.h.b16 %v1199
      %v1503 = vunpack.c.l.b16 %v1200
      %v1504 = vunpack.c.h.b16 %v1200
      %v1505 = vunpack.c.l.b16 %v1201
      %v1506 = vunpack.c.h.b16 %v1201
      %v1507 = vunpack.c.l.b16 %v1202
      %v1508 = vunpack.c.h.b16 %v1202
      %v1509 = vunpack.c.l.b16 %v1203
      %v1510 = vunpack.c.h.b16 %v1203
      %v1511 = vunpack.c.l.b16 %v1204
      %v1512 = vunpack.c.h.b16 %v1204
      %v1513 = vunpack.c.l.b16 %v1205
      %v1514 = vunpack.c.h.b16 %v1205
      %v1515 = vunpack.c.l.b16 %v1206
      %v1516 = vunpack.c.h.b16 %v1206
      %v1517 = vunpack.c.l.b16 %v1207
      %v1518 = vunpack.c.h.b16 %v1207
      %v1519 = vunpack.c.l.b16 %v1208
      %v1520 = vunpack.c.h.b16 %v1208
      %v1521 = vunpack.c.l.b16 %v1209
      %v1522 = vunpack.c.h.b16 %v1209
      %v1523 = vunpack.c.l.b16 %v1210
      %v1524 = vunpack.c.h.b16 %v1210
      %v1525 = vunpack.c.l.b16 %v1211
      %v1526 = vunpack.c.h.b16 %v1211
      %v1527 = vunpack.c.l.b16 %v1212
      %v1528 = vunpack.c.h.b16 %v1212
      %v1529 = vunpack.c.l.b16 %v1213
      %v1530 = vunpack.c.h.b16 %v1213
      %v1531 = vunpack.c.l.b16 %v1214
      %v1532 = vunpack.c.h.b16 %v1214
      %v1533 = vunpack.c.l.b16 %v1215
      %v1534 = vunpack.c.h.b16 %v1215
      %v1535 = vunpack.c.l.b16 %v1216
      %v1536 = vunpack.c.h.b16 %v1216
      %v1537 = vunpack.c.l.b16 %v1217
      %v1538 = vunpack.c.h.b16 %v1217
      %v1539 = vunpack.c.l.b16 %v1218
      %v1540 = vunpack.c.h.b16 %v1218
      %v1541 = vunpack.c.l.b16 %v1219
      %v1542 = vunpack.c.h.b16 %v1219
      %v1543 = vunpack.c.l.b16 %v1220
      %v1544 = vunpack.c.h.b16 %v1220
      %v1545 = vunpack.c.l.b16 %v1221
      %v1546 = vunpack.c.h.b16 %v1221
      %v1547 = vunpack.c.l.b16 %v1222
      %v1548 = vunpack.c.h.b16 %v1222
      %v1549 = vunpack.c.l.b16 %v1223
      %v1550 = vunpack.c.h.b16 %v1223
      %v1551 = vunpack.c.l.b16 %v1224
      %v1552 = vunpack.c.h.b16 %v1224
      %v1553 = vunpack.c.l.b16 %v1225
      %v1554 = vunpack.c.h.b16 %v1225
      %v1555 = vunpack.c.l.b16 %v1226
      %v1556 = vunpack.c.h.b16 %v1226
      %v1557 = vunpack.c.l.b16 %v1227
      %v1558 = vunpack.c.h.b16 %v1227
      %v1559 = vunpack.c.l.b16 %v1228
      %v1560 = vunpack.c.h.b16 %v1228
      %v1561 = vpack.c.b16 %v1499, %v1497
      %v1562 = vpack.c.b16 %v1500, %v1498
      %v1563 = vpack.c.b16 %v1503, %v1501
      %v1564 = vpack.c.b16 %v1504, %v1502
      %v1565 = vpack.c.b16 %v1507, %v1505
      %v1566 = vpack.c.b16 %v1508, %v1506
      %v1567 = vpack.c.b16 %v1511, %v1509
      %v1568 = vpack.c.b16 %v1512, %v1510
      %v1569 = vpack.c.b16 %v1515, %v1513
      %v1570 = vpack.c.b16 %v1516, %v1514
      %v1571 = vpack.c.b16 %v1519, %v1517
      %v1572 = vpack.c.b16 %v1520, %v1518
      %v1573 = vpack.c.b16 %v1523, %v1521
      %v1574 = vpack.c.b16 %v1524, %v1522
      %v1575 = vpack.c.b16 %v1527, %v1525
      %v1576 = vpack.c.b16 %v1528, %v1526
      %v1577 = vpack.c.b16 %v1531, %v1529
      %v1578 = vpack.c.b16 %v1532, %v1530
      %v1579 = vpack.c.b16 %v1535, %v1533
      %v1580 = vpack.c.b16 %v1536, %v1534
      %v1581 = vpack.c.b16 %v1539, %v1537
      %v1582 = vpack.c.b16 %v1540, %v1538
      %v1583 = vpack.c.b16 %v1543, %v1541
      %v1584 = vpack.c.b16 %v1544, %v1542
      %v1585 = vpack.c.b16 %v1547, %v1545
      %v1586 = vpack.c.b16 %v1548, %v1546
      %v1587 = vpack.c.b16 %v1551, %v1549
      %v1588 = vpack.c.b16 %v1552, %v1550
      %v1589 = vpack.c.b16 %v1555, %v1553
      %v1590 = vpack.c.b16 %v1556, %v1554
      %v1591 = vpack.c.b16 %v1559, %v1557
      %v1592 = vpack.c.b16 %v1560, %v1558
      %1625 = vmatprep.subr.bf16.mxu0 %v1562
      %1626 = vmatpush1.bf16.msra.mxu0 %v1561
      %1627 = vmatprep.subr.bf16.mxu0 %v1564
      %1628 = vmatpush1.bf16.msra.mxu0 %v1563
      %1629 = vmatprep.subr.bf16.mxu0 %v1566
      %1630 = vmatpush1.bf16.msra.mxu0 %v1565
      %1631 = vmatprep.subr.bf16.mxu0 %v1568
      %1632 = vmatpush1.bf16.msra.mxu0 %v1567
      %1633 = vmatprep.subr.bf16.mxu0 %v1570
      %1634 = vmatpush1.bf16.msra.mxu0 %v1569
      %1635 = vmatprep.subr.bf16.mxu0 %v1572
      %1636 = vmatpush1.bf16.msra.mxu0 %v1571
      %1637 = vmatprep.subr.bf16.mxu0 %v1574
      %1638 = vmatpush1.bf16.msra.mxu0 %v1573
      %1639 = vmatprep.subr.bf16.mxu0 %v1576
      %1640 = vmatpush1.bf16.msra.mxu0 %v1575
      %1641 = vmatprep.subr.bf16.mxu0 %v1578
      %1642 = vmatpush1.bf16.msra.mxu0 %v1577
      %1643 = vmatprep.subr.bf16.mxu0 %v1580
      %1644 = vmatpush1.bf16.msra.mxu0 %v1579
      %1645 = vmatprep.subr.bf16.mxu0 %v1582
      %1646 = vmatpush1.bf16.msra.mxu0 %v1581
      %1647 = vmatprep.subr.bf16.mxu0 %v1584
      %1648 = vmatpush1.bf16.msra.mxu0 %v1583
      %1649 = vmatprep.subr.bf16.mxu0 %v1586
      %1650 = vmatpush1.bf16.msra.mxu0 %v1585
      %1651 = vmatprep.subr.bf16.mxu0 %v1588
      %1652 = vmatpush1.bf16.msra.mxu0 %v1587
      %1653 = vmatprep.subr.bf16.mxu0 %v1590
      %1654 = vmatpush1.bf16.msra.mxu0 %v1589
      %1655 = vmatprep.subr.bf16.mxu0 %v1592
      %1656 = vmatpush1.bf16.msra.mxu0 %v1591
      %1657 = vmatprep.mubr.bf16.mxu0 %v1194
      %1658 = vmatmul.mubr.bf16.gmra.mrb[0].mxu0 %v1193
      %v1659 = vpop.f32.mrb[0].mxu0
      %v1660 = vadd.f32 %v1457, %v1659
      %v1661 = vpop.f32.mrb[0].mxu0
      %v1662 = vadd.f32 %v1459, %v1661
      %v1663 = vpop.f32.mrb[0].mxu0
      %v1664 = vadd.f32 %v1461, %v1663
      %v1665 = vpop.f32.mrb[0].mxu0
      %v1666 = vadd.f32 %v1463, %v1665
      %1667 = vdwg.mxu0
      %s1668 = scalar_lea.vmem %s307, 512
      %v1669 = vld [vmem:[%s1668] sm:$0xff]
      %v1670 = vld [vmem:[%s1668 + $0x8] sm:$0xff]
      %v1671 = vld [vmem:[%s1668 + $0x10] sm:$0xff]
      %v1672 = vld [vmem:[%s1668 + $0x18] sm:$0xff]
      %v1673 = vld [vmem:[%s1668 + $0x20] sm:$0xff]
      %v1674 = vld [vmem:[%s1668 + $0x28] sm:$0xff]
      %v1675 = vld [vmem:[%s1668 + $0x30] sm:$0xff]
      %v1676 = vld [vmem:[%s1668 + $0x38] sm:$0xff]
      %v1677 = vld [vmem:[%s1668 + $0x40] sm:$0xff]
      %v1678 = vld [vmem:[%s1668 + $0x48] sm:$0xff]
      %v1679 = vld [vmem:[%s1668 + $0x50] sm:$0xff]
      %v1680 = vld [vmem:[%s1668 + $0x58] sm:$0xff]
      %v1681 = vld [vmem:[%s1668 + $0x60] sm:$0xff]
      %v1682 = vld [vmem:[%s1668 + $0x68] sm:$0xff]
      %v1683 = vld [vmem:[%s1668 + $0x70] sm:$0xff]
      %v1684 = vld [vmem:[%s1668 + $0x78] sm:$0xff]
      %v1685 = vld [vmem:[%s1668 + $0x80] sm:$0xff]
      %v1686 = vld [vmem:[%s1668 + $0x88] sm:$0xff]
      %v1687 = vld [vmem:[%s1668 + $0x90] sm:$0xff]
      %v1688 = vld [vmem:[%s1668 + $0x98] sm:$0xff]
      %v1689 = vld [vmem:[%s1668 + $0xa0] sm:$0xff]
      %v1690 = vld [vmem:[%s1668 + $0xa8] sm:$0xff]
      %v1691 = vld [vmem:[%s1668 + $0xb0] sm:$0xff]
      %v1692 = vld [vmem:[%s1668 + $0xb8] sm:$0xff]
      %v1693 = vld [vmem:[%s1668 + $0xc0] sm:$0xff]
      %v1694 = vld [vmem:[%s1668 + $0xc8] sm:$0xff]
      %v1695 = vld [vmem:[%s1668 + $0xd0] sm:$0xff]
      %v1696 = vld [vmem:[%s1668 + $0xd8] sm:$0xff]
      %v1697 = vld [vmem:[%s1668 + $0xe0] sm:$0xff]
      %v1698 = vld [vmem:[%s1668 + $0xe8] sm:$0xff]
      %v1699 = vld [vmem:[%s1668 + $0xf0] sm:$0xff]
      %v1700 = vld [vmem:[%s1668 + $0xf8] sm:$0xff]
      %v1733 = vunpack.c.l.b16 %v1669
      %v1734 = vunpack.c.h.b16 %v1669
      %v1735 = vunpack.c.l.b16 %v1670
      %v1736 = vunpack.c.h.b16 %v1670
      %v1737 = vunpack.c.l.b16 %v1671
      %v1738 = vunpack.c.h.b16 %v1671
      %v1739 = vunpack.c.l.b16 %v1672
      %v1740 = vunpack.c.h.b16 %v1672
      %v1741 = vunpack.c.l.b16 %v1673
      %v1742 = vunpack.c.h.b16 %v1673
      %v1743 = vunpack.c.l.b16 %v1674
      %v1744 = vunpack.c.h.b16 %v1674
      %v1745 = vunpack.c.l.b16 %v1675
      %v1746 = vunpack.c.h.b16 %v1675
      %v1747 = vunpack.c.l.b16 %v1676
      %v1748 = vunpack.c.h.b16 %v1676
      %v1749 = vunpack.c.l.b16 %v1677
      %v1750 = vunpack.c.h.b16 %v1677
      %v1751 = vunpack.c.l.b16 %v1678
      %v1752 = vunpack.c.h.b16 %v1678
      %v1753 = vunpack.c.l.b16 %v1679
      %v1754 = vunpack.c.h.b16 %v1679
      %v1755 = vunpack.c.l.b16 %v1680
      %v1756 = vunpack.c.h.b16 %v1680
      %v1757 = vunpack.c.l.b16 %v1681
      %v1758 = vunpack.c.h.b16 %v1681
      %v1759 = vunpack.c.l.b16 %v1682
      %v1760 = vunpack.c.h.b16 %v1682
      %v1761 = vunpack.c.l.b16 %v1683
      %v1762 = vunpack.c.h.b16 %v1683
      %v1763 = vunpack.c.l.b16 %v1684
      %v1764 = vunpack.c.h.b16 %v1684
      %v1765 = vunpack.c.l.b16 %v1685
      %v1766 = vunpack.c.h.b16 %v1685
      %v1767 = vunpack.c.l.b16 %v1686
      %v1768 = vunpack.c.h.b16 %v1686
      %v1769 = vunpack.c.l.b16 %v1687
      %v1770 = vunpack.c.h.b16 %v1687
      %v1771 = vunpack.c.l.b16 %v1688
      %v1772 = vunpack.c.h.b16 %v1688
      %v1773 = vunpack.c.l.b16 %v1689
      %v1774 = vunpack.c.h.b16 %v1689
      %v1775 = vunpack.c.l.b16 %v1690
      %v1776 = vunpack.c.h.b16 %v1690
      %v1777 = vunpack.c.l.b16 %v1691
      %v1778 = vunpack.c.h.b16 %v1691
      %v1779 = vunpack.c.l.b16 %v1692
      %v1780 = vunpack.c.h.b16 %v1692
      %v1781 = vunpack.c.l.b16 %v1693
      %v1782 = vunpack.c.h.b16 %v1693
      %v1783 = vunpack.c.l.b16 %v1694
      %v1784 = vunpack.c.h.b16 %v1694
      %v1785 = vunpack.c.l.b16 %v1695
      %v1786 = vunpack.c.h.b16 %v1695
      %v1787 = vunpack.c.l.b16 %v1696
      %v1788 = vunpack.c.h.b16 %v1696
      %v1789 = vunpack.c.l.b16 %v1697
      %v1790 = vunpack.c.h.b16 %v1697
      %v1791 = vunpack.c.l.b16 %v1698
      %v1792 = vunpack.c.h.b16 %v1698
      %v1793 = vunpack.c.l.b16 %v1699
      %v1794 = vunpack.c.h.b16 %v1699
      %v1795 = vunpack.c.l.b16 %v1700
      %v1796 = vunpack.c.h.b16 %v1700
      %v1797 = vpack.c.b16 %v1735, %v1733
      %v1798 = vpack.c.b16 %v1736, %v1734
      %v1799 = vpack.c.b16 %v1739, %v1737
      %v1800 = vpack.c.b16 %v1740, %v1738
      %v1801 = vpack.c.b16 %v1743, %v1741
      %v1802 = vpack.c.b16 %v1744, %v1742
      %v1803 = vpack.c.b16 %v1747, %v1745
      %v1804 = vpack.c.b16 %v1748, %v1746
      %v1805 = vpack.c.b16 %v1751, %v1749
      %v1806 = vpack.c.b16 %v1752, %v1750
      %v1807 = vpack.c.b16 %v1755, %v1753
      %v1808 = vpack.c.b16 %v1756, %v1754
      %v1809 = vpack.c.b16 %v1759, %v1757
      %v1810 = vpack.c.b16 %v1760, %v1758
      %v1811 = vpack.c.b16 %v1763, %v1761
      %v1812 = vpack.c.b16 %v1764, %v1762
      %v1813 = vpack.c.b16 %v1767, %v1765
      %v1814 = vpack.c.b16 %v1768, %v1766
      %v1815 = vpack.c.b16 %v1771, %v1769
      %v1816 = vpack.c.b16 %v1772, %v1770
      %v1817 = vpack.c.b16 %v1775, %v1773
      %v1818 = vpack.c.b16 %v1776, %v1774
      %v1819 = vpack.c.b16 %v1779, %v1777
      %v1820 = vpack.c.b16 %v1780, %v1778
      %v1821 = vpack.c.b16 %v1783, %v1781
      %v1822 = vpack.c.b16 %v1784, %v1782
      %v1823 = vpack.c.b16 %v1787, %v1785
      %v1824 = vpack.c.b16 %v1788, %v1786
      %v1825 = vpack.c.b16 %v1791, %v1789
      %v1826 = vpack.c.b16 %v1792, %v1790
      %v1827 = vpack.c.b16 %v1795, %v1793
      %v1828 = vpack.c.b16 %v1796, %v1794
      %1861 = vmatprep.subr.bf16.mxu0 %v1798
      %1862 = vmatpush1.bf16.msra.mxu0 %v1797
      %1863 = vmatprep.subr.bf16.mxu0 %v1800
      %1864 = vmatpush1.bf16.msra.mxu0 %v1799
      %1865 = vmatprep.subr.bf16.mxu0 %v1802
      %1866 = vmatpush1.bf16.msra.mxu0 %v1801
      %1867 = vmatprep.subr.bf16.mxu0 %v1804
      %1868 = vmatpush1.bf16.msra.mxu0 %v1803
      %1869 = vmatprep.subr.bf16.mxu0 %v1806
      %1870 = vmatpush1.bf16.msra.mxu0 %v1805
      %1871 = vmatprep.subr.bf16.mxu0 %v1808
      %1872 = vmatpush1.bf16.msra.mxu0 %v1807
      %1873 = vmatprep.subr.bf16.mxu0 %v1810
      %1874 = vmatpush1.bf16.msra.mxu0 %v1809
      %1875 = vmatprep.subr.bf16.mxu0 %v1812
      %1876 = vmatpush1.bf16.msra.mxu0 %v1811
      %1877 = vmatprep.subr.bf16.mxu0 %v1814
      %1878 = vmatpush1.bf16.msra.mxu0 %v1813
      %1879 = vmatprep.subr.bf16.mxu0 %v1816
      %1880 = vmatpush1.bf16.msra.mxu0 %v1815
      %1881 = vmatprep.subr.bf16.mxu0 %v1818
      %1882 = vmatpush1.bf16.msra.mxu0 %v1817
      %1883 = vmatprep.subr.bf16.mxu0 %v1820
      %1884 = vmatpush1.bf16.msra.mxu0 %v1819
      %1885 = vmatprep.subr.bf16.mxu0 %v1822
      %1886 = vmatpush1.bf16.msra.mxu0 %v1821
      %1887 = vmatprep.subr.bf16.mxu0 %v1824
      %1888 = vmatpush1.bf16.msra.mxu0 %v1823
      %1889 = vmatprep.subr.bf16.mxu0 %v1826
      %1890 = vmatpush1.bf16.msra.mxu0 %v1825
      %1891 = vmatprep.subr.bf16.mxu0 %v1828
      %1892 = vmatpush1.bf16.msra.mxu0 %v1827
      %1893 = vmatprep.mubr.bf16.mxu0 %v1196
      %1894 = vmatmul.mubr.bf16.gmra.mrb[0].mxu0 %v1195
      %v1895 = vpop.f32.mrb[0].mxu0
      %v1896 = vadd.f32 0.0, %v1895
      %v1897 = vpop.f32.mrb[0].mxu0
      %v1898 = vadd.f32 0.0, %v1897
      %v1899 = vpop.f32.mrb[0].mxu0
      %v1900 = vadd.f32 0.0, %v1899
      %v1901 = vpop.f32.mrb[0].mxu0
      %v1902 = vadd.f32 0.0, %v1901
      %1903 = vdwg.mxu0
      %v1904 = vadd.f32 %v1660, %v1896
      %v1905 = vadd.f32 %v1662, %v1898
      %v1906 = vadd.f32 %v1664, %v1900
      %v1907 = vadd.f32 %v1666, %v1902
      %v1909 = vlaneseq
      %v1910 = vshrl.u32 %v1909, 7
      %v1911 = vsub.s32 0, %v1910
      %v1912 = vrot.slane %v1166, %v1911
      %v1913 = vlaneseq
      %v1914 = vshrl.u32 %v1913, 7
      %v1915 = vsub.s32 1, %v1914
      %v1916 = vrot.slane %v1166, %v1915
      %v1919 = vadd.f32 %v1904, %v1912
      %v1920 = vadd.f32 %v1905, %v1916
      %v1921 = vadd.f32 %v1906, %v1912
      %v1922 = vadd.f32 %v1907, %v1916
      %v1923 = vunpack.c.l.bf16 %v330
      %v1924 = vunpack.c.h.bf16 %v330
      %v1925 = vunpack.c.l.bf16 %v331
      %v1926 = vunpack.c.h.bf16 %v331
      %v1927 = vadd.f32 %v1923, %v1919
      %v1928 = vadd.f32 %v1924, %v1920
      %v1929 = vadd.f32 %v1925, %v1921
      %v1930 = vadd.f32 %v1926, %v1922
      %v1931 = vpack.c.bf16 %v1929, %v1927
      %v1932 = vpack.c.bf16 %v1930, %v1928
      %v1935 = vunpack.c.l.b16 %v1931
      %v1936 = vunpack.c.l.b16 %v1932
      %v1937 = vunpack.c.h.b16 %v1931
      %v1938 = vunpack.c.h.b16 %v1932
      %v1939 = vpack.c.b16 %v1936, %v1935
      %v1940 = vpack.c.b16 %v1938, %v1937
      %1943 = vst [vmem:[%s317] sm:$0xff] %v1939
      %1944 = vst [vmem:[%s317 + $0x8] sm:$0xff] %v1940
      %s1945 = smul.u32 2, %s20
      %p1946 = scmp.lt.s32.totalorder %s1945, 1
      %s1947 = scalar_select %p1946, %s1945, 1
      %s1948 = smul.addr %s1947, 2
      %s1949 = smul.addr %s1948, 4
      %s1950 = scalar_lea.vmem %s5, %s1949
      // Predicated region
      $region45: #{conv_residual_blocks_forward.3} parent=39 // pred_check
        %p1951 = pneg %p176
      $region46: #{conv_residual_blocks_forward.3} parent=39 // pred_check_branch
        %1953 = sbr.rel (%p1951) target = $region48
      $region47: #{conv_residual_blocks_forward.3} parent=39 // pred_region
        %s1954 = smul.u32 2, %s20
      $region48: #{conv_residual_blocks_forward.3} parent=39 // pred_fallthru
        _
      // Predicated region
      $region49: #{conv_residual_blocks_forward.3} parent=39 // pred_check
        %p1955 = pneg %p176
      $region50: #{conv_residual_blocks_forward.3} parent=39 // pred_check_branch
        %1957 = sbr.rel (%p1955) target = $region52
      $region51: #{conv_residual_blocks_forward.3} parent=39 // pred_region
        %s1958 = smul.u32 2, %s20
        %p1959 = scmp.lt.s32.totalorder %s1958, 1
        %s1960 = scalar_select %p1959, %s1958, 1
        %s1961 = smul.addr %s1960, 2
        %s1962 = smul.addr %s1961, 4
        %s1963 = scalar_lea.vmem %s5, %s1962
      $region52: #{conv_residual_blocks_forward.3} parent=39 // pred_fallthru
        _
    $region40: #{conv_residual_blocks_forward.3} parent=5 // pred_fallthru
      _
    %p1964 = scmp.le.s32.totalorder 2, %s11
    // Predicated region
    $region53: #{conv_residual_blocks_forward.3} parent=5 // pred_check
      %p1965 = pneg %p1964
    $region54: #{conv_residual_blocks_forward.3} parent=5 // pred_check_branch
      %1967 = sbr.rel (%p1965) target = $region56
    $region55: #{conv_residual_blocks_forward.3} parent=5 // pred_region
      %s1968 = ssub.s32 %s11, 2
    $region56: #{conv_residual_blocks_forward.3} parent=5 // pred_fallthru
      _
  $region6: #{conv_residual_blocks_forward.3} parent=0 // loop_footer
    %s15 = sadd.s32 1, %s11
  $region7: #{conv_residual_blocks_forward.3} parent=0 // loop_footer_branch
    %10 = sbr.rel target = $region3
  $region8: #{conv_residual_blocks_forward.3} parent=0 // loop_exit
    _

</llo_original>
